<compile_context>
chip_gen: v6e
topology: v6e:2x2x1
jax: 0.10.0
libtpu: 0.0.40
codegen_flags: <defaults>
</compile_context>

<pallas_src>
import functools

import jax
import jax.numpy as jnp
from jax.experimental import pallas as pl
from jax.experimental.pallas import tpu as pltpu

# ----------------------------- config (small, synthetic) -----------------------------
POOLING_SIZE = 7          # cfg.POOLING_SIZE
FEAT_STRIDE = 16          # backbone stride (spatial_scale = 1/16)
SPATIAL_SCALE = 1.0 / 16.0
N_CLASSES = 3             # ['__background__', 'targetobject', 'hand']
DOUT_BASE = 32            # dout_base_model (small stand-in for 512)
C_PAD = 128               # backbone channels padded to lane width (dense stores)
RPN_DIM = 32              # RPN_Conv output channels (small)
HEAD_DIM = 64             # _head_to_tail hidden dim (small stand-in for 4096)
HEAD_PAD = 128            # padded head dim
EXT_HID = 32              # extension_layer hidden dim
ANCHOR_SCALES = (2.0, 4.0, 8.0)
NUM_ANCHORS = len(ANCHOR_SCALES)
NUM_ROIS = 8              # proposals kept per image (post top-k)
RPN_HEAD_N = 128          # fused RPN head width: [bg A | fg A | bbox 4A | fg_prob A | 0..]
PF_HEAD_N = 128           # fused pooled-feat head width: [cls | bbox | d1 | l1 | 0..]
OUT_N = 128               # fused output width: [cls_prob | bbox | contact | dxdy | lr | 0..]
SEC_N = 16                # fused block-diag second stage: [contact 5 | dxdy 3 | lr 1 | pad]

_VMEM_SPEC = pl.BlockSpec(memory_space=pltpu.MemorySpace.VMEM)


# ----------------------------- tiled fused linear -----------------------------
def _matmul_kernel(x_ref, w_ref, b_ref, o_ref, *, act, nk):
    if nk == 1:
        # Single K tile: no accumulator scratch, no init/finalize grid steps.
        y = jnp.dot(x_ref[...], w_ref[...], preferred_element_type=jnp.float32) + b_ref[...]
        if act == "relu":
            y = jnp.maximum(y, 0.0)
        o_ref[...] = y.astype(o_ref.dtype)
    else:
        # K streamed: accumulate directly into the resident f32 output block.
        @pl.when(pl.program_id(1) == 0)
        def _():
            o_ref[...] = jnp.zeros_like(o_ref)

        o_ref[...] += jnp.dot(x_ref[...], w_ref[...], preferred_element_type=jnp.float32)

        @pl.when(pl.program_id(1) == nk - 1)
        def _():
            y = o_ref[...] + b_ref[...]
            if act == "relu":
                y = jnp.maximum(y, 0.0)
            o_ref[...] = y


def pallas_matmul(x, w, b, act="none", out_dtype=jnp.float32):
    """y = act(x @ w + b).  LHS pre-cast to bf16 (halved DMA), f32 MXU accumulation.
    M tiled ("parallel", >= 2 tiles when possible so both v7x TCs stay busy); K streamed
    ("arbitrary") only when a single K tile would not fit the VMEM budget."""
    x = x.astype(jnp.bfloat16)
    m, k = x.shape
    n = w.shape[1]
    assert k % 128 == 0 and n % 128 == 0, (k, n)
    m_pad = (m + 7) // 8 * 8
    if m_pad >= 16:
        tm = next(t for t in (512, 256, 128, 64, 32, 16, 8)
                  if m_pad % t == 0 and m_pad // t >= 2)
    else:
        tm = m_pad
    if m_pad != m:
        x = jnp.pad(x, ((0, m_pad - m), (0, 0)))

    # Largest K tile (multiple of 128 dividing K) whose double-buffered tiles fit VMEM.
    budget = 20 * 1024 * 1024
    bx, bw = x.dtype.itemsize, w.dtype.itemsize
    tk, t = 128, k
    while t >= 128:
        if k % t == 0 and 2 * (tm * t * bx + t * n * bw) <= budget:
            tk = t
            break
        t -= 128
    nk = k // tk
    acc_dtype = out_dtype if nk == 1 else jnp.float32   # nk > 1 accumulates in o_ref

    out = pl.pallas_call(
        functools.partial(_matmul_kernel, act=act, nk=nk),
        out_shape=jax.ShapeDtypeStruct((m_pad, n), acc_dtype),
        grid_spec=pltpu.PrefetchScalarGridSpec(
            num_scalar_prefetch=0,
            grid=(m_pad // tm, nk),
            in_specs=[pl.BlockSpec((tm, tk), lambda i, kk: (i, kk)),
                      pl.BlockSpec((tk, n), lambda i, kk: (kk, 0)),
                      pl.BlockSpec((1, n), lambda i, kk: (0, 0))],
            out_specs=pl.BlockSpec((tm, n), lambda i, kk: (i, 0))),
        compiler_params=pltpu.CompilerParams(
            dimension_semantics=("parallel", "arbitrary"),
            vmem_limit_bytes=32 * 1024 * 1024),
    )(x, w, b)
    out = out[:m]
    return out if acc_dtype == out_dtype else out.astype(out_dtype)


# ----------------------------- fused RPN kernel -----------------------------
def _rpn_kernel(feat_ref, wconv_ref, bconv_ref, whead_ref, bhead_ref, o_ref, pad_ref,
                *, hf, wf, a):
    """Fused RPN for one image.
    The 3x3 conv is done as 9 shifted dots on a W*C-flattened, halo-padded bf16 VMEM
    scratch: every shifted tap is a CONTIGUOUS row slice (cheap sublane offset), so no
    strided slice+reshape feature-map copies.  ReLU, fused 1x1 cls/bbox heads, in-kernel
    2-way objectness softmax, ONE dense 128-lane store.
    Output columns: [bg A | fg A | bbox 4A (a-major, 4-minor) | fg_prob A | 0...]."""
    wp = wf + 2
    nrows = hf * wp
    rpn_dim = wconv_ref.shape[2]

    # Build the flattened, halo-padded feature map once in VMEM (zero borders).
    pad_ref[...] = jnp.zeros_like(pad_ref)
    feat = feat_ref[0]                                        # (hf*wf, C) bf16
    for y in range(hf):
        dst = (y + 1) * wp + 1
        pad_ref[dst:dst + wf, :] = feat[y * wf:(y + 1) * wf, :]

    acc = jnp.zeros((nrows, rpn_dim), jnp.float32)
    for dy in range(3):
        for dx in range(3):
            off = dy * wp + dx
            patch = pad_ref[off:off + nrows, :]               # contiguous rows
            acc = acc + jnp.dot(patch, wconv_ref[dy * 3 + dx],
                                preferred_element_type=jnp.float32)
    rpn_feat = jnp.maximum(acc + bconv_ref[...], 0.0).astype(jnp.bfloat16)
    heads = jnp.dot(rpn_feat, whead_ref[...],
                    preferred_element_type=jnp.float32) + bhead_ref[...]
    bg = heads[:, 0:a]
    fg = heads[:, a:2 * a]
    mx = jnp.maximum(bg, fg)
    eb = jnp.exp(bg - mx)
    ef = jnp.exp(fg - mx)
    fg_prob = ef / (eb + ef)
    out = jnp.concatenate(
        [heads[:, :6 * a], fg_prob,
         jnp.zeros((nrows, o_ref.shape[-1] - 7 * a), jnp.float32)], axis=-1)
    o_ref[...] = out[None]                                    # one dense store


def pallas_rpn(base_feat, w_conv, b_conv, w_heads, b_heads):
    """base_feat: (b, hf, wf, C) bf16.  Returns (b, hf*(wf+2), RPN_HEAD_N) f32 — the
    caller slices the valid wf columns (no HBM jnp.pad round trip of base_feat)."""
    b, hf, wf, c = base_feat.shape
    wp = wf + 2
    nrows = hf * wp
    feat_flat = base_feat.reshape(b, hf * wf, c)
    return pl.pallas_call(
        functools.partial(_rpn_kernel, hf=hf, wf=wf, a=NUM_ANCHORS),
        out_shape=jax.ShapeDtypeStruct((b, nrows, RPN_HEAD_N), jnp.float32),
        grid_spec=pltpu.PrefetchScalarGridSpec(
            num_scalar_prefetch=0,
            grid=(b,),
            in_specs=[pl.BlockSpec((1, hf * wf, c), lambda i: (i, 0, 0)),
                      pl.BlockSpec(w_conv.shape, lambda i: (0, 0, 0)),
                      pl.BlockSpec(b_conv.shape, lambda i: (0, 0)),
                      pl.BlockSpec(w_heads.shape, lambda i: (0, 0)),
                      pl.BlockSpec(b_heads.shape, lambda i: (0, 0))],
            out_specs=pl.BlockSpec((1, nrows, RPN_HEAD_N), lambda i: (i, 0, 0)),
            scratch_shapes=[pltpu.VMEM(((hf + 3) * wp, c), jnp.bfloat16)]),
        compiler_params=pltpu.CompilerParams(dimension_semantics=("parallel",)),
    )(feat_flat, w_conv, b_conv, w_heads, b_heads)


# ----------------------------- ROI max-pool kernel -----------------------------
def _roi_pool_kernel(bidx_ref, hs_ref, he_ref, ws_ref, we_ref, feat_ref, o_ref, *, pool):
    """Per-ROI ROIPool.  The batch index (scalar prefetch) drives the base_feat
    index_map (no per-ROI feature-map replication in HBM).  Two-stage masked max
    (W then H); the pool*pool bin maxima are assembled in registers and written with a
    single dense (pool*pool, C) store."""
    del bidx_ref                                              # consumed by the index_map
    r = pl.program_id(0)
    feat = feat_ref[0].astype(jnp.float32)                    # bf16 -> f32 for VPU (v5e-safe)
    hf, wf, _ = feat.shape
    w_iota = jax.lax.broadcasted_iota(jnp.int32, (1, wf, 1), 1)
    h_iota = jax.lax.broadcasted_iota(jnp.int32, (hf, 1), 0)
    col_max = []
    for pw in range(pool):                                    # stage 1: W reduction
        mw = (w_iota >= ws_ref[r * pool + pw]) & (w_iota < we_ref[r * pool + pw])
        col_max.append(jnp.max(jnp.where(mw, feat, -jnp.inf), axis=1))      # (hf, C)
    rows = []
    for ph in range(pool):                                    # stage 2: H reduction
        mh = (h_iota >= hs_ref[r * pool + ph]) & (h_iota < he_ref[r * pool + ph])
        for pw in range(pool):
            v = jnp.max(jnp.where(mh, col_max[pw], -jnp.inf), axis=0, keepdims=True)
            rows.append(jnp.where(v > -jnp.inf, v, 0.0))      # empty bin -> 0
    o_ref[...] = jnp.concatenate(rows, axis=0)[None].astype(o_ref.dtype)


def pallas_roi_pool(base_feat_nhwc, rois_flat, pooled_size, spatial_scale):
    """torchvision-style ROIPool (round coords, +1 widths, floor/ceil bins, empty -> 0).
    Returns (R, P*P, C) bf16 in NHWC-flatten (position-major) order."""
    b, h, w, c = base_feat_nhwc.shape
    r = rois_flat.shape[0]
    batch_idx = rois_flat[:, 0].astype(jnp.int32)

    def to_int(v):  # round half-up (matches C++ round() for positive coords)
        return jnp.floor(v * spatial_scale + 0.5).astype(jnp.int32)

    rs_w, rs_h = to_int(rois_flat[:, 1]), to_int(rois_flat[:, 2])
    re_w, re_h = to_int(rois_flat[:, 3]), to_int(rois_flat[:, 4])
    roi_w = jnp.maximum(re_w - rs_w + 1, 1).astype(jnp.float32)
    roi_h = jnp.maximum(re_h - rs_h + 1, 1).astype(jnp.float32)
    bin_w = roi_w / pooled_size
    bin_h = roi_h / pooled_size
    p = jnp.arange(pooled_size, dtype=jnp.float32)
    hs = jnp.clip(jnp.floor(p[None] * bin_h[:, None]).astype(jnp.int32) + rs_h[:, None], 0, h)
    he = jnp.clip(jnp.ceil((p[None] + 1.0) * bin_h[:, None]).astype(jnp.int32) + rs_h[:, None], 0, h)
    ws = jnp.clip(jnp.floor(p[None] * bin_w[:, None]).astype(jnp.int32) + rs_w[:, None], 0, w)
    we = jnp.clip(jnp.ceil((p[None] + 1.0) * bin_w[:, None]).astype(jnp.int32) + rs_w[:, None], 0, w)
    # 1-D SMEM tables: a 2-D (R, P) int32 table would pad to (ceil(R/8)*8, 128) words.
    hs, he, ws, we = (t.reshape(-1) for t in (hs, he, ws, we))

    return pl.pallas_call(
        functools.partial(_roi_pool_kernel, pool=pooled_size),
        out_shape=jax.ShapeDtypeStruct((r, pooled_size * pooled_size, c), jnp.bfloat16),
        grid_spec=pltpu.PrefetchScalarGridSpec(
            num_scalar_prefetch=5,
            grid=(r,),
            in_specs=[pl.BlockSpec((1, h, w, c), lambda i, bi, *_: (bi[i], 0, 0, 0))],
            out_specs=pl.BlockSpec((1, pooled_size * pooled_size, c),
                                   lambda i, *_: (i, 0, 0))),
        compiler_params=pltpu.CompilerParams(dimension_semantics=("parallel",)),
    )(batch_idx, hs, he, ws, we, base_feat_nhwc)


# ----------------------------- fused output heads kernel -----------------------------
def _final_heads_kernel(pf_ref, pfp_ref, wpf_ref, bpf_ref, wc1_ref, bc1_ref,
                        w2_ref, b2_ref, o_ref, *, ncls, ext_hid):
    """cls softmax | bbox_pred | contact MLP | dxdy MLP | lr MLP in one launch.
    The three tiny second-stage heads are fused into ONE block-diagonal bf16 matmul and
    the whole 128-lane output row is built with one concatenate and stored once."""
    pf = pf_ref[...]                                          # (R, HEAD_PAD) bf16
    pfp = pfp_ref[...]
    main = jnp.dot(pf, wpf_ref[...],
                   preferred_element_type=jnp.float32) + bpf_ref[...]
    cls_s = main[:, 0:ncls]
    bbox = main[:, ncls:5 * ncls]
    hd = jnp.maximum(main[:, 5 * ncls:5 * ncls + ext_hid], 0.0)
    hl = jnp.maximum(main[:, 5 * ncls + ext_hid:5 * ncls + 2 * ext_hid], 0.0)
    cls_s = cls_s - jnp.max(cls_s, axis=-1, keepdims=True)
    e = jnp.exp(cls_s)
    cls_p = e / jnp.sum(e, axis=-1, keepdims=True)
    cat = jnp.concatenate([pf, pfp], axis=-1)                 # (R, 2*HEAD_PAD) bf16
    hc = jnp.maximum(jnp.dot(cat, wc1_ref[...],
                             preferred_element_type=jnp.float32) + bc1_ref[...], 0.0)
    sec_in = jnp.concatenate([hc, hd, hl], axis=-1).astype(jnp.bfloat16)
    sec = jnp.dot(sec_in, w2_ref[...],
                  preferred_element_type=jnp.float32) + b2_ref[...]
    lr = 1.0 / (1.0 + jnp.exp(-sec[:, 8:9]))
    nrows = pf.shape[0]
    out = jnp.concatenate(
        [cls_p, bbox, sec[:, 0:8], lr,
         jnp.zeros((nrows, o_ref.shape[-1] - (5 * ncls + 9)), jnp.float32)], axis=-1)
    o_ref[...] = out                                          # one dense store


def pallas_final_heads(pf, pfp, params):
    n_rois = pf.shape[0]
    return pl.pallas_call(
        functools.partial(_final_heads_kernel, ncls=N_CLASSES, ext_hid=EXT_HID),
        out_shape=jax.ShapeDtypeStruct((n_rois, OUT_N), jnp.float32),
        in_specs=[_VMEM_SPEC] * 8,
        out_specs=_VMEM_SPEC,
    )(pf, pfp, params["w_pf_heads"], params["b_pf_heads"],
      params["w_c1"], params["b_c1"], params["w_sec"], params["b_sec"])


# ----------------------------- glue (anchors, decode, enlarge) -----------------------------
def make_anchors(hf, wf, stride, scales):
    sizes = jnp.asarray(scales, jnp.float32) * stride
    ctr = (stride - 1.0) / 2.0
    ctr_x = jnp.arange(wf, dtype=jnp.float32) * stride + ctr
    ctr_y = jnp.arange(hf, dtype=jnp.float32) * stride + ctr
    cy, cx = jnp.meshgrid(ctr_y, ctr_x, indexing="ij")
    half = (sizes - 1.0) / 2.0
    x1 = cx[:, :, None] - half
    y1 = cy[:, :, None] - half
    x2 = cx[:, :, None] + half
    y2 = cy[:, :, None] + half
    return jnp.stack([x1, y1, x2, y2], axis=-1).reshape(-1, 4)      # (hf*wf*A, 4)


def decode_boxes(anchors, deltas):
    wa = anchors[..., 2] - anchors[..., 0] + 1.0
    ha = anchors[..., 3] - anchors[..., 1] + 1.0
    cxa = anchors[..., 0] + 0.5 * wa
    cya = anchors[..., 1] + 0.5 * ha
    cx = deltas[..., 0] * wa + cxa
    cy = deltas[..., 1] * ha + cya
    w = jnp.exp(deltas[..., 2]) * wa
    h = jnp.exp(deltas[..., 3]) * ha
    return jnp.stack([cx - 0.5 * w, cy - 0.5 * h, cx + 0.5 * w, cy + 0.5 * h], axis=-1)


def enlarge_bbox(im_info, rois, ratio=0.5):
    w = rois[:, :, 3] - rois[:, :, 1]
    h = rois[:, :, 4] - rois[:, :, 2]
    x1 = jnp.maximum(rois[:, :, 1] - ratio * w, 0.0)
    y1 = jnp.maximum(rois[:, :, 2] - ratio * h, 0.0)
    # NOTE: the original clamps col-3 with im_info[:, 0] and col-4 with im_info[:, 1];
    # we reproduce that behavior (harmless for square images) to keep module semantics.
    x2 = jnp.minimum(rois[:, :, 3] + ratio * w, im_info[:, 0][:, None])
    y2 = jnp.minimum(rois[:, :, 4] + ratio * h, im_info[:, 1][:, None])
    return jnp.stack([rois[:, :, 0], x1, y1, x2, y2], axis=-1)


# ----------------------------- parameters (deterministic, synthetic) -----------------------------
def init_params(key):
    ks = jax.random.split(key, 13)

    def nrm(k, shape, std):
        return jax.random.normal(k, shape, jnp.float32) * std

    def pad_cols(w, n):
        return jnp.pad(w, ((0, 0), (0, n - w.shape[1])))

    def pad_rows(w, n):
        return jnp.pad(w, ((0, n - w.shape[0]), (0, 0)))

    in_base = 3 * FEAT_STRIDE * FEAT_STRIDE

    # backbone patch-conv (output channels zero-padded to C_PAD lanes)
    w_base = pad_cols(nrm(ks[0], (in_base, DOUT_BASE), 0.01), C_PAD).astype(jnp.bfloat16)
    b_base = jnp.zeros((1, C_PAD), jnp.float32)

    # RPN 3x3 conv (input channels zero-padded to C_PAD)
    w_rpn_conv = jnp.pad(nrm(ks[1], (9, DOUT_BASE, RPN_DIM), 0.01),
                         ((0, 0), (0, C_PAD - DOUT_BASE), (0, 0))).astype(jnp.bfloat16)
    b_rpn_conv = jnp.zeros((1, RPN_DIM), jnp.float32)

    # fused RPN 1x1 heads: [bg A | fg A | bbox 4A | zero pad]
    w_rpn_cls = nrm(ks[2], (RPN_DIM, 2 * NUM_ANCHORS), 0.01)
    w_rpn_bbox = nrm(ks[3], (RPN_DIM, 4 * NUM_ANCHORS), 0.01)
    w_rpn_heads = pad_cols(jnp.concatenate([w_rpn_cls, w_rpn_bbox], axis=1),
                           RPN_HEAD_N).astype(jnp.bfloat16)
    b_rpn_heads = jnp.zeros((1, RPN_HEAD_N), jnp.float32)

    # _head_to_tail FC — stored in NHWC-flatten (position-major, channel-minor) layout so
    # the pooled features need no NCHW transpose; padded channel rows are zero.
    head_in = POOLING_SIZE * POOLING_SIZE * C_PAD
    w_head_real = nrm(ks[4], (POOLING_SIZE * POOLING_SIZE, DOUT_BASE, HEAD_DIM), 0.01)
    w_head = jnp.zeros((POOLING_SIZE * POOLING_SIZE, C_PAD, HEAD_DIM), jnp.float32)
    w_head = w_head.at[:, :DOUT_BASE, :].set(w_head_real).reshape(head_in, HEAD_DIM)
    w_head = pad_cols(w_head, HEAD_PAD).astype(jnp.bfloat16)
    b_head = jnp.zeros((1, HEAD_PAD), jnp.float32)

    # fused pooled-feat heads: [cls 3 | bbox 12 | dxdy-hidden 32 | lr-hidden 32 | zero pad]
    w_cls = nrm(ks[5], (HEAD_DIM, N_CLASSES), 0.01)
    w_bbox = nrm(ks[6], (HEAD_DIM, 4 * N_CLASSES), 0.001)
    w_d1 = nrm(ks[9], (HEAD_DIM, EXT_HID), 0.01)
    w_l1 = nrm(ks[11], (HEAD_DIM, EXT_HID), 0.01)
    w_pf = jnp.concatenate([w_cls, w_bbox, w_d1, w_l1], axis=1)
    w_pf_heads = pad_cols(pad_rows(w_pf, HEAD_PAD), PF_HEAD_N).astype(jnp.bfloat16)
    b_pf_heads = jnp.zeros((1, PF_HEAD_N), jnp.float32)

    # extension_layer contact branch (input = concat(pooled, pooled_padded), each HEAD_PAD wide)
    w_c1_real = nrm(ks[7], (2 * HEAD_DIM, EXT_HID), 0.01)
    w_c1 = jnp.concatenate([pad_rows(w_c1_real[:HEAD_DIM], HEAD_PAD),
                            pad_rows(w_c1_real[HEAD_DIM:], HEAD_PAD)], axis=0).astype(jnp.bfloat16)
    b_c1 = jnp.zeros((1, EXT_HID), jnp.float32)

    # fused block-diagonal second stage: [contact 5 | dxdy 3 | lr 1 | pad] (bf16)
    w_c2 = nrm(ks[8], (EXT_HID, 5), 0.01)
    w_d2 = nrm(ks[10], (EXT_HID, 3), 0.01)
    w_l2 = nrm(ks[12], (EXT_HID, 1), 0.01)
    w_sec = jnp.zeros((3 * EXT_HID, SEC_N), jnp.float32)
    w_sec = w_sec.at[0 * EXT_HID:1 * EXT_HID, 0:5].set(w_c2)
    w_sec = w_sec.at[1 * EXT_HID:2 * EXT_HID, 5:8].set(w_d2)
    w_sec = w_sec.at[2 * EXT_HID:3 * EXT_HID, 8:9].set(w_l2)
    w_sec = w_sec.astype(jnp.bfloat16)
    b_sec = jnp.zeros((1, SEC_N), jnp.float32)

    return dict(
        w_base=w_base, b_base=b_base,
        w_rpn_conv=w_rpn_conv, b_rpn_conv=b_rpn_conv,
        w_rpn_heads=w_rpn_heads, b_rpn_heads=b_rpn_heads,
        w_head=w_head, b_head=b_head,
        w_pf_heads=w_pf_heads, b_pf_heads=b_pf_heads,
        w_c1=w_c1, b_c1=b_c1, w_sec=w_sec, b_sec=b_sec,
    )


# ----------------------------- forward (eval path) -----------------------------
def faster_rcnn_forward(params, im_data, im_info, gt_boxes, num_boxes, box_info):
    del gt_boxes, num_boxes  # used only by training-time RPN / proposal-target layers
    # TODO(synk): box_info is only consumed by the extension layer's training losses.
    del box_info
    b, cin, him, wim = im_data.shape
    hf, wf = him // FEAT_STRIDE, wim // FEAT_STRIDE
    hw = hf * wf
    A = NUM_ANCHORS

    # ---- RCNN_base: stride-16 patch conv + ReLU (bf16 space-to-depth, bf16 output) ----
    x = im_data.astype(jnp.bfloat16).reshape(b, cin, hf, FEAT_STRIDE, wf, FEAT_STRIDE)
    x = x.transpose(0, 2, 4, 1, 3, 5).reshape(b * hw, cin * FEAT_STRIDE * FEAT_STRIDE)
    base_flat = pallas_matmul(x, params["w_base"], params["b_base"], act="relu",
                              out_dtype=jnp.bfloat16)
    base_feat = base_flat.reshape(b, hf, wf, C_PAD)                 # NHWC, lane-padded, bf16

    # ---- RCNN_rpn: fused 3x3 conv + ReLU + 1x1 heads + objectness softmax (1 launch) ----
    rpn_raw = pallas_rpn(base_feat, params["w_rpn_conv"], params["b_rpn_conv"],
                         params["w_rpn_heads"], params["b_rpn_heads"])
    rpn_out = rpn_raw.reshape(b, hf, wf + 2, RPN_HEAD_N)[:, :, :wf, :].reshape(b, hw, RPN_HEAD_N)
    fg_prob = rpn_out[:, :, 6 * A:7 * A].reshape(b, hw * A)         # (b, H*W*A)
    deltas = rpn_out[:, :, 2 * A:6 * A].reshape(b, hw * A, 4)

    anchors = make_anchors(hf, wf, FEAT_STRIDE, ANCHOR_SCALES)
    proposals = decode_boxes(anchors[None], deltas)
    im_h = im_info[:, 0][:, None]
    im_w = im_info[:, 1][:, None]
    proposals = jnp.stack(
        [jnp.clip(proposals[..., 0], 0.0, im_w - 1.0),
         jnp.clip(proposals[..., 1], 0.0, im_h - 1.0),
         jnp.clip(proposals[..., 2], 0.0, im_w - 1.0),
         jnp.clip(proposals[..., 3], 0.0, im_h - 1.0)], axis=-1)

    # TODO(synk): NMS in the proposal layer has no clean Pallas equivalent here;
    # proposals are selected by top-k objectness instead.
    _, top_idx = jax.lax.top_k(fg_prob, NUM_ROIS)
    top_boxes = jnp.take_along_axis(proposals, top_idx[..., None], axis=1)
    batch_col = jnp.broadcast_to(
        jnp.arange(b, dtype=jnp.float32)[:, None, None], (b, NUM_ROIS, 1))
    rois = jnp.concatenate([batch_col, top_boxes], axis=-1)         # (b, N, 5)

    rpn_loss_cls = jnp.zeros((), jnp.float32)
    rpn_loss_bbox = jnp.zeros((), jnp.float32)

    # TODO(synk): training-only branches (_ProposalTargetLayer, cross-entropy,
    # smooth-L1 loss, per-class bbox gather) are not implemented; eval path only.
    rois_padded = enlarge_bbox(im_info, rois, 0.3)

    # cfg.POOLING_MODE == 'pool' — normal/enlarged ROIs of the SAME image are grouped so
    # the ROI-pool feature-map block index changes only once per image.
    rois_all = jnp.concatenate([rois, rois_padded], axis=1).reshape(-1, 5)   # (2bN, 5)
    pooled_all = pallas_roi_pool(base_feat, rois_all, POOLING_SIZE, SPATIAL_SCALE)

    r = b * NUM_ROIS
    # _head_to_tail for both ROI sets in one tiled matmul (bf16 in, bf16 out).
    head_in = pooled_all.reshape(2 * r, POOLING_SIZE * POOLING_SIZE * C_PAD)
    head_feat = pallas_matmul(head_in, params["w_head"], params["b_head"], act="relu",
                              out_dtype=jnp.bfloat16)
    head_feat = head_feat.reshape(b, 2, NUM_ROIS, HEAD_PAD)
    pooled_feat = head_feat[:, 0].reshape(r, HEAD_PAD)
    pooled_feat_padded = head_feat[:, 1].reshape(r, HEAD_PAD)

    # ---- fused cls / bbox / extension-layer heads (1 launch, 1 dense store) ----
    heads_out = pallas_final_heads(pooled_feat, pooled_feat_padded, params)
    ncls = N_CLASSES
    cls_prob = heads_out[:, 0:ncls].reshape(b, NUM_ROIS, ncls)
    bbox_pred = heads_out[:, ncls:5 * ncls].reshape(b, NUM_ROIS, 4 * ncls)
    contact = heads_out[:, 5 * ncls:5 * ncls + 5]
    dydx = heads_out[:, 5 * ncls + 5:5 * ncls + 8]
    lr = heads_out[:, 5 * ncls + 8:5 * ncls + 9]
    loss_list = [contact, dydx, lr]

    return (rois, cls_prob, bbox_pred, rpn_loss_cls, rpn_loss_bbox,
            jnp.zeros((), jnp.float32), jnp.zeros((), jnp.float32), None, loss_list)


# ----------------------------- demo -----------------------------
if __name__ == "__main__":
    key = jax.random.PRNGKey(0)
    k_im, k_par = jax.random.split(key)
    B = 2
    im_data = jax.random.normal(k_im, (B, 3, 64, 64), jnp.float32)      # NCHW
    im_info = jnp.tile(jnp.array([[64.0, 64.0, 1.0]], jnp.float32), (B, 1))
    gt_boxes = jnp.zeros((B, 5, 5), jnp.float32)
    num_boxes = jnp.zeros((B,), jnp.int32)
    box_info = jnp.zeros((B, 5, 5), jnp.float32)

    params = init_params(k_par)
    fwd = jax.jit(faster_rcnn_forward)
    out = fwd(params, im_data, im_info, gt_boxes, num_boxes, box_info)
    rois, cls_prob, bbox_pred = out[0], out[1], out[2]
    loss_list = out[8]
    jax.block_until_ready((rois, cls_prob, bbox_pred, loss_list))

    assert rois.shape == (B, NUM_ROIS, 5)
    assert cls_prob.shape == (B, NUM_ROIS, N_CLASSES)
    assert bbox_pred.shape == (B, NUM_ROIS, 4 * N_CLASSES)
    assert loss_list[0].shape == (B * NUM_ROIS, 5)
    assert loss_list[1].shape == (B * NUM_ROIS, 3)
    assert loss_list[2].shape == (B * NUM_ROIS, 1)
    print("KERNEL_OK")
</pallas_src>

<mosaic_0001>
module attributes {stable_mosaic.version = 11 : i64} {
  func.func @_matmul_kernel(%arg0: i32, %arg1: i32, %arg2: memref<16x768xbf16, #tpu.memory_space<vmem>>, %arg3: memref<768x128xbf16, #tpu.memory_space<vmem>>, %arg4: memref<1x128xf32, #tpu.memory_space<vmem>>, %arg5: memref<16x128xbf16, #tpu.memory_space<vmem>>) attributes {dimension_semantics = [#tpu.dimension_semantics<parallel>, #tpu.dimension_semantics<arbitrary>], iteration_bounds = array<i64: 2, 1>, scalar_prefetch = 0 : i64, scratch_operands = 0 : i64, tpu.core_type = #tpu.core_type<tc>, window_params = [{transform_indices = @transform_0, window_bounds = array<i64: 16, 768>}, {transform_indices = @transform_1, window_bounds = array<i64: 768, 128>}, {pipeline_mode = #tpu.pipeline_mode<synchronous>, transform_indices = @transform_2, window_bounds = array<i64: 1, 128>}, {transform_indices = @transform_3, window_bounds = array<i64: 16, 128>}]} {
    %c0 = arith.constant 0 : index
    %c0_0 = arith.constant 0 : index
    %0 = vector.load %arg2[%c0, %c0_0] : memref<16x768xbf16, #tpu.memory_space<vmem>>, vector<16x768xbf16>
    %c0_1 = arith.constant 0 : index
    %c0_2 = arith.constant 0 : index
    %1 = vector.load %arg3[%c0_1, %c0_2] : memref<768x128xbf16, #tpu.memory_space<vmem>>, vector<768x128xbf16>
    %cst = arith.constant dense<0.000000e+00> : vector<16x128xf32>
    %2 = tpu.matmul %0, %1, %cst {dimension_numbers = #tpu.dot_dimension_numbers<[1], [0], [0], [1], [0, 0, 1, 1], [], []>} : vector<16x768xbf16>, vector<768x128xbf16>, vector<16x128xf32> -> vector<16x128xf32>
    %c0_3 = arith.constant 0 : index
    %c0_4 = arith.constant 0 : index
    %3 = vector.load %arg4[%c0_3, %c0_4] : memref<1x128xf32, #tpu.memory_space<vmem>>, vector<1x128xf32>
    %4 = vector.broadcast %3 : vector<1x128xf32> to vector<16x128xf32>
    %5 = arith.addf %2, %4 : vector<16x128xf32>
    %cst_5 = arith.constant 0.000000e+00 : f32
    %6 = vector.broadcast %cst_5 : f32 to vector<16x128xf32>
    %7 = arith.maximumf %5, %6 : vector<16x128xf32>
    %8 = arith.truncf %7 : vector<16x128xf32> to vector<16x128xbf16>
    %c0_6 = arith.constant 0 : index
    %c0_7 = arith.constant 0 : index
    %9 = vector.load %arg5[%c0_6, %c0_7] : memref<16x128xbf16, #tpu.memory_space<vmem>>, vector<16x128xbf16>
    tpu.vector_store %arg5[%c0_6, %c0_7], %8 {strides = array<i32>} : memref<16x128xbf16, #tpu.memory_space<vmem>>, vector<16x128xbf16>,
    return
  }
  func.func @transform_0(%arg0: i32, %arg1: i32) -> (i32, i32) {
    %c0_i32 = arith.constant 0 : i32
    return %arg0, %arg1 : i32, i32
  }
  func.func @transform_1(%arg0: i32, %arg1: i32) -> (i32, i32) {
    %c0_i32 = arith.constant 0 : i32
    %c0_i32_0 = arith.constant 0 : i32
    return %arg1, %c0_i32 : i32, i32
  }
  func.func @transform_2(%arg0: i32, %arg1: i32) -> (i32, i32) {
    %c0_i32 = arith.constant 0 : i32
    %c0_i32_0 = arith.constant 0 : i32
    %c0_i32_1 = arith.constant 0 : i32
    return %c0_i32, %c0_i32_0 : i32, i32
  }
  func.func @transform_3(%arg0: i32, %arg1: i32) -> (i32, i32) {
    %c0_i32 = arith.constant 0 : i32
    %c0_i32_0 = arith.constant 0 : i32
    return %arg0, %c0_i32 : i32, i32
  }
}

module attributes {stable_mosaic.version = 11 : i64} {
  func.func @_rpn_kernel(%arg0: i32, %arg1: memref<1x16x128xbf16, #tpu.memory_space<vmem>>, %arg2: memref<9x128x32xbf16, #tpu.memory_space<vmem>>, %arg3: memref<1x32xf32, #tpu.memory_space<vmem>>, %arg4: memref<32x128xbf16, #tpu.memory_space<vmem>>, %arg5: memref<1x128xf32, #tpu.memory_space<vmem>>, %arg6: memref<1x24x128xf32, #tpu.memory_space<vmem>>, %arg7: memref<42x128xbf16, #tpu.memory_space<vmem>>) attributes {dimension_semantics = [#tpu.dimension_semantics<parallel>], iteration_bounds = array<i64: 2>, scalar_prefetch = 0 : i64, scratch_operands = 1 : i64, tpu.core_type = #tpu.core_type<tc>, window_params = [{transform_indices = @transform_0, window_bounds = array<i64: 1, 16, 128>}, {pipeline_mode = #tpu.pipeline_mode<synchronous>, transform_indices = @transform_1, window_bounds = array<i64: 9, 128, 32>}, {pipeline_mode = #tpu.pipeline_mode<synchronous>, transform_indices = @transform_2, window_bounds = array<i64: 1, 32>}, {pipeline_mode = #tpu.pipeline_mode<synchronous>, transform_indices = @transform_3, window_bounds = array<i64: 32, 128>}, {pipeline_mode = #tpu.pipeline_mode<synchronous>, transform_indices = @transform_4, window_bounds = array<i64: 1, 128>}, {transform_indices = @transform_5, window_bounds = array<i64: 1, 24, 128>}]} {
    %cst = arith.constant 0.000000e+00 : bf16
    %0 = vector.broadcast %cst : bf16 to vector<42x128xbf16>
    %c0 = arith.constant 0 : index
    %c0_0 = arith.constant 0 : index
    %1 = vector.load %arg7[%c0, %c0_0] : memref<42x128xbf16, #tpu.memory_space<vmem>>, vector<42x128xbf16>
    tpu.vector_store %arg7[%c0, %c0_0], %0 {strides = array<i32>} : memref<42x128xbf16, #tpu.memory_space<vmem>>, vector<42x128xbf16>,
    %c0_1 = arith.constant 0 : index
    %c0_2 = arith.constant 0 : index
    %c0_3 = arith.constant 0 : index
    %2 = vector.load %arg1[%c0_1, %c0_2, %c0_3] : memref<1x16x128xbf16, #tpu.memory_space<vmem>>, vector<1x16x128xbf16>
    %3 = vector.shape_cast %2 : vector<1x16x128xbf16> to vector<16x128xbf16>
    %4 = vector.extract_strided_slice %3 {offsets = [0, 0], sizes = [4, 128], strides = [1, 1]} : vector<16x128xbf16> to vector<4x128xbf16>
    %c7 = arith.constant 7 : index
    %c0_4 = arith.constant 0 : index
    %5 = vector.load %arg7[%c7, %c0_4] : memref<42x128xbf16, #tpu.memory_space<vmem>>, vector<4x128xbf16>
    tpu.vector_store %arg7[%c7, %c0_4], %4 {strides = array<i32>} : memref<42x128xbf16, #tpu.memory_space<vmem>>, vector<4x128xbf16>,
    %6 = vector.extract_strided_slice %3 {offsets = [4, 0], sizes = [4, 128], strides = [1, 1]} : vector<16x128xbf16> to vector<4x128xbf16>
    %c13 = arith.constant 13 : index
    %c0_5 = arith.constant 0 : index
    %7 = vector.load %arg7[%c13, %c0_5] : memref<42x128xbf16, #tpu.memory_space<vmem>>, vector<4x128xbf16>
    tpu.vector_store %arg7[%c13, %c0_5], %6 {strides = array<i32>} : memref<42x128xbf16, #tpu.memory_space<vmem>>, vector<4x128xbf16>,
    %8 = vector.extract_strided_slice %3 {offsets = [8, 0], sizes = [4, 128], strides = [1, 1]} : vector<16x128xbf16> to vector<4x128xbf16>
    %c19 = arith.constant 19 : index
    %c0_6 = arith.constant 0 : index
    %9 = vector.load %arg7[%c19, %c0_6] : memref<42x128xbf16, #tpu.memory_space<vmem>>, vector<4x128xbf16>
    tpu.vector_store %arg7[%c19, %c0_6], %8 {strides = array<i32>} : memref<42x128xbf16, #tpu.memory_space<vmem>>, vector<4x128xbf16>,
    %10 = vector.extract_strided_slice %3 {offsets = [12, 0], sizes = [4, 128], strides = [1, 1]} : vector<16x128xbf16> to vector<4x128xbf16>
    %c25 = arith.constant 25 : index
    %c0_7 = arith.constant 0 : index
    %11 = vector.load %arg7[%c25, %c0_7] : memref<42x128xbf16, #tpu.memory_space<vmem>>, vector<4x128xbf16>
    tpu.vector_store %arg7[%c25, %c0_7], %10 {strides = array<i32>} : memref<42x128xbf16, #tpu.memory_space<vmem>>, vector<4x128xbf16>,
    %cst_8 = arith.constant 0.000000e+00 : f32
    %12 = vector.broadcast %cst_8 : f32 to vector<24x32xf32>
    %c0_9 = arith.constant 0 : index
    %c0_10 = arith.constant 0 : index
    %13 = vector.load %arg7[%c0_9, %c0_10] : memref<42x128xbf16, #tpu.memory_space<vmem>>, vector<24x128xbf16>
    %c0_11 = arith.constant 0 : index
    %c0_12 = arith.constant 0 : index
    %c0_13 = arith.constant 0 : index
    %14 = vector.load %arg2[%c0_11, %c0_12, %c0_13] : memref<9x128x32xbf16, #tpu.memory_space<vmem>>, vector<1x128x32xbf16>
    %15 = vector.shape_cast %14 : vector<1x128x32xbf16> to vector<128x32xbf16>
    %cst_14 = arith.constant dense<0.000000e+00> : vector<24x32xf32>
    %16 = tpu.matmul %13, %15, %cst_14 {dimension_numbers = #tpu.dot_dimension_numbers<[1], [0], [0], [1], [0, 0, 1, 1], [], []>} : vector<24x128xbf16>, vector<128x32xbf16>, vector<24x32xf32> -> vector<24x32xf32>
    %17 = arith.addf %12, %16 : vector<24x32xf32>
    %c1 = arith.constant 1 : index
    %c0_15 = arith.constant 0 : index
    %18 = vector.load %arg7[%c1, %c0_15] : memref<42x128xbf16, #tpu.memory_space<vmem>>, vector<24x128xbf16>
    %c1_16 = arith.constant 1 : index
    %c0_17 = arith.constant 0 : index
    %c0_18 = arith.constant 0 : index
    %19 = vector.load %arg2[%c1_16, %c0_17, %c0_18] : memref<9x128x32xbf16, #tpu.memory_space<vmem>>, vector<1x128x32xbf16>
    %20 = vector.shape_cast %19 : vector<1x128x32xbf16> to vector<128x32xbf16>
    %cst_19 = arith.constant dense<0.000000e+00> : vector<24x32xf32>
    %21 = tpu.matmul %18, %20, %cst_19 {dimension_numbers = #tpu.dot_dimension_numbers<[1], [0], [0], [1], [0, 0, 1, 1], [], []>} : vector<24x128xbf16>, vector<128x32xbf16>, vector<24x32xf32> -> vector<24x32xf32>
    %22 = arith.addf %17, %21 : vector<24x32xf32>
    %c2 = arith.constant 2 : index
    %c0_20 = arith.constant 0 : index
    %23 = vector.load %arg7[%c2, %c0_20] : memref<42x128xbf16, #tpu.memory_space<vmem>>, vector<24x128xbf16>
    %c2_21 = arith.constant 2 : index
    %c0_22 = arith.constant 0 : index
    %c0_23 = arith.constant 0 : index
    %24 = vector.load %arg2[%c2_21, %c0_22, %c0_23] : memref<9x128x32xbf16, #tpu.memory_space<vmem>>, vector<1x128x32xbf16>
    %25 = vector.shape_cast %24 : vector<1x128x32xbf16> to vector<128x32xbf16>
    %cst_24 = arith.constant dense<0.000000e+00> : vector<24x32xf32>
    %26 = tpu.matmul %23, %25, %cst_24 {dimension_numbers = #tpu.dot_dimension_numbers<[1], [0], [0], [1], [0, 0, 1, 1], [], []>} : vector<24x128xbf16>, vector<128x32xbf16>, vector<24x32xf32> -> vector<24x32xf32>
    %27 = arith.addf %22, %26 : vector<24x32xf32>
    %c6 = arith.constant 6 : index
    %c0_25 = arith.constant 0 : index
    %28 = vector.load %arg7[%c6, %c0_25] : memref<42x128xbf16, #tpu.memory_space<vmem>>, vector<24x128xbf16>
    %c3 = arith.constant 3 : index
    %c0_26 = arith.constant 0 : index
    %c0_27 = arith.constant 0 : index
    %29 = vector.load %arg2[%c3, %c0_26, %c0_27] : memref<9x128x32xbf16, #tpu.memory_space<vmem>>, vector<1x128x32xbf16>
    %30 = vector.shape_cast %29 : vector<1x128x32xbf16> to vector<128x32xbf16>
    %cst_28 = arith.constant dense<0.000000e+00> : vector<24x32xf32>
    %31 = tpu.matmul %28, %30, %cst_28 {dimension_numbers = #tpu.dot_dimension_numbers<[1], [0], [0], [1], [0, 0, 1, 1], [], []>} : vector<24x128xbf16>, vector<128x32xbf16>, vector<24x32xf32> -> vector<24x32xf32>
    %32 = arith.addf %27, %31 : vector<24x32xf32>
    %c7_29 = arith.constant 7 : index
    %c0_30 = arith.constant 0 : index
    %33 = vector.load %arg7[%c7_29, %c0_30] : memref<42x128xbf16, #tpu.memory_space<vmem>>, vector<24x128xbf16>
    %c4 = arith.constant 4 : index
    %c0_31 = arith.constant 0 : index
    %c0_32 = arith.constant 0 : index
    %34 = vector.load %arg2[%c4, %c0_31, %c0_32] : memref<9x128x32xbf16, #tpu.memory_space<vmem>>, vector<1x128x32xbf16>
    %35 = vector.shape_cast %34 : vector<1x128x32xbf16> to vector<128x32xbf16>
    %cst_33 = arith.constant dense<0.000000e+00> : vector<24x32xf32>
    %36 = tpu.matmul %33, %35, %cst_33 {dimension_numbers = #tpu.dot_dimension_numbers<[1], [0], [0], [1], [0, 0, 1, 1], [], []>} : vector<24x128xbf16>, vector<128x32xbf16>, vector<24x32xf32> -> vector<24x32xf32>
    %37 = arith.addf %32, %36 : vector<24x32xf32>
    %c8 = arith.constant 8 : index
    %c0_34 = arith.constant 0 : index
    %38 = vector.load %arg7[%c8, %c0_34] : memref<42x128xbf16, #tpu.memory_space<vmem>>, vector<24x128xbf16>
    %c5 = arith.constant 5 : index
    %c0_35 = arith.constant 0 : index
    %c0_36 = arith.constant 0 : index
    %39 = vector.load %arg2[%c5, %c0_35, %c0_36] : memref<9x128x32xbf16, #tpu.memory_space<vmem>>, vector<1x128x32xbf16>
    %40 = vector.shape_cast %39 : vector<1x128x32xbf16> to vector<128x32xbf16>
    %cst_37 = arith.constant dense<0.000000e+00> : vector<24x32xf32>
    %41 = tpu.matmul %38, %40, %cst_37 {dimension_numbers = #tpu.dot_dimension_numbers<[1], [0], [0], [1], [0, 0, 1, 1], [], []>} : vector<24x128xbf16>, vector<128x32xbf16>, vector<24x32xf32> -> vector<24x32xf32>
    %42 = arith.addf %37, %41 : vector<24x32xf32>
    %c12 = arith.constant 12 : index
    %c0_38 = arith.constant 0 : index
    %43 = vector.load %arg7[%c12, %c0_38] : memref<42x128xbf16, #tpu.memory_space<vmem>>, vector<24x128xbf16>
    %c6_39 = arith.constant 6 : index
    %c0_40 = arith.constant 0 : index
    %c0_41 = arith.constant 0 : index
    %44 = vector.load %arg2[%c6_39, %c0_40, %c0_41] : memref<9x128x32xbf16, #tpu.memory_space<vmem>>, vector<1x128x32xbf16>
    %45 = vector.shape_cast %44 : vector<1x128x32xbf16> to vector<128x32xbf16>
    %cst_42 = arith.constant dense<0.000000e+00> : vector<24x32xf32>
    %46 = tpu.matmul %43, %45, %cst_42 {dimension_numbers = #tpu.dot_dimension_numbers<[1], [0], [0], [1], [0, 0, 1, 1], [], []>} : vector<24x128xbf16>, vector<128x32xbf16>, vector<24x32xf32> -> vector<24x32xf32>
    %47 = arith.addf %42, %46 : vector<24x32xf32>
    %c13_43 = arith.constant 13 : index
    %c0_44 = arith.constant 0 : index
    %48 = vector.load %arg7[%c13_43, %c0_44] : memref<42x128xbf16, #tpu.memory_space<vmem>>, vector<24x128xbf16>
    %c7_45 = arith.constant 7 : index
    %c0_46 = arith.constant 0 : index
    %c0_47 = arith.constant 0 : index
    %49 = vector.load %arg2[%c7_45, %c0_46, %c0_47] : memref<9x128x32xbf16, #tpu.memory_space<vmem>>, vector<1x128x32xbf16>
    %50 = vector.shape_cast %49 : vector<1x128x32xbf16> to vector<128x32xbf16>
    %cst_48 = arith.constant dense<0.000000e+00> : vector<24x32xf32>
    %51 = tpu.matmul %48, %50, %cst_48 {dimension_numbers = #tpu.dot_dimension_numbers<[1], [0], [0], [1], [0, 0, 1, 1], [], []>} : vector<24x128xbf16>, vector<128x32xbf16>, vector<24x32xf32> -> vector<24x32xf32>
    %52 = arith.addf %47, %51 : vector<24x32xf32>
    %c14 = arith.constant 14 : index
    %c0_49 = arith.constant 0 : index
    %53 = vector.load %arg7[%c14, %c0_49] : memref<42x128xbf16, #tpu.memory_space<vmem>>, vector<24x128xbf16>
    %c8_50 = arith.constant 8 : index
    %c0_51 = arith.constant 0 : index
    %c0_52 = arith.constant 0 : index
    %54 = vector.load %arg2[%c8_50, %c0_51, %c0_52] : memref<9x128x32xbf16, #tpu.memory_space<vmem>>, vector<1x128x32xbf16>
    %55 = vector.shape_cast %54 : vector<1x128x32xbf16> to vector<128x32xbf16>
    %cst_53 = arith.constant dense<0.000000e+00> : vector<24x32xf32>
    %56 = tpu.matmul %53, %55, %cst_53 {dimension_numbers = #tpu.dot_dimension_numbers<[1], [0], [0], [1], [0, 0, 1, 1], [], []>} : vector<24x128xbf16>, vector<128x32xbf16>, vector<24x32xf32> -> vector<24x32xf32>
    %57 = arith.addf %52, %56 : vector<24x32xf32>
    %c0_54 = arith.constant 0 : index
    %c0_55 = arith.constant 0 : index
    %58 = vector.load %arg3[%c0_54, %c0_55] : memref<1x32xf32, #tpu.memory_space<vmem>>, vector<1x32xf32>
    %59 = vector.broadcast %58 : vector<1x32xf32> to vector<24x32xf32>
    %60 = arith.addf %57, %59 : vector<24x32xf32>
    %cst_56 = arith.constant 0.000000e+00 : f32
    %61 = vector.broadcast %cst_56 : f32 to vector<24x32xf32>
    %62 = arith.maximumf %60, %61 : vector<24x32xf32>
    %63 = arith.truncf %62 : vector<24x32xf32> to vector<24x32xbf16>
    %c0_57 = arith.constant 0 : index
    %c0_58 = arith.constant 0 : index
    %64 = vector.load %arg4[%c0_57, %c0_58] : memref<32x128xbf16, #tpu.memory_space<vmem>>, vector<32x128xbf16>
    %cst_59 = arith.constant dense<0.000000e+00> : vector<24x128xf32>
    %65 = tpu.matmul %63, %64, %cst_59 {dimension_numbers = #tpu.dot_dimension_numbers<[1], [0], [0], [1], [0, 0, 1, 1], [], []>} : vector<24x32xbf16>, vector<32x128xbf16>, vector<24x128xf32> -> vector<24x128xf32>
    %c0_60 = arith.constant 0 : index
    %c0_61 = arith.constant 0 : index
    %66 = vector.load %arg5[%c0_60, %c0_61] : memref<1x128xf32, #tpu.memory_space<vmem>>, vector<1x128xf32>
    %67 = vector.broadcast %66 : vector<1x128xf32> to vector<24x128xf32>
    %68 = arith.addf %65, %67 : vector<24x128xf32>
    %69 = vector.extract_strided_slice %68 {offsets = [0, 0], sizes = [24, 3], strides = [1, 1]} : vector<24x128xf32> to vector<24x3xf32>
    %70 = vector.extract_strided_slice %68 {offsets = [0, 3], sizes = [24, 3], strides = [1, 1]} : vector<24x128xf32> to vector<24x3xf32>
    %71 = arith.maximumf %69, %70 : vector<24x3xf32>
    %72 = arith.subf %69, %71 : vector<24x3xf32>
    %73 = math.exp %72 : vector<24x3xf32>
    %74 = arith.subf %70, %71 : vector<24x3xf32>
    %75 = math.exp %74 : vector<24x3xf32>
    %76 = arith.addf %73, %75 : vector<24x3xf32>
    %77 = arith.divf %75, %76 : vector<24x3xf32>
    %78 = vector.extract_strided_slice %68 {offsets = [0, 0], sizes = [24, 18], strides = [1, 1]} : vector<24x128xf32> to vector<24x18xf32>
    %cst_62 = arith.constant 0.000000e+00 : f32
    %79 = vector.broadcast %cst_62 : f32 to vector<24x107xf32>
    %80 = tpu.concatenate %78, %77, %79 in 1 : vector<24x18xf32>, vector<24x3xf32>, vector<24x107xf32> -> vector<24x128xf32>
    %81 = vector.shape_cast %80 : vector<24x128xf32> to vector<1x24x128xf32>
    %c0_63 = arith.constant 0 : index
    %c0_64 = arith.constant 0 : index
    %c0_65 = arith.constant 0 : index
    %82 = vector.load %arg6[%c0_63, %c0_64, %c0_65] : memref<1x24x128xf32, #tpu.memory_space<vmem>>, vector<1x24x128xf32>
    tpu.vector_store %arg6[%c0_63, %c0_64, %c0_65], %81 {strides = array<i32>} : memref<1x24x128xf32, #tpu.memory_space<vmem>>, vector<1x24x128xf32>,
    return
  }
  func.func @transform_0(%arg0: i32) -> (i32, i32, i32) {
    %c0_i32 = arith.constant 0 : i32
    %c0_i32_0 = arith.constant 0 : i32
    %c0_i32_1 = arith.constant 0 : i32
    return %arg0, %c0_i32, %c0_i32_0 : i32, i32, i32
  }
  func.func @transform_1(%arg0: i32) -> (i32, i32, i32) {
    %c0_i32 = arith.constant 0 : i32
    %c0_i32_0 = arith.constant 0 : i32
    %c0_i32_1 = arith.constant 0 : i32
    %c0_i32_2 = arith.constant 0 : i32
    return %c0_i32, %c0_i32_0, %c0_i32_1 : i32, i32, i32
  }
  func.func @transform_2(%arg0: i32) -> (i32, i32) {
    %c0_i32 = arith.constant 0 : i32
    %c0_i32_0 = arith.constant 0 : i32
    %c0_i32_1 = arith.constant 0 : i32
    return %c0_i32, %c0_i32_0 : i32, i32
  }
  func.func @transform_3(%arg0: i32) -> (i32, i32) {
    %c0_i32 = arith.constant 0 : i32
    %c0_i32_0 = arith.constant 0 : i32
    %c0_i32_1 = arith.constant 0 : i32
    return %c0_i32, %c0_i32_0 : i32, i32
  }
  func.func @transform_4(%arg0: i32) -> (i32, i32) {
    %c0_i32 = arith.constant 0 : i32
    %c0_i32_0 = arith.constant 0 : i32
    %c0_i32_1 = arith.constant 0 : i32
    return %c0_i32, %c0_i32_0 : i32, i32
  }
  func.func @transform_5(%arg0: i32) -> (i32, i32, i32) {
    %c0_i32 = arith.constant 0 : i32
    %c0_i32_0 = arith.constant 0 : i32
    %c0_i32_1 = arith.constant 0 : i32
    return %arg0, %c0_i32, %c0_i32_0 : i32, i32, i32
  }
}

module attributes {stable_mosaic.version = 11 : i64} {
  func.func @_matmul_kernel(%arg0: i32, %arg1: i32, %arg2: memref<16x6272xbf16, #tpu.memory_space<vmem>>, %arg3: memref<6272x128xbf16, #tpu.memory_space<vmem>>, %arg4: memref<1x128xf32, #tpu.memory_space<vmem>>, %arg5: memref<16x128xbf16, #tpu.memory_space<vmem>>) attributes {dimension_semantics = [#tpu.dimension_semantics<parallel>, #tpu.dimension_semantics<arbitrary>], iteration_bounds = array<i64: 2, 1>, scalar_prefetch = 0 : i64, scratch_operands = 0 : i64, tpu.core_type = #tpu.core_type<tc>, window_params = [{transform_indices = @transform_0, window_bounds = array<i64: 16, 6272>}, {transform_indices = @transform_1, window_bounds = array<i64: 6272, 128>}, {pipeline_mode = #tpu.pipeline_mode<synchronous>, transform_indices = @transform_2, window_bounds = array<i64: 1, 128>}, {transform_indices = @transform_3, window_bounds = array<i64: 16, 128>}]} {
    %c0 = arith.constant 0 : index
    %c0_0 = arith.constant 0 : index
    %0 = vector.load %arg2[%c0, %c0_0] : memref<16x6272xbf16, #tpu.memory_space<vmem>>, vector<16x6272xbf16>
    %c0_1 = arith.constant 0 : index
    %c0_2 = arith.constant 0 : index
    %1 = vector.load %arg3[%c0_1, %c0_2] : memref<6272x128xbf16, #tpu.memory_space<vmem>>, vector<6272x128xbf16>
    %cst = arith.constant dense<0.000000e+00> : vector<16x128xf32>
    %2 = tpu.matmul %0, %1, %cst {dimension_numbers = #tpu.dot_dimension_numbers<[1], [0], [0], [1], [0, 0, 1, 1], [], []>} : vector<16x6272xbf16>, vector<6272x128xbf16>, vector<16x128xf32> -> vector<16x128xf32>
    %c0_3 = arith.constant 0 : index
    %c0_4 = arith.constant 0 : index
    %3 = vector.load %arg4[%c0_3, %c0_4] : memref<1x128xf32, #tpu.memory_space<vmem>>, vector<1x128xf32>
    %4 = vector.broadcast %3 : vector<1x128xf32> to vector<16x128xf32>
    %5 = arith.addf %2, %4 : vector<16x128xf32>
    %cst_5 = arith.constant 0.000000e+00 : f32
    %6 = vector.broadcast %cst_5 : f32 to vector<16x128xf32>
    %7 = arith.maximumf %5, %6 : vector<16x128xf32>
    %8 = arith.truncf %7 : vector<16x128xf32> to vector<16x128xbf16>
    %c0_6 = arith.constant 0 : index
    %c0_7 = arith.constant 0 : index
    %9 = vector.load %arg5[%c0_6, %c0_7] : memref<16x128xbf16, #tpu.memory_space<vmem>>, vector<16x128xbf16>
    tpu.vector_store %arg5[%c0_6, %c0_7], %8 {strides = array<i32>} : memref<16x128xbf16, #tpu.memory_space<vmem>>, vector<16x128xbf16>,
    return
  }
  func.func @transform_0(%arg0: i32, %arg1: i32) -> (i32, i32) {
    %c0_i32 = arith.constant 0 : i32
    return %arg0, %arg1 : i32, i32
  }
  func.func @transform_1(%arg0: i32, %arg1: i32) -> (i32, i32) {
    %c0_i32 = arith.constant 0 : i32
    %c0_i32_0 = arith.constant 0 : i32
    return %arg1, %c0_i32 : i32, i32
  }
  func.func @transform_2(%arg0: i32, %arg1: i32) -> (i32, i32) {
    %c0_i32 = arith.constant 0 : i32
    %c0_i32_0 = arith.constant 0 : i32
    %c0_i32_1 = arith.constant 0 : i32
    return %c0_i32, %c0_i32_0 : i32, i32
  }
  func.func @transform_3(%arg0: i32, %arg1: i32) -> (i32, i32) {
    %c0_i32 = arith.constant 0 : i32
    %c0_i32_0 = arith.constant 0 : i32
    return %arg0, %c0_i32 : i32, i32
  }
}

module attributes {stable_mosaic.version = 11 : i64} {
  func.func @_roi_pool_kernel(%arg0: i32, %arg1: memref<32xi32, #tpu.memory_space<smem>>, %arg2: memref<224xi32, #tpu.memory_space<smem>>, %arg3: memref<224xi32, #tpu.memory_space<smem>>, %arg4: memref<224xi32, #tpu.memory_space<smem>>, %arg5: memref<224xi32, #tpu.memory_space<smem>>, %arg6: memref<1x4x4x128xbf16, #tpu.memory_space<vmem>>, %arg7: memref<1x49x128xbf16, #tpu.memory_space<vmem>>) attributes {dimension_semantics = [#tpu.dimension_semantics<parallel>], iteration_bounds = array<i64: 32>, scalar_prefetch = 5 : i64, scratch_operands = 0 : i64, tpu.core_type = #tpu.core_type<tc>, window_params = [{transform_indices = @transform_0, window_bounds = array<i64: 1, 4, 4, 128>}, {transform_indices = @transform_1, window_bounds = array<i64: 1, 49, 128>}]} {
    %c0 = arith.constant 0 : index
    %c0_0 = arith.constant 0 : index
    %c0_1 = arith.constant 0 : index
    %c0_2 = arith.constant 0 : index
    %0 = vector.load %arg6[%c0, %c0_0, %c0_1, %c0_2] : memref<1x4x4x128xbf16, #tpu.memory_space<vmem>>, vector<1x4x4x128xbf16>
    %1 = vector.shape_cast %0 : vector<1x4x4x128xbf16> to vector<4x4x128xbf16>
    %2 = arith.extf %1 : vector<4x4x128xbf16> to vector<4x4x128xf32>
    %3 = tpu.iota {dimensions = array<i32: 1>} : vector<1x4x1xi32>
    %4 = tpu.iota {dimensions = array<i32: 0>} : vector<4x1xi32>
    %c7_i32 = arith.constant 7 : i32
    %5 = arith.muli %arg0, %c7_i32 : i32
    %c0_i32 = arith.constant 0 : i32
    %6 = arith.addi %5, %c0_i32 : i32
    %7 = arith.index_cast %6 : i32 to index
    %8 = memref.load %arg4[%7] : memref<224xi32, #tpu.memory_space<smem>>
    %9 = vector.broadcast %8 : i32 to vector<1x4x1xi32>
    %10 = arith.cmpi sge, %3, %9 : vector<1x4x1xi32>
    %c7_i32_3 = arith.constant 7 : i32
    %11 = arith.muli %arg0, %c7_i32_3 : i32
    %c0_i32_4 = arith.constant 0 : i32
    %12 = arith.addi %11, %c0_i32_4 : i32
    %13 = arith.index_cast %12 : i32 to index
    %14 = memref.load %arg5[%13] : memref<224xi32, #tpu.memory_space<smem>>
    %15 = vector.broadcast %14 : i32 to vector<1x4x1xi32>
    %16 = arith.cmpi slt, %3, %15 : vector<1x4x1xi32>
    %17 = arith.andi %10, %16 : vector<1x4x1xi1>
    %cst = arith.constant 0xFF800000 : f32
    %18 = vector.shape_cast %17 : vector<1x4x1xi1> to vector<1x4x1xi1>
    %19 = vector.broadcast %18 : vector<1x4x1xi1> to vector<4x4x128xi1>
    %20 = vector.broadcast %cst : f32 to vector<4x4x128xf32>
    %21 = arith.select %19, %2, %20 : vector<4x4x128xi1>, vector<4x4x128xf32>
    %cst_5 = arith.constant dense<0xFF800000> : vector<4x128xf32>
    %22 = vector.multi_reduction <maximumf>, %21, %cst_5 [1] : vector<4x4x128xf32> to vector<4x128xf32>
    %c7_i32_6 = arith.constant 7 : i32
    %23 = arith.muli %arg0, %c7_i32_6 : i32
    %c1_i32 = arith.constant 1 : i32
    %24 = arith.addi %23, %c1_i32 : i32
    %25 = arith.index_cast %24 : i32 to index
    %26 = memref.load %arg4[%25] : memref<224xi32, #tpu.memory_space<smem>>
    %27 = vector.broadcast %26 : i32 to vector<1x4x1xi32>
    %28 = arith.cmpi sge, %3, %27 : vector<1x4x1xi32>
    %c7_i32_7 = arith.constant 7 : i32
    %29 = arith.muli %arg0, %c7_i32_7 : i32
    %c1_i32_8 = arith.constant 1 : i32
    %30 = arith.addi %29, %c1_i32_8 : i32
    %31 = arith.index_cast %30 : i32 to index
    %32 = memref.load %arg5[%31] : memref<224xi32, #tpu.memory_space<smem>>
    %33 = vector.broadcast %32 : i32 to vector<1x4x1xi32>
    %34 = arith.cmpi slt, %3, %33 : vector<1x4x1xi32>
    %35 = arith.andi %28, %34 : vector<1x4x1xi1>
    %cst_9 = arith.constant 0xFF800000 : f32
    %36 = vector.shape_cast %35 : vector<1x4x1xi1> to vector<1x4x1xi1>
    %37 = vector.broadcast %36 : vector<1x4x1xi1> to vector<4x4x128xi1>
    %38 = vector.broadcast %cst_9 : f32 to vector<4x4x128xf32>
    %39 = arith.select %37, %2, %38 : vector<4x4x128xi1>, vector<4x4x128xf32>
    %cst_10 = arith.constant dense<0xFF800000> : vector<4x128xf32>
    %40 = vector.multi_reduction <maximumf>, %39, %cst_10 [1] : vector<4x4x128xf32> to vector<4x128xf32>
    %c7_i32_11 = arith.constant 7 : i32
    %41 = arith.muli %arg0, %c7_i32_11 : i32
    %c2_i32 = arith.constant 2 : i32
    %42 = arith.addi %41, %c2_i32 : i32
    %43 = arith.index_cast %42 : i32 to index
    %44 = memref.load %arg4[%43] : memref<224xi32, #tpu.memory_space<smem>>
    %45 = vector.broadcast %44 : i32 to vector<1x4x1xi32>
    %46 = arith.cmpi sge, %3, %45 : vector<1x4x1xi32>
    %c7_i32_12 = arith.constant 7 : i32
    %47 = arith.muli %arg0, %c7_i32_12 : i32
    %c2_i32_13 = arith.constant 2 : i32
    %48 = arith.addi %47, %c2_i32_13 : i32
    %49 = arith.index_cast %48 : i32 to index
    %50 = memref.load %arg5[%49] : memref<224xi32, #tpu.memory_space<smem>>
    %51 = vector.broadcast %50 : i32 to vector<1x4x1xi32>
    %52 = arith.cmpi slt, %3, %51 : vector<1x4x1xi32>
    %53 = arith.andi %46, %52 : vector<1x4x1xi1>
    %cst_14 = arith.constant 0xFF800000 : f32
    %54 = vector.shape_cast %53 : vector<1x4x1xi1> to vector<1x4x1xi1>
    %55 = vector.broadcast %54 : vector<1x4x1xi1> to vector<4x4x128xi1>
    %56 = vector.broadcast %cst_14 : f32 to vector<4x4x128xf32>
    %57 = arith.select %55, %2, %56 : vector<4x4x128xi1>, vector<4x4x128xf32>
    %cst_15 = arith.constant dense<0xFF800000> : vector<4x128xf32>
    %58 = vector.multi_reduction <maximumf>, %57, %cst_15 [1] : vector<4x4x128xf32> to vector<4x128xf32>
    %c7_i32_16 = arith.constant 7 : i32
    %59 = arith.muli %arg0, %c7_i32_16 : i32
    %c3_i32 = arith.constant 3 : i32
    %60 = arith.addi %59, %c3_i32 : i32
    %61 = arith.index_cast %60 : i32 to index
    %62 = memref.load %arg4[%61] : memref<224xi32, #tpu.memory_space<smem>>
    %63 = vector.broadcast %62 : i32 to vector<1x4x1xi32>
    %64 = arith.cmpi sge, %3, %63 : vector<1x4x1xi32>
    %c7_i32_17 = arith.constant 7 : i32
    %65 = arith.muli %arg0, %c7_i32_17 : i32
    %c3_i32_18 = arith.constant 3 : i32
    %66 = arith.addi %65, %c3_i32_18 : i32
    %67 = arith.index_cast %66 : i32 to index
    %68 = memref.load %arg5[%67] : memref<224xi32, #tpu.memory_space<smem>>
    %69 = vector.broadcast %68 : i32 to vector<1x4x1xi32>
    %70 = arith.cmpi slt, %3, %69 : vector<1x4x1xi32>
    %71 = arith.andi %64, %70 : vector<1x4x1xi1>
    %cst_19 = arith.constant 0xFF800000 : f32
    %72 = vector.shape_cast %71 : vector<1x4x1xi1> to vector<1x4x1xi1>
    %73 = vector.broadcast %72 : vector<1x4x1xi1> to vector<4x4x128xi1>
    %74 = vector.broadcast %cst_19 : f32 to vector<4x4x128xf32>
    %75 = arith.select %73, %2, %74 : vector<4x4x128xi1>, vector<4x4x128xf32>
    %cst_20 = arith.constant dense<0xFF800000> : vector<4x128xf32>
    %76 = vector.multi_reduction <maximumf>, %75, %cst_20 [1] : vector<4x4x128xf32> to vector<4x128xf32>
    %c7_i32_21 = arith.constant 7 : i32
    %77 = arith.muli %arg0, %c7_i32_21 : i32
    %c4_i32 = arith.constant 4 : i32
    %78 = arith.addi %77, %c4_i32 : i32
    %79 = arith.index_cast %78 : i32 to index
    %80 = memref.load %arg4[%79] : memref<224xi32, #tpu.memory_space<smem>>
    %81 = vector.broadcast %80 : i32 to vector<1x4x1xi32>
    %82 = arith.cmpi sge, %3, %81 : vector<1x4x1xi32>
    %c7_i32_22 = arith.constant 7 : i32
    %83 = arith.muli %arg0, %c7_i32_22 : i32
    %c4_i32_23 = arith.constant 4 : i32
    %84 = arith.addi %83, %c4_i32_23 : i32
    %85 = arith.index_cast %84 : i32 to index
    %86 = memref.load %arg5[%85] : memref<224xi32, #tpu.memory_space<smem>>
    %87 = vector.broadcast %86 : i32 to vector<1x4x1xi32>
    %88 = arith.cmpi slt, %3, %87 : vector<1x4x1xi32>
    %89 = arith.andi %82, %88 : vector<1x4x1xi1>
    %cst_24 = arith.constant 0xFF800000 : f32
    %90 = vector.shape_cast %89 : vector<1x4x1xi1> to vector<1x4x1xi1>
    %91 = vector.broadcast %90 : vector<1x4x1xi1> to vector<4x4x128xi1>
    %92 = vector.broadcast %cst_24 : f32 to vector<4x4x128xf32>
    %93 = arith.select %91, %2, %92 : vector<4x4x128xi1>, vector<4x4x128xf32>
    %cst_25 = arith.constant dense<0xFF800000> : vector<4x128xf32>
    %94 = vector.multi_reduction <maximumf>, %93, %cst_25 [1] : vector<4x4x128xf32> to vector<4x128xf32>
    %c7_i32_26 = arith.constant 7 : i32
    %95 = arith.muli %arg0, %c7_i32_26 : i32
    %c5_i32 = arith.constant 5 : i32
    %96 = arith.addi %95, %c5_i32 : i32
    %97 = arith.index_cast %96 : i32 to index
    %98 = memref.load %arg4[%97] : memref<224xi32, #tpu.memory_space<smem>>
    %99 = vector.broadcast %98 : i32 to vector<1x4x1xi32>
    %100 = arith.cmpi sge, %3, %99 : vector<1x4x1xi32>
    %c7_i32_27 = arith.constant 7 : i32
    %101 = arith.muli %arg0, %c7_i32_27 : i32
    %c5_i32_28 = arith.constant 5 : i32
    %102 = arith.addi %101, %c5_i32_28 : i32
    %103 = arith.index_cast %102 : i32 to index
    %104 = memref.load %arg5[%103] : memref<224xi32, #tpu.memory_space<smem>>
    %105 = vector.broadcast %104 : i32 to vector<1x4x1xi32>
    %106 = arith.cmpi slt, %3, %105 : vector<1x4x1xi32>
    %107 = arith.andi %100, %106 : vector<1x4x1xi1>
    %cst_29 = arith.constant 0xFF800000 : f32
    %108 = vector.shape_cast %107 : vector<1x4x1xi1> to vector<1x4x1xi1>
    %109 = vector.broadcast %108 : vector<1x4x1xi1> to vector<4x4x128xi1>
    %110 = vector.broadcast %cst_29 : f32 to vector<4x4x128xf32>
    %111 = arith.select %109, %2, %110 : vector<4x4x128xi1>, vector<4x4x128xf32>
    %cst_30 = arith.constant dense<0xFF800000> : vector<4x128xf32>
    %112 = vector.multi_reduction <maximumf>, %111, %cst_30 [1] : vector<4x4x128xf32> to vector<4x128xf32>
    %c7_i32_31 = arith.constant 7 : i32
    %113 = arith.muli %arg0, %c7_i32_31 : i32
    %c6_i32 = arith.constant 6 : i32
    %114 = arith.addi %113, %c6_i32 : i32
    %115 = arith.index_cast %114 : i32 to index
    %116 = memref.load %arg4[%115] : memref<224xi32, #tpu.memory_space<smem>>
    %117 = vector.broadcast %116 : i32 to vector<1x4x1xi32>
    %118 = arith.cmpi sge, %3, %117 : vector<1x4x1xi32>
    %c7_i32_32 = arith.constant 7 : i32
    %119 = arith.muli %arg0, %c7_i32_32 : i32
    %c6_i32_33 = arith.constant 6 : i32
    %120 = arith.addi %119, %c6_i32_33 : i32
    %121 = arith.index_cast %120 : i32 to index
    %122 = memref.load %arg5[%121] : memref<224xi32, #tpu.memory_space<smem>>
    %123 = vector.broadcast %122 : i32 to vector<1x4x1xi32>
    %124 = arith.cmpi slt, %3, %123 : vector<1x4x1xi32>
    %125 = arith.andi %118, %124 : vector<1x4x1xi1>
    %cst_34 = arith.constant 0xFF800000 : f32
    %126 = vector.shape_cast %125 : vector<1x4x1xi1> to vector<1x4x1xi1>
    %127 = vector.broadcast %126 : vector<1x4x1xi1> to vector<4x4x128xi1>
    %128 = vector.broadcast %cst_34 : f32 to vector<4x4x128xf32>
    %129 = arith.select %127, %2, %128 : vector<4x4x128xi1>, vector<4x4x128xf32>
    %cst_35 = arith.constant dense<0xFF800000> : vector<4x128xf32>
    %130 = vector.multi_reduction <maximumf>, %129, %cst_35 [1] : vector<4x4x128xf32> to vector<4x128xf32>
    %c7_i32_36 = arith.constant 7 : i32
    %131 = arith.muli %arg0, %c7_i32_36 : i32
    %c0_i32_37 = arith.constant 0 : i32
    %132 = arith.addi %131, %c0_i32_37 : i32
    %133 = arith.index_cast %132 : i32 to index
    %134 = memref.load %arg2[%133] : memref<224xi32, #tpu.memory_space<smem>>
    %135 = vector.broadcast %134 : i32 to vector<4x1xi32>
    %136 = arith.cmpi sge, %4, %135 : vector<4x1xi32>
    %c7_i32_38 = arith.constant 7 : i32
    %137 = arith.muli %arg0, %c7_i32_38 : i32
    %c0_i32_39 = arith.constant 0 : i32
    %138 = arith.addi %137, %c0_i32_39 : i32
    %139 = arith.index_cast %138 : i32 to index
    %140 = memref.load %arg3[%139] : memref<224xi32, #tpu.memory_space<smem>>
    %141 = vector.broadcast %140 : i32 to vector<4x1xi32>
    %142 = arith.cmpi slt, %4, %141 : vector<4x1xi32>
    %143 = arith.andi %136, %142 : vector<4x1xi1>
    %cst_40 = arith.constant 0xFF800000 : f32
    %144 = vector.shape_cast %143 : vector<4x1xi1> to vector<4x1xi1>
    %145 = vector.broadcast %144 : vector<4x1xi1> to vector<4x128xi1>
    %146 = vector.broadcast %cst_40 : f32 to vector<4x128xf32>
    %147 = arith.select %145, %22, %146 : vector<4x128xi1>, vector<4x128xf32>
    %cst_41 = arith.constant dense<0xFF800000> : vector<128xf32>
    %148 = vector.multi_reduction <maximumf>, %147, %cst_41 [0] : vector<4x128xf32> to vector<128xf32>
    %149 = vector.shape_cast %148 : vector<128xf32> to vector<1x128xf32>
    %cst_42 = arith.constant 0xFF800000 : f32
    %150 = vector.broadcast %cst_42 : f32 to vector<1x128xf32>
    %151 = arith.cmpf ogt, %149, %150 : vector<1x128xf32>
    %cst_43 = arith.constant 0.000000e+00 : f32
    %152 = vector.broadcast %cst_43 : f32 to vector<1x128xf32>
    %153 = arith.select %151, %149, %152 : vector<1x128xi1>, vector<1x128xf32>
    %cst_44 = arith.constant 0xFF800000 : f32
    %154 = vector.shape_cast %143 : vector<4x1xi1> to vector<4x1xi1>
    %155 = vector.broadcast %154 : vector<4x1xi1> to vector<4x128xi1>
    %156 = vector.broadcast %cst_44 : f32 to vector<4x128xf32>
    %157 = arith.select %155, %40, %156 : vector<4x128xi1>, vector<4x128xf32>
    %cst_45 = arith.constant dense<0xFF800000> : vector<128xf32>
    %158 = vector.multi_reduction <maximumf>, %157, %cst_45 [0] : vector<4x128xf32> to vector<128xf32>
    %159 = vector.shape_cast %158 : vector<128xf32> to vector<1x128xf32>
    %cst_46 = arith.constant 0xFF800000 : f32
    %160 = vector.broadcast %cst_46 : f32 to vector<1x128xf32>
    %161 = arith.cmpf ogt, %159, %160 : vector<1x128xf32>
    %cst_47 = arith.constant 0.000000e+00 : f32
    %162 = vector.broadcast %cst_47 : f32 to vector<1x128xf32>
    %163 = arith.select %161, %159, %162 : vector<1x128xi1>, vector<1x128xf32>
    %cst_48 = arith.constant 0xFF800000 : f32
    %164 = vector.shape_cast %143 : vector<4x1xi1> to vector<4x1xi1>
    %165 = vector.broadcast %164 : vector<4x1xi1> to vector<4x128xi1>
    %166 = vector.broadcast %cst_48 : f32 to vector<4x128xf32>
    %167 = arith.select %165, %58, %166 : vector<4x128xi1>, vector<4x128xf32>
    %cst_49 = arith.constant dense<0xFF800000> : vector<128xf32>
    %168 = vector.multi_reduction <maximumf>, %167, %cst_49 [0] : vector<4x128xf32> to vector<128xf32>
    %169 = vector.shape_cast %168 : vector<128xf32> to vector<1x128xf32>
    %cst_50 = arith.constant 0xFF800000 : f32
    %170 = vector.broadcast %cst_50 : f32 to vector<1x128xf32>
    %171 = arith.cmpf ogt, %169, %170 : vector<1x128xf32>
    %cst_51 = arith.constant 0.000000e+00 : f32
    %172 = vector.broadcast %cst_51 : f32 to vector<1x128xf32>
    %173 = arith.select %171, %169, %172 : vector<1x128xi1>, vector<1x128xf32>
    %cst_52 = arith.constant 0xFF800000 : f32
    %174 = vector.shape_cast %143 : vector<4x1xi1> to vector<4x1xi1>
    %175 = vector.broadcast %174 : vector<4x1xi1> to vector<4x128xi1>
    %176 = vector.broadcast %cst_52 : f32 to vector<4x128xf32>
    %177 = arith.select %175, %76, %176 : vector<4x128xi1>, vector<4x128xf32>
    %cst_53 = arith.constant dense<0xFF800000> : vector<128xf32>
    %178 = vector.multi_reduction <maximumf>, %177, %cst_53 [0] : vector<4x128xf32> to vector<128xf32>
    %179 = vector.shape_cast %178 : vector<128xf32> to vector<1x128xf32>
    %cst_54 = arith.constant 0xFF800000 : f32
    %180 = vector.broadcast %cst_54 : f32 to vector<1x128xf32>
    %181 = arith.cmpf ogt, %179, %180 : vector<1x128xf32>
    %cst_55 = arith.constant 0.000000e+00 : f32
    %182 = vector.broadcast %cst_55 : f32 to vector<1x128xf32>
    %183 = arith.select %181, %179, %182 : vector<1x128xi1>, vector<1x128xf32>
    %cst_56 = arith.constant 0xFF800000 : f32
    %184 = vector.shape_cast %143 : vector<4x1xi1> to vector<4x1xi1>
    %185 = vector.broadcast %184 : vector<4x1xi1> to vector<4x128xi1>
    %186 = vector.broadcast %cst_56 : f32 to vector<4x128xf32>
    %187 = arith.select %185, %94, %186 : vector<4x128xi1>, vector<4x128xf32>
    %cst_57 = arith.constant dense<0xFF800000> : vector<128xf32>
    %188 = vector.multi_reduction <maximumf>, %187, %cst_57 [0] : vector<4x128xf32> to vector<128xf32>
    %189 = vector.shape_cast %188 : vector<128xf32> to vector<1x128xf32>
    %cst_58 = arith.constant 0xFF800000 : f32
    %190 = vector.broadcast %cst_58 : f32 to vector<1x128xf32>
    %191 = arith.cmpf ogt, %189, %190 : vector<1x128xf32>
    %cst_59 = arith.constant 0.000000e+00 : f32
    %192 = vector.broadcast %cst_59 : f32 to vector<1x128xf32>
    %193 = arith.select %191, %189, %192 : vector<1x128xi1>, vector<1x128xf32>
    %cst_60 = arith.constant 0xFF800000 : f32
    %194 = vector.shape_cast %143 : vector<4x1xi1> to vector<4x1xi1>
    %195 = vector.broadcast %194 : vector<4x1xi1> to vector<4x128xi1>
    %196 = vector.broadcast %cst_60 : f32 to vector<4x128xf32>
    %197 = arith.select %195, %112, %196 : vector<4x128xi1>, vector<4x128xf32>
    %cst_61 = arith.constant dense<0xFF800000> : vector<128xf32>
    %198 = vector.multi_reduction <maximumf>, %197, %cst_61 [0] : vector<4x128xf32> to vector<128xf32>
    %199 = vector.shape_cast %198 : vector<128xf32> to vector<1x128xf32>
    %cst_62 = arith.constant 0xFF800000 : f32
    %200 = vector.broadcast %cst_62 : f32 to vector<1x128xf32>
    %201 = arith.cmpf ogt, %199, %200 : vector<1x128xf32>
    %cst_63 = arith.constant 0.000000e+00 : f32
    %202 = vector.broadcast %cst_63 : f32 to vector<1x128xf32>
    %203 = arith.select %201, %199, %202 : vector<1x128xi1>, vector<1x128xf32>
    %cst_64 = arith.constant 0xFF800000 : f32
    %204 = vector.shape_cast %143 : vector<4x1xi1> to vector<4x1xi1>
    %205 = vector.broadcast %204 : vector<4x1xi1> to vector<4x128xi1>
    %206 = vector.broadcast %cst_64 : f32 to vector<4x128xf32>
    %207 = arith.select %205, %130, %206 : vector<4x128xi1>, vector<4x128xf32>
    %cst_65 = arith.constant dense<0xFF800000> : vector<128xf32>
    %208 = vector.multi_reduction <maximumf>, %207, %cst_65 [0] : vector<4x128xf32> to vector<128xf32>
    %209 = vector.shape_cast %208 : vector<128xf32> to vector<1x128xf32>
    %cst_66 = arith.constant 0xFF800000 : f32
    %210 = vector.broadcast %cst_66 : f32 to vector<1x128xf32>
    %211 = arith.cmpf ogt, %209, %210 : vector<1x128xf32>
    %cst_67 = arith.constant 0.000000e+00 : f32
    %212 = vector.broadcast %cst_67 : f32 to vector<1x128xf32>
    %213 = arith.select %211, %209, %212 : vector<1x128xi1>, vector<1x128xf32>
    %c7_i32_68 = arith.constant 7 : i32
    %214 = arith.muli %arg0, %c7_i32_68 : i32
    %c1_i32_69 = arith.constant 1 : i32
    %215 = arith.addi %214, %c1_i32_69 : i32
    %216 = arith.index_cast %215 : i32 to index
    %217 = memref.load %arg2[%216] : memref<224xi32, #tpu.memory_space<smem>>
    %218 = vector.broadcast %217 : i32 to vector<4x1xi32>
    %219 = arith.cmpi sge, %4, %218 : vector<4x1xi32>
    %c7_i32_70 = arith.constant 7 : i32
    %220 = arith.muli %arg0, %c7_i32_70 : i32
    %c1_i32_71 = arith.constant 1 : i32
    %221 = arith.addi %220, %c1_i32_71 : i32
    %222 = arith.index_cast %221 : i32 to index
    %223 = memref.load %arg3[%222] : memref<224xi32, #tpu.memory_space<smem>>
    %224 = vector.broadcast %223 : i32 to vector<4x1xi32>
    %225 = arith.cmpi slt, %4, %224 : vector<4x1xi32>
    %226 = arith.andi %219, %225 : vector<4x1xi1>
    %cst_72 = arith.constant 0xFF800000 : f32
    %227 = vector.shape_cast %226 : vector<4x1xi1> to vector<4x1xi1>
    %228 = vector.broadcast %227 : vector<4x1xi1> to vector<4x128xi1>
    %229 = vector.broadcast %cst_72 : f32 to vector<4x128xf32>
    %230 = arith.select %228, %22, %229 : vector<4x128xi1>, vector<4x128xf32>
    %cst_73 = arith.constant dense<0xFF800000> : vector<128xf32>
    %231 = vector.multi_reduction <maximumf>, %230, %cst_73 [0] : vector<4x128xf32> to vector<128xf32>
    %232 = vector.shape_cast %231 : vector<128xf32> to vector<1x128xf32>
    %cst_74 = arith.constant 0xFF800000 : f32
    %233 = vector.broadcast %cst_74 : f32 to vector<1x128xf32>
    %234 = arith.cmpf ogt, %232, %233 : vector<1x128xf32>
    %cst_75 = arith.constant 0.000000e+00 : f32
    %235 = vector.broadcast %cst_75 : f32 to vector<1x128xf32>
    %236 = arith.select %234, %232, %235 : vector<1x128xi1>, vector<1x128xf32>
    %cst_76 = arith.constant 0xFF800000 : f32
    %237 = vector.shape_cast %226 : vector<4x1xi1> to vector<4x1xi1>
    %238 = vector.broadcast %237 : vector<4x1xi1> to vector<4x128xi1>
    %239 = vector.broadcast %cst_76 : f32 to vector<4x128xf32>
    %240 = arith.select %238, %40, %239 : vector<4x128xi1>, vector<4x128xf32>
    %cst_77 = arith.constant dense<0xFF800000> : vector<128xf32>
    %241 = vector.multi_reduction <maximumf>, %240, %cst_77 [0] : vector<4x128xf32> to vector<128xf32>
    %242 = vector.shape_cast %241 : vector<128xf32> to vector<1x128xf32>
    %cst_78 = arith.constant 0xFF800000 : f32
    %243 = vector.broadcast %cst_78 : f32 to vector<1x128xf32>
    %244 = arith.cmpf ogt, %242, %243 : vector<1x128xf32>
    %cst_79 = arith.constant 0.000000e+00 : f32
    %245 = vector.broadcast %cst_79 : f32 to vector<1x128xf32>
    %246 = arith.select %244, %242, %245 : vector<1x128xi1>, vector<1x128xf32>
    %cst_80 = arith.constant 0xFF800000 : f32
    %247 = vector.shape_cast %226 : vector<4x1xi1> to vector<4x1xi1>
    %248 = vector.broadcast %247 : vector<4x1xi1> to vector<4x128xi1>
    %249 = vector.broadcast %cst_80 : f32 to vector<4x128xf32>
    %250 = arith.select %248, %58, %249 : vector<4x128xi1>, vector<4x128xf32>
    %cst_81 = arith.constant dense<0xFF800000> : vector<128xf32>
    %251 = vector.multi_reduction <maximumf>, %250, %cst_81 [0] : vector<4x128xf32> to vector<128xf32>
    %252 = vector.shape_cast %251 : vector<128xf32> to vector<1x128xf32>
    %cst_82 = arith.constant 0xFF800000 : f32
    %253 = vector.broadcast %cst_82 : f32 to vector<1x128xf32>
    %254 = arith.cmpf ogt, %252, %253 : vector<1x128xf32>
    %cst_83 = arith.constant 0.000000e+00 : f32
    %255 = vector.broadcast %cst_83 : f32 to vector<1x128xf32>
    %256 = arith.select %254, %252, %255 : vector<1x128xi1>, vector<1x128xf32>
    %cst_84 = arith.constant 0xFF800000 : f32
    %257 = vector.shape_cast %226 : vector<4x1xi1> to vector<4x1xi1>
    %258 = vector.broadcast %257 : vector<4x1xi1> to vector<4x128xi1>
    %259 = vector.broadcast %cst_84 : f32 to vector<4x128xf32>
    %260 = arith.select %258, %76, %259 : vector<4x128xi1>, vector<4x128xf32>
    %cst_85 = arith.constant dense<0xFF800000> : vector<128xf32>
    %261 = vector.multi_reduction <maximumf>, %260, %cst_85 [0] : vector<4x128xf32> to vector<128xf32>
    %262 = vector.shape_cast %261 : vector<128xf32> to vector<1x128xf32>
    %cst_86 = arith.constant 0xFF800000 : f32
    %263 = vector.broadcast %cst_86 : f32 to vector<1x128xf32>
    %264 = arith.cmpf ogt, %262, %263 : vector<1x128xf32>
    %cst_87 = arith.constant 0.000000e+00 : f32
    %265 = vector.broadcast %cst_87 : f32 to vector<1x128xf32>
    %266 = arith.select %264, %262, %265 : vector<1x128xi1>, vector<1x128xf32>
    %cst_88 = arith.constant 0xFF800000 : f32
    %267 = vector.shape_cast %226 : vector<4x1xi1> to vector<4x1xi1>
    %268 = vector.broadcast %267 : vector<4x1xi1> to vector<4x128xi1>
    %269 = vector.broadcast %cst_88 : f32 to vector<4x128xf32>
    %270 = arith.select %268, %94, %269 : vector<4x128xi1>, vector<4x128xf32>
    %cst_89 = arith.constant dense<0xFF800000> : vector<128xf32>
    %271 = vector.multi_reduction <maximumf>, %270, %cst_89 [0] : vector<4x128xf32> to vector<128xf32>
    %272 = vector.shape_cast %271 : vector<128xf32> to vector<1x128xf32>
    %cst_90 = arith.constant 0xFF800000 : f32
    %273 = vector.broadcast %cst_90 : f32 to vector<1x128xf32>
    %274 = arith.cmpf ogt, %272, %273 : vector<1x128xf32>
    %cst_91 = arith.constant 0.000000e+00 : f32
    %275 = vector.broadcast %cst_91 : f32 to vector<1x128xf32>
    %276 = arith.select %274, %272, %275 : vector<1x128xi1>, vector<1x128xf32>
    %cst_92 = arith.constant 0xFF800000 : f32
    %277 = vector.shape_cast %226 : vector<4x1xi1> to vector<4x1xi1>
    %278 = vector.broadcast %277 : vector<4x1xi1> to vector<4x128xi1>
    %279 = vector.broadcast %cst_92 : f32 to vector<4x128xf32>
    %280 = arith.select %278, %112, %279 : vector<4x128xi1>, vector<4x128xf32>
    %cst_93 = arith.constant dense<0xFF800000> : vector<128xf32>
    %281 = vector.multi_reduction <maximumf>, %280, %cst_93 [0] : vector<4x128xf32> to vector<128xf32>
    %282 = vector.shape_cast %281 : vector<128xf32> to vector<1x128xf32>
    %cst_94 = arith.constant 0xFF800000 : f32
    %283 = vector.broadcast %cst_94 : f32 to vector<1x128xf32>
    %284 = arith.cmpf ogt, %282, %283 : vector<1x128xf32>
    %cst_95 = arith.constant 0.000000e+00 : f32
    %285 = vector.broadcast %cst_95 : f32 to vector<1x128xf32>
    %286 = arith.select %284, %282, %285 : vector<1x128xi1>, vector<1x128xf32>
    %cst_96 = arith.constant 0xFF800000 : f32
    %287 = vector.shape_cast %226 : vector<4x1xi1> to vector<4x1xi1>
    %288 = vector.broadcast %287 : vector<4x1xi1> to vector<4x128xi1>
    %289 = vector.broadcast %cst_96 : f32 to vector<4x128xf32>
    %290 = arith.select %288, %130, %289 : vector<4x128xi1>, vector<4x128xf32>
    %cst_97 = arith.constant dense<0xFF800000> : vector<128xf32>
    %291 = vector.multi_reduction <maximumf>, %290, %cst_97 [0] : vector<4x128xf32> to vector<128xf32>
    %292 = vector.shape_cast %291 : vector<128xf32> to vector<1x128xf32>
    %cst_98 = arith.constant 0xFF800000 : f32
    %293 = vector.broadcast %cst_98 : f32 to vector<1x128xf32>
    %294 = arith.cmpf ogt, %292, %293 : vector<1x128xf32>
    %cst_99 = arith.constant 0.000000e+00 : f32
    %295 = vector.broadcast %cst_99 : f32 to vector<1x128xf32>
    %296 = arith.select %294, %292, %295 : vector<1x128xi1>, vector<1x128xf32>
    %c7_i32_100 = arith.constant 7 : i32
    %297 = arith.muli %arg0, %c7_i32_100 : i32
    %c2_i32_101 = arith.constant 2 : i32
    %298 = arith.addi %297, %c2_i32_101 : i32
    %299 = arith.index_cast %298 : i32 to index
    %300 = memref.load %arg2[%299] : memref<224xi32, #tpu.memory_space<smem>>
    %301 = vector.broadcast %300 : i32 to vector<4x1xi32>
    %302 = arith.cmpi sge, %4, %301 : vector<4x1xi32>
    %c7_i32_102 = arith.constant 7 : i32
    %303 = arith.muli %arg0, %c7_i32_102 : i32
    %c2_i32_103 = arith.constant 2 : i32
    %304 = arith.addi %303, %c2_i32_103 : i32
    %305 = arith.index_cast %304 : i32 to index
    %306 = memref.load %arg3[%305] : memref<224xi32, #tpu.memory_space<smem>>
    %307 = vector.broadcast %306 : i32 to vector<4x1xi32>
    %308 = arith.cmpi slt, %4, %307 : vector<4x1xi32>
    %309 = arith.andi %302, %308 : vector<4x1xi1>
    %cst_104 = arith.constant 0xFF800000 : f32
    %310 = vector.shape_cast %309 : vector<4x1xi1> to vector<4x1xi1>
    %311 = vector.broadcast %310 : vector<4x1xi1> to vector<4x128xi1>
    %312 = vector.broadcast %cst_104 : f32 to vector<4x128xf32>
    %313 = arith.select %311, %22, %312 : vector<4x128xi1>, vector<4x128xf32>
    %cst_105 = arith.constant dense<0xFF800000> : vector<128xf32>
    %314 = vector.multi_reduction <maximumf>, %313, %cst_105 [0] : vector<4x128xf32> to vector<128xf32>
    %315 = vector.shape_cast %314 : vector<128xf32> to vector<1x128xf32>
    %cst_106 = arith.constant 0xFF800000 : f32
    %316 = vector.broadcast %cst_106 : f32 to vector<1x128xf32>
    %317 = arith.cmpf ogt, %315, %316 : vector<1x128xf32>
    %cst_107 = arith.constant 0.000000e+00 : f32
    %318 = vector.broadcast %cst_107 : f32 to vector<1x128xf32>
    %319 = arith.select %317, %315, %318 : vector<1x128xi1>, vector<1x128xf32>
    %cst_108 = arith.constant 0xFF800000 : f32
    %320 = vector.shape_cast %309 : vector<4x1xi1> to vector<4x1xi1>
    %321 = vector.broadcast %320 : vector<4x1xi1> to vector<4x128xi1>
    %322 = vector.broadcast %cst_108 : f32 to vector<4x128xf32>
    %323 = arith.select %321, %40, %322 : vector<4x128xi1>, vector<4x128xf32>
    %cst_109 = arith.constant dense<0xFF800000> : vector<128xf32>
    %324 = vector.multi_reduction <maximumf>, %323, %cst_109 [0] : vector<4x128xf32> to vector<128xf32>
    %325 = vector.shape_cast %324 : vector<128xf32> to vector<1x128xf32>
    %cst_110 = arith.constant 0xFF800000 : f32
    %326 = vector.broadcast %cst_110 : f32 to vector<1x128xf32>
    %327 = arith.cmpf ogt, %325, %326 : vector<1x128xf32>
    %cst_111 = arith.constant 0.000000e+00 : f32
    %328 = vector.broadcast %cst_111 : f32 to vector<1x128xf32>
    %329 = arith.select %327, %325, %328 : vector<1x128xi1>, vector<1x128xf32>
    %cst_112 = arith.constant 0xFF800000 : f32
    %330 = vector.shape_cast %309 : vector<4x1xi1> to vector<4x1xi1>
    %331 = vector.broadcast %330 : vector<4x1xi1> to vector<4x128xi1>
    %332 = vector.broadcast %cst_112 : f32 to vector<4x128xf32>
    %333 = arith.select %331, %58, %332 : vector<4x128xi1>, vector<4x128xf32>
    %cst_113 = arith.constant dense<0xFF800000> : vector<128xf32>
    %334 = vector.multi_reduction <maximumf>, %333, %cst_113 [0] : vector<4x128xf32> to vector<128xf32>
    %335 = vector.shape_cast %334 : vector<128xf32> to vector<1x128xf32>
    %cst_114 = arith.constant 0xFF800000 : f32
    %336 = vector.broadcast %cst_114 : f32 to vector<1x128xf32>
    %337 = arith.cmpf ogt, %335, %336 : vector<1x128xf32>
    %cst_115 = arith.constant 0.000000e+00 : f32
    %338 = vector.broadcast %cst_115 : f32 to vector<1x128xf32>
    %339 = arith.select %337, %335, %338 : vector<1x128xi1>, vector<1x128xf32>
    %cst_116 = arith.constant 0xFF800000 : f32
    %340 = vector.shape_cast %309 : vector<4x1xi1> to vector<4x1xi1>
    %341 = vector.broadcast %340 : vector<4x1xi1> to vector<4x128xi1>
    %342 = vector.broadcast %cst_116 : f32 to vector<4x128xf32>
    %343 = arith.select %341, %76, %342 : vector<4x128xi1>, vector<4x128xf32>
    %cst_117 = arith.constant dense<0xFF800000> : vector<128xf32>
    %344 = vector.multi_reduction <maximumf>, %343, %cst_117 [0] : vector<4x128xf32> to vector<128xf32>
    %345 = vector.shape_cast %344 : vector<128xf32> to vector<1x128xf32>
    %cst_118 = arith.constant 0xFF800000 : f32
    %346 = vector.broadcast %cst_118 : f32 to vector<1x128xf32>
    %347 = arith.cmpf ogt, %345, %346 : vector<1x128xf32>
    %cst_119 = arith.constant 0.000000e+00 : f32
    %348 = vector.broadcast %cst_119 : f32 to vector<1x128xf32>
    %349 = arith.select %347, %345, %348 : vector<1x128xi1>, vector<1x128xf32>
    %cst_120 = arith.constant 0xFF800000 : f32
    %350 = vector.shape_cast %309 : vector<4x1xi1> to vector<4x1xi1>
    %351 = vector.broadcast %350 : vector<4x1xi1> to vector<4x128xi1>
    %352 = vector.broadcast %cst_120 : f32 to vector<4x128xf32>
    %353 = arith.select %351, %94, %352 : vector<4x128xi1>, vector<4x128xf32>
    %cst_121 = arith.constant dense<0xFF800000> : vector<128xf32>
    %354 = vector.multi_reduction <maximumf>, %353, %cst_121 [0] : vector<4x128xf32> to vector<128xf32>
    %355 = vector.shape_cast %354 : vector<128xf32> to vector<1x128xf32>
    %cst_122 = arith.constant 0xFF800000 : f32
    %356 = vector.broadcast %cst_122 : f32 to vector<1x128xf32>
    %357 = arith.cmpf ogt, %355, %356 : vector<1x128xf32>
    %cst_123 = arith.constant 0.000000e+00 : f32
    %358 = vector.broadcast %cst_123 : f32 to vector<1x128xf32>
    %359 = arith.select %357, %355, %358 : vector<1x128xi1>, vector<1x128xf32>
    %cst_124 = arith.constant 0xFF800000 : f32
    %360 = vector.shape_cast %309 : vector<4x1xi1> to vector<4x1xi1>
    %361 = vector.broadcast %360 : vector<4x1xi1> to vector<4x128xi1>
    %362 = vector.broadcast %cst_124 : f32 to vector<4x128xf32>
    %363 = arith.select %361, %112, %362 : vector<4x128xi1>, vector<4x128xf32>
    %cst_125 = arith.constant dense<0xFF800000> : vector<128xf32>
    %364 = vector.multi_reduction <maximumf>, %363, %cst_125 [0] : vector<4x128xf32> to vector<128xf32>
    %365 = vector.shape_cast %364 : vector<128xf32> to vector<1x128xf32>
    %cst_126 = arith.constant 0xFF800000 : f32
    %366 = vector.broadcast %cst_126 : f32 to vector<1x128xf32>
    %367 = arith.cmpf ogt, %365, %366 : vector<1x128xf32>
    %cst_127 = arith.constant 0.000000e+00 : f32
    %368 = vector.broadcast %cst_127 : f32 to vector<1x128xf32>
    %369 = arith.select %367, %365, %368 : vector<1x128xi1>, vector<1x128xf32>
    %cst_128 = arith.constant 0xFF800000 : f32
    %370 = vector.shape_cast %309 : vector<4x1xi1> to vector<4x1xi1>
    %371 = vector.broadcast %370 : vector<4x1xi1> to vector<4x128xi1>
    %372 = vector.broadcast %cst_128 : f32 to vector<4x128xf32>
    %373 = arith.select %371, %130, %372 : vector<4x128xi1>, vector<4x128xf32>
    %cst_129 = arith.constant dense<0xFF800000> : vector<128xf32>
    %374 = vector.multi_reduction <maximumf>, %373, %cst_129 [0] : vector<4x128xf32> to vector<128xf32>
    %375 = vector.shape_cast %374 : vector<128xf32> to vector<1x128xf32>
    %cst_130 = arith.constant 0xFF800000 : f32
    %376 = vector.broadcast %cst_130 : f32 to vector<1x128xf32>
    %377 = arith.cmpf ogt, %375, %376 : vector<1x128xf32>
    %cst_131 = arith.constant 0.000000e+00 : f32
    %378 = vector.broadcast %cst_131 : f32 to vector<1x128xf32>
    %379 = arith.select %377, %375, %378 : vector<1x128xi1>, vector<1x128xf32>
    %c7_i32_132 = arith.constant 7 : i32
    %380 = arith.muli %arg0, %c7_i32_132 : i32
    %c3_i32_133 = arith.constant 3 : i32
    %381 = arith.addi %380, %c3_i32_133 : i32
    %382 = arith.index_cast %381 : i32 to index
    %383 = memref.load %arg2[%382] : memref<224xi32, #tpu.memory_space<smem>>
    %384 = vector.broadcast %383 : i32 to vector<4x1xi32>
    %385 = arith.cmpi sge, %4, %384 : vector<4x1xi32>
    %c7_i32_134 = arith.constant 7 : i32
    %386 = arith.muli %arg0, %c7_i32_134 : i32
    %c3_i32_135 = arith.constant 3 : i32
    %387 = arith.addi %386, %c3_i32_135 : i32
    %388 = arith.index_cast %387 : i32 to index
    %389 = memref.load %arg3[%388] : memref<224xi32, #tpu.memory_space<smem>>
    %390 = vector.broadcast %389 : i32 to vector<4x1xi32>
    %391 = arith.cmpi slt, %4, %390 : vector<4x1xi32>
    %392 = arith.andi %385, %391 : vector<4x1xi1>
    %cst_136 = arith.constant 0xFF800000 : f32
    %393 = vector.shape_cast %392 : vector<4x1xi1> to vector<4x1xi1>
    %394 = vector.broadcast %393 : vector<4x1xi1> to vector<4x128xi1>
    %395 = vector.broadcast %cst_136 : f32 to vector<4x128xf32>
    %396 = arith.select %394, %22, %395 : vector<4x128xi1>, vector<4x128xf32>
    %cst_137 = arith.constant dense<0xFF800000> : vector<128xf32>
    %397 = vector.multi_reduction <maximumf>, %396, %cst_137 [0] : vector<4x128xf32> to vector<128xf32>
    %398 = vector.shape_cast %397 : vector<128xf32> to vector<1x128xf32>
    %cst_138 = arith.constant 0xFF800000 : f32
    %399 = vector.broadcast %cst_138 : f32 to vector<1x128xf32>
    %400 = arith.cmpf ogt, %398, %399 : vector<1x128xf32>
    %cst_139 = arith.constant 0.000000e+00 : f32
    %401 = vector.broadcast %cst_139 : f32 to vector<1x128xf32>
    %402 = arith.select %400, %398, %401 : vector<1x128xi1>, vector<1x128xf32>
    %cst_140 = arith.constant 0xFF800000 : f32
    %403 = vector.shape_cast %392 : vector<4x1xi1> to vector<4x1xi1>
    %404 = vector.broadcast %403 : vector<4x1xi1> to vector<4x128xi1>
    %405 = vector.broadcast %cst_140 : f32 to vector<4x128xf32>
    %406 = arith.select %404, %40, %405 : vector<4x128xi1>, vector<4x128xf32>
    %cst_141 = arith.constant dense<0xFF800000> : vector<128xf32>
    %407 = vector.multi_reduction <maximumf>, %406, %cst_141 [0] : vector<4x128xf32> to vector<128xf32>
    %408 = vector.shape_cast %407 : vector<128xf32> to vector<1x128xf32>
    %cst_142 = arith.constant 0xFF800000 : f32
    %409 = vector.broadcast %cst_142 : f32 to vector<1x128xf32>
    %410 = arith.cmpf ogt, %408, %409 : vector<1x128xf32>
    %cst_143 = arith.constant 0.000000e+00 : f32
    %411 = vector.broadcast %cst_143 : f32 to vector<1x128xf32>
    %412 = arith.select %410, %408, %411 : vector<1x128xi1>, vector<1x128xf32>
    %cst_144 = arith.constant 0xFF800000 : f32
    %413 = vector.shape_cast %392 : vector<4x1xi1> to vector<4x1xi1>
    %414 = vector.broadcast %413 : vector<4x1xi1> to vector<4x128xi1>
    %415 = vector.broadcast %cst_144 : f32 to vector<4x128xf32>
    %416 = arith.select %414, %58, %415 : vector<4x128xi1>, vector<4x128xf32>
    %cst_145 = arith.constant dense<0xFF800000> : vector<128xf32>
    %417 = vector.multi_reduction <maximumf>, %416, %cst_145 [0] : vector<4x128xf32> to vector<128xf32>
    %418 = vector.shape_cast %417 : vector<128xf32> to vector<1x128xf32>
    %cst_146 = arith.constant 0xFF800000 : f32
    %419 = vector.broadcast %cst_146 : f32 to vector<1x128xf32>
    %420 = arith.cmpf ogt, %418, %419 : vector<1x128xf32>
    %cst_147 = arith.constant 0.000000e+00 : f32
    %421 = vector.broadcast %cst_147 : f32 to vector<1x128xf32>
    %422 = arith.select %420, %418, %421 : vector<1x128xi1>, vector<1x128xf32>
    %cst_148 = arith.constant 0xFF800000 : f32
    %423 = vector.shape_cast %392 : vector<4x1xi1> to vector<4x1xi1>
    %424 = vector.broadcast %423 : vector<4x1xi1> to vector<4x128xi1>
    %425 = vector.broadcast %cst_148 : f32 to vector<4x128xf32>
    %426 = arith.select %424, %76, %425 : vector<4x128xi1>, vector<4x128xf32>
    %cst_149 = arith.constant dense<0xFF800000> : vector<128xf32>
    %427 = vector.multi_reduction <maximumf>, %426, %cst_149 [0] : vector<4x128xf32> to vector<128xf32>
    %428 = vector.shape_cast %427 : vector<128xf32> to vector<1x128xf32>
    %cst_150 = arith.constant 0xFF800000 : f32
    %429 = vector.broadcast %cst_150 : f32 to vector<1x128xf32>
    %430 = arith.cmpf ogt, %428, %429 : vector<1x128xf32>
    %cst_151 = arith.constant 0.000000e+00 : f32
    %431 = vector.broadcast %cst_151 : f32 to vector<1x128xf32>
    %432 = arith.select %430, %428, %431 : vector<1x128xi1>, vector<1x128xf32>
    %cst_152 = arith.constant 0xFF800000 : f32
    %433 = vector.shape_cast %392 : vector<4x1xi1> to vector<4x1xi1>
    %434 = vector.broadcast %433 : vector<4x1xi1> to vector<4x128xi1>
    %435 = vector.broadcast %cst_152 : f32 to vector<4x128xf32>
    %436 = arith.select %434, %94, %435 : vector<4x128xi1>, vector<4x128xf32>
    %cst_153 = arith.constant dense<0xFF800000> : vector<128xf32>
    %437 = vector.multi_reduction <maximumf>, %436, %cst_153 [0] : vector<4x128xf32> to vector<128xf32>
    %438 = vector.shape_cast %437 : vector<128xf32> to vector<1x128xf32>
    %cst_154 = arith.constant 0xFF800000 : f32
    %439 = vector.broadcast %cst_154 : f32 to vector<1x128xf32>
    %440 = arith.cmpf ogt, %438, %439 : vector<1x128xf32>
    %cst_155 = arith.constant 0.000000e+00 : f32
    %441 = vector.broadcast %cst_155 : f32 to vector<1x128xf32>
    %442 = arith.select %440, %438, %441 : vector<1x128xi1>, vector<1x128xf32>
    %cst_156 = arith.constant 0xFF800000 : f32
    %443 = vector.shape_cast %392 : vector<4x1xi1> to vector<4x1xi1>
    %444 = vector.broadcast %443 : vector<4x1xi1> to vector<4x128xi1>
    %445 = vector.broadcast %cst_156 : f32 to vector<4x128xf32>
    %446 = arith.select %444, %112, %445 : vector<4x128xi1>, vector<4x128xf32>
    %cst_157 = arith.constant dense<0xFF800000> : vector<128xf32>
    %447 = vector.multi_reduction <maximumf>, %446, %cst_157 [0] : vector<4x128xf32> to vector<128xf32>
    %448 = vector.shape_cast %447 : vector<128xf32> to vector<1x128xf32>
    %cst_158 = arith.constant 0xFF800000 : f32
    %449 = vector.broadcast %cst_158 : f32 to vector<1x128xf32>
    %450 = arith.cmpf ogt, %448, %449 : vector<1x128xf32>
    %cst_159 = arith.constant 0.000000e+00 : f32
    %451 = vector.broadcast %cst_159 : f32 to vector<1x128xf32>
    %452 = arith.select %450, %448, %451 : vector<1x128xi1>, vector<1x128xf32>
    %cst_160 = arith.constant 0xFF800000 : f32
    %453 = vector.shape_cast %392 : vector<4x1xi1> to vector<4x1xi1>
    %454 = vector.broadcast %453 : vector<4x1xi1> to vector<4x128xi1>
    %455 = vector.broadcast %cst_160 : f32 to vector<4x128xf32>
    %456 = arith.select %454, %130, %455 : vector<4x128xi1>, vector<4x128xf32>
    %cst_161 = arith.constant dense<0xFF800000> : vector<128xf32>
    %457 = vector.multi_reduction <maximumf>, %456, %cst_161 [0] : vector<4x128xf32> to vector<128xf32>
    %458 = vector.shape_cast %457 : vector<128xf32> to vector<1x128xf32>
    %cst_162 = arith.constant 0xFF800000 : f32
    %459 = vector.broadcast %cst_162 : f32 to vector<1x128xf32>
    %460 = arith.cmpf ogt, %458, %459 : vector<1x128xf32>
    %cst_163 = arith.constant 0.000000e+00 : f32
    %461 = vector.broadcast %cst_163 : f32 to vector<1x128xf32>
    %462 = arith.select %460, %458, %461 : vector<1x128xi1>, vector<1x128xf32>
    %c7_i32_164 = arith.constant 7 : i32
    %463 = arith.muli %arg0, %c7_i32_164 : i32
    %c4_i32_165 = arith.constant 4 : i32
    %464 = arith.addi %463, %c4_i32_165 : i32
    %465 = arith.index_cast %464 : i32 to index
    %466 = memref.load %arg2[%465] : memref<224xi32, #tpu.memory_space<smem>>
    %467 = vector.broadcast %466 : i32 to vector<4x1xi32>
    %468 = arith.cmpi sge, %4, %467 : vector<4x1xi32>
    %c7_i32_166 = arith.constant 7 : i32
    %469 = arith.muli %arg0, %c7_i32_166 : i32
    %c4_i32_167 = arith.constant 4 : i32
    %470 = arith.addi %469, %c4_i32_167 : i32
    %471 = arith.index_cast %470 : i32 to index
    %472 = memref.load %arg3[%471] : memref<224xi32, #tpu.memory_space<smem>>
    %473 = vector.broadcast %472 : i32 to vector<4x1xi32>
    %474 = arith.cmpi slt, %4, %473 : vector<4x1xi32>
    %475 = arith.andi %468, %474 : vector<4x1xi1>
    %cst_168 = arith.constant 0xFF800000 : f32
    %476 = vector.shape_cast %475 : vector<4x1xi1> to vector<4x1xi1>
    %477 = vector.broadcast %476 : vector<4x1xi1> to vector<4x128xi1>
    %478 = vector.broadcast %cst_168 : f32 to vector<4x128xf32>
    %479 = arith.select %477, %22, %478 : vector<4x128xi1>, vector<4x128xf32>
    %cst_169 = arith.constant dense<0xFF800000> : vector<128xf32>
    %480 = vector.multi_reduction <maximumf>, %479, %cst_169 [0] : vector<4x128xf32> to vector<128xf32>
    %481 = vector.shape_cast %480 : vector<128xf32> to vector<1x128xf32>
    %cst_170 = arith.constant 0xFF800000 : f32
    %482 = vector.broadcast %cst_170 : f32 to vector<1x128xf32>
    %483 = arith.cmpf ogt, %481, %482 : vector<1x128xf32>
    %cst_171 = arith.constant 0.000000e+00 : f32
    %484 = vector.broadcast %cst_171 : f32 to vector<1x128xf32>
    %485 = arith.select %483, %481, %484 : vector<1x128xi1>, vector<1x128xf32>
    %cst_172 = arith.constant 0xFF800000 : f32
    %486 = vector.shape_cast %475 : vector<4x1xi1> to vector<4x1xi1>
    %487 = vector.broadcast %486 : vector<4x1xi1> to vector<4x128xi1>
    %488 = vector.broadcast %cst_172 : f32 to vector<4x128xf32>
    %489 = arith.select %487, %40, %488 : vector<4x128xi1>, vector<4x128xf32>
    %cst_173 = arith.constant dense<0xFF800000> : vector<128xf32>
    %490 = vector.multi_reduction <maximumf>, %489, %cst_173 [0] : vector<4x128xf32> to vector<128xf32>
    %491 = vector.shape_cast %490 : vector<128xf32> to vector<1x128xf32>
    %cst_174 = arith.constant 0xFF800000 : f32
    %492 = vector.broadcast %cst_174 : f32 to vector<1x128xf32>
    %493 = arith.cmpf ogt, %491, %492 : vector<1x128xf32>
    %cst_175 = arith.constant 0.000000e+00 : f32
    %494 = vector.broadcast %cst_175 : f32 to vector<1x128xf32>
    %495 = arith.select %493, %491, %494 : vector<1x128xi1>, vector<1x128xf32>
    %cst_176 = arith.constant 0xFF800000 : f32
    %496 = vector.shape_cast %475 : vector<4x1xi1> to vector<4x1xi1>
    %497 = vector.broadcast %496 : vector<4x1xi1> to vector<4x128xi1>
    %498 = vector.broadcast %cst_176 : f32 to vector<4x128xf32>
    %499 = arith.select %497, %58, %498 : vector<4x128xi1>, vector<4x128xf32>
    %cst_177 = arith.constant dense<0xFF800000> : vector<128xf32>
    %500 = vector.multi_reduction <maximumf>, %499, %cst_177 [0] : vector<4x128xf32> to vector<128xf32>
    %501 = vector.shape_cast %500 : vector<128xf32> to vector<1x128xf32>
    %cst_178 = arith.constant 0xFF800000 : f32
    %502 = vector.broadcast %cst_178 : f32 to vector<1x128xf32>
    %503 = arith.cmpf ogt, %501, %502 : vector<1x128xf32>
    %cst_179 = arith.constant 0.000000e+00 : f32
    %504 = vector.broadcast %cst_179 : f32 to vector<1x128xf32>
    %505 = arith.select %503, %501, %504 : vector<1x128xi1>, vector<1x128xf32>
    %cst_180 = arith.constant 0xFF800000 : f32
    %506 = vector.shape_cast %475 : vector<4x1xi1> to vector<4x1xi1>
    %507 = vector.broadcast %506 : vector<4x1xi1> to vector<4x128xi1>
    %508 = vector.broadcast %cst_180 : f32 to vector<4x128xf32>
    %509 = arith.select %507, %76, %508 : vector<4x128xi1>, vector<4x128xf32>
    %cst_181 = arith.constant dense<0xFF800000> : vector<128xf32>
    %510 = vector.multi_reduction <maximumf>, %509, %cst_181 [0] : vector<4x128xf32> to vector<128xf32>
    %511 = vector.shape_cast %510 : vector<128xf32> to vector<1x128xf32>
    %cst_182 = arith.constant 0xFF800000 : f32
    %512 = vector.broadcast %cst_182 : f32 to vector<1x128xf32>
    %513 = arith.cmpf ogt, %511, %512 : vector<1x128xf32>
    %cst_183 = arith.constant 0.000000e+00 : f32
    %514 = vector.broadcast %cst_183 : f32 to vector<1x128xf32>
    %515 = arith.select %513, %511, %514 : vector<1x128xi1>, vector<1x128xf32>
    %cst_184 = arith.constant 0xFF800000 : f32
    %516 = vector.shape_cast %475 : vector<4x1xi1> to vector<4x1xi1>
    %517 = vector.broadcast %516 : vector<4x1xi1> to vector<4x128xi1>
    %518 = vector.broadcast %cst_184 : f32 to vector<4x128xf32>
    %519 = arith.select %517, %94, %518 : vector<4x128xi1>, vector<4x128xf32>
    %cst_185 = arith.constant dense<0xFF800000> : vector<128xf32>
    %520 = vector.multi_reduction <maximumf>, %519, %cst_185 [0] : vector<4x128xf32> to vector<128xf32>
    %521 = vector.shape_cast %520 : vector<128xf32> to vector<1x128xf32>
    %cst_186 = arith.constant 0xFF800000 : f32
    %522 = vector.broadcast %cst_186 : f32 to vector<1x128xf32>
    %523 = arith.cmpf ogt, %521, %522 : vector<1x128xf32>
    %cst_187 = arith.constant 0.000000e+00 : f32
    %524 = vector.broadcast %cst_187 : f32 to vector<1x128xf32>
    %525 = arith.select %523, %521, %524 : vector<1x128xi1>, vector<1x128xf32>
    %cst_188 = arith.constant 0xFF800000 : f32
    %526 = vector.shape_cast %475 : vector<4x1xi1> to vector<4x1xi1>
    %527 = vector.broadcast %526 : vector<4x1xi1> to vector<4x128xi1>
    %528 = vector.broadcast %cst_188 : f32 to vector<4x128xf32>
    %529 = arith.select %527, %112, %528 : vector<4x128xi1>, vector<4x128xf32>
    %cst_189 = arith.constant dense<0xFF800000> : vector<128xf32>
    %530 = vector.multi_reduction <maximumf>, %529, %cst_189 [0] : vector<4x128xf32> to vector<128xf32>
    %531 = vector.shape_cast %530 : vector<128xf32> to vector<1x128xf32>
    %cst_190 = arith.constant 0xFF800000 : f32
    %532 = vector.broadcast %cst_190 : f32 to vector<1x128xf32>
    %533 = arith.cmpf ogt, %531, %532 : vector<1x128xf32>
    %cst_191 = arith.constant 0.000000e+00 : f32
    %534 = vector.broadcast %cst_191 : f32 to vector<1x128xf32>
    %535 = arith.select %533, %531, %534 : vector<1x128xi1>, vector<1x128xf32>
    %cst_192 = arith.constant 0xFF800000 : f32
    %536 = vector.shape_cast %475 : vector<4x1xi1> to vector<4x1xi1>
    %537 = vector.broadcast %536 : vector<4x1xi1> to vector<4x128xi1>
    %538 = vector.broadcast %cst_192 : f32 to vector<4x128xf32>
    %539 = arith.select %537, %130, %538 : vector<4x128xi1>, vector<4x128xf32>
    %cst_193 = arith.constant dense<0xFF800000> : vector<128xf32>
    %540 = vector.multi_reduction <maximumf>, %539, %cst_193 [0] : vector<4x128xf32> to vector<128xf32>
    %541 = vector.shape_cast %540 : vector<128xf32> to vector<1x128xf32>
    %cst_194 = arith.constant 0xFF800000 : f32
    %542 = vector.broadcast %cst_194 : f32 to vector<1x128xf32>
    %543 = arith.cmpf ogt, %541, %542 : vector<1x128xf32>
    %cst_195 = arith.constant 0.000000e+00 : f32
    %544 = vector.broadcast %cst_195 : f32 to vector<1x128xf32>
    %545 = arith.select %543, %541, %544 : vector<1x128xi1>, vector<1x128xf32>
    %c7_i32_196 = arith.constant 7 : i32
    %546 = arith.muli %arg0, %c7_i32_196 : i32
    %c5_i32_197 = arith.constant 5 : i32
    %547 = arith.addi %546, %c5_i32_197 : i32
    %548 = arith.index_cast %547 : i32 to index
    %549 = memref.load %arg2[%548] : memref<224xi32, #tpu.memory_space<smem>>
    %550 = vector.broadcast %549 : i32 to vector<4x1xi32>
    %551 = arith.cmpi sge, %4, %550 : vector<4x1xi32>
    %c7_i32_198 = arith.constant 7 : i32
    %552 = arith.muli %arg0, %c7_i32_198 : i32
    %c5_i32_199 = arith.constant 5 : i32
    %553 = arith.addi %552, %c5_i32_199 : i32
    %554 = arith.index_cast %553 : i32 to index
    %555 = memref.load %arg3[%554] : memref<224xi32, #tpu.memory_space<smem>>
    %556 = vector.broadcast %555 : i32 to vector<4x1xi32>
    %557 = arith.cmpi slt, %4, %556 : vector<4x1xi32>
    %558 = arith.andi %551, %557 : vector<4x1xi1>
    %cst_200 = arith.constant 0xFF800000 : f32
    %559 = vector.shape_cast %558 : vector<4x1xi1> to vector<4x1xi1>
    %560 = vector.broadcast %559 : vector<4x1xi1> to vector<4x128xi1>
    %561 = vector.broadcast %cst_200 : f32 to vector<4x128xf32>
    %562 = arith.select %560, %22, %561 : vector<4x128xi1>, vector<4x128xf32>
    %cst_201 = arith.constant dense<0xFF800000> : vector<128xf32>
    %563 = vector.multi_reduction <maximumf>, %562, %cst_201 [0] : vector<4x128xf32> to vector<128xf32>
    %564 = vector.shape_cast %563 : vector<128xf32> to vector<1x128xf32>
    %cst_202 = arith.constant 0xFF800000 : f32
    %565 = vector.broadcast %cst_202 : f32 to vector<1x128xf32>
    %566 = arith.cmpf ogt, %564, %565 : vector<1x128xf32>
    %cst_203 = arith.constant 0.000000e+00 : f32
    %567 = vector.broadcast %cst_203 : f32 to vector<1x128xf32>
    %568 = arith.select %566, %564, %567 : vector<1x128xi1>, vector<1x128xf32>
    %cst_204 = arith.constant 0xFF800000 : f32
    %569 = vector.shape_cast %558 : vector<4x1xi1> to vector<4x1xi1>
    %570 = vector.broadcast %569 : vector<4x1xi1> to vector<4x128xi1>
    %571 = vector.broadcast %cst_204 : f32 to vector<4x128xf32>
    %572 = arith.select %570, %40, %571 : vector<4x128xi1>, vector<4x128xf32>
    %cst_205 = arith.constant dense<0xFF800000> : vector<128xf32>
    %573 = vector.multi_reduction <maximumf>, %572, %cst_205 [0] : vector<4x128xf32> to vector<128xf32>
    %574 = vector.shape_cast %573 : vector<128xf32> to vector<1x128xf32>
    %cst_206 = arith.constant 0xFF800000 : f32
    %575 = vector.broadcast %cst_206 : f32 to vector<1x128xf32>
    %576 = arith.cmpf ogt, %574, %575 : vector<1x128xf32>
    %cst_207 = arith.constant 0.000000e+00 : f32
    %577 = vector.broadcast %cst_207 : f32 to vector<1x128xf32>
    %578 = arith.select %576, %574, %577 : vector<1x128xi1>, vector<1x128xf32>
    %cst_208 = arith.constant 0xFF800000 : f32
    %579 = vector.shape_cast %558 : vector<4x1xi1> to vector<4x1xi1>
    %580 = vector.broadcast %579 : vector<4x1xi1> to vector<4x128xi1>
    %581 = vector.broadcast %cst_208 : f32 to vector<4x128xf32>
    %582 = arith.select %580, %58, %581 : vector<4x128xi1>, vector<4x128xf32>
    %cst_209 = arith.constant dense<0xFF800000> : vector<128xf32>
    %583 = vector.multi_reduction <maximumf>, %582, %cst_209 [0] : vector<4x128xf32> to vector<128xf32>
    %584 = vector.shape_cast %583 : vector<128xf32> to vector<1x128xf32>
    %cst_210 = arith.constant 0xFF800000 : f32
    %585 = vector.broadcast %cst_210 : f32 to vector<1x128xf32>
    %586 = arith.cmpf ogt, %584, %585 : vector<1x128xf32>
    %cst_211 = arith.constant 0.000000e+00 : f32
    %587 = vector.broadcast %cst_211 : f32 to vector<1x128xf32>
    %588 = arith.select %586, %584, %587 : vector<1x128xi1>, vector<1x128xf32>
    %cst_212 = arith.constant 0xFF800000 : f32
    %589 = vector.shape_cast %558 : vector<4x1xi1> to vector<4x1xi1>
    %590 = vector.broadcast %589 : vector<4x1xi1> to vector<4x128xi1>
    %591 = vector.broadcast %cst_212 : f32 to vector<4x128xf32>
    %592 = arith.select %590, %76, %591 : vector<4x128xi1>, vector<4x128xf32>
    %cst_213 = arith.constant dense<0xFF800000> : vector<128xf32>
    %593 = vector.multi_reduction <maximumf>, %592, %cst_213 [0] : vector<4x128xf32> to vector<128xf32>
    %594 = vector.shape_cast %593 : vector<128xf32> to vector<1x128xf32>
    %cst_214 = arith.constant 0xFF800000 : f32
    %595 = vector.broadcast %cst_214 : f32 to vector<1x128xf32>
    %596 = arith.cmpf ogt, %594, %595 : vector<1x128xf32>
    %cst_215 = arith.constant 0.000000e+00 : f32
    %597 = vector.broadcast %cst_215 : f32 to vector<1x128xf32>
    %598 = arith.select %596, %594, %597 : vector<1x128xi1>, vector<1x128xf32>
    %cst_216 = arith.constant 0xFF800000 : f32
    %599 = vector.shape_cast %558 : vector<4x1xi1> to vector<4x1xi1>
    %600 = vector.broadcast %599 : vector<4x1xi1> to vector<4x128xi1>
    %601 = vector.broadcast %cst_216 : f32 to vector<4x128xf32>
    %602 = arith.select %600, %94, %601 : vector<4x128xi1>, vector<4x128xf32>
    %cst_217 = arith.constant dense<0xFF800000> : vector<128xf32>
    %603 = vector.multi_reduction <maximumf>, %602, %cst_217 [0] : vector<4x128xf32> to vector<128xf32>
    %604 = vector.shape_cast %603 : vector<128xf32> to vector<1x128xf32>
    %cst_218 = arith.constant 0xFF800000 : f32
    %605 = vector.broadcast %cst_218 : f32 to vector<1x128xf32>
    %606 = arith.cmpf ogt, %604, %605 : vector<1x128xf32>
    %cst_219 = arith.constant 0.000000e+00 : f32
    %607 = vector.broadcast %cst_219 : f32 to vector<1x128xf32>
    %608 = arith.select %606, %604, %607 : vector<1x128xi1>, vector<1x128xf32>
    %cst_220 = arith.constant 0xFF800000 : f32
    %609 = vector.shape_cast %558 : vector<4x1xi1> to vector<4x1xi1>
    %610 = vector.broadcast %609 : vector<4x1xi1> to vector<4x128xi1>
    %611 = vector.broadcast %cst_220 : f32 to vector<4x128xf32>
    %612 = arith.select %610, %112, %611 : vector<4x128xi1>, vector<4x128xf32>
    %cst_221 = arith.constant dense<0xFF800000> : vector<128xf32>
    %613 = vector.multi_reduction <maximumf>, %612, %cst_221 [0] : vector<4x128xf32> to vector<128xf32>
    %614 = vector.shape_cast %613 : vector<128xf32> to vector<1x128xf32>
    %cst_222 = arith.constant 0xFF800000 : f32
    %615 = vector.broadcast %cst_222 : f32 to vector<1x128xf32>
    %616 = arith.cmpf ogt, %614, %615 : vector<1x128xf32>
    %cst_223 = arith.constant 0.000000e+00 : f32
    %617 = vector.broadcast %cst_223 : f32 to vector<1x128xf32>
    %618 = arith.select %616, %614, %617 : vector<1x128xi1>, vector<1x128xf32>
    %cst_224 = arith.constant 0xFF800000 : f32
    %619 = vector.shape_cast %558 : vector<4x1xi1> to vector<4x1xi1>
    %620 = vector.broadcast %619 : vector<4x1xi1> to vector<4x128xi1>
    %621 = vector.broadcast %cst_224 : f32 to vector<4x128xf32>
    %622 = arith.select %620, %130, %621 : vector<4x128xi1>, vector<4x128xf32>
    %cst_225 = arith.constant dense<0xFF800000> : vector<128xf32>
    %623 = vector.multi_reduction <maximumf>, %622, %cst_225 [0] : vector<4x128xf32> to vector<128xf32>
    %624 = vector.shape_cast %623 : vector<128xf32> to vector<1x128xf32>
    %cst_226 = arith.constant 0xFF800000 : f32
    %625 = vector.broadcast %cst_226 : f32 to vector<1x128xf32>
    %626 = arith.cmpf ogt, %624, %625 : vector<1x128xf32>
    %cst_227 = arith.constant 0.000000e+00 : f32
    %627 = vector.broadcast %cst_227 : f32 to vector<1x128xf32>
    %628 = arith.select %626, %624, %627 : vector<1x128xi1>, vector<1x128xf32>
    %c7_i32_228 = arith.constant 7 : i32
    %629 = arith.muli %arg0, %c7_i32_228 : i32
    %c6_i32_229 = arith.constant 6 : i32
    %630 = arith.addi %629, %c6_i32_229 : i32
    %631 = arith.index_cast %630 : i32 to index
    %632 = memref.load %arg2[%631] : memref<224xi32, #tpu.memory_space<smem>>
    %633 = vector.broadcast %632 : i32 to vector<4x1xi32>
    %634 = arith.cmpi sge, %4, %633 : vector<4x1xi32>
    %c7_i32_230 = arith.constant 7 : i32
    %635 = arith.muli %arg0, %c7_i32_230 : i32
    %c6_i32_231 = arith.constant 6 : i32
    %636 = arith.addi %635, %c6_i32_231 : i32
    %637 = arith.index_cast %636 : i32 to index
    %638 = memref.load %arg3[%637] : memref<224xi32, #tpu.memory_space<smem>>
    %639 = vector.broadcast %638 : i32 to vector<4x1xi32>
    %640 = arith.cmpi slt, %4, %639 : vector<4x1xi32>
    %641 = arith.andi %634, %640 : vector<4x1xi1>
    %cst_232 = arith.constant 0xFF800000 : f32
    %642 = vector.shape_cast %641 : vector<4x1xi1> to vector<4x1xi1>
    %643 = vector.broadcast %642 : vector<4x1xi1> to vector<4x128xi1>
    %644 = vector.broadcast %cst_232 : f32 to vector<4x128xf32>
    %645 = arith.select %643, %22, %644 : vector<4x128xi1>, vector<4x128xf32>
    %cst_233 = arith.constant dense<0xFF800000> : vector<128xf32>
    %646 = vector.multi_reduction <maximumf>, %645, %cst_233 [0] : vector<4x128xf32> to vector<128xf32>
    %647 = vector.shape_cast %646 : vector<128xf32> to vector<1x128xf32>
    %cst_234 = arith.constant 0xFF800000 : f32
    %648 = vector.broadcast %cst_234 : f32 to vector<1x128xf32>
    %649 = arith.cmpf ogt, %647, %648 : vector<1x128xf32>
    %cst_235 = arith.constant 0.000000e+00 : f32
    %650 = vector.broadcast %cst_235 : f32 to vector<1x128xf32>
    %651 = arith.select %649, %647, %650 : vector<1x128xi1>, vector<1x128xf32>
    %cst_236 = arith.constant 0xFF800000 : f32
    %652 = vector.shape_cast %641 : vector<4x1xi1> to vector<4x1xi1>
    %653 = vector.broadcast %652 : vector<4x1xi1> to vector<4x128xi1>
    %654 = vector.broadcast %cst_236 : f32 to vector<4x128xf32>
    %655 = arith.select %653, %40, %654 : vector<4x128xi1>, vector<4x128xf32>
    %cst_237 = arith.constant dense<0xFF800000> : vector<128xf32>
    %656 = vector.multi_reduction <maximumf>, %655, %cst_237 [0] : vector<4x128xf32> to vector<128xf32>
    %657 = vector.shape_cast %656 : vector<128xf32> to vector<1x128xf32>
    %cst_238 = arith.constant 0xFF800000 : f32
    %658 = vector.broadcast %cst_238 : f32 to vector<1x128xf32>
    %659 = arith.cmpf ogt, %657, %658 : vector<1x128xf32>
    %cst_239 = arith.constant 0.000000e+00 : f32
    %660 = vector.broadcast %cst_239 : f32 to vector<1x128xf32>
    %661 = arith.select %659, %657, %660 : vector<1x128xi1>, vector<1x128xf32>
    %cst_240 = arith.constant 0xFF800000 : f32
    %662 = vector.shape_cast %641 : vector<4x1xi1> to vector<4x1xi1>
    %663 = vector.broadcast %662 : vector<4x1xi1> to vector<4x128xi1>
    %664 = vector.broadcast %cst_240 : f32 to vector<4x128xf32>
    %665 = arith.select %663, %58, %664 : vector<4x128xi1>, vector<4x128xf32>
    %cst_241 = arith.constant dense<0xFF800000> : vector<128xf32>
    %666 = vector.multi_reduction <maximumf>, %665, %cst_241 [0] : vector<4x128xf32> to vector<128xf32>
    %667 = vector.shape_cast %666 : vector<128xf32> to vector<1x128xf32>
    %cst_242 = arith.constant 0xFF800000 : f32
    %668 = vector.broadcast %cst_242 : f32 to vector<1x128xf32>
    %669 = arith.cmpf ogt, %667, %668 : vector<1x128xf32>
    %cst_243 = arith.constant 0.000000e+00 : f32
    %670 = vector.broadcast %cst_243 : f32 to vector<1x128xf32>
    %671 = arith.select %669, %667, %670 : vector<1x128xi1>, vector<1x128xf32>
    %cst_244 = arith.constant 0xFF800000 : f32
    %672 = vector.shape_cast %641 : vector<4x1xi1> to vector<4x1xi1>
    %673 = vector.broadcast %672 : vector<4x1xi1> to vector<4x128xi1>
    %674 = vector.broadcast %cst_244 : f32 to vector<4x128xf32>
    %675 = arith.select %673, %76, %674 : vector<4x128xi1>, vector<4x128xf32>
    %cst_245 = arith.constant dense<0xFF800000> : vector<128xf32>
    %676 = vector.multi_reduction <maximumf>, %675, %cst_245 [0] : vector<4x128xf32> to vector<128xf32>
    %677 = vector.shape_cast %676 : vector<128xf32> to vector<1x128xf32>
    %cst_246 = arith.constant 0xFF800000 : f32
    %678 = vector.broadcast %cst_246 : f32 to vector<1x128xf32>
    %679 = arith.cmpf ogt, %677, %678 : vector<1x128xf32>
    %cst_247 = arith.constant 0.000000e+00 : f32
    %680 = vector.broadcast %cst_247 : f32 to vector<1x128xf32>
    %681 = arith.select %679, %677, %680 : vector<1x128xi1>, vector<1x128xf32>
    %cst_248 = arith.constant 0xFF800000 : f32
    %682 = vector.shape_cast %641 : vector<4x1xi1> to vector<4x1xi1>
    %683 = vector.broadcast %682 : vector<4x1xi1> to vector<4x128xi1>
    %684 = vector.broadcast %cst_248 : f32 to vector<4x128xf32>
    %685 = arith.select %683, %94, %684 : vector<4x128xi1>, vector<4x128xf32>
    %cst_249 = arith.constant dense<0xFF800000> : vector<128xf32>
    %686 = vector.multi_reduction <maximumf>, %685, %cst_249 [0] : vector<4x128xf32> to vector<128xf32>
    %687 = vector.shape_cast %686 : vector<128xf32> to vector<1x128xf32>
    %cst_250 = arith.constant 0xFF800000 : f32
    %688 = vector.broadcast %cst_250 : f32 to vector<1x128xf32>
    %689 = arith.cmpf ogt, %687, %688 : vector<1x128xf32>
    %cst_251 = arith.constant 0.000000e+00 : f32
    %690 = vector.broadcast %cst_251 : f32 to vector<1x128xf32>
    %691 = arith.select %689, %687, %690 : vector<1x128xi1>, vector<1x128xf32>
    %cst_252 = arith.constant 0xFF800000 : f32
    %692 = vector.shape_cast %641 : vector<4x1xi1> to vector<4x1xi1>
    %693 = vector.broadcast %692 : vector<4x1xi1> to vector<4x128xi1>
    %694 = vector.broadcast %cst_252 : f32 to vector<4x128xf32>
    %695 = arith.select %693, %112, %694 : vector<4x128xi1>, vector<4x128xf32>
    %cst_253 = arith.constant dense<0xFF800000> : vector<128xf32>
    %696 = vector.multi_reduction <maximumf>, %695, %cst_253 [0] : vector<4x128xf32> to vector<128xf32>
    %697 = vector.shape_cast %696 : vector<128xf32> to vector<1x128xf32>
    %cst_254 = arith.constant 0xFF800000 : f32
    %698 = vector.broadcast %cst_254 : f32 to vector<1x128xf32>
    %699 = arith.cmpf ogt, %697, %698 : vector<1x128xf32>
    %cst_255 = arith.constant 0.000000e+00 : f32
    %700 = vector.broadcast %cst_255 : f32 to vector<1x128xf32>
    %701 = arith.select %699, %697, %700 : vector<1x128xi1>, vector<1x128xf32>
    %cst_256 = arith.constant 0xFF800000 : f32
    %702 = vector.shape_cast %641 : vector<4x1xi1> to vector<4x1xi1>
    %703 = vector.broadcast %702 : vector<4x1xi1> to vector<4x128xi1>
    %704 = vector.broadcast %cst_256 : f32 to vector<4x128xf32>
    %705 = arith.select %703, %130, %704 : vector<4x128xi1>, vector<4x128xf32>
    %cst_257 = arith.constant dense<0xFF800000> : vector<128xf32>
    %706 = vector.multi_reduction <maximumf>, %705, %cst_257 [0] : vector<4x128xf32> to vector<128xf32>
    %707 = vector.shape_cast %706 : vector<128xf32> to vector<1x128xf32>
    %cst_258 = arith.constant 0xFF800000 : f32
    %708 = vector.broadcast %cst_258 : f32 to vector<1x128xf32>
    %709 = arith.cmpf ogt, %707, %708 : vector<1x128xf32>
    %cst_259 = arith.constant 0.000000e+00 : f32
    %710 = vector.broadcast %cst_259 : f32 to vector<1x128xf32>
    %711 = arith.select %709, %707, %710 : vector<1x128xi1>, vector<1x128xf32>
    %712 = tpu.concatenate %153, %163, %173, %183, %193, %203, %213, %236, %246, %256, %266, %276, %286, %296, %319, %329 in 0 : vector<1x128xf32>, vector<1x128xf32>, vector<1x128xf32>, vector<1x128xf32>, vector<1x128xf32>, vector<1x128xf32>, vector<1x128xf32>, vector<1x128xf32>, vector<1x128xf32>, vector<1x128xf32>, vector<1x128xf32>, vector<1x128xf32>, vector<1x128xf32>, vector<1x128xf32>, vector<1x128xf32>, vector<1x128xf32> -> vector<16x128xf32>
    %713 = tpu.concatenate %339, %349, %359, %369, %379, %402, %412, %422, %432, %442, %452, %462, %485, %495, %505, %515 in 0 : vector<1x128xf32>, vector<1x128xf32>, vector<1x128xf32>, vector<1x128xf32>, vector<1x128xf32>, vector<1x128xf32>, vector<1x128xf32>, vector<1x128xf32>, vector<1x128xf32>, vector<1x128xf32>, vector<1x128xf32>, vector<1x128xf32>, vector<1x128xf32>, vector<1x128xf32>, vector<1x128xf32>, vector<1x128xf32> -> vector<16x128xf32>
    %714 = tpu.concatenate %525, %535, %545, %568, %578, %588, %598, %608, %618, %628, %651, %661, %671, %681, %691, %701 in 0 : vector<1x128xf32>, vector<1x128xf32>, vector<1x128xf32>, vector<1x128xf32>, vector<1x128xf32>, vector<1x128xf32>, vector<1x128xf32>, vector<1x128xf32>, vector<1x128xf32>, vector<1x128xf32>, vector<1x128xf32>, vector<1x128xf32>, vector<1x128xf32>, vector<1x128xf32>, vector<1x128xf32>, vector<1x128xf32> -> vector<16x128xf32>
    %715 = tpu.concatenate %712, %713, %714, %711 in 0 : vector<16x128xf32>, vector<16x128xf32>, vector<16x128xf32>, vector<1x128xf32> -> vector<49x128xf32>
    %716 = vector.shape_cast %715 : vector<49x128xf32> to vector<1x49x128xf32>
    %717 = arith.truncf %716 : vector<1x49x128xf32> to vector<1x49x128xbf16>
    %c0_260 = arith.constant 0 : index
    %c0_261 = arith.constant 0 : index
    %c0_262 = arith.constant 0 : index
    %718 = vector.load %arg7[%c0_260, %c0_261, %c0_262] : memref<1x49x128xbf16, #tpu.memory_space<vmem>>, vector<1x49x128xbf16>
    tpu.vector_store %arg7[%c0_260, %c0_261, %c0_262], %717 {strides = array<i32>} : memref<1x49x128xbf16, #tpu.memory_space<vmem>>, vector<1x49x128xbf16>,
    return
  }
  func.func @transform_0(%arg0: i32, %arg1: memref<32xi32, #tpu.memory_space<smem>>, %arg2: memref<224xi32, #tpu.memory_space<smem>>, %arg3: memref<224xi32, #tpu.memory_space<smem>>, %arg4: memref<224xi32, #tpu.memory_space<smem>>, %arg5: memref<224xi32, #tpu.memory_space<smem>>) -> (i32, i32, i32, i32) {
    %0 = arith.index_cast %arg0 : i32 to index
    %1 = memref.load %arg1[%0] : memref<32xi32, #tpu.memory_space<smem>>
    %c0_i32 = arith.constant 0 : i32
    %c0_i32_0 = arith.constant 0 : i32
    %c0_i32_1 = arith.constant 0 : i32
    %c0_i32_2 = arith.constant 0 : i32
    return %1, %c0_i32, %c0_i32_0, %c0_i32_1 : i32, i32, i32, i32
  }
  func.func @transform_1(%arg0: i32, %arg1: memref<32xi32, #tpu.memory_space<smem>>, %arg2: memref<224xi32, #tpu.memory_space<smem>>, %arg3: memref<224xi32, #tpu.memory_space<smem>>, %arg4: memref<224xi32, #tpu.memory_space<smem>>, %arg5: memref<224xi32, #tpu.memory_space<smem>>) -> (i32, i32, i32) {
    %c0_i32 = arith.constant 0 : i32
    %c0_i32_0 = arith.constant 0 : i32
    %c0_i32_1 = arith.constant 0 : i32
    return %arg0, %c0_i32, %c0_i32_0 : i32, i32, i32
  }
}

module attributes {stable_mosaic.version = 11 : i64} {
  func.func @_final_heads_kernel(%arg0: memref<16x128xbf16, #tpu.memory_space<vmem>>, %arg1: memref<16x128xbf16, #tpu.memory_space<vmem>>, %arg2: memref<128x128xbf16, #tpu.memory_space<vmem>>, %arg3: memref<1x128xf32, #tpu.memory_space<vmem>>, %arg4: memref<256x32xbf16, #tpu.memory_space<vmem>>, %arg5: memref<1x32xf32, #tpu.memory_space<vmem>>, %arg6: memref<96x16xbf16, #tpu.memory_space<vmem>>, %arg7: memref<1x16xf32, #tpu.memory_space<vmem>>, %arg8: memref<16x128xf32, #tpu.memory_space<vmem>>) attributes {dimension_semantics = [], scalar_prefetch = 0 : i64, scratch_operands = 0 : i64, tpu.core_type = #tpu.core_type<tc>} {
    %c0 = arith.constant 0 : index
    %c0_0 = arith.constant 0 : index
    %0 = vector.load %arg0[%c0, %c0_0] : memref<16x128xbf16, #tpu.memory_space<vmem>>, vector<16x128xbf16>
    %c0_1 = arith.constant 0 : index
    %c0_2 = arith.constant 0 : index
    %1 = vector.load %arg1[%c0_1, %c0_2] : memref<16x128xbf16, #tpu.memory_space<vmem>>, vector<16x128xbf16>
    %c0_3 = arith.constant 0 : index
    %c0_4 = arith.constant 0 : index
    %2 = vector.load %arg2[%c0_3, %c0_4] : memref<128x128xbf16, #tpu.memory_space<vmem>>, vector<128x128xbf16>
    %cst = arith.constant dense<0.000000e+00> : vector<16x128xf32>
    %3 = tpu.matmul %0, %2, %cst {dimension_numbers = #tpu.dot_dimension_numbers<[1], [0], [0], [1], [0, 0, 1, 1], [], []>} : vector<16x128xbf16>, vector<128x128xbf16>, vector<16x128xf32> -> vector<16x128xf32>
    %c0_5 = arith.constant 0 : index
    %c0_6 = arith.constant 0 : index
    %4 = vector.load %arg3[%c0_5, %c0_6] : memref<1x128xf32, #tpu.memory_space<vmem>>, vector<1x128xf32>
    %5 = vector.broadcast %4 : vector<1x128xf32> to vector<16x128xf32>
    %6 = arith.addf %3, %5 : vector<16x128xf32>
    %7 = vector.extract_strided_slice %6 {offsets = [0, 0], sizes = [16, 3], strides = [1, 1]} : vector<16x128xf32> to vector<16x3xf32>
    %8 = vector.extract_strided_slice %6 {offsets = [0, 3], sizes = [16, 12], strides = [1, 1]} : vector<16x128xf32> to vector<16x12xf32>
    %9 = vector.extract_strided_slice %6 {offsets = [0, 15], sizes = [16, 32], strides = [1, 1]} : vector<16x128xf32> to vector<16x32xf32>
    %cst_7 = arith.constant 0.000000e+00 : f32
    %10 = vector.broadcast %cst_7 : f32 to vector<16x32xf32>
    %11 = arith.maximumf %9, %10 : vector<16x32xf32>
    %12 = vector.extract_strided_slice %6 {offsets = [0, 47], sizes = [16, 32], strides = [1, 1]} : vector<16x128xf32> to vector<16x32xf32>
    %cst_8 = arith.constant 0.000000e+00 : f32
    %13 = vector.broadcast %cst_8 : f32 to vector<16x32xf32>
    %14 = arith.maximumf %12, %13 : vector<16x32xf32>
    %cst_9 = arith.constant dense<0xFF800000> : vector<16xf32>
    %15 = vector.multi_reduction <maximumf>, %7, %cst_9 [1] : vector<16x3xf32> to vector<16xf32>
    %16 = vector.shape_cast %15 : vector<16xf32> to vector<16x1xf32>
    %17 = vector.broadcast %16 : vector<16x1xf32> to vector<16x3xf32>
    %18 = arith.subf %7, %17 : vector<16x3xf32>
    %19 = math.exp %18 : vector<16x3xf32>
    %cst_10 = arith.constant dense<0.000000e+00> : vector<16xf32>
    %20 = vector.multi_reduction <add>, %19, %cst_10 [1] : vector<16x3xf32> to vector<16xf32>
    %21 = vector.shape_cast %20 : vector<16xf32> to vector<16x1xf32>
    %22 = vector.broadcast %21 : vector<16x1xf32> to vector<16x3xf32>
    %23 = arith.divf %19, %22 : vector<16x3xf32>
    %24 = tpu.concatenate %0, %1 in 1 : vector<16x128xbf16>, vector<16x128xbf16> -> vector<16x256xbf16>
    %c0_11 = arith.constant 0 : index
    %c0_12 = arith.constant 0 : index
    %25 = vector.load %arg4[%c0_11, %c0_12] : memref<256x32xbf16, #tpu.memory_space<vmem>>, vector<256x32xbf16>
    %cst_13 = arith.constant dense<0.000000e+00> : vector<16x32xf32>
    %26 = tpu.matmul %24, %25, %cst_13 {dimension_numbers = #tpu.dot_dimension_numbers<[1], [0], [0], [1], [0, 0, 1, 1], [], []>} : vector<16x256xbf16>, vector<256x32xbf16>, vector<16x32xf32> -> vector<16x32xf32>
    %c0_14 = arith.constant 0 : index
    %c0_15 = arith.constant 0 : index
    %27 = vector.load %arg5[%c0_14, %c0_15] : memref<1x32xf32, #tpu.memory_space<vmem>>, vector<1x32xf32>
    %28 = vector.broadcast %27 : vector<1x32xf32> to vector<16x32xf32>
    %29 = arith.addf %26, %28 : vector<16x32xf32>
    %cst_16 = arith.constant 0.000000e+00 : f32
    %30 = vector.broadcast %cst_16 : f32 to vector<16x32xf32>
    %31 = arith.maximumf %29, %30 : vector<16x32xf32>
    %32 = tpu.concatenate %31, %11, %14 in 1 : vector<16x32xf32>, vector<16x32xf32>, vector<16x32xf32> -> vector<16x96xf32>
    %33 = arith.truncf %32 : vector<16x96xf32> to vector<16x96xbf16>
    %c0_17 = arith.constant 0 : index
    %c0_18 = arith.constant 0 : index
    %34 = vector.load %arg6[%c0_17, %c0_18] : memref<96x16xbf16, #tpu.memory_space<vmem>>, vector<96x16xbf16>
    %cst_19 = arith.constant dense<0.000000e+00> : vector<16x16xf32>
    %35 = tpu.matmul %33, %34, %cst_19 {dimension_numbers = #tpu.dot_dimension_numbers<[1], [0], [0], [1], [0, 0, 1, 1], [], []>} : vector<16x96xbf16>, vector<96x16xbf16>, vector<16x16xf32> -> vector<16x16xf32>
    %c0_20 = arith.constant 0 : index
    %c0_21 = arith.constant 0 : index
    %36 = vector.load %arg7[%c0_20, %c0_21] : memref<1x16xf32, #tpu.memory_space<vmem>>, vector<1x16xf32>
    %37 = vector.broadcast %36 : vector<1x16xf32> to vector<16x16xf32>
    %38 = arith.addf %35, %37 : vector<16x16xf32>
    %39 = vector.extract_strided_slice %38 {offsets = [0, 8], sizes = [16, 1], strides = [1, 1]} : vector<16x16xf32> to vector<16x1xf32>
    %cst_22 = arith.constant 0.000000e+00 : f32
    %40 = vector.broadcast %cst_22 : f32 to vector<16x1xf32>
    %41 = arith.subf %40, %39 : vector<16x1xf32>
    %42 = math.exp %41 : vector<16x1xf32>
    %cst_23 = arith.constant 1.000000e+00 : f32
    %43 = vector.broadcast %cst_23 : f32 to vector<16x1xf32>
    %44 = arith.addf %43, %42 : vector<16x1xf32>
    %cst_24 = arith.constant 1.000000e+00 : f32
    %45 = vector.broadcast %cst_24 : f32 to vector<16x1xf32>
    %46 = arith.divf %45, %44 : vector<16x1xf32>
    %47 = vector.extract_strided_slice %38 {offsets = [0, 0], sizes = [16, 8], strides = [1, 1]} : vector<16x16xf32> to vector<16x8xf32>
    %cst_25 = arith.constant 0.000000e+00 : f32
    %48 = vector.broadcast %cst_25 : f32 to vector<16x104xf32>
    %49 = tpu.concatenate %23, %8, %47, %46, %48 in 1 : vector<16x3xf32>, vector<16x12xf32>, vector<16x8xf32>, vector<16x1xf32>, vector<16x104xf32> -> vector<16x128xf32>
    %c0_26 = arith.constant 0 : index
    %c0_27 = arith.constant 0 : index
    %50 = vector.load %arg8[%c0_26, %c0_27] : memref<16x128xf32, #tpu.memory_space<vmem>>, vector<16x128xf32>
    tpu.vector_store %arg8[%c0_26, %c0_27], %49 {strides = array<i32>} : memref<16x128xf32, #tpu.memory_space<vmem>>, vector<16x128xf32>,
    return
  }
}

</mosaic_0001>

<llo_original>
// kernel: faster_rcnn_forward.5
$region0: #{faster_rcnn_forward.5}
  #allocation0 [shape = 'u32[]', space=smem, size = 0x4, offset = 0x4, fixed_abs, tag = 'smem constant byte address 0x4 - core index']
  #allocation1 [shape = 'u32[144,128]{1,0:T(1,128)}', space=vmem, size = 0x12000, scoped, tag = 'internal scratch']
  %s0 = inlined_call_operand.vmem [shape: bf16[32,768], index: 0, kind: input, shape index: {}]
  %s1 = inlined_call_operand.vmem [shape: bf16[768,128], index: 1, kind: input, shape index: {}]
  %s2 = inlined_call_operand.vmem [shape: f32[1,128], index: 2, kind: input, shape index: {}]
  %s3 = inlined_call_operand.vmem [shape: bf16[32,128], index: 3, kind: output, shape index: {}]
  %s4 = sld [smem:[#allocation0]]
  $region45: #{faster_rcnn_forward.5} parent=0
    _
  %s6 = ssub.s32 1, %s4
  %s7 = scalar_select 0, %s6, %s4
  loop: start=0, step=1, limit=4
  $region2: #{faster_rcnn_forward.5} parent=0 // loop_pre_header
    _
  $region3: #{faster_rcnn_forward.5} parent=0 // loop_header
    %s9 = sphi 0, %s13
    %p10 = scmp.ge.s32.totalorder %s9, 4
    %s16 = sphi 0, %s28
    %s17 = sphi 0, %s24
    %s18 = sphi 0, %s16
    %s19 = sphi 0, %s17
    %s20 = sphi 0, %s18
    %s21 = sphi 0, %s19
    %s33 = sphi 0, %s35
    %s36 = sphi 0, %s33
    %s37 = sphi 0, %s36
    %s53 = sphi 0, %s37
    %s59 = sphi 0, %s61
    %s62 = sphi 0, %s59
    %s63 = sphi 0, %s62
    %s79 = sphi 0, %s63
    %s83 = sphi 0, %s83
    %s85 = sphi 0, %s83
    %s86 = sphi 0, %s85
    %s100 = sphi 0, %s86
    %s106 = sphi 0, %s108
    %s109 = sphi 0, %s106
    %s110 = sphi 0, %s109
    %s126 = sphi 0, %s110
  $region4: #{faster_rcnn_forward.5} parent=0 // loop_header_branch
    %12 = sbr.rel (%p10) target = $region8
  $region5: #{faster_rcnn_forward.5} parent=0 // loop_body
    %s14 = ssub.s32 %s9, 1
    %s15 = ssub.s32 %s9, 2
    %s22 = sadd.s32 1, %s17
    %p23 = scmp.ge.s32.totalorder %s22, 1
    %s24 = scalar_select %p23, 0, %s22
    %s25 = sadd.s32 1, %s16
    %s26 = scalar_select %p23, %s25, %s16
    %p27 = scmp.ge.s32.totalorder %s26, 2
    %s28 = scalar_select %p27, 0, %s26
    %s29 = ssub.s32 %s16, %s28
    %s30 = ssub.s32 %s17, %s24
    %s31 = sor.u32 %s29, %s30
    %p32 = scmp.eq.s32.totalorder %s31, 0
    %s34 = sadd.s32 %s33, 1
    %s35 = scalar_select %p32, %s33, %s34
    %p38 = pneg %p32
    %p39 = scmp.eq.s32.totalorder %s9, 1
    %p40 = por %p38, %p39
    %p41 = scmp.ne.s32.totalorder %s33, %s36
    %p42 = scmp.eq.s32.totalorder %s9, 0
    %p43 = por %p41, %p42
    %p44 = scmp.ne.s32.totalorder %s33, %s36
    %p45 = scmp.eq.s32.totalorder %s14, 1
    %p46 = por %p44, %p45
    %p47 = scmp.ne.s32.totalorder %s36, %s37
    %p48 = scmp.eq.s32.totalorder %s14, 0
    %p49 = por %p47, %p48
    %p50 = scmp.ne.s32.totalorder %s36, %s37
    %p51 = scmp.eq.s32.totalorder %s15, 1
    %p52 = por %p50, %p51
    %p54 = scmp.ne.s32.totalorder %s37, %s53
    %p55 = scmp.eq.s32.totalorder %s15, 0
    %p56 = por %p54, %p55
    %s57 = ssub.s32 %s17, %s24
    %p58 = scmp.eq.s32.totalorder %s57, 0
    %s60 = sadd.s32 %s59, 1
    %s61 = scalar_select %p58, %s59, %s60
    %p64 = pneg %p58
    %p65 = scmp.eq.s32.totalorder %s9, 1
    %p66 = por %p64, %p65
    %p67 = scmp.ne.s32.totalorder %s59, %s62
    %p68 = scmp.eq.s32.totalorder %s9, 0
    %p69 = por %p67, %p68
    %p70 = scmp.ne.s32.totalorder %s59, %s62
    %p71 = scmp.eq.s32.totalorder %s14, 1
    %p72 = por %p70, %p71
    %p73 = scmp.ne.s32.totalorder %s62, %s63
    %p74 = scmp.eq.s32.totalorder %s14, 0
    %p75 = por %p73, %p74
    %p76 = scmp.ne.s32.totalorder %s62, %s63
    %p77 = scmp.eq.s32.totalorder %s15, 1
    %p78 = por %p76, %p77
    %p80 = scmp.ne.s32.totalorder %s63, %s79
    %p81 = scmp.eq.s32.totalorder %s15, 0
    %p82 = por %p80, %p81
    %s84 = sadd.s32 %s83, 1
    %p87 = scmp.eq.s32.totalorder %s9, 1
    %p88 = scmp.ne.s32.totalorder %s83, %s85
    %p89 = scmp.eq.s32.totalorder %s9, 0
    %p90 = por %p88, %p89
    %p91 = scmp.ne.s32.totalorder %s83, %s85
    %p92 = scmp.eq.s32.totalorder %s14, 1
    %p93 = por %p91, %p92
    %p94 = scmp.ne.s32.totalorder %s85, %s86
    %p95 = scmp.eq.s32.totalorder %s14, 0
    %p96 = por %p94, %p95
    %p97 = scmp.ne.s32.totalorder %s85, %s86
    %p98 = scmp.eq.s32.totalorder %s15, 1
    %p99 = por %p97, %p98
    %p101 = scmp.ne.s32.totalorder %s86, %s100
    %p102 = scmp.eq.s32.totalorder %s15, 0
    %p103 = por %p101, %p102
    %s104 = ssub.s32 %s16, %s28
    %p105 = scmp.eq.s32.totalorder %s104, 0
    %s107 = sadd.s32 %s106, 1
    %s108 = scalar_select %p105, %s106, %s107
    %p111 = pneg %p105
    %p112 = scmp.eq.s32.totalorder %s9, 1
    %p113 = por %p111, %p112
    %p114 = scmp.ne.s32.totalorder %s106, %s109
    %p115 = scmp.eq.s32.totalorder %s9, 0
    %p116 = por %p114, %p115
    %p117 = scmp.ne.s32.totalorder %s106, %s109
    %p118 = scmp.eq.s32.totalorder %s14, 1
    %p119 = por %p117, %p118
    %p120 = scmp.ne.s32.totalorder %s109, %s110
    %p121 = scmp.eq.s32.totalorder %s14, 0
    %p122 = por %p120, %p121
    %p123 = scmp.ne.s32.totalorder %s109, %s110
    %p124 = scmp.eq.s32.totalorder %s15, 1
    %p125 = por %p123, %p124
    %p127 = scmp.ne.s32.totalorder %s110, %s126
    %p128 = scmp.eq.s32.totalorder %s15, 0
    %p129 = por %p127, %p128
    %p130 = scmp.le.s32.totalorder 1, %s9
    %p131 = scmp.lt.s32.totalorder %s9, 3
    %p132 = pnand %p130, %p131
    %p133 = pneg %p132
    // Predicated region
    $region9: #{faster_rcnn_forward.5} parent=5 // pred_check
      _
    $region10: #{faster_rcnn_forward.5} parent=5 // pred_check_branch
      %135 = sbr.rel (%p132) target = $region12
    $region11: #{faster_rcnn_forward.5} parent=5 // pred_region
      %s136 = ssub.s32 %s9, 1
      // Predicated region
      $region13: #{faster_rcnn_forward.5} parent=11 // pred_check
        %p137 = pneg %p75
      $region14: #{faster_rcnn_forward.5} parent=11 // pred_check_branch
        %139 = sbr.rel (%p137) target = $region16
      $region15: #{faster_rcnn_forward.5} parent=11 // pred_region
        %s140 = smul.u32 96, %s19
        %p141 = scmp.lt.s32.totalorder %s140, 95
        %s142 = scalar_select %p141, %s140, 95
        %s143 = smul.addr %s142, 4
        %s144 = scalar_lea.vmem %s1, %s143
        %s145 = smul.u32 96, %s19
      $region16: #{faster_rcnn_forward.5} parent=11 // pred_fallthru
        _
      // Predicated region
      $region17: #{faster_rcnn_forward.5} parent=11 // pred_check
        %p146 = pneg %p96
      $region18: #{faster_rcnn_forward.5} parent=11 // pred_check_branch
        %148 = sbr.rel (%p146) target = $region20
      $region19: #{faster_rcnn_forward.5} parent=11 // pred_region
        _
      $region20: #{faster_rcnn_forward.5} parent=11 // pred_fallthru
        _
    $region12: #{faster_rcnn_forward.5} parent=5 // pred_fallthru
      _
    %p149 = scmp.lt.s32.totalorder %s9, 2
    // Predicated region
    $region21: #{faster_rcnn_forward.5} parent=5 // pred_check
      %p150 = pneg %p149
    $region22: #{faster_rcnn_forward.5} parent=5 // pred_check_branch
      %152 = sbr.rel (%p150) target = $region24
    $region23: #{faster_rcnn_forward.5} parent=5 // pred_region
      // Predicated region
      $region25: #{faster_rcnn_forward.5} parent=23 // pred_check
        %p153 = pneg %p43
      $region26: #{faster_rcnn_forward.5} parent=23 // pred_check_branch
        %155 = sbr.rel (%p153) target = $region28
      $region27: #{faster_rcnn_forward.5} parent=23 // pred_region
        %s156 = smul.u32 2, %s16
        %s157 = smul.u32 6, %s17
        %p158 = scmp.lt.s32.totalorder %s156, 3
        %s159 = scalar_select %p158, %s156, 3
        %p160 = scmp.lt.s32.totalorder %s157, 5
        %s161 = scalar_select %p160, %s157, 5
        %s162 = smul.addr %s159, 6
        %s163 = sadd.s32 %s161, %s162
        %s164 = smul.addr %s163, 4
        %s165 = scalar_lea.vmem %s0, %s164
        %s166 = smul.u32 2, %s16
        %s167 = smul.u32 6, %s17
      $region28: #{faster_rcnn_forward.5} parent=23 // pred_fallthru
        _
    $region24: #{faster_rcnn_forward.5} parent=5 // pred_fallthru
      _
    %p168 = scmp.le.s32.totalorder 1, %s9
    %p169 = scmp.lt.s32.totalorder %s9, 3
    %p170 = pnand %p168, %p169
    %p171 = pneg %p170
    // Predicated region
    $region29: #{faster_rcnn_forward.5} parent=5 // pred_check
      _
    $region30: #{faster_rcnn_forward.5} parent=5 // pred_check_branch
      %173 = sbr.rel (%p170) target = $region32
    $region31: #{faster_rcnn_forward.5} parent=5 // pred_region
      %s174 = ssub.s32 %s9, 1
      %s175 = smul.u32 2, %s18
      %s176 = smul.u32 6, %s19
      %p177 = scmp.lt.s32.totalorder %s175, 3
      %s178 = scalar_select %p177, %s175, 3
      %p179 = scmp.lt.s32.totalorder %s176, 5
      %s180 = scalar_select %p179, %s176, 5
      %s181 = smul.addr %s178, 6
      %s182 = sadd.s32 %s180, %s181
      %s183 = smul.addr %s182, 4
      %s184 = scalar_lea.vmem %s0, %s183
      %p185 = pneg %p49
      %p186 = pneg %p46
      %s187 = smul.u32 96, %s19
      %p188 = scmp.lt.s32.totalorder %s187, 95
      %s189 = scalar_select %p188, %s187, 95
      %s190 = smul.addr %s189, 4
      %s191 = scalar_lea.vmem %s1, %s190
      %p192 = pneg %p75
      %p193 = pneg %p72
      %p194 = pneg %p96
      %p195 = pneg %p93
      %p196 = pneg %p122
      %p197 = pneg %p119
      %s198 = smul.u32 2, %s18
      %p199 = scmp.lt.s32.totalorder %s198, 3
      %s200 = scalar_select %p199, %s198, 3
      %s201 = smul.addr %s200, 4
      %s202 = scalar_lea.vmem %s3, %s201
      %s203 = smul.u32 2, %s18
      %s204 = smul.u32 6, %s19
      %p205 = scmp.lt.s32.totalorder %s203, 3
      %s206 = scalar_select %p205, %s203, 3
      %p207 = scmp.lt.s32.totalorder %s204, 5
      %s208 = scalar_select %p207, %s204, 5
      %s209 = smul.addr %s206, 6
      %s210 = sadd.s32 %s208, %s209
      %s211 = smul.addr %s210, 4
      %s212 = scalar_lea.vmem %s0, %s211
      %s213 = smul.u32 2, %s18
      %s214 = smul.u32 6, %s19
      %s215 = smul.u32 96, %s19
      %p216 = scmp.lt.s32.totalorder %s215, 95
      %s217 = scalar_select %p216, %s215, 95
      %s218 = smul.addr %s217, 4
      %s219 = scalar_lea.vmem %s1, %s218
      %s220 = smul.u32 96, %s19
      %s221 = smul.u32 2, %s18
      %p222 = scmp.lt.s32.totalorder %s221, 3
      %s223 = scalar_select %p222, %s221, 3
      %s224 = smul.addr %s223, 4
      %s225 = scalar_lea.vmem %s3, %s224
      %s226 = smul.u32 2, %s18
      %v228 = vld [vmem:[%s212] sm:$0xff]
      %v229 = vld [vmem:[%s212 + $0x8] sm:$0xff]
      %v230 = vld [vmem:[%s212 + $0x10] sm:$0xff]
      %v231 = vld [vmem:[%s212 + $0x18] sm:$0xff]
      %v232 = vld [vmem:[%s212 + $0x20] sm:$0xff]
      %v233 = vld [vmem:[%s212 + $0x28] sm:$0xff]
      %v234 = vld [vmem:[%s219] sm:$0xf]
      %v235 = vld [vmem:[%s219 + $0x4] sm:$0xf]
      %v236 = vld [vmem:[%s219 + $0x8] sm:$0xf]
      %v237 = vld [vmem:[%s219 + $0xc] sm:$0xf]
      %v238 = vld [vmem:[%s219 + $0x10] sm:$0xf]
      %v239 = vld [vmem:[%s219 + $0x14] sm:$0xf]
      %v240 = vld [vmem:[%s219 + $0x18] sm:$0xf]
      %v241 = vld [vmem:[%s219 + $0x1c] sm:$0xf]
      %v242 = vld [vmem:[%s219 + $0x20] sm:$0xf]
      %v243 = vld [vmem:[%s219 + $0x24] sm:$0xf]
      %v244 = vld [vmem:[%s219 + $0x28] sm:$0xf]
      %v245 = vld [vmem:[%s219 + $0x2c] sm:$0xf]
      %v246 = vld [vmem:[%s219 + $0x30] sm:$0xf]
      %v247 = vld [vmem:[%s219 + $0x34] sm:$0xf]
      %v248 = vld [vmem:[%s219 + $0x38] sm:$0xf]
      %v249 = vld [vmem:[%s219 + $0x3c] sm:$0xf]
      %v250 = vld [vmem:[%s219 + $0x40] sm:$0xf]
      %v251 = vld [vmem:[%s219 + $0x44] sm:$0xf]
      %v252 = vld [vmem:[%s219 + $0x48] sm:$0xf]
      %v253 = vld [vmem:[%s219 + $0x4c] sm:$0xf]
      %v254 = vld [vmem:[%s219 + $0x50] sm:$0xf]
      %v255 = vld [vmem:[%s219 + $0x54] sm:$0xf]
      %v256 = vld [vmem:[%s219 + $0x58] sm:$0xf]
      %v257 = vld [vmem:[%s219 + $0x5c] sm:$0xf]
      %v258 = vld [vmem:[%s219 + $0x60] sm:$0xf]
      %v259 = vld [vmem:[%s219 + $0x64] sm:$0xf]
      %v260 = vld [vmem:[%s219 + $0x68] sm:$0xf]
      %v261 = vld [vmem:[%s219 + $0x6c] sm:$0xf]
      %v262 = vld [vmem:[%s219 + $0x70] sm:$0xf]
      %v263 = vld [vmem:[%s219 + $0x74] sm:$0xf]
      %v264 = vld [vmem:[%s219 + $0x78] sm:$0xf]
      %v265 = vld [vmem:[%s219 + $0x7c] sm:$0xf]
      %v266 = vld [vmem:[%s219 + $0x80] sm:$0xf]
      %v267 = vld [vmem:[%s219 + $0x84] sm:$0xf]
      %v268 = vld [vmem:[%s219 + $0x88] sm:$0xf]
      %v269 = vld [vmem:[%s219 + $0x8c] sm:$0xf]
      %v270 = vld [vmem:[%s219 + $0x90] sm:$0xf]
      %v271 = vld [vmem:[%s219 + $0x94] sm:$0xf]
      %v272 = vld [vmem:[%s219 + $0x98] sm:$0xf]
      %v273 = vld [vmem:[%s219 + $0x9c] sm:$0xf]
      %v274 = vld [vmem:[%s219 + $0xa0] sm:$0xf]
      %v275 = vld [vmem:[%s219 + $0xa4] sm:$0xf]
      %v276 = vld [vmem:[%s219 + $0xa8] sm:$0xf]
      %v277 = vld [vmem:[%s219 + $0xac] sm:$0xf]
      %v278 = vld [vmem:[%s219 + $0xb0] sm:$0xf]
      %v279 = vld [vmem:[%s219 + $0xb4] sm:$0xf]
      %v280 = vld [vmem:[%s219 + $0xb8] sm:$0xf]
      %v281 = vld [vmem:[%s219 + $0xbc] sm:$0xf]
      %v282 = vld [vmem:[%s219 + $0xc0] sm:$0xf]
      %v283 = vld [vmem:[%s219 + $0xc4] sm:$0xf]
      %v284 = vld [vmem:[%s219 + $0xc8] sm:$0xf]
      %v285 = vld [vmem:[%s219 + $0xcc] sm:$0xf]
      %v286 = vld [vmem:[%s219 + $0xd0] sm:$0xf]
      %v287 = vld [vmem:[%s219 + $0xd4] sm:$0xf]
      %v288 = vld [vmem:[%s219 + $0xd8] sm:$0xf]
      %v289 = vld [vmem:[%s219 + $0xdc] sm:$0xf]
      %v290 = vld [vmem:[%s219 + $0xe0] sm:$0xf]
      %v291 = vld [vmem:[%s219 + $0xe4] sm:$0xf]
      %v292 = vld [vmem:[%s219 + $0xe8] sm:$0xf]
      %v293 = vld [vmem:[%s219 + $0xec] sm:$0xf]
      %v294 = vld [vmem:[%s219 + $0xf0] sm:$0xf]
      %v295 = vld [vmem:[%s219 + $0xf4] sm:$0xf]
      %v296 = vld [vmem:[%s219 + $0xf8] sm:$0xf]
      %v297 = vld [vmem:[%s219 + $0xfc] sm:$0xf]
      %v298 = vld [vmem:[%s219 + $0x100] sm:$0xf]
      %v299 = vld [vmem:[%s219 + $0x104] sm:$0xf]
      %v300 = vld [vmem:[%s219 + $0x108] sm:$0xf]
      %v301 = vld [vmem:[%s219 + $0x10c] sm:$0xf]
      %v302 = vld [vmem:[%s219 + $0x110] sm:$0xf]
      %v303 = vld [vmem:[%s219 + $0x114] sm:$0xf]
      %v304 = vld [vmem:[%s219 + $0x118] sm:$0xf]
      %v305 = vld [vmem:[%s219 + $0x11c] sm:$0xf]
      %v306 = vld [vmem:[%s219 + $0x120] sm:$0xf]
      %v307 = vld [vmem:[%s219 + $0x124] sm:$0xf]
      %v308 = vld [vmem:[%s219 + $0x128] sm:$0xf]
      %v309 = vld [vmem:[%s219 + $0x12c] sm:$0xf]
      %v310 = vld [vmem:[%s219 + $0x130] sm:$0xf]
      %v311 = vld [vmem:[%s219 + $0x134] sm:$0xf]
      %v312 = vld [vmem:[%s219 + $0x138] sm:$0xf]
      %v313 = vld [vmem:[%s219 + $0x13c] sm:$0xf]
      %v314 = vld [vmem:[%s219 + $0x140] sm:$0xf]
      %v315 = vld [vmem:[%s219 + $0x144] sm:$0xf]
      %v316 = vld [vmem:[%s219 + $0x148] sm:$0xf]
      %v317 = vld [vmem:[%s219 + $0x14c] sm:$0xf]
      %v318 = vld [vmem:[%s219 + $0x150] sm:$0xf]
      %v319 = vld [vmem:[%s219 + $0x154] sm:$0xf]
      %v320 = vld [vmem:[%s219 + $0x158] sm:$0xf]
      %v321 = vld [vmem:[%s219 + $0x15c] sm:$0xf]
      %v322 = vld [vmem:[%s219 + $0x160] sm:$0xf]
      %v323 = vld [vmem:[%s219 + $0x164] sm:$0xf]
      %v324 = vld [vmem:[%s219 + $0x168] sm:$0xf]
      %v325 = vld [vmem:[%s219 + $0x16c] sm:$0xf]
      %v326 = vld [vmem:[%s219 + $0x170] sm:$0xf]
      %v327 = vld [vmem:[%s219 + $0x174] sm:$0xf]
      %v328 = vld [vmem:[%s219 + $0x178] sm:$0xf]
      %v329 = vld [vmem:[%s219 + $0x17c] sm:$0xf]
      %v330 = vld [vmem:[%s2] sm:$0x1]
      %v332 = vlaneseq
      %v333 = vshrl.u32 %v332, 7
      %v334 = vsub.s32 0, %v333
      %v335 = vrot.slane %v330, %v334
      %v343 = vunpack.c.l.b16 %v228
      %v344 = vunpack.c.h.b16 %v228
      %v345 = vunpack.c.l.b16 %v229
      %v346 = vunpack.c.h.b16 %v229
      %v347 = vunpack.c.l.b16 %v230
      %v348 = vunpack.c.h.b16 %v230
      %v349 = vunpack.c.l.b16 %v231
      %v350 = vunpack.c.h.b16 %v231
      %v351 = vunpack.c.l.b16 %v232
      %v352 = vunpack.c.h.b16 %v232
      %v353 = vunpack.c.l.b16 %v233
      %v354 = vunpack.c.h.b16 %v233
      %v355 = vpack.c.b16 %v349, %v343
      %v356 = vpack.c.b16 %v350, %v344
      %v357 = vpack.c.b16 %v351, %v345
      %v358 = vpack.c.b16 %v352, %v346
      %v359 = vpack.c.b16 %v353, %v347
      %v360 = vpack.c.b16 %v354, %v348
      %v463 = vunpack.c.l.b16 %v234
      %v464 = vunpack.c.l.b16 %v235
      %v465 = vunpack.c.l.b16 %v236
      %v466 = vunpack.c.l.b16 %v237
      %v467 = vunpack.c.l.b16 %v238
      %v468 = vunpack.c.l.b16 %v239
      %v469 = vunpack.c.l.b16 %v240
      %v470 = vunpack.c.l.b16 %v241
      %v471 = vunpack.c.l.b16 %v242
      %v472 = vunpack.c.l.b16 %v243
      %v473 = vunpack.c.l.b16 %v244
      %v474 = vunpack.c.l.b16 %v245
      %v475 = vunpack.c.l.b16 %v246
      %v476 = vunpack.c.l.b16 %v247
      %v477 = vunpack.c.l.b16 %v248
      %v478 = vunpack.c.l.b16 %v249
      %v479 = vunpack.c.l.b16 %v250
      %v480 = vunpack.c.l.b16 %v251
      %v481 = vunpack.c.l.b16 %v252
      %v482 = vunpack.c.l.b16 %v253
      %v483 = vunpack.c.l.b16 %v254
      %v484 = vunpack.c.l.b16 %v255
      %v485 = vunpack.c.l.b16 %v256
      %v486 = vunpack.c.l.b16 %v257
      %v487 = vunpack.c.l.b16 %v258
      %v488 = vunpack.c.l.b16 %v259
      %v489 = vunpack.c.l.b16 %v260
      %v490 = vunpack.c.l.b16 %v261
      %v491 = vunpack.c.l.b16 %v262
      %v492 = vunpack.c.l.b16 %v263
      %v493 = vunpack.c.l.b16 %v264
      %v494 = vunpack.c.l.b16 %v265
      %v495 = vunpack.c.l.b16 %v266
      %v496 = vunpack.c.l.b16 %v267
      %v497 = vunpack.c.l.b16 %v268
      %v498 = vunpack.c.l.b16 %v269
      %v499 = vunpack.c.l.b16 %v270
      %v500 = vunpack.c.l.b16 %v271
      %v501 = vunpack.c.l.b16 %v272
      %v502 = vunpack.c.l.b16 %v273
      %v503 = vunpack.c.l.b16 %v274
      %v504 = vunpack.c.l.b16 %v275
      %v505 = vunpack.c.l.b16 %v276
      %v506 = vunpack.c.l.b16 %v277
      %v507 = vunpack.c.l.b16 %v278
      %v508 = vunpack.c.l.b16 %v279
      %v509 = vunpack.c.l.b16 %v280
      %v510 = vunpack.c.l.b16 %v281
      %v511 = vunpack.c.l.b16 %v282
      %v512 = vunpack.c.l.b16 %v283
      %v513 = vunpack.c.l.b16 %v284
      %v514 = vunpack.c.l.b16 %v285
      %v515 = vunpack.c.l.b16 %v286
      %v516 = vunpack.c.l.b16 %v287
      %v517 = vunpack.c.l.b16 %v288
      %v518 = vunpack.c.l.b16 %v289
      %v519 = vunpack.c.l.b16 %v290
      %v520 = vunpack.c.l.b16 %v291
      %v521 = vunpack.c.l.b16 %v292
      %v522 = vunpack.c.l.b16 %v293
      %v523 = vunpack.c.l.b16 %v294
      %v524 = vunpack.c.l.b16 %v295
      %v525 = vunpack.c.l.b16 %v296
      %v526 = vunpack.c.l.b16 %v297
      %v527 = vunpack.c.l.b16 %v298
      %v528 = vunpack.c.l.b16 %v299
      %v529 = vunpack.c.l.b16 %v300
      %v530 = vunpack.c.l.b16 %v301
      %v531 = vunpack.c.l.b16 %v302
      %v532 = vunpack.c.l.b16 %v303
      %v533 = vunpack.c.l.b16 %v304
      %v534 = vunpack.c.l.b16 %v305
      %v535 = vunpack.c.l.b16 %v306
      %v536 = vunpack.c.l.b16 %v307
      %v537 = vunpack.c.l.b16 %v308
      %v538 = vunpack.c.l.b16 %v309
      %v539 = vunpack.c.l.b16 %v310
      %v540 = vunpack.c.l.b16 %v311
      %v541 = vunpack.c.l.b16 %v312
      %v542 = vunpack.c.l.b16 %v313
      %v543 = vunpack.c.l.b16 %v314
      %v544 = vunpack.c.l.b16 %v315
      %v545 = vunpack.c.l.b16 %v316
      %v546 = vunpack.c.l.b16 %v317
      %v547 = vunpack.c.l.b16 %v318
      %v548 = vunpack.c.l.b16 %v319
      %v549 = vunpack.c.l.b16 %v320
      %v550 = vunpack.c.l.b16 %v321
      %v551 = vunpack.c.l.b16 %v322
      %v552 = vunpack.c.l.b16 %v323
      %v553 = vunpack.c.l.b16 %v324
      %v554 = vunpack.c.l.b16 %v325
      %v555 = vunpack.c.l.b16 %v326
      %v556 = vunpack.c.l.b16 %v327
      %v557 = vunpack.c.l.b16 %v328
      %v558 = vunpack.c.l.b16 %v329
      %v559 = vpack.c.b16 %v464, %v463
      %v560 = vpack.c.b16 %v466, %v465
      %v561 = vpack.c.b16 %v468, %v467
      %v562 = vpack.c.b16 %v470, %v469
      %v563 = vpack.c.b16 %v472, %v471
      %v564 = vpack.c.b16 %v474, %v473
      %v565 = vpack.c.b16 %v476, %v475
      %v566 = vpack.c.b16 %v478, %v477
      %v567 = vpack.c.b16 %v480, %v479
      %v568 = vpack.c.b16 %v482, %v481
      %v569 = vpack.c.b16 %v484, %v483
      %v570 = vpack.c.b16 %v486, %v485
      %v571 = vpack.c.b16 %v488, %v487
      %v572 = vpack.c.b16 %v490, %v489
      %v573 = vpack.c.b16 %v492, %v491
      %v574 = vpack.c.b16 %v494, %v493
      %v575 = vpack.c.b16 %v496, %v495
      %v576 = vpack.c.b16 %v498, %v497
      %v577 = vpack.c.b16 %v500, %v499
      %v578 = vpack.c.b16 %v502, %v501
      %v579 = vpack.c.b16 %v504, %v503
      %v580 = vpack.c.b16 %v506, %v505
      %v581 = vpack.c.b16 %v508, %v507
      %v582 = vpack.c.b16 %v510, %v509
      %v583 = vpack.c.b16 %v512, %v511
      %v584 = vpack.c.b16 %v514, %v513
      %v585 = vpack.c.b16 %v516, %v515
      %v586 = vpack.c.b16 %v518, %v517
      %v587 = vpack.c.b16 %v520, %v519
      %v588 = vpack.c.b16 %v522, %v521
      %v589 = vpack.c.b16 %v524, %v523
      %v590 = vpack.c.b16 %v526, %v525
      %v591 = vpack.c.b16 %v528, %v527
      %v592 = vpack.c.b16 %v530, %v529
      %v593 = vpack.c.b16 %v532, %v531
      %v594 = vpack.c.b16 %v534, %v533
      %v595 = vpack.c.b16 %v536, %v535
      %v596 = vpack.c.b16 %v538, %v537
      %v597 = vpack.c.b16 %v540, %v539
      %v598 = vpack.c.b16 %v542, %v541
      %v599 = vpack.c.b16 %v544, %v543
      %v600 = vpack.c.b16 %v546, %v545
      %v601 = vpack.c.b16 %v548, %v547
      %v602 = vpack.c.b16 %v550, %v549
      %v603 = vpack.c.b16 %v552, %v551
      %v604 = vpack.c.b16 %v554, %v553
      %v605 = vpack.c.b16 %v556, %v555
      %v606 = vpack.c.b16 %v558, %v557
      %655 = vmatprep.subr.bf16.mxu0 0
      %656 = vmatpush1.bf16.msra.mxu0 %v566
      %657 = vmatprep.subr.bf16.mxu0 0
      %658 = vmatpush1.bf16.msra.mxu0 %v565
      %659 = vmatprep.subr.bf16.mxu0 0
      %660 = vmatpush1.bf16.msra.mxu0 %v564
      %661 = vmatprep.subr.bf16.mxu0 0
      %662 = vmatpush1.bf16.msra.mxu0 %v563
      %663 = vmatprep.subr.bf16.mxu0 0
      %664 = vmatpush1.bf16.msra.mxu0 %v562
      %665 = vmatprep.subr.bf16.mxu0 0
      %666 = vmatpush1.bf16.msra.mxu0 %v561
      %667 = vmatprep.subr.bf16.mxu0 0
      %668 = vmatpush1.bf16.msra.mxu0 %v560
      %669 = vmatprep.subr.bf16.mxu0 0
      %670 = vmatpush1.bf16.msra.mxu0 %v559
      %671 = vmatprep.subr.bf16.mxu0 0
      %672 = vmatpush2.bf16.msra.mxu0 %v574
      %673 = vmatprep.subr.bf16.mxu0 0
      %674 = vmatpush2.bf16.msra.mxu0 %v573
      %675 = vmatprep.subr.bf16.mxu0 0
      %676 = vmatpush2.bf16.msra.mxu0 %v572
      %677 = vmatprep.subr.bf16.mxu0 0
      %678 = vmatpush2.bf16.msra.mxu0 %v571
      %679 = vmatprep.subr.bf16.mxu0 0
      %680 = vmatpush2.bf16.msra.mxu0 %v570
      %681 = vmatprep.subr.bf16.mxu0 0
      %682 = vmatpush2.bf16.msra.mxu0 %v569
      %683 = vmatprep.subr.bf16.mxu0 0
      %684 = vmatpush2.bf16.msra.mxu0 %v568
      %685 = vmatprep.subr.bf16.mxu0 0
      %686 = vmatpush2.bf16.msra.mxu0 %v567
      %687 = vmatprep.mubr.bf16.mxu0 %v356
      %688 = vmatmul.mubr.bf16.gmra.mxu0 %v355
      %v689 = vpop.f32.mrf.mxu0
      %v690 = vadd.f32 %v335, %v689
      %v691 = vpop.f32.mrf.mxu0
      %v692 = vpop.f32.mrf.mxu0
      %v693 = vadd.f32 %v335, %v692
      %v694 = vpop.f32.mrf.mxu0
      %695 = vdwg.mxu0
      %696 = vmatprep.subr.bf16.mxu0 0
      %697 = vmatpush1.bf16.msra.mxu0 %v582
      %698 = vmatprep.subr.bf16.mxu0 0
      %699 = vmatpush1.bf16.msra.mxu0 %v581
      %700 = vmatprep.subr.bf16.mxu0 0
      %701 = vmatpush1.bf16.msra.mxu0 %v580
      %702 = vmatprep.subr.bf16.mxu0 0
      %703 = vmatpush1.bf16.msra.mxu0 %v579
      %704 = vmatprep.subr.bf16.mxu0 0
      %705 = vmatpush1.bf16.msra.mxu0 %v578
      %706 = vmatprep.subr.bf16.mxu0 0
      %707 = vmatpush1.bf16.msra.mxu0 %v577
      %708 = vmatprep.subr.bf16.mxu0 0
      %709 = vmatpush1.bf16.msra.mxu0 %v576
      %710 = vmatprep.subr.bf16.mxu0 0
      %711 = vmatpush1.bf16.msra.mxu0 %v575
      %712 = vmatprep.subr.bf16.mxu0 0
      %713 = vmatpush2.bf16.msra.mxu0 %v590
      %714 = vmatprep.subr.bf16.mxu0 0
      %715 = vmatpush2.bf16.msra.mxu0 %v589
      %716 = vmatprep.subr.bf16.mxu0 0
      %717 = vmatpush2.bf16.msra.mxu0 %v588
      %718 = vmatprep.subr.bf16.mxu0 0
      %719 = vmatpush2.bf16.msra.mxu0 %v587
      %720 = vmatprep.subr.bf16.mxu0 0
      %721 = vmatpush2.bf16.msra.mxu0 %v586
      %722 = vmatprep.subr.bf16.mxu0 0
      %723 = vmatpush2.bf16.msra.mxu0 %v585
      %724 = vmatprep.subr.bf16.mxu0 0
      %725 = vmatpush2.bf16.msra.mxu0 %v584
      %726 = vmatprep.subr.bf16.mxu0 0
      %727 = vmatpush2.bf16.msra.mxu0 %v583
      %728 = vmatprep.mubr.bf16.mxu0 %v358
      %729 = vmatmul.mubr.bf16.gmra.mxu0 %v357
      %v730 = vpop.f32.mrf.mxu0
      %v731 = vadd.f32 %v690, %v730
      %v732 = vpop.f32.mrf.mxu0
      %v733 = vpop.f32.mrf.mxu0
      %v734 = vadd.f32 %v693, %v733
      %v735 = vpop.f32.mrf.mxu0
      %736 = vdwg.mxu0
      %737 = vmatprep.subr.bf16.mxu0 0
      %738 = vmatpush1.bf16.msra.mxu0 %v598
      %739 = vmatprep.subr.bf16.mxu0 0
      %740 = vmatpush1.bf16.msra.mxu0 %v597
      %741 = vmatprep.subr.bf16.mxu0 0
      %742 = vmatpush1.bf16.msra.mxu0 %v596
      %743 = vmatprep.subr.bf16.mxu0 0
      %744 = vmatpush1.bf16.msra.mxu0 %v595
      %745 = vmatprep.subr.bf16.mxu0 0
      %746 = vmatpush1.bf16.msra.mxu0 %v594
      %747 = vmatprep.subr.bf16.mxu0 0
      %748 = vmatpush1.bf16.msra.mxu0 %v593
      %749 = vmatprep.subr.bf16.mxu0 0
      %750 = vmatpush1.bf16.msra.mxu0 %v592
      %751 = vmatprep.subr.bf16.mxu0 0
      %752 = vmatpush1.bf16.msra.mxu0 %v591
      %753 = vmatprep.subr.bf16.mxu0 0
      %754 = vmatpush2.bf16.msra.mxu0 %v606
      %755 = vmatprep.subr.bf16.mxu0 0
      %756 = vmatpush2.bf16.msra.mxu0 %v605
      %757 = vmatprep.subr.bf16.mxu0 0
      %758 = vmatpush2.bf16.msra.mxu0 %v604
      %759 = vmatprep.subr.bf16.mxu0 0
      %760 = vmatpush2.bf16.msra.mxu0 %v603
      %761 = vmatprep.subr.bf16.mxu0 0
      %762 = vmatpush2.bf16.msra.mxu0 %v602
      %763 = vmatprep.subr.bf16.mxu0 0
      %764 = vmatpush2.bf16.msra.mxu0 %v601
      %765 = vmatprep.subr.bf16.mxu0 0
      %766 = vmatpush2.bf16.msra.mxu0 %v600
      %767 = vmatprep.subr.bf16.mxu0 0
      %768 = vmatpush2.bf16.msra.mxu0 %v599
      %769 = vmatprep.mubr.bf16.mxu0 %v360
      %770 = vmatmul.mubr.bf16.gmra.mxu0 %v359
      %v771 = vpop.f32.mrf.mxu0
      %v772 = vadd.f32 %v731, %v771
      %v773 = vpop.f32.mrf.mxu0
      %v774 = vpop.f32.mrf.mxu0
      %v775 = vadd.f32 %v734, %v774
      %v776 = vpop.f32.mrf.mxu0
      %777 = vdwg.mxu0
      %v778 = vmax.f32 %v772, 0.0
      %v779 = vmax.f32 %v775, 0.0
      %v780 = vpack.c.bf16 %v779, %v778
      %v782 = vunpack.c.l.b16 %v780
      %v783 = vunpack.c.h.b16 %v780
      %v784 = vpack.c.b16 %v782, %v782
      %v785 = vpack.c.b16 %v783, %v783
      %788 = vst [vmem:[%s225] sm:$0xf] %v784
      %789 = vst [vmem:[%s225 + $0x4] sm:$0xf] %v785
      %s790 = smul.u32 2, %s18
      %p791 = scmp.lt.s32.totalorder %s790, 3
      %s792 = scalar_select %p791, %s790, 3
      %s793 = smul.addr %s792, 4
      %s794 = scalar_lea.vmem %s3, %s793
      // Predicated region
      $region33: #{faster_rcnn_forward.5} parent=31 // pred_check
        %p795 = pneg %p119
      $region34: #{faster_rcnn_forward.5} parent=31 // pred_check_branch
        %797 = sbr.rel (%p795) target = $region36
      $region35: #{faster_rcnn_forward.5} parent=31 // pred_region
        %s798 = smul.u32 2, %s18
      $region36: #{faster_rcnn_forward.5} parent=31 // pred_fallthru
        _
    $region32: #{faster_rcnn_forward.5} parent=5 // pred_fallthru
      _
    %p799 = scmp.le.s32.totalorder 2, %s9
    // Predicated region
    $region37: #{faster_rcnn_forward.5} parent=5 // pred_check
      %p800 = pneg %p799
    $region38: #{faster_rcnn_forward.5} parent=5 // pred_check_branch
      %802 = sbr.rel (%p800) target = $region40
    $region39: #{faster_rcnn_forward.5} parent=5 // pred_region
      %s803 = ssub.s32 %s9, 2
      // Predicated region
      $region41: #{faster_rcnn_forward.5} parent=39 // pred_check
        %p804 = pneg %p125
      $region42: #{faster_rcnn_forward.5} parent=39 // pred_check_branch
        %806 = sbr.rel (%p804) target = $region44
      $region43: #{faster_rcnn_forward.5} parent=39 // pred_region
        %s807 = smul.u32 2, %s20
        %p808 = scmp.lt.s32.totalorder %s807, 3
        %s809 = scalar_select %p808, %s807, 3
        %s810 = smul.addr %s809, 4
        %s811 = scalar_lea.vmem %s3, %s810
      $region44: #{faster_rcnn_forward.5} parent=39 // pred_fallthru
        _
    $region40: #{faster_rcnn_forward.5} parent=5 // pred_fallthru
      _
  $region6: #{faster_rcnn_forward.5} parent=0 // loop_footer
    %s13 = sadd.s32 1, %s9
  $region7: #{faster_rcnn_forward.5} parent=0 // loop_footer_branch
    %8 = sbr.rel target = $region3
  $region8: #{faster_rcnn_forward.5} parent=0 // loop_exit
    _

// kernel: faster_rcnn_forward.6
$region0: #{faster_rcnn_forward.6}
  #allocation0 [shape = 'u32[]', space=smem, size = 0x4, offset = 0x4, fixed_abs, tag = 'smem constant byte address 0x4 - core index']
  #allocation1 [shape = 'u32[144,128]{1,0:T(1,128)}', space=vmem, size = 0x12000, scoped, tag = 'internal scratch']
  #allocation2 [shape = 'bf16[42,128]{1,0:T(8,128)(2,1)}', space=vmem, size = 0x3000, scoped, tag = 'scratch operand']
  %s0 = inlined_call_operand.vmem [shape: bf16[2,16,128], index: 0, kind: input, shape index: {}]
  %s1 = inlined_call_operand.vmem [shape: bf16[9,128,32], index: 1, kind: input, shape index: {}]
  %s2 = inlined_call_operand.vmem [shape: f32[1,32], index: 2, kind: input, shape index: {}]
  %s3 = inlined_call_operand.vmem [shape: bf16[32,128], index: 3, kind: input, shape index: {}]
  %s4 = inlined_call_operand.vmem [shape: f32[1,128], index: 4, kind: input, shape index: {}]
  %s5 = inlined_call_operand.vmem [shape: f32[2,24,128], index: 5, kind: output, shape index: {}]
  %s6 = sld [smem:[#allocation0]]
  $region53: #{faster_rcnn_forward.6} parent=0
    _
  %s8 = ssub.s32 1, %s6
  %s9 = scalar_select 0, %s8, %s6
  loop: start=0, step=1, limit=4
  $region2: #{faster_rcnn_forward.6} parent=0 // loop_pre_header
    _
  $region3: #{faster_rcnn_forward.6} parent=0 // loop_header
    %s11 = sphi 0, %s15
    %p12 = scmp.ge.s32.totalorder %s11, 4
    %s21 = sphi 0, %s23
    %s24 = sphi 0, %s21
    %s25 = sphi 0, %s24
    %s41 = sphi 0, %s25
    %s45 = sphi 0, %s45
    %s47 = sphi 0, %s45
    %s48 = sphi 0, %s47
    %s62 = sphi 0, %s48
    %s66 = sphi 0, %s66
    %s68 = sphi 0, %s66
    %s69 = sphi 0, %s68
    %s83 = sphi 0, %s69
    %s87 = sphi 0, %s87
    %s89 = sphi 0, %s87
    %s90 = sphi 0, %s89
    %s104 = sphi 0, %s90
    %s108 = sphi 0, %s108
    %s110 = sphi 0, %s108
    %s111 = sphi 0, %s110
    %s125 = sphi 0, %s111
    %s131 = sphi 0, %s133
    %s134 = sphi 0, %s131
    %s135 = sphi 0, %s134
    %s151 = sphi 0, %s135
  $region4: #{faster_rcnn_forward.6} parent=0 // loop_header_branch
    %14 = sbr.rel (%p12) target = $region8
  $region5: #{faster_rcnn_forward.6} parent=0 // loop_body
    %s16 = ssub.s32 %s11, 1
    %s17 = ssub.s32 %s11, 2
    %s18 = sadd.s32 %s11, 1
    %s19 = ssub.s32 %s11, %s18
    %p20 = scmp.eq.s32.totalorder %s19, 0
    %s22 = sadd.s32 %s21, 1
    %s23 = scalar_select %p20, %s21, %s22
    %p26 = pneg %p20
    %p27 = scmp.eq.s32.totalorder %s11, 1
    %p28 = por %p26, %p27
    %p29 = scmp.ne.s32.totalorder %s21, %s24
    %p30 = scmp.eq.s32.totalorder %s11, 0
    %p31 = por %p29, %p30
    %p32 = scmp.ne.s32.totalorder %s21, %s24
    %p33 = scmp.eq.s32.totalorder %s16, 1
    %p34 = por %p32, %p33
    %p35 = scmp.ne.s32.totalorder %s24, %s25
    %p36 = scmp.eq.s32.totalorder %s16, 0
    %p37 = por %p35, %p36
    %p38 = scmp.ne.s32.totalorder %s24, %s25
    %p39 = scmp.eq.s32.totalorder %s17, 1
    %p40 = por %p38, %p39
    %p42 = scmp.ne.s32.totalorder %s25, %s41
    %p43 = scmp.eq.s32.totalorder %s17, 0
    %p44 = por %p42, %p43
    %s46 = sadd.s32 %s45, 1
    %p49 = scmp.eq.s32.totalorder %s11, 1
    %p50 = scmp.ne.s32.totalorder %s45, %s47
    %p51 = scmp.eq.s32.totalorder %s11, 0
    %p52 = por %p50, %p51
    %p53 = scmp.ne.s32.totalorder %s45, %s47
    %p54 = scmp.eq.s32.totalorder %s16, 1
    %p55 = por %p53, %p54
    %p56 = scmp.ne.s32.totalorder %s47, %s48
    %p57 = scmp.eq.s32.totalorder %s16, 0
    %p58 = por %p56, %p57
    %p59 = scmp.ne.s32.totalorder %s47, %s48
    %p60 = scmp.eq.s32.totalorder %s17, 1
    %p61 = por %p59, %p60
    %p63 = scmp.ne.s32.totalorder %s48, %s62
    %p64 = scmp.eq.s32.totalorder %s17, 0
    %p65 = por %p63, %p64
    %s67 = sadd.s32 %s66, 1
    %p70 = scmp.eq.s32.totalorder %s11, 1
    %p71 = scmp.ne.s32.totalorder %s66, %s68
    %p72 = scmp.eq.s32.totalorder %s11, 0
    %p73 = por %p71, %p72
    %p74 = scmp.ne.s32.totalorder %s66, %s68
    %p75 = scmp.eq.s32.totalorder %s16, 1
    %p76 = por %p74, %p75
    %p77 = scmp.ne.s32.totalorder %s68, %s69
    %p78 = scmp.eq.s32.totalorder %s16, 0
    %p79 = por %p77, %p78
    %p80 = scmp.ne.s32.totalorder %s68, %s69
    %p81 = scmp.eq.s32.totalorder %s17, 1
    %p82 = por %p80, %p81
    %p84 = scmp.ne.s32.totalorder %s69, %s83
    %p85 = scmp.eq.s32.totalorder %s17, 0
    %p86 = por %p84, %p85
    %s88 = sadd.s32 %s87, 1
    %p91 = scmp.eq.s32.totalorder %s11, 1
    %p92 = scmp.ne.s32.totalorder %s87, %s89
    %p93 = scmp.eq.s32.totalorder %s11, 0
    %p94 = por %p92, %p93
    %p95 = scmp.ne.s32.totalorder %s87, %s89
    %p96 = scmp.eq.s32.totalorder %s16, 1
    %p97 = por %p95, %p96
    %p98 = scmp.ne.s32.totalorder %s89, %s90
    %p99 = scmp.eq.s32.totalorder %s16, 0
    %p100 = por %p98, %p99
    %p101 = scmp.ne.s32.totalorder %s89, %s90
    %p102 = scmp.eq.s32.totalorder %s17, 1
    %p103 = por %p101, %p102
    %p105 = scmp.ne.s32.totalorder %s90, %s104
    %p106 = scmp.eq.s32.totalorder %s17, 0
    %p107 = por %p105, %p106
    %s109 = sadd.s32 %s108, 1
    %p112 = scmp.eq.s32.totalorder %s11, 1
    %p113 = scmp.ne.s32.totalorder %s108, %s110
    %p114 = scmp.eq.s32.totalorder %s11, 0
    %p115 = por %p113, %p114
    %p116 = scmp.ne.s32.totalorder %s108, %s110
    %p117 = scmp.eq.s32.totalorder %s16, 1
    %p118 = por %p116, %p117
    %p119 = scmp.ne.s32.totalorder %s110, %s111
    %p120 = scmp.eq.s32.totalorder %s16, 0
    %p121 = por %p119, %p120
    %p122 = scmp.ne.s32.totalorder %s110, %s111
    %p123 = scmp.eq.s32.totalorder %s17, 1
    %p124 = por %p122, %p123
    %p126 = scmp.ne.s32.totalorder %s111, %s125
    %p127 = scmp.eq.s32.totalorder %s17, 0
    %p128 = por %p126, %p127
    %s129 = ssub.s32 %s11, %s18
    %p130 = scmp.eq.s32.totalorder %s129, 0
    %s132 = sadd.s32 %s131, 1
    %s133 = scalar_select %p130, %s131, %s132
    %p136 = pneg %p130
    %p137 = scmp.eq.s32.totalorder %s11, 1
    %p138 = por %p136, %p137
    %p139 = scmp.ne.s32.totalorder %s131, %s134
    %p140 = scmp.eq.s32.totalorder %s11, 0
    %p141 = por %p139, %p140
    %p142 = scmp.ne.s32.totalorder %s131, %s134
    %p143 = scmp.eq.s32.totalorder %s16, 1
    %p144 = por %p142, %p143
    %p145 = scmp.ne.s32.totalorder %s134, %s135
    %p146 = scmp.eq.s32.totalorder %s16, 0
    %p147 = por %p145, %p146
    %p148 = scmp.ne.s32.totalorder %s134, %s135
    %p149 = scmp.eq.s32.totalorder %s17, 1
    %p150 = por %p148, %p149
    %p152 = scmp.ne.s32.totalorder %s135, %s151
    %p153 = scmp.eq.s32.totalorder %s17, 0
    %p154 = por %p152, %p153
    %p155 = scmp.le.s32.totalorder 1, %s11
    %p156 = scmp.lt.s32.totalorder %s11, 3
    %p157 = pnand %p155, %p156
    %p158 = pneg %p157
    // Predicated region
    $region9: #{faster_rcnn_forward.6} parent=5 // pred_check
      _
    $region10: #{faster_rcnn_forward.6} parent=5 // pred_check_branch
      %160 = sbr.rel (%p157) target = $region12
    $region11: #{faster_rcnn_forward.6} parent=5 // pred_region
      %s161 = ssub.s32 %s11, 1
      // Predicated region
      $region13: #{faster_rcnn_forward.6} parent=11 // pred_check
        %p162 = pneg %p58
      $region14: #{faster_rcnn_forward.6} parent=11 // pred_check_branch
        %164 = sbr.rel (%p162) target = $region16
      $region15: #{faster_rcnn_forward.6} parent=11 // pred_region
        _
      $region16: #{faster_rcnn_forward.6} parent=11 // pred_fallthru
        _
      // Predicated region
      $region17: #{faster_rcnn_forward.6} parent=11 // pred_check
        %p165 = pneg %p79
      $region18: #{faster_rcnn_forward.6} parent=11 // pred_check_branch
        %167 = sbr.rel (%p165) target = $region20
      $region19: #{faster_rcnn_forward.6} parent=11 // pred_region
        _
      $region20: #{faster_rcnn_forward.6} parent=11 // pred_fallthru
        _
      // Predicated region
      $region21: #{faster_rcnn_forward.6} parent=11 // pred_check
        %p168 = pneg %p100
      $region22: #{faster_rcnn_forward.6} parent=11 // pred_check_branch
        %170 = sbr.rel (%p168) target = $region24
      $region23: #{faster_rcnn_forward.6} parent=11 // pred_region
        _
      $region24: #{faster_rcnn_forward.6} parent=11 // pred_fallthru
        _
      // Predicated region
      $region25: #{faster_rcnn_forward.6} parent=11 // pred_check
        %p171 = pneg %p121
      $region26: #{faster_rcnn_forward.6} parent=11 // pred_check_branch
        %173 = sbr.rel (%p171) target = $region28
      $region27: #{faster_rcnn_forward.6} parent=11 // pred_region
        _
      $region28: #{faster_rcnn_forward.6} parent=11 // pred_fallthru
        _
    $region12: #{faster_rcnn_forward.6} parent=5 // pred_fallthru
      _
    %p174 = scmp.lt.s32.totalorder %s11, 2
    // Predicated region
    $region29: #{faster_rcnn_forward.6} parent=5 // pred_check
      %p175 = pneg %p174
    $region30: #{faster_rcnn_forward.6} parent=5 // pred_check_branch
      %177 = sbr.rel (%p175) target = $region32
    $region31: #{faster_rcnn_forward.6} parent=5 // pred_region
      // Predicated region
      $region33: #{faster_rcnn_forward.6} parent=31 // pred_check
        %p178 = pneg %p31
      $region34: #{faster_rcnn_forward.6} parent=31 // pred_check_branch
        %180 = sbr.rel (%p178) target = $region36
      $region35: #{faster_rcnn_forward.6} parent=31 // pred_region
        %p181 = scmp.lt.s32.totalorder %s11, 1
        %s182 = scalar_select %p181, %s11, 1
        %s183 = smul.addr %s182, 2
        %s184 = smul.addr %s183, 4
        %s185 = scalar_lea.vmem %s0, %s184
      $region36: #{faster_rcnn_forward.6} parent=31 // pred_fallthru
        _
    $region32: #{faster_rcnn_forward.6} parent=5 // pred_fallthru
      _
    %p186 = scmp.le.s32.totalorder 1, %s11
    %p187 = scmp.lt.s32.totalorder %s11, 3
    %p188 = pnand %p186, %p187
    %p189 = pneg %p188
    // Predicated region
    $region37: #{faster_rcnn_forward.6} parent=5 // pred_check
      _
    $region38: #{faster_rcnn_forward.6} parent=5 // pred_check_branch
      %191 = sbr.rel (%p188) target = $region40
    $region39: #{faster_rcnn_forward.6} parent=5 // pred_region
      %s192 = ssub.s32 %s11, 1
      %p193 = scmp.lt.s32.totalorder %s16, 1
      %s194 = scalar_select %p193, %s16, 1
      %s195 = smul.addr %s194, 2
      %s196 = smul.addr %s195, 4
      %s197 = scalar_lea.vmem %s0, %s196
      %p198 = pneg %p37
      %p199 = pneg %p34
      %p200 = pneg %p58
      %p201 = pneg %p55
      %p202 = pneg %p79
      %p203 = pneg %p76
      %p204 = pneg %p100
      %p205 = pneg %p97
      %p206 = pneg %p121
      %p207 = pneg %p118
      %p208 = pneg %p147
      %p209 = pneg %p144
      %p210 = scmp.lt.s32.totalorder %s16, 1
      %s211 = scalar_select %p210, %s16, 1
      %s212 = smul.addr %s211, 3
      %s213 = smul.addr %s212, 8
      %s214 = scalar_lea.vmem %s5, %s213
      %p215 = scmp.lt.s32.totalorder %s16, 1
      %s216 = scalar_select %p215, %s16, 1
      %s217 = smul.addr %s216, 2
      %s218 = smul.addr %s217, 4
      %s219 = scalar_lea.vmem %s0, %s218
      %p220 = scmp.lt.s32.totalorder %s16, 1
      %s221 = scalar_select %p220, %s16, 1
      %s222 = smul.addr %s221, 3
      %s223 = smul.addr %s222, 8
      %s224 = scalar_lea.vmem %s5, %s223
      %226 = vst [vmem:[#allocation2] sm:$0xf] 0
      %227 = vst [vmem:[#allocation2 + $0x4] sm:$0xf] 0
      %228 = vst [vmem:[#allocation2 + $0x8] sm:$0xf] 0
      %229 = vst [vmem:[#allocation2 + $0xc] sm:$0xf] 0
      %230 = vst [vmem:[#allocation2 + $0x10] sm:$0xf] 0
      %231 = vst [vmem:[#allocation2 + $0x14] sm:$0x1] 0
      %v232 = vld [vmem:[%s219] sm:$0xf]
      %v233 = vld [vmem:[%s219 + $0x4] sm:$0xf]
      %v235 = vshll.u32 %v232, 16
      %v237 = vrot.slane %v235, 5
      %v238 = vshrl.u32 %v232, 16
      %v240 = vrot.slane %v238, 4
      %v241 = vor.u32 %v240, %v237
      %v242 = vrot.slane %v241, 4
      %vm245 = vcmask 1043459
      %vm246 = vsmask.f32 7950
      %vm247 = vmand %vm245, %vm246
      %v248 = vld [vmem:[#allocation2] sm:$0x8]
      %v249 = vsel %vm247, %v237, %v248
      %250 = vst [vmem:[#allocation2] sm:$0x8] %v249
      %vm251 = vcmask 1041408
      %vm252 = vsmask.f32 1280
      %vm253 = vmand %vm251, %vm252
      %v254 = vld [vmem:[#allocation2 + $0x4] sm:$0x3]
      %v255 = vsel %vm253, %v242, %v254
      %256 = vst [vmem:[#allocation2 + $0x4] sm:$0x3] %v255
      %v257 = vrot.slane %v238, 7
      %v258 = vor.u32 %v257, %v235
      %v259 = vrot.slane %v257, 4
      %vm262 = vcmask 1043458
      %vm263 = vsmask.f32 7946
      %vm264 = vmand %vm262, %vm263
      %v265 = vld [vmem:[#allocation2 + $0x4] sm:$0xc]
      %v266 = vsel %vm264, %v258, %v265
      %267 = vst [vmem:[#allocation2 + $0x4] sm:$0xc] %v266
      %vm268 = vcmask 1040384
      %vm269 = vsmask.f32 256
      %vm270 = vmand %vm268, %vm269
      %v271 = vld [vmem:[#allocation2 + $0x8] sm:$0x1]
      %v272 = vsel %vm270, %v259, %v271
      %273 = vst [vmem:[#allocation2 + $0x8] sm:$0x1] %v272
      %v275 = vshrl.u32 %v233, 16
      %v277 = vrot.slane %v275, 6
      %v278 = vshll.u32 %v233, 16
      %v280 = vrot.slane %v278, 7
      %v281 = vor.u32 %v277, %v280
      %vm283 = vcmask 1043457
      %vm284 = vsmask.f32 3334
      %vm285 = vmand %vm283, %vm284
      %v286 = vld [vmem:[#allocation2 + $0x8] sm:$0xe]
      %v287 = vsel %vm285, %v281, %v286
      %288 = vst [vmem:[#allocation2 + $0x8] sm:$0xe] %v287
      %v289 = vrot.slane %v275, 5
      %v290 = vrot.slane %v278, 6
      %v291 = vor.u32 %v289, %v290
      %v292 = vrot.slane %v291, 4
      %vm294 = vcmask 1042432
      %vm295 = vsmask.f32 2306
      %vm296 = vmand %vm294, %vm295
      %v297 = vld [vmem:[#allocation2 + $0xc] sm:$0x7]
      %v298 = vsel %vm296, %v292, %v297
      %299 = vst [vmem:[#allocation2 + $0xc] sm:$0x7] %v298
      %v300 = vld [vmem:[#allocation2] sm:$0xf]
      %v301 = vld [vmem:[#allocation2 + $0x4] sm:$0xf]
      %v302 = vld [vmem:[#allocation2 + $0x8] sm:$0xf]
      %v303 = vld [vmem:[%s1] sm:$0xf]
      %v304 = vld [vmem:[%s1 + $0x4] sm:$0xf]
      %v305 = vld [vmem:[%s1 + $0x8] sm:$0xf]
      %v306 = vld [vmem:[%s1 + $0xc] sm:$0xf]
      %v307 = vld [vmem:[%s1 + $0x10] sm:$0xf]
      %v308 = vld [vmem:[%s1 + $0x14] sm:$0xf]
      %v309 = vld [vmem:[%s1 + $0x18] sm:$0xf]
      %v310 = vld [vmem:[%s1 + $0x1c] sm:$0xf]
      %v311 = vld [vmem:[%s1 + $0x20] sm:$0xf]
      %v312 = vld [vmem:[%s1 + $0x24] sm:$0xf]
      %v313 = vld [vmem:[%s1 + $0x28] sm:$0xf]
      %v314 = vld [vmem:[%s1 + $0x2c] sm:$0xf]
      %v315 = vld [vmem:[%s1 + $0x30] sm:$0xf]
      %v316 = vld [vmem:[%s1 + $0x34] sm:$0xf]
      %v317 = vld [vmem:[%s1 + $0x38] sm:$0xf]
      %v318 = vld [vmem:[%s1 + $0x3c] sm:$0xf]
      %v319 = vld [vmem:[#allocation2 + $0xc] sm:$0x1]
      %s320 = scalar_lea.vmem %s1, 64
      %v321 = vld [vmem:[%s320] sm:$0xf]
      %v322 = vld [vmem:[%s320 + $0x4] sm:$0xf]
      %v323 = vld [vmem:[%s320 + $0x8] sm:$0xf]
      %v324 = vld [vmem:[%s320 + $0xc] sm:$0xf]
      %v325 = vld [vmem:[%s320 + $0x10] sm:$0xf]
      %v326 = vld [vmem:[%s320 + $0x14] sm:$0xf]
      %v327 = vld [vmem:[%s320 + $0x18] sm:$0xf]
      %v328 = vld [vmem:[%s320 + $0x1c] sm:$0xf]
      %v329 = vld [vmem:[%s320 + $0x20] sm:$0xf]
      %v330 = vld [vmem:[%s320 + $0x24] sm:$0xf]
      %v331 = vld [vmem:[%s320 + $0x28] sm:$0xf]
      %v332 = vld [vmem:[%s320 + $0x2c] sm:$0xf]
      %v333 = vld [vmem:[%s320 + $0x30] sm:$0xf]
      %v334 = vld [vmem:[%s320 + $0x34] sm:$0xf]
      %v335 = vld [vmem:[%s320 + $0x38] sm:$0xf]
      %v336 = vld [vmem:[%s320 + $0x3c] sm:$0xf]
      %v341 = vunpack.c.l.b16 %v300
      %v342 = vunpack.c.l.b16 %v301
      %v343 = vunpack.c.l.b16 %v302
      %v344 = vunpack.c.l.b16 %v319
      %v345 = vpack.c.b16 %v342, %v341
      %v346 = vpack.c.b16 %v344, %v343
      %vm347 = vsmask.f32 7424
      %v349 = vshrl.u32 %v345, 16
      %v351 = vshll.u32 %v345, 16
      %v353 = vrot.slane %v351, 1
      %v354 = vor.u32 %v349, %v353
      %v356 = vshll.u32 %v346, 16
      %v358 = vrot.slane %v356, 1
      %v359 = vsel %vm347, %v354, %v358
      %v360 = vshrl.u32 %v346, 16
      %v362 = vor.u32 %v360, %v358
      %v381 = vunpack.c.l.b16 %v321
      %v382 = vunpack.c.l.b16 %v322
      %v383 = vunpack.c.l.b16 %v323
      %v384 = vunpack.c.l.b16 %v324
      %v385 = vunpack.c.l.b16 %v325
      %v386 = vunpack.c.l.b16 %v326
      %v387 = vunpack.c.l.b16 %v327
      %v388 = vunpack.c.l.b16 %v328
      %v389 = vunpack.c.l.b16 %v329
      %v390 = vunpack.c.l.b16 %v330
      %v391 = vunpack.c.l.b16 %v331
      %v392 = vunpack.c.l.b16 %v332
      %v393 = vunpack.c.l.b16 %v333
      %v394 = vunpack.c.l.b16 %v334
      %v395 = vunpack.c.l.b16 %v335
      %v396 = vunpack.c.l.b16 %v336
      %v397 = vpack.c.b16 %v382, %v381
      %v398 = vpack.c.b16 %v384, %v383
      %v399 = vpack.c.b16 %v386, %v385
      %v400 = vpack.c.b16 %v388, %v387
      %v401 = vpack.c.b16 %v390, %v389
      %v402 = vpack.c.b16 %v392, %v391
      %v403 = vpack.c.b16 %v394, %v393
      %v404 = vpack.c.b16 %v396, %v395
      %413 = vmatprep.subr.bf16.mxu0 0
      %414 = vmatpush1.bf16.msra.mxu0 %v404
      %415 = vmatprep.subr.bf16.mxu0 0
      %416 = vmatpush1.bf16.msra.mxu0 %v403
      %417 = vmatprep.subr.bf16.mxu0 0
      %418 = vmatpush1.bf16.msra.mxu0 %v402
      %419 = vmatprep.subr.bf16.mxu0 0
      %420 = vmatpush1.bf16.msra.mxu0 %v401
      %421 = vmatprep.subr.bf16.mxu0 0
      %422 = vmatpush1.bf16.msra.mxu0 %v400
      %423 = vmatprep.subr.bf16.mxu0 0
      %424 = vmatpush1.bf16.msra.mxu0 %v399
      %425 = vmatprep.subr.bf16.mxu0 0
      %426 = vmatpush1.bf16.msra.mxu0 %v398
      %427 = vmatprep.subr.bf16.mxu0 0
      %428 = vmatpush1.bf16.msra.mxu0 %v397
      %429 = vmatprep.subr.bf16.mxu0 0
      %430 = vmatpush2.bf16.msra.mxu0 0
      %431 = vmatprep.subr.bf16.mxu0 0
      %432 = vmatpush2.bf16.msra.mxu0 0
      %433 = vmatprep.subr.bf16.mxu0 0
      %434 = vmatpush2.bf16.msra.mxu0 0
      %435 = vmatprep.subr.bf16.mxu0 0
      %436 = vmatpush2.bf16.msra.mxu0 0
      %437 = vmatprep.subr.bf16.mxu0 0
      %438 = vmatpush2.bf16.msra.mxu0 0
      %439 = vmatprep.subr.bf16.mxu0 0
      %440 = vmatpush2.bf16.msra.mxu0 0
      %441 = vmatprep.subr.bf16.mxu0 0
      %442 = vmatpush2.bf16.msra.mxu0 0
      %443 = vmatprep.subr.bf16.mxu0 0
      %444 = vmatpush2.bf16.msra.mxu0 0
      %445 = vmatprep.mubr.bf16.mxu0 0
      %446 = vmatmul.mubr.bf16.gmra.mxu0 %v359
      %v447 = vpop.f32.mrf.mxu0
      %v448 = vadd.f32 0.0, %v447
      %v449 = vpop.f32.mrf.mxu0
      %v450 = vpop.f32.mrf.mxu0
      %v451 = vadd.f32 0.0, %v450
      %v452 = vpop.f32.mrf.mxu0
      %453 = vmatprep.mubr.bf16.mxu0 0
      %454 = vmatmul.mubr.bf16.gmra.mxu0 %v362
      %v455 = vpop.f32.mrf.mxu0
      %v456 = vadd.f32 0.0, %v455
      %v457 = vpop.f32.mrf.mxu0
      %v458 = vpop.f32.mrf.mxu0
      %v459 = vpop.f32.mrf.mxu0
      %460 = vdwg.mxu0
      %v461 = vpack.c.b16 %v343, %v343
      %v480 = vunpack.c.l.b16 %v303
      %v481 = vunpack.c.l.b16 %v304
      %v482 = vunpack.c.l.b16 %v305
      %v483 = vunpack.c.l.b16 %v306
      %v484 = vunpack.c.l.b16 %v307
      %v485 = vunpack.c.l.b16 %v308
      %v486 = vunpack.c.l.b16 %v309
      %v487 = vunpack.c.l.b16 %v310
      %v488 = vunpack.c.l.b16 %v311
      %v489 = vunpack.c.l.b16 %v312
      %v490 = vunpack.c.l.b16 %v313
      %v491 = vunpack.c.l.b16 %v314
      %v492 = vunpack.c.l.b16 %v315
      %v493 = vunpack.c.l.b16 %v316
      %v494 = vunpack.c.l.b16 %v317
      %v495 = vunpack.c.l.b16 %v318
      %v496 = vpack.c.b16 %v481, %v480
      %v497 = vpack.c.b16 %v483, %v482
      %v498 = vpack.c.b16 %v485, %v484
      %v499 = vpack.c.b16 %v487, %v486
      %v500 = vpack.c.b16 %v489, %v488
      %v501 = vpack.c.b16 %v491, %v490
      %v502 = vpack.c.b16 %v493, %v492
      %v503 = vpack.c.b16 %v495, %v494
      %512 = vmatprep.subr.bf16.mxu0 0
      %513 = vmatpush1.bf16.msra.mxu0 %v503
      %514 = vmatprep.subr.bf16.mxu0 0
      %515 = vmatpush1.bf16.msra.mxu0 %v502
      %516 = vmatprep.subr.bf16.mxu0 0
      %517 = vmatpush1.bf16.msra.mxu0 %v501
      %518 = vmatprep.subr.bf16.mxu0 0
      %519 = vmatpush1.bf16.msra.mxu0 %v500
      %520 = vmatprep.subr.bf16.mxu0 0
      %521 = vmatpush1.bf16.msra.mxu0 %v499
      %522 = vmatprep.subr.bf16.mxu0 0
      %523 = vmatpush1.bf16.msra.mxu0 %v498
      %524 = vmatprep.subr.bf16.mxu0 0
      %525 = vmatpush1.bf16.msra.mxu0 %v497
      %526 = vmatprep.subr.bf16.mxu0 0
      %527 = vmatpush1.bf16.msra.mxu0 %v496
      %528 = vmatprep.subr.bf16.mxu0 0
      %529 = vmatpush2.bf16.msra.mxu0 0
      %530 = vmatprep.subr.bf16.mxu0 0
      %531 = vmatpush2.bf16.msra.mxu0 0
      %532 = vmatprep.subr.bf16.mxu0 0
      %533 = vmatpush2.bf16.msra.mxu0 0
      %534 = vmatprep.subr.bf16.mxu0 0
      %535 = vmatpush2.bf16.msra.mxu0 0
      %536 = vmatprep.subr.bf16.mxu0 0
      %537 = vmatpush2.bf16.msra.mxu0 0
      %538 = vmatprep.subr.bf16.mxu0 0
      %539 = vmatpush2.bf16.msra.mxu0 0
      %540 = vmatprep.subr.bf16.mxu0 0
      %541 = vmatpush2.bf16.msra.mxu0 0
      %542 = vmatprep.subr.bf16.mxu0 0
      %543 = vmatpush2.bf16.msra.mxu0 0
      %544 = vmatprep.mubr.bf16.mxu0 0
      %545 = vmatmul.mubr.bf16.gmra.mxu0 %v345
      %v546 = vpop.f32.mrf.mxu0
      %v547 = vadd.f32 %v448, %v546
      %v548 = vpop.f32.mrf.mxu0
      %v549 = vpop.f32.mrf.mxu0
      %v550 = vadd.f32 %v451, %v549
      %v551 = vpop.f32.mrf.mxu0
      %552 = vmatprep.mubr.bf16.mxu0 0
      %553 = vmatmul.mubr.bf16.gmra.mxu0 %v461
      %v554 = vpop.f32.mrf.mxu0
      %v555 = vadd.f32 %v456, %v554
      %v556 = vpop.f32.mrf.mxu0
      %v557 = vpop.f32.mrf.mxu0
      %v558 = vpop.f32.mrf.mxu0
      %559 = vdwg.mxu0
      %v560 = vld [vmem:[#allocation2] sm:$0xe]
      %s561 = scalar_lea.vmem %s1, 128
      %v562 = vld [vmem:[%s561] sm:$0xf]
      %v563 = vld [vmem:[%s561 + $0x4] sm:$0xf]
      %v564 = vld [vmem:[%s561 + $0x8] sm:$0xf]
      %v565 = vld [vmem:[%s561 + $0xc] sm:$0xf]
      %v566 = vld [vmem:[%s561 + $0x10] sm:$0xf]
      %v567 = vld [vmem:[%s561 + $0x14] sm:$0xf]
      %v568 = vld [vmem:[%s561 + $0x18] sm:$0xf]
      %v569 = vld [vmem:[%s561 + $0x1c] sm:$0xf]
      %v570 = vld [vmem:[%s561 + $0x20] sm:$0xf]
      %v571 = vld [vmem:[%s561 + $0x24] sm:$0xf]
      %v572 = vld [vmem:[%s561 + $0x28] sm:$0xf]
      %v573 = vld [vmem:[%s561 + $0x2c] sm:$0xf]
      %v574 = vld [vmem:[%s561 + $0x30] sm:$0xf]
      %v575 = vld [vmem:[%s561 + $0x34] sm:$0xf]
      %v576 = vld [vmem:[%s561 + $0x38] sm:$0xf]
      %v577 = vld [vmem:[%s561 + $0x3c] sm:$0xf]
      %v579 = vunpack.c.l.b16 %v560
      %v580 = vpack.c.b16 %v342, %v579
      %vm581 = vcmask 1046528
      %v582 = vrot.slane %v580, 1
      %v583 = vrot.slane %v346, 1
      %v584 = vsel %vm581, %v582, %v583
      %v603 = vunpack.c.l.b16 %v562
      %v604 = vunpack.c.l.b16 %v563
      %v605 = vunpack.c.l.b16 %v564
      %v606 = vunpack.c.l.b16 %v565
      %v607 = vunpack.c.l.b16 %v566
      %v608 = vunpack.c.l.b16 %v567
      %v609 = vunpack.c.l.b16 %v568
      %v610 = vunpack.c.l.b16 %v569
      %v611 = vunpack.c.l.b16 %v570
      %v612 = vunpack.c.l.b16 %v571
      %v613 = vunpack.c.l.b16 %v572
      %v614 = vunpack.c.l.b16 %v573
      %v615 = vunpack.c.l.b16 %v574
      %v616 = vunpack.c.l.b16 %v575
      %v617 = vunpack.c.l.b16 %v576
      %v618 = vunpack.c.l.b16 %v577
      %v619 = vpack.c.b16 %v604, %v603
      %v620 = vpack.c.b16 %v606, %v605
      %v621 = vpack.c.b16 %v608, %v607
      %v622 = vpack.c.b16 %v610, %v609
      %v623 = vpack.c.b16 %v612, %v611
      %v624 = vpack.c.b16 %v614, %v613
      %v625 = vpack.c.b16 %v616, %v615
      %v626 = vpack.c.b16 %v618, %v617
      %635 = vmatprep.subr.bf16.mxu0 0
      %636 = vmatpush1.bf16.msra.mxu0 %v626
      %637 = vmatprep.subr.bf16.mxu0 0
      %638 = vmatpush1.bf16.msra.mxu0 %v625
      %639 = vmatprep.subr.bf16.mxu0 0
      %640 = vmatpush1.bf16.msra.mxu0 %v624
      %641 = vmatprep.subr.bf16.mxu0 0
      %642 = vmatpush1.bf16.msra.mxu0 %v623
      %643 = vmatprep.subr.bf16.mxu0 0
      %644 = vmatpush1.bf16.msra.mxu0 %v622
      %645 = vmatprep.subr.bf16.mxu0 0
      %646 = vmatpush1.bf16.msra.mxu0 %v621
      %647 = vmatprep.subr.bf16.mxu0 0
      %648 = vmatpush1.bf16.msra.mxu0 %v620
      %649 = vmatprep.subr.bf16.mxu0 0
      %650 = vmatpush1.bf16.msra.mxu0 %v619
      %651 = vmatprep.subr.bf16.mxu0 0
      %652 = vmatpush2.bf16.msra.mxu0 0
      %653 = vmatprep.subr.bf16.mxu0 0
      %654 = vmatpush2.bf16.msra.mxu0 0
      %655 = vmatprep.subr.bf16.mxu0 0
      %656 = vmatpush2.bf16.msra.mxu0 0
      %657 = vmatprep.subr.bf16.mxu0 0
      %658 = vmatpush2.bf16.msra.mxu0 0
      %659 = vmatprep.subr.bf16.mxu0 0
      %660 = vmatpush2.bf16.msra.mxu0 0
      %661 = vmatprep.subr.bf16.mxu0 0
      %662 = vmatpush2.bf16.msra.mxu0 0
      %663 = vmatprep.subr.bf16.mxu0 0
      %664 = vmatpush2.bf16.msra.mxu0 0
      %665 = vmatprep.subr.bf16.mxu0 0
      %666 = vmatpush2.bf16.msra.mxu0 0
      %667 = vmatprep.mubr.bf16.mxu0 0
      %668 = vmatmul.mubr.bf16.gmra.mxu0 %v584
      %v669 = vpop.f32.mrf.mxu0
      %v670 = vadd.f32 0.0, %v669
      %v671 = vpop.f32.mrf.mxu0
      %v672 = vpop.f32.mrf.mxu0
      %v673 = vadd.f32 0.0, %v672
      %v674 = vpop.f32.mrf.mxu0
      %675 = vmatprep.mubr.bf16.mxu0 0
      %676 = vmatmul.mubr.bf16.gmra.mxu0 %v583
      %v677 = vpop.f32.mrf.mxu0
      %v678 = vadd.f32 0.0, %v677
      %v679 = vpop.f32.mrf.mxu0
      %v680 = vpop.f32.mrf.mxu0
      %v681 = vpop.f32.mrf.mxu0
      %682 = vdwg.mxu0
      %v683 = vadd.f32 %v547, %v670
      %v684 = vadd.f32 %v550, %v673
      %v685 = vadd.f32 %v555, %v678
      %v686 = vld [vmem:[#allocation2] sm:$0x8]
      %v687 = vld [vmem:[#allocation2 + $0xc] sm:$0x7]
      %s688 = scalar_lea.vmem %s1, 192
      %v689 = vld [vmem:[%s688] sm:$0xf]
      %v690 = vld [vmem:[%s688 + $0x4] sm:$0xf]
      %v691 = vld [vmem:[%s688 + $0x8] sm:$0xf]
      %v692 = vld [vmem:[%s688 + $0xc] sm:$0xf]
      %v693 = vld [vmem:[%s688 + $0x10] sm:$0xf]
      %v694 = vld [vmem:[%s688 + $0x14] sm:$0xf]
      %v695 = vld [vmem:[%s688 + $0x18] sm:$0xf]
      %v696 = vld [vmem:[%s688 + $0x1c] sm:$0xf]
      %v697 = vld [vmem:[%s688 + $0x20] sm:$0xf]
      %v698 = vld [vmem:[%s688 + $0x24] sm:$0xf]
      %v699 = vld [vmem:[%s688 + $0x28] sm:$0xf]
      %v700 = vld [vmem:[%s688 + $0x2c] sm:$0xf]
      %v701 = vld [vmem:[%s688 + $0x30] sm:$0xf]
      %v702 = vld [vmem:[%s688 + $0x34] sm:$0xf]
      %v703 = vld [vmem:[%s688 + $0x38] sm:$0xf]
      %v704 = vld [vmem:[%s688 + $0x3c] sm:$0xf]
      %v707 = vunpack.c.l.b16 %v686
      %v708 = vunpack.c.l.b16 %v687
      %v709 = vpack.c.b16 %v342, %v707
      %v710 = vpack.c.b16 %v708, %v343
      %vm711 = vcmask 1044480
      %v712 = vrot.slane %v709, 3
      %v713 = vrot.slane %v710, 3
      %v714 = vsel %vm711, %v712, %v713
      %v733 = vunpack.c.l.b16 %v689
      %v734 = vunpack.c.l.b16 %v690
      %v735 = vunpack.c.l.b16 %v691
      %v736 = vunpack.c.l.b16 %v692
      %v737 = vunpack.c.l.b16 %v693
      %v738 = vunpack.c.l.b16 %v694
      %v739 = vunpack.c.l.b16 %v695
      %v740 = vunpack.c.l.b16 %v696
      %v741 = vunpack.c.l.b16 %v697
      %v742 = vunpack.c.l.b16 %v698
      %v743 = vunpack.c.l.b16 %v699
      %v744 = vunpack.c.l.b16 %v700
      %v745 = vunpack.c.l.b16 %v701
      %v746 = vunpack.c.l.b16 %v702
      %v747 = vunpack.c.l.b16 %v703
      %v748 = vunpack.c.l.b16 %v704
      %v749 = vpack.c.b16 %v734, %v733
      %v750 = vpack.c.b16 %v736, %v735
      %v751 = vpack.c.b16 %v738, %v737
      %v752 = vpack.c.b16 %v740, %v739
      %v753 = vpack.c.b16 %v742, %v741
      %v754 = vpack.c.b16 %v744, %v743
      %v755 = vpack.c.b16 %v746, %v745
      %v756 = vpack.c.b16 %v748, %v747
      %765 = vmatprep.subr.bf16.mxu0 0
      %766 = vmatpush1.bf16.msra.mxu0 %v756
      %767 = vmatprep.subr.bf16.mxu0 0
      %768 = vmatpush1.bf16.msra.mxu0 %v755
      %769 = vmatprep.subr.bf16.mxu0 0
      %770 = vmatpush1.bf16.msra.mxu0 %v754
      %771 = vmatprep.subr.bf16.mxu0 0
      %772 = vmatpush1.bf16.msra.mxu0 %v753
      %773 = vmatprep.subr.bf16.mxu0 0
      %774 = vmatpush1.bf16.msra.mxu0 %v752
      %775 = vmatprep.subr.bf16.mxu0 0
      %776 = vmatpush1.bf16.msra.mxu0 %v751
      %777 = vmatprep.subr.bf16.mxu0 0
      %778 = vmatpush1.bf16.msra.mxu0 %v750
      %779 = vmatprep.subr.bf16.mxu0 0
      %780 = vmatpush1.bf16.msra.mxu0 %v749
      %781 = vmatprep.subr.bf16.mxu0 0
      %782 = vmatpush2.bf16.msra.mxu0 0
      %783 = vmatprep.subr.bf16.mxu0 0
      %784 = vmatpush2.bf16.msra.mxu0 0
      %785 = vmatprep.subr.bf16.mxu0 0
      %786 = vmatpush2.bf16.msra.mxu0 0
      %787 = vmatprep.subr.bf16.mxu0 0
      %788 = vmatpush2.bf16.msra.mxu0 0
      %789 = vmatprep.subr.bf16.mxu0 0
      %790 = vmatpush2.bf16.msra.mxu0 0
      %791 = vmatprep.subr.bf16.mxu0 0
      %792 = vmatpush2.bf16.msra.mxu0 0
      %793 = vmatprep.subr.bf16.mxu0 0
      %794 = vmatpush2.bf16.msra.mxu0 0
      %795 = vmatprep.subr.bf16.mxu0 0
      %796 = vmatpush2.bf16.msra.mxu0 0
      %797 = vmatprep.mubr.bf16.mxu0 0
      %798 = vmatmul.mubr.bf16.gmra.mxu0 %v714
      %v799 = vpop.f32.mrf.mxu0
      %v800 = vadd.f32 0.0, %v799
      %v801 = vpop.f32.mrf.mxu0
      %v802 = vpop.f32.mrf.mxu0
      %v803 = vadd.f32 0.0, %v802
      %v804 = vpop.f32.mrf.mxu0
      %805 = vmatprep.mubr.bf16.mxu0 0
      %806 = vmatmul.mubr.bf16.gmra.mxu0 %v713
      %v807 = vpop.f32.mrf.mxu0
      %v808 = vadd.f32 0.0, %v807
      %v809 = vpop.f32.mrf.mxu0
      %v810 = vpop.f32.mrf.mxu0
      %v811 = vpop.f32.mrf.mxu0
      %812 = vdwg.mxu0
      %v813 = vadd.f32 %v683, %v800
      %v814 = vadd.f32 %v684, %v803
      %v815 = vadd.f32 %v685, %v808
      %v816 = vld [vmem:[#allocation2 + $0xc] sm:$0xf]
      %s817 = scalar_lea.vmem %s1, 256
      %v818 = vld [vmem:[%s817] sm:$0xf]
      %v819 = vld [vmem:[%s817 + $0x4] sm:$0xf]
      %v820 = vld [vmem:[%s817 + $0x8] sm:$0xf]
      %v821 = vld [vmem:[%s817 + $0xc] sm:$0xf]
      %v822 = vld [vmem:[%s817 + $0x10] sm:$0xf]
      %v823 = vld [vmem:[%s817 + $0x14] sm:$0xf]
      %v824 = vld [vmem:[%s817 + $0x18] sm:$0xf]
      %v825 = vld [vmem:[%s817 + $0x1c] sm:$0xf]
      %v826 = vld [vmem:[%s817 + $0x20] sm:$0xf]
      %v827 = vld [vmem:[%s817 + $0x24] sm:$0xf]
      %v828 = vld [vmem:[%s817 + $0x28] sm:$0xf]
      %v829 = vld [vmem:[%s817 + $0x2c] sm:$0xf]
      %v830 = vld [vmem:[%s817 + $0x30] sm:$0xf]
      %v831 = vld [vmem:[%s817 + $0x34] sm:$0xf]
      %v832 = vld [vmem:[%s817 + $0x38] sm:$0xf]
      %v833 = vld [vmem:[%s817 + $0x3c] sm:$0xf]
      %v835 = vunpack.c.l.b16 %v816
      %v836 = vpack.c.b16 %v835, %v343
      %vm837 = vsmask.f32 4352
      %v839 = vshrl.u32 %v709, 16
      %v841 = vrot.slane %v839, 3
      %v842 = vshll.u32 %v709, 16
      %v844 = vrot.slane %v842, 4
      %v845 = vor.u32 %v841, %v844
      %v847 = vshrl.u32 %v836, 16
      %v849 = vrot.slane %v847, 3
      %v850 = vshll.u32 %v836, 16
      %v852 = vrot.slane %v850, 4
      %v853 = vor.u32 %v849, %v852
      %v854 = vsel %vm837, %v845, %v853
      %v873 = vunpack.c.l.b16 %v818
      %v874 = vunpack.c.l.b16 %v819
      %v875 = vunpack.c.l.b16 %v820
      %v876 = vunpack.c.l.b16 %v821
      %v877 = vunpack.c.l.b16 %v822
      %v878 = vunpack.c.l.b16 %v823
      %v879 = vunpack.c.l.b16 %v824
      %v880 = vunpack.c.l.b16 %v825
      %v881 = vunpack.c.l.b16 %v826
      %v882 = vunpack.c.l.b16 %v827
      %v883 = vunpack.c.l.b16 %v828
      %v884 = vunpack.c.l.b16 %v829
      %v885 = vunpack.c.l.b16 %v830
      %v886 = vunpack.c.l.b16 %v831
      %v887 = vunpack.c.l.b16 %v832
      %v888 = vunpack.c.l.b16 %v833
      %v889 = vpack.c.b16 %v874, %v873
      %v890 = vpack.c.b16 %v876, %v875
      %v891 = vpack.c.b16 %v878, %v877
      %v892 = vpack.c.b16 %v880, %v879
      %v893 = vpack.c.b16 %v882, %v881
      %v894 = vpack.c.b16 %v884, %v883
      %v895 = vpack.c.b16 %v886, %v885
      %v896 = vpack.c.b16 %v888, %v887
      %905 = vmatprep.subr.bf16.mxu0 0
      %906 = vmatpush1.bf16.msra.mxu0 %v896
      %907 = vmatprep.subr.bf16.mxu0 0
      %908 = vmatpush1.bf16.msra.mxu0 %v895
      %909 = vmatprep.subr.bf16.mxu0 0
      %910 = vmatpush1.bf16.msra.mxu0 %v894
      %911 = vmatprep.subr.bf16.mxu0 0
      %912 = vmatpush1.bf16.msra.mxu0 %v893
      %913 = vmatprep.subr.bf16.mxu0 0
      %914 = vmatpush1.bf16.msra.mxu0 %v892
      %915 = vmatprep.subr.bf16.mxu0 0
      %916 = vmatpush1.bf16.msra.mxu0 %v891
      %917 = vmatprep.subr.bf16.mxu0 0
      %918 = vmatpush1.bf16.msra.mxu0 %v890
      %919 = vmatprep.subr.bf16.mxu0 0
      %920 = vmatpush1.bf16.msra.mxu0 %v889
      %921 = vmatprep.subr.bf16.mxu0 0
      %922 = vmatpush2.bf16.msra.mxu0 0
      %923 = vmatprep.subr.bf16.mxu0 0
      %924 = vmatpush2.bf16.msra.mxu0 0
      %925 = vmatprep.subr.bf16.mxu0 0
      %926 = vmatpush2.bf16.msra.mxu0 0
      %927 = vmatprep.subr.bf16.mxu0 0
      %928 = vmatpush2.bf16.msra.mxu0 0
      %929 = vmatprep.subr.bf16.mxu0 0
      %930 = vmatpush2.bf16.msra.mxu0 0
      %931 = vmatprep.subr.bf16.mxu0 0
      %932 = vmatpush2.bf16.msra.mxu0 0
      %933 = vmatprep.subr.bf16.mxu0 0
      %934 = vmatpush2.bf16.msra.mxu0 0
      %935 = vmatprep.subr.bf16.mxu0 0
      %936 = vmatpush2.bf16.msra.mxu0 0
      %937 = vmatprep.mubr.bf16.mxu0 0
      %938 = vmatmul.mubr.bf16.gmra.mxu0 %v854
      %v939 = vpop.f32.mrf.mxu0
      %v940 = vadd.f32 0.0, %v939
      %v941 = vpop.f32.mrf.mxu0
      %v942 = vpop.f32.mrf.mxu0
      %v943 = vadd.f32 0.0, %v942
      %v944 = vpop.f32.mrf.mxu0
      %945 = vmatprep.mubr.bf16.mxu0 0
      %946 = vmatmul.mubr.bf16.gmra.mxu0 %v853
      %v947 = vpop.f32.mrf.mxu0
      %v948 = vadd.f32 0.0, %v947
      %v949 = vpop.f32.mrf.mxu0
      %v950 = vpop.f32.mrf.mxu0
      %v951 = vpop.f32.mrf.mxu0
      %952 = vdwg.mxu0
      %v953 = vadd.f32 %v813, %v940
      %v954 = vadd.f32 %v814, %v943
      %v955 = vadd.f32 %v815, %v948
      %s956 = scalar_lea.vmem %s1, 320
      %v957 = vld [vmem:[%s956] sm:$0xf]
      %v958 = vld [vmem:[%s956 + $0x4] sm:$0xf]
      %v959 = vld [vmem:[%s956 + $0x8] sm:$0xf]
      %v960 = vld [vmem:[%s956 + $0xc] sm:$0xf]
      %v961 = vld [vmem:[%s956 + $0x10] sm:$0xf]
      %v962 = vld [vmem:[%s956 + $0x14] sm:$0xf]
      %v963 = vld [vmem:[%s956 + $0x18] sm:$0xf]
      %v964 = vld [vmem:[%s956 + $0x1c] sm:$0xf]
      %v965 = vld [vmem:[%s956 + $0x20] sm:$0xf]
      %v966 = vld [vmem:[%s956 + $0x24] sm:$0xf]
      %v967 = vld [vmem:[%s956 + $0x28] sm:$0xf]
      %v968 = vld [vmem:[%s956 + $0x2c] sm:$0xf]
      %v969 = vld [vmem:[%s956 + $0x30] sm:$0xf]
      %v970 = vld [vmem:[%s956 + $0x34] sm:$0xf]
      %v971 = vld [vmem:[%s956 + $0x38] sm:$0xf]
      %v972 = vld [vmem:[%s956 + $0x3c] sm:$0xf]
      %v973 = vpack.c.b16 %v343, %v342
      %v974 = vpack.c.b16 %v835, %v835
      %v993 = vunpack.c.l.b16 %v957
      %v994 = vunpack.c.l.b16 %v958
      %v995 = vunpack.c.l.b16 %v959
      %v996 = vunpack.c.l.b16 %v960
      %v997 = vunpack.c.l.b16 %v961
      %v998 = vunpack.c.l.b16 %v962
      %v999 = vunpack.c.l.b16 %v963
      %v1000 = vunpack.c.l.b16 %v964
      %v1001 = vunpack.c.l.b16 %v965
      %v1002 = vunpack.c.l.b16 %v966
      %v1003 = vunpack.c.l.b16 %v967
      %v1004 = vunpack.c.l.b16 %v968
      %v1005 = vunpack.c.l.b16 %v969
      %v1006 = vunpack.c.l.b16 %v970
      %v1007 = vunpack.c.l.b16 %v971
      %v1008 = vunpack.c.l.b16 %v972
      %v1009 = vpack.c.b16 %v994, %v993
      %v1010 = vpack.c.b16 %v996, %v995
      %v1011 = vpack.c.b16 %v998, %v997
      %v1012 = vpack.c.b16 %v1000, %v999
      %v1013 = vpack.c.b16 %v1002, %v1001
      %v1014 = vpack.c.b16 %v1004, %v1003
      %v1015 = vpack.c.b16 %v1006, %v1005
      %v1016 = vpack.c.b16 %v1008, %v1007
      %1025 = vmatprep.subr.bf16.mxu0 0
      %1026 = vmatpush1.bf16.msra.mxu0 %v1016
      %1027 = vmatprep.subr.bf16.mxu0 0
      %1028 = vmatpush1.bf16.msra.mxu0 %v1015
      %1029 = vmatprep.subr.bf16.mxu0 0
      %1030 = vmatpush1.bf16.msra.mxu0 %v1014
      %1031 = vmatprep.subr.bf16.mxu0 0
      %1032 = vmatpush1.bf16.msra.mxu0 %v1013
      %1033 = vmatprep.subr.bf16.mxu0 0
      %1034 = vmatpush1.bf16.msra.mxu0 %v1012
      %1035 = vmatprep.subr.bf16.mxu0 0
      %1036 = vmatpush1.bf16.msra.mxu0 %v1011
      %1037 = vmatprep.subr.bf16.mxu0 0
      %1038 = vmatpush1.bf16.msra.mxu0 %v1010
      %1039 = vmatprep.subr.bf16.mxu0 0
      %1040 = vmatpush1.bf16.msra.mxu0 %v1009
      %1041 = vmatprep.subr.bf16.mxu0 0
      %1042 = vmatpush2.bf16.msra.mxu0 0
      %1043 = vmatprep.subr.bf16.mxu0 0
      %1044 = vmatpush2.bf16.msra.mxu0 0
      %1045 = vmatprep.subr.bf16.mxu0 0
      %1046 = vmatpush2.bf16.msra.mxu0 0
      %1047 = vmatprep.subr.bf16.mxu0 0
      %1048 = vmatpush2.bf16.msra.mxu0 0
      %1049 = vmatprep.subr.bf16.mxu0 0
      %1050 = vmatpush2.bf16.msra.mxu0 0
      %1051 = vmatprep.subr.bf16.mxu0 0
      %1052 = vmatpush2.bf16.msra.mxu0 0
      %1053 = vmatprep.subr.bf16.mxu0 0
      %1054 = vmatpush2.bf16.msra.mxu0 0
      %1055 = vmatprep.subr.bf16.mxu0 0
      %1056 = vmatpush2.bf16.msra.mxu0 0
      %1057 = vmatprep.mubr.bf16.mxu0 0
      %1058 = vmatmul.mubr.bf16.gmra.mxu0 %v973
      %v1059 = vpop.f32.mrf.mxu0
      %v1060 = vadd.f32 0.0, %v1059
      %v1061 = vpop.f32.mrf.mxu0
      %v1062 = vpop.f32.mrf.mxu0
      %v1063 = vadd.f32 0.0, %v1062
      %v1064 = vpop.f32.mrf.mxu0
      %1065 = vmatprep.mubr.bf16.mxu0 0
      %1066 = vmatmul.mubr.bf16.gmra.mxu0 %v974
      %v1067 = vpop.f32.mrf.mxu0
      %v1068 = vadd.f32 0.0, %v1067
      %v1069 = vpop.f32.mrf.mxu0
      %v1070 = vpop.f32.mrf.mxu0
      %v1071 = vpop.f32.mrf.mxu0
      %1072 = vdwg.mxu0
      %v1073 = vadd.f32 %v953, %v1060
      %v1074 = vadd.f32 %v954, %v1063
      %v1075 = vadd.f32 %v955, %v1068
      %v1076 = vld [vmem:[#allocation2 + $0x4] sm:$0xc]
      %v1077 = vld [vmem:[#allocation2 + $0x8] sm:$0xf]
      %v1078 = vld [vmem:[#allocation2 + $0xc] sm:$0xf]
      %v1079 = vld [vmem:[#allocation2 + $0x10] sm:$0x3]
      %s1080 = scalar_lea.vmem %s1, 384
      %v1081 = vld [vmem:[%s1080] sm:$0xf]
      %v1082 = vld [vmem:[%s1080 + $0x4] sm:$0xf]
      %v1083 = vld [vmem:[%s1080 + $0x8] sm:$0xf]
      %v1084 = vld [vmem:[%s1080 + $0xc] sm:$0xf]
      %v1085 = vld [vmem:[%s1080 + $0x10] sm:$0xf]
      %v1086 = vld [vmem:[%s1080 + $0x14] sm:$0xf]
      %v1087 = vld [vmem:[%s1080 + $0x18] sm:$0xf]
      %v1088 = vld [vmem:[%s1080 + $0x1c] sm:$0xf]
      %v1089 = vld [vmem:[%s1080 + $0x20] sm:$0xf]
      %v1090 = vld [vmem:[%s1080 + $0x24] sm:$0xf]
      %v1091 = vld [vmem:[%s1080 + $0x28] sm:$0xf]
      %v1092 = vld [vmem:[%s1080 + $0x2c] sm:$0xf]
      %v1093 = vld [vmem:[%s1080 + $0x30] sm:$0xf]
      %v1094 = vld [vmem:[%s1080 + $0x34] sm:$0xf]
      %v1095 = vld [vmem:[%s1080 + $0x38] sm:$0xf]
      %v1096 = vld [vmem:[%s1080 + $0x3c] sm:$0xf]
      %v1101 = vunpack.c.l.b16 %v1076
      %v1102 = vunpack.c.l.b16 %v1077
      %v1103 = vunpack.c.l.b16 %v1078
      %v1104 = vunpack.c.l.b16 %v1079
      %v1105 = vpack.c.b16 %v1102, %v1101
      %v1106 = vpack.c.b16 %v1104, %v1103
      %vm1107 = vcmask 1045504
      %v1108 = vrot.slane %v1105, 2
      %v1109 = vrot.slane %v1106, 2
      %v1110 = vsel %vm1107, %v1108, %v1109
      %v1129 = vunpack.c.l.b16 %v1081
      %v1130 = vunpack.c.l.b16 %v1082
      %v1131 = vunpack.c.l.b16 %v1083
      %v1132 = vunpack.c.l.b16 %v1084
      %v1133 = vunpack.c.l.b16 %v1085
      %v1134 = vunpack.c.l.b16 %v1086
      %v1135 = vunpack.c.l.b16 %v1087
      %v1136 = vunpack.c.l.b16 %v1088
      %v1137 = vunpack.c.l.b16 %v1089
      %v1138 = vunpack.c.l.b16 %v1090
      %v1139 = vunpack.c.l.b16 %v1091
      %v1140 = vunpack.c.l.b16 %v1092
      %v1141 = vunpack.c.l.b16 %v1093
      %v1142 = vunpack.c.l.b16 %v1094
      %v1143 = vunpack.c.l.b16 %v1095
      %v1144 = vunpack.c.l.b16 %v1096
      %v1145 = vpack.c.b16 %v1130, %v1129
      %v1146 = vpack.c.b16 %v1132, %v1131
      %v1147 = vpack.c.b16 %v1134, %v1133
      %v1148 = vpack.c.b16 %v1136, %v1135
      %v1149 = vpack.c.b16 %v1138, %v1137
      %v1150 = vpack.c.b16 %v1140, %v1139
      %v1151 = vpack.c.b16 %v1142, %v1141
      %v1152 = vpack.c.b16 %v1144, %v1143
      %1161 = vmatprep.subr.bf16.mxu0 0
      %1162 = vmatpush1.bf16.msra.mxu0 %v1152
      %1163 = vmatprep.subr.bf16.mxu0 0
      %1164 = vmatpush1.bf16.msra.mxu0 %v1151
      %1165 = vmatprep.subr.bf16.mxu0 0
      %1166 = vmatpush1.bf16.msra.mxu0 %v1150
      %1167 = vmatprep.subr.bf16.mxu0 0
      %1168 = vmatpush1.bf16.msra.mxu0 %v1149
      %1169 = vmatprep.subr.bf16.mxu0 0
      %1170 = vmatpush1.bf16.msra.mxu0 %v1148
      %1171 = vmatprep.subr.bf16.mxu0 0
      %1172 = vmatpush1.bf16.msra.mxu0 %v1147
      %1173 = vmatprep.subr.bf16.mxu0 0
      %1174 = vmatpush1.bf16.msra.mxu0 %v1146
      %1175 = vmatprep.subr.bf16.mxu0 0
      %1176 = vmatpush1.bf16.msra.mxu0 %v1145
      %1177 = vmatprep.subr.bf16.mxu0 0
      %1178 = vmatpush2.bf16.msra.mxu0 0
      %1179 = vmatprep.subr.bf16.mxu0 0
      %1180 = vmatpush2.bf16.msra.mxu0 0
      %1181 = vmatprep.subr.bf16.mxu0 0
      %1182 = vmatpush2.bf16.msra.mxu0 0
      %1183 = vmatprep.subr.bf16.mxu0 0
      %1184 = vmatpush2.bf16.msra.mxu0 0
      %1185 = vmatprep.subr.bf16.mxu0 0
      %1186 = vmatpush2.bf16.msra.mxu0 0
      %1187 = vmatprep.subr.bf16.mxu0 0
      %1188 = vmatpush2.bf16.msra.mxu0 0
      %1189 = vmatprep.subr.bf16.mxu0 0
      %1190 = vmatpush2.bf16.msra.mxu0 0
      %1191 = vmatprep.subr.bf16.mxu0 0
      %1192 = vmatpush2.bf16.msra.mxu0 0
      %1193 = vmatprep.mubr.bf16.mxu0 0
      %1194 = vmatmul.mubr.bf16.gmra.mxu0 %v1110
      %v1195 = vpop.f32.mrf.mxu0
      %v1196 = vadd.f32 0.0, %v1195
      %v1197 = vpop.f32.mrf.mxu0
      %v1198 = vpop.f32.mrf.mxu0
      %v1199 = vadd.f32 0.0, %v1198
      %v1200 = vpop.f32.mrf.mxu0
      %1201 = vmatprep.mubr.bf16.mxu0 0
      %1202 = vmatmul.mubr.bf16.gmra.mxu0 %v1109
      %v1203 = vpop.f32.mrf.mxu0
      %v1204 = vadd.f32 0.0, %v1203
      %v1205 = vpop.f32.mrf.mxu0
      %v1206 = vpop.f32.mrf.mxu0
      %v1207 = vpop.f32.mrf.mxu0
      %1208 = vdwg.mxu0
      %v1209 = vadd.f32 %v1073, %v1196
      %v1210 = vadd.f32 %v1074, %v1199
      %v1211 = vadd.f32 %v1075, %v1204
      %v1212 = vld [vmem:[#allocation2 + $0x10] sm:$0x7]
      %s1213 = scalar_lea.vmem %s1, 448
      %v1214 = vld [vmem:[%s1213] sm:$0xf]
      %v1215 = vld [vmem:[%s1213 + $0x4] sm:$0xf]
      %v1216 = vld [vmem:[%s1213 + $0x8] sm:$0xf]
      %v1217 = vld [vmem:[%s1213 + $0xc] sm:$0xf]
      %v1218 = vld [vmem:[%s1213 + $0x10] sm:$0xf]
      %v1219 = vld [vmem:[%s1213 + $0x14] sm:$0xf]
      %v1220 = vld [vmem:[%s1213 + $0x18] sm:$0xf]
      %v1221 = vld [vmem:[%s1213 + $0x1c] sm:$0xf]
      %v1222 = vld [vmem:[%s1213 + $0x20] sm:$0xf]
      %v1223 = vld [vmem:[%s1213 + $0x24] sm:$0xf]
      %v1224 = vld [vmem:[%s1213 + $0x28] sm:$0xf]
      %v1225 = vld [vmem:[%s1213 + $0x2c] sm:$0xf]
      %v1226 = vld [vmem:[%s1213 + $0x30] sm:$0xf]
      %v1227 = vld [vmem:[%s1213 + $0x34] sm:$0xf]
      %v1228 = vld [vmem:[%s1213 + $0x38] sm:$0xf]
      %v1229 = vld [vmem:[%s1213 + $0x3c] sm:$0xf]
      %v1231 = vunpack.c.l.b16 %v1212
      %v1232 = vpack.c.b16 %v1231, %v1103
      %vm1233 = vsmask.f32 5376
      %v1235 = vshrl.u32 %v1105, 16
      %v1237 = vrot.slane %v1235, 2
      %v1238 = vshll.u32 %v1105, 16
      %v1240 = vrot.slane %v1238, 3
      %v1241 = vor.u32 %v1237, %v1240
      %v1243 = vshrl.u32 %v1232, 16
      %v1245 = vrot.slane %v1243, 2
      %v1246 = vshll.u32 %v1232, 16
      %v1248 = vrot.slane %v1246, 3
      %v1249 = vor.u32 %v1245, %v1248
      %v1250 = vsel %vm1233, %v1241, %v1249
      %v1269 = vunpack.c.l.b16 %v1214
      %v1270 = vunpack.c.l.b16 %v1215
      %v1271 = vunpack.c.l.b16 %v1216
      %v1272 = vunpack.c.l.b16 %v1217
      %v1273 = vunpack.c.l.b16 %v1218
      %v1274 = vunpack.c.l.b16 %v1219
      %v1275 = vunpack.c.l.b16 %v1220
      %v1276 = vunpack.c.l.b16 %v1221
      %v1277 = vunpack.c.l.b16 %v1222
      %v1278 = vunpack.c.l.b16 %v1223
      %v1279 = vunpack.c.l.b16 %v1224
      %v1280 = vunpack.c.l.b16 %v1225
      %v1281 = vunpack.c.l.b16 %v1226
      %v1282 = vunpack.c.l.b16 %v1227
      %v1283 = vunpack.c.l.b16 %v1228
      %v1284 = vunpack.c.l.b16 %v1229
      %v1285 = vpack.c.b16 %v1270, %v1269
      %v1286 = vpack.c.b16 %v1272, %v1271
      %v1287 = vpack.c.b16 %v1274, %v1273
      %v1288 = vpack.c.b16 %v1276, %v1275
      %v1289 = vpack.c.b16 %v1278, %v1277
      %v1290 = vpack.c.b16 %v1280, %v1279
      %v1291 = vpack.c.b16 %v1282, %v1281
      %v1292 = vpack.c.b16 %v1284, %v1283
      %1301 = vmatprep.subr.bf16.mxu0 0
      %1302 = vmatpush1.bf16.msra.mxu0 %v1292
      %1303 = vmatprep.subr.bf16.mxu0 0
      %1304 = vmatpush1.bf16.msra.mxu0 %v1291
      %1305 = vmatprep.subr.bf16.mxu0 0
      %1306 = vmatpush1.bf16.msra.mxu0 %v1290
      %1307 = vmatprep.subr.bf16.mxu0 0
      %1308 = vmatpush1.bf16.msra.mxu0 %v1289
      %1309 = vmatprep.subr.bf16.mxu0 0
      %1310 = vmatpush1.bf16.msra.mxu0 %v1288
      %1311 = vmatprep.subr.bf16.mxu0 0
      %1312 = vmatpush1.bf16.msra.mxu0 %v1287
      %1313 = vmatprep.subr.bf16.mxu0 0
      %1314 = vmatpush1.bf16.msra.mxu0 %v1286
      %1315 = vmatprep.subr.bf16.mxu0 0
      %1316 = vmatpush1.bf16.msra.mxu0 %v1285
      %1317 = vmatprep.subr.bf16.mxu0 0
      %1318 = vmatpush2.bf16.msra.mxu0 0
      %1319 = vmatprep.subr.bf16.mxu0 0
      %1320 = vmatpush2.bf16.msra.mxu0 0
      %1321 = vmatprep.subr.bf16.mxu0 0
      %1322 = vmatpush2.bf16.msra.mxu0 0
      %1323 = vmatprep.subr.bf16.mxu0 0
      %1324 = vmatpush2.bf16.msra.mxu0 0
      %1325 = vmatprep.subr.bf16.mxu0 0
      %1326 = vmatpush2.bf16.msra.mxu0 0
      %1327 = vmatprep.subr.bf16.mxu0 0
      %1328 = vmatpush2.bf16.msra.mxu0 0
      %1329 = vmatprep.subr.bf16.mxu0 0
      %1330 = vmatpush2.bf16.msra.mxu0 0
      %1331 = vmatprep.subr.bf16.mxu0 0
      %1332 = vmatpush2.bf16.msra.mxu0 0
      %1333 = vmatprep.mubr.bf16.mxu0 0
      %1334 = vmatmul.mubr.bf16.gmra.mxu0 %v1250
      %v1335 = vpop.f32.mrf.mxu0
      %v1336 = vadd.f32 0.0, %v1335
      %v1337 = vpop.f32.mrf.mxu0
      %v1338 = vpop.f32.mrf.mxu0
      %v1339 = vadd.f32 0.0, %v1338
      %v1340 = vpop.f32.mrf.mxu0
      %1341 = vmatprep.mubr.bf16.mxu0 0
      %1342 = vmatmul.mubr.bf16.gmra.mxu0 %v1249
      %v1343 = vpop.f32.mrf.mxu0
      %v1344 = vadd.f32 0.0, %v1343
      %v1345 = vpop.f32.mrf.mxu0
      %v1346 = vpop.f32.mrf.mxu0
      %v1347 = vpop.f32.mrf.mxu0
      %1348 = vdwg.mxu0
      %v1349 = vadd.f32 %v1209, %v1336
      %v1350 = vadd.f32 %v1210, %v1339
      %v1351 = vadd.f32 %v1211, %v1344
      %v1352 = vld [vmem:[#allocation2 + $0x4] sm:$0x8]
      %s1353 = scalar_lea.vmem %s1, 512
      %v1354 = vld [vmem:[%s1353] sm:$0xf]
      %v1355 = vld [vmem:[%s1353 + $0x4] sm:$0xf]
      %v1356 = vld [vmem:[%s1353 + $0x8] sm:$0xf]
      %v1357 = vld [vmem:[%s1353 + $0xc] sm:$0xf]
      %v1358 = vld [vmem:[%s1353 + $0x10] sm:$0xf]
      %v1359 = vld [vmem:[%s1353 + $0x14] sm:$0xf]
      %v1360 = vld [vmem:[%s1353 + $0x18] sm:$0xf]
      %v1361 = vld [vmem:[%s1353 + $0x1c] sm:$0xf]
      %v1362 = vld [vmem:[%s1353 + $0x20] sm:$0xf]
      %v1363 = vld [vmem:[%s1353 + $0x24] sm:$0xf]
      %v1364 = vld [vmem:[%s1353 + $0x28] sm:$0xf]
      %v1365 = vld [vmem:[%s1353 + $0x2c] sm:$0xf]
      %v1366 = vld [vmem:[%s1353 + $0x30] sm:$0xf]
      %v1367 = vld [vmem:[%s1353 + $0x34] sm:$0xf]
      %v1368 = vld [vmem:[%s1353 + $0x38] sm:$0xf]
      %v1369 = vld [vmem:[%s1353 + $0x3c] sm:$0xf]
      %v1371 = vunpack.c.l.b16 %v1352
      %v1372 = vpack.c.b16 %v1102, %v1371
      %v1373 = vrot.slane %v1372, 3
      %v1374 = vrot.slane %v1232, 3
      %v1375 = vsel %vm711, %v1373, %v1374
      %v1394 = vunpack.c.l.b16 %v1354
      %v1395 = vunpack.c.l.b16 %v1355
      %v1396 = vunpack.c.l.b16 %v1356
      %v1397 = vunpack.c.l.b16 %v1357
      %v1398 = vunpack.c.l.b16 %v1358
      %v1399 = vunpack.c.l.b16 %v1359
      %v1400 = vunpack.c.l.b16 %v1360
      %v1401 = vunpack.c.l.b16 %v1361
      %v1402 = vunpack.c.l.b16 %v1362
      %v1403 = vunpack.c.l.b16 %v1363
      %v1404 = vunpack.c.l.b16 %v1364
      %v1405 = vunpack.c.l.b16 %v1365
      %v1406 = vunpack.c.l.b16 %v1366
      %v1407 = vunpack.c.l.b16 %v1367
      %v1408 = vunpack.c.l.b16 %v1368
      %v1409 = vunpack.c.l.b16 %v1369
      %v1410 = vpack.c.b16 %v1395, %v1394
      %v1411 = vpack.c.b16 %v1397, %v1396
      %v1412 = vpack.c.b16 %v1399, %v1398
      %v1413 = vpack.c.b16 %v1401, %v1400
      %v1414 = vpack.c.b16 %v1403, %v1402
      %v1415 = vpack.c.b16 %v1405, %v1404
      %v1416 = vpack.c.b16 %v1407, %v1406
      %v1417 = vpack.c.b16 %v1409, %v1408
      %1426 = vmatprep.subr.bf16.mxu0 0
      %1427 = vmatpush1.bf16.msra.mxu0 %v1417
      %1428 = vmatprep.subr.bf16.mxu0 0
      %1429 = vmatpush1.bf16.msra.mxu0 %v1416
      %1430 = vmatprep.subr.bf16.mxu0 0
      %1431 = vmatpush1.bf16.msra.mxu0 %v1415
      %1432 = vmatprep.subr.bf16.mxu0 0
      %1433 = vmatpush1.bf16.msra.mxu0 %v1414
      %1434 = vmatprep.subr.bf16.mxu0 0
      %1435 = vmatpush1.bf16.msra.mxu0 %v1413
      %1436 = vmatprep.subr.bf16.mxu0 0
      %1437 = vmatpush1.bf16.msra.mxu0 %v1412
      %1438 = vmatprep.subr.bf16.mxu0 0
      %1439 = vmatpush1.bf16.msra.mxu0 %v1411
      %1440 = vmatprep.subr.bf16.mxu0 0
      %1441 = vmatpush1.bf16.msra.mxu0 %v1410
      %1442 = vmatprep.subr.bf16.mxu0 0
      %1443 = vmatpush2.bf16.msra.mxu0 0
      %1444 = vmatprep.subr.bf16.mxu0 0
      %1445 = vmatpush2.bf16.msra.mxu0 0
      %1446 = vmatprep.subr.bf16.mxu0 0
      %1447 = vmatpush2.bf16.msra.mxu0 0
      %1448 = vmatprep.subr.bf16.mxu0 0
      %1449 = vmatpush2.bf16.msra.mxu0 0
      %1450 = vmatprep.subr.bf16.mxu0 0
      %1451 = vmatpush2.bf16.msra.mxu0 0
      %1452 = vmatprep.subr.bf16.mxu0 0
      %1453 = vmatpush2.bf16.msra.mxu0 0
      %1454 = vmatprep.subr.bf16.mxu0 0
      %1455 = vmatpush2.bf16.msra.mxu0 0
      %1456 = vmatprep.subr.bf16.mxu0 0
      %1457 = vmatpush2.bf16.msra.mxu0 0
      %1458 = vmatprep.mubr.bf16.mxu0 0
      %1459 = vmatmul.mubr.bf16.gmra.mxu0 %v1375
      %v1460 = vpop.f32.mrf.mxu0
      %v1461 = vadd.f32 0.0, %v1460
      %v1462 = vpop.f32.mrf.mxu0
      %v1463 = vpop.f32.mrf.mxu0
      %v1464 = vadd.f32 0.0, %v1463
      %v1465 = vpop.f32.mrf.mxu0
      %1466 = vmatprep.mubr.bf16.mxu0 0
      %1467 = vmatmul.mubr.bf16.gmra.mxu0 %v1374
      %v1468 = vpop.f32.mrf.mxu0
      %v1469 = vadd.f32 0.0, %v1468
      %v1470 = vpop.f32.mrf.mxu0
      %v1471 = vpop.f32.mrf.mxu0
      %v1472 = vpop.f32.mrf.mxu0
      %1473 = vdwg.mxu0
      %v1474 = vadd.f32 %v1349, %v1461
      %v1475 = vadd.f32 %v1350, %v1464
      %v1476 = vadd.f32 %v1351, %v1469
      %v1477 = vld [vmem:[%s2] sm:$0x1]
      %v1479 = vlaneseq
      %v1480 = vshrl.u32 %v1479, 7
      %v1481 = vsub.s32 0, %v1480
      %v1482 = vrot.slane %v1477, %v1481
      %v1484 = vadd.f32 %v1474, %v1482
      %v1485 = vadd.f32 %v1475, %v1482
      %v1486 = vadd.f32 %v1476, %v1482
      %v1487 = vmax.f32 %v1484, 0.0
      %v1488 = vmax.f32 %v1485, 0.0
      %v1489 = vmax.f32 %v1486, 0.0
      %v1490 = vpack.c.bf16 %v1488, %v1487
      %v1491 = vpack.c.bf16 %v1489, %v1489
      %v1492 = vld [vmem:[%s3] sm:$0xf]
      %v1493 = vld [vmem:[%s3 + $0x4] sm:$0xf]
      %v1494 = vld [vmem:[%s3 + $0x8] sm:$0xf]
      %v1495 = vld [vmem:[%s3 + $0xc] sm:$0xf]
      %v1496 = vld [vmem:[%s4] sm:$0x1]
      %v1498 = vlaneseq
      %v1499 = vshrl.u32 %v1498, 7
      %v1500 = vsub.s32 0, %v1499
      %v1501 = vrot.slane %v1496, %v1500
      %v1507 = vunpack.c.l.b16 %v1492
      %v1508 = vunpack.c.l.b16 %v1493
      %v1509 = vunpack.c.l.b16 %v1494
      %v1510 = vunpack.c.l.b16 %v1495
      %v1511 = vpack.c.b16 %v1508, %v1507
      %v1512 = vpack.c.b16 %v1510, %v1509
      %vm1515 = vcmask 261120
      %v1517 = vsel %vm1515, %v1490, 0
      %v1520 = vsel %vm1515, %v1491, 0
      %1522 = vmatprep.subr.bf16.mxu0 0
      %1523 = vmatpush1.bf16.msra.mxu0 0
      %1524 = vmatprep.subr.bf16.mxu0 0
      %1525 = vmatpush1.bf16.msra.mxu0 0
      %1526 = vmatprep.subr.bf16.mxu0 0
      %1527 = vmatpush1.bf16.msra.mxu0 0
      %1528 = vmatprep.subr.bf16.mxu0 0
      %1529 = vmatpush1.bf16.msra.mxu0 0
      %1530 = vmatprep.subr.bf16.mxu0 0
      %1531 = vmatpush1.bf16.msra.mxu0 0
      %1532 = vmatprep.subr.bf16.mxu0 0
      %1533 = vmatpush1.bf16.msra.mxu0 0
      %1534 = vmatprep.subr.bf16.mxu0 0
      %1535 = vmatpush1.bf16.msra.mxu0 %v1512
      %1536 = vmatprep.subr.bf16.mxu0 0
      %1537 = vmatpush1.bf16.msra.mxu0 %v1511
      %1538 = vmatprep.subr.bf16.mxu0 0
      %1539 = vmatpush2.bf16.msra.mxu0 0
      %1540 = vmatprep.subr.bf16.mxu0 0
      %1541 = vmatpush2.bf16.msra.mxu0 0
      %1542 = vmatprep.subr.bf16.mxu0 0
      %1543 = vmatpush2.bf16.msra.mxu0 0
      %1544 = vmatprep.subr.bf16.mxu0 0
      %1545 = vmatpush2.bf16.msra.mxu0 0
      %1546 = vmatprep.subr.bf16.mxu0 0
      %1547 = vmatpush2.bf16.msra.mxu0 0
      %1548 = vmatprep.subr.bf16.mxu0 0
      %1549 = vmatpush2.bf16.msra.mxu0 0
      %1550 = vmatprep.subr.bf16.mxu0 0
      %1551 = vmatpush2.bf16.msra.mxu0 0
      %1552 = vmatprep.subr.bf16.mxu0 0
      %1553 = vmatpush2.bf16.msra.mxu0 0
      %1554 = vmatprep.mubr.bf16.mxu0 0
      %1555 = vmatmul.mubr.bf16.gmra.mxu0 %v1517
      %v1556 = vpop.f32.mrf.mxu0
      %v1557 = vadd.f32 %v1501, %v1556
      %v1558 = vpop.f32.mrf.mxu0
      %v1559 = vpop.f32.mrf.mxu0
      %v1560 = vadd.f32 %v1501, %v1559
      %v1561 = vpop.f32.mrf.mxu0
      %1562 = vmatprep.mubr.bf16.mxu0 0
      %1563 = vmatmul.mubr.bf16.gmra.mxu0 %v1520
      %v1564 = vpop.f32.mrf.mxu0
      %v1565 = vadd.f32 %v1501, %v1564
      %v1566 = vpop.f32.mrf.mxu0
      %v1567 = vpop.f32.mrf.mxu0
      %v1568 = vpop.f32.mrf.mxu0
      %1569 = vdwg.mxu0
      %1573 = vrot.lane.b32.xlu0 %v1557, 125
      %v1574 = vpop.permute.xlu0 %1573
      %1575 = vrot.lane.b32.xlu0 %v1560, 125
      %v1576 = vpop.permute.xlu0 %1575
      %1577 = vrot.lane.b32.xlu0 %v1565, 125
      %v1578 = vpop.permute.xlu0 %1577
      %v1582 = vmax.f32 %v1557, %v1574
      %v1583 = vmax.f32 %v1560, %v1576
      %v1584 = vmax.f32 %v1565, %v1578
      %v1585 = vsub.f32 %v1557, %v1582
      %v1586 = vsub.f32 %v1560, %v1583
      %v1587 = vsub.f32 %v1565, %v1584
      %v1588 = vmul.f32 %v1585, 1.442695
      %v1589 = vpow.pop %v1588
      %v1590 = vmul.f32 %v1586, 1.442695
      %v1591 = vpow.pop %v1590
      %v1592 = vmul.f32 %v1587, 1.442695
      %v1593 = vpow.pop %v1592
      %1597 = vrot.lane.b32.xlu0 %v1582, 3
      %v1598 = vpop.permute.xlu0 %1597
      %1599 = vrot.lane.b32.xlu0 %v1583, 3
      %v1600 = vpop.permute.xlu0 %1599
      %1601 = vrot.lane.b32.xlu0 %v1584, 3
      %v1602 = vpop.permute.xlu0 %1601
      %v1606 = vsub.f32 %v1557, %v1598
      %v1607 = vsub.f32 %v1560, %v1600
      %v1608 = vsub.f32 %v1565, %v1602
      %v1609 = vmul.f32 %v1606, 1.442695
      %v1610 = vpow.pop %v1609
      %v1611 = vmul.f32 %v1607, 1.442695
      %v1612 = vpow.pop %v1611
      %v1613 = vmul.f32 %v1608, 1.442695
      %v1614 = vpow.pop %v1613
      %1618 = vrot.lane.b32.xlu0 %v1610, 125
      %v1619 = vpop.permute.xlu0 %1618
      %1620 = vrot.lane.b32.xlu0 %v1612, 125
      %v1621 = vpop.permute.xlu0 %1620
      %1622 = vrot.lane.b32.xlu0 %v1614, 125
      %v1623 = vpop.permute.xlu0 %1622
      %v1627 = vadd.f32 %v1589, %v1619
      %v1628 = vadd.f32 %v1591, %v1621
      %v1629 = vadd.f32 %v1593, %v1623
      %1633 = vrot.lane.b32.xlu0 %v1627, 3
      %v1634 = vpop.permute.xlu0 %1633
      %1635 = vrot.lane.b32.xlu0 %v1628, 3
      %v1636 = vpop.permute.xlu0 %1635
      %1637 = vrot.lane.b32.xlu0 %v1629, 3
      %v1638 = vpop.permute.xlu0 %1637
      %v1642 = vrcp.pop %v1634
      %v1643 = vmul.f32 %v1610, %v1642
      %v1644 = vrcp.pop %v1636
      %v1645 = vmul.f32 %v1612, %v1644
      %v1646 = vrcp.pop %v1638
      %v1647 = vmul.f32 %v1614, %v1646
      %1651 = vrot.lane.b32.xlu0 %v1643, 15
      %v1652 = vpop.permute.xlu0 %1651
      %1653 = vrot.lane.b32.xlu0 %v1645, 15
      %v1654 = vpop.permute.xlu0 %1653
      %1655 = vrot.lane.b32.xlu0 %v1647, 15
      %v1656 = vpop.permute.xlu0 %1655
      %vm1660 = vcmask 146432
      %v1661 = vsel %vm1660, %v1557, %v1652
      %v1662 = vsel %vm1660, %v1560, %v1654
      %v1663 = vsel %vm1660, %v1565, %v1656
      %vm1664 = vcmask 171008
      %v1665 = vsel %vm1664, %v1661, 0.0
      %v1666 = vsel %vm1664, %v1662, 0.0
      %v1667 = vsel %vm1664, %v1663, 0.0
      %1668 = vst [vmem:[%s224] sm:$0xff] %v1665
      %1669 = vst [vmem:[%s224 + $0x8] sm:$0xff] %v1666
      %1670 = vst [vmem:[%s224 + $0x10] sm:$0xff] %v1667
      %p1671 = scmp.lt.s32.totalorder %s16, 1
      %s1672 = scalar_select %p1671, %s16, 1
      %s1673 = smul.addr %s1672, 3
      %s1674 = smul.addr %s1673, 8
      %s1675 = scalar_lea.vmem %s5, %s1674
      // Predicated region
      $region41: #{faster_rcnn_forward.6} parent=39 // pred_check
        %p1676 = pneg %p144
      $region42: #{faster_rcnn_forward.6} parent=39 // pred_check_branch
        %1678 = sbr.rel (%p1676) target = $region44
      $region43: #{faster_rcnn_forward.6} parent=39 // pred_region
        _
      $region44: #{faster_rcnn_forward.6} parent=39 // pred_fallthru
        _
    $region40: #{faster_rcnn_forward.6} parent=5 // pred_fallthru
      _
    %p1679 = scmp.le.s32.totalorder 2, %s11
    // Predicated region
    $region45: #{faster_rcnn_forward.6} parent=5 // pred_check
      %p1680 = pneg %p1679
    $region46: #{faster_rcnn_forward.6} parent=5 // pred_check_branch
      %1682 = sbr.rel (%p1680) target = $region48
    $region47: #{faster_rcnn_forward.6} parent=5 // pred_region
      %s1683 = ssub.s32 %s11, 2
      // Predicated region
      $region49: #{faster_rcnn_forward.6} parent=47 // pred_check
        %p1684 = pneg %p150
      $region50: #{faster_rcnn_forward.6} parent=47 // pred_check_branch
        %1686 = sbr.rel (%p1684) target = $region52
      $region51: #{faster_rcnn_forward.6} parent=47 // pred_region
        %p1687 = scmp.lt.s32.totalorder %s17, 1
        %s1688 = scalar_select %p1687, %s17, 1
        %s1689 = smul.addr %s1688, 3
        %s1690 = smul.addr %s1689, 8
        %s1691 = scalar_lea.vmem %s5, %s1690
      $region52: #{faster_rcnn_forward.6} parent=47 // pred_fallthru
        _
    $region48: #{faster_rcnn_forward.6} parent=5 // pred_fallthru
      _
  $region6: #{faster_rcnn_forward.6} parent=0 // loop_footer
    %s15 = sadd.s32 1, %s11
  $region7: #{faster_rcnn_forward.6} parent=0 // loop_footer_branch
    %10 = sbr.rel target = $region3
  $region8: #{faster_rcnn_forward.6} parent=0 // loop_exit
    _

// kernel: faster_rcnn_forward.9
$region0: #{faster_rcnn_forward.9}
  #allocation0 [shape = 'u32[]', space=smem, size = 0x4, offset = 0x4, fixed_abs, tag = 'smem constant byte address 0x4 - core index']
  #allocation1 [shape = 'u32[144,128]{1,0:T(1,128)}', space=vmem, size = 0x12000, scoped, tag = 'internal scratch']
  %s0 = inlined_call_operand.vmem [shape: bf16[16,128], index: 0, kind: input, shape index: {}]
  %s1 = inlined_call_operand.vmem [shape: bf16[16,128], index: 1, kind: input, shape index: {}]
  %s2 = inlined_call_operand.vmem [shape: bf16[128,128], index: 2, kind: input, shape index: {}]
  %s3 = inlined_call_operand.vmem [shape: f32[1,128], index: 3, kind: input, shape index: {}]
  %s4 = inlined_call_operand.vmem [shape: bf16[256,32], index: 4, kind: input, shape index: {}]
  %s5 = inlined_call_operand.vmem [shape: f32[1,32], index: 5, kind: input, shape index: {}]
  %s6 = inlined_call_operand.vmem [shape: bf16[96,16], index: 6, kind: input, shape index: {}]
  %s7 = inlined_call_operand.vmem [shape: f32[1,16], index: 7, kind: input, shape index: {}]
  %s8 = inlined_call_operand.vmem [shape: f32[16,128], index: 8, kind: output, shape index: {}]
  %s9 = sld [smem:[#allocation0]]
  $region42: #{faster_rcnn_forward.9} parent=0
    _
  %s11 = ssub.s32 1, %s9
  %s12 = scalar_select 0, %s11, %s9
  // Predicated region
  $region2: #{faster_rcnn_forward.9} parent=0 // pred_check
    _
  $region3: #{faster_rcnn_forward.9} parent=0 // pred_check_branch
    %14 = sbr.rel (0) target = $region5
  $region4: #{faster_rcnn_forward.9} parent=0 // pred_region
    _
  $region5: #{faster_rcnn_forward.9} parent=0 // pred_fallthru
    _
  // Predicated region
  $region6: #{faster_rcnn_forward.9} parent=0 // pred_check
    _
  $region7: #{faster_rcnn_forward.9} parent=0 // pred_check_branch
    %16 = sbr.rel (0) target = $region9
  $region8: #{faster_rcnn_forward.9} parent=0 // pred_region
    _
  $region9: #{faster_rcnn_forward.9} parent=0 // pred_fallthru
    _
  // Predicated region
  $region10: #{faster_rcnn_forward.9} parent=0 // pred_check
    _
  $region11: #{faster_rcnn_forward.9} parent=0 // pred_check_branch
    %18 = sbr.rel (0) target = $region13
  $region12: #{faster_rcnn_forward.9} parent=0 // pred_region
    _
  $region13: #{faster_rcnn_forward.9} parent=0 // pred_fallthru
    _
  // Predicated region
  $region14: #{faster_rcnn_forward.9} parent=0 // pred_check
    _
  $region15: #{faster_rcnn_forward.9} parent=0 // pred_check_branch
    %20 = sbr.rel (0) target = $region17
  $region16: #{faster_rcnn_forward.9} parent=0 // pred_region
    _
  $region17: #{faster_rcnn_forward.9} parent=0 // pred_fallthru
    _
  // Predicated region
  $region18: #{faster_rcnn_forward.9} parent=0 // pred_check
    _
  $region19: #{faster_rcnn_forward.9} parent=0 // pred_check_branch
    %22 = sbr.rel (0) target = $region21
  $region20: #{faster_rcnn_forward.9} parent=0 // pred_region
    _
  $region21: #{faster_rcnn_forward.9} parent=0 // pred_fallthru
    _
  // Predicated region
  $region22: #{faster_rcnn_forward.9} parent=0 // pred_check
    _
  $region23: #{faster_rcnn_forward.9} parent=0 // pred_check_branch
    %24 = sbr.rel (0) target = $region25
  $region24: #{faster_rcnn_forward.9} parent=0 // pred_region
    _
  $region25: #{faster_rcnn_forward.9} parent=0 // pred_fallthru
    _
  // Predicated region
  $region26: #{faster_rcnn_forward.9} parent=0 // pred_check
    _
  $region27: #{faster_rcnn_forward.9} parent=0 // pred_check_branch
    %26 = sbr.rel (0) target = $region29
  $region28: #{faster_rcnn_forward.9} parent=0 // pred_region
    _
  $region29: #{faster_rcnn_forward.9} parent=0 // pred_fallthru
    _
  // Predicated region
  $region30: #{faster_rcnn_forward.9} parent=0 // pred_check
    _
  $region31: #{faster_rcnn_forward.9} parent=0 // pred_check_branch
    %28 = sbr.rel (0) target = $region33
  $region32: #{faster_rcnn_forward.9} parent=0 // pred_region
    _
  $region33: #{faster_rcnn_forward.9} parent=0 // pred_fallthru
    _
  %v30 = vld [vmem:[%s0] sm:$0xf]
  %v31 = vld [vmem:[%s0 + $0x4] sm:$0xf]
  %v32 = vld [vmem:[%s1] sm:$0xf]
  %v33 = vld [vmem:[%s1 + $0x4] sm:$0xf]
  %v34 = vld [vmem:[%s2] sm:$0xf]
  %v35 = vld [vmem:[%s2 + $0x4] sm:$0xf]
  %v36 = vld [vmem:[%s2 + $0x8] sm:$0xf]
  %v37 = vld [vmem:[%s2 + $0xc] sm:$0xf]
  %v38 = vld [vmem:[%s2 + $0x10] sm:$0xf]
  %v39 = vld [vmem:[%s2 + $0x14] sm:$0xf]
  %v40 = vld [vmem:[%s2 + $0x18] sm:$0xf]
  %v41 = vld [vmem:[%s2 + $0x1c] sm:$0xf]
  %v42 = vld [vmem:[%s2 + $0x20] sm:$0xf]
  %v43 = vld [vmem:[%s2 + $0x24] sm:$0xf]
  %v44 = vld [vmem:[%s2 + $0x28] sm:$0xf]
  %v45 = vld [vmem:[%s2 + $0x2c] sm:$0xf]
  %v46 = vld [vmem:[%s2 + $0x30] sm:$0xf]
  %v47 = vld [vmem:[%s2 + $0x34] sm:$0xf]
  %v48 = vld [vmem:[%s2 + $0x38] sm:$0xf]
  %v49 = vld [vmem:[%s2 + $0x3c] sm:$0xf]
  %v50 = vld [vmem:[%s3] sm:$0x1]
  %v52 = vlaneseq
  %v53 = vshrl.u32 %v52, 7
  %v54 = vsub.s32 0, %v53
  %v55 = vrot.slane %v50, %v54
  %v59 = vunpack.c.l.b16 %v30
  %v60 = vunpack.c.l.b16 %v31
  %v61 = vpack.c.b16 %v60, %v59
  %v79 = vunpack.c.l.b16 %v34
  %v80 = vunpack.c.l.b16 %v35
  %v81 = vunpack.c.l.b16 %v36
  %v82 = vunpack.c.l.b16 %v37
  %v83 = vunpack.c.l.b16 %v38
  %v84 = vunpack.c.l.b16 %v39
  %v85 = vunpack.c.l.b16 %v40
  %v86 = vunpack.c.l.b16 %v41
  %v87 = vunpack.c.l.b16 %v42
  %v88 = vunpack.c.l.b16 %v43
  %v89 = vunpack.c.l.b16 %v44
  %v90 = vunpack.c.l.b16 %v45
  %v91 = vunpack.c.l.b16 %v46
  %v92 = vunpack.c.l.b16 %v47
  %v93 = vunpack.c.l.b16 %v48
  %v94 = vunpack.c.l.b16 %v49
  %v95 = vpack.c.b16 %v80, %v79
  %v96 = vpack.c.b16 %v82, %v81
  %v97 = vpack.c.b16 %v84, %v83
  %v98 = vpack.c.b16 %v86, %v85
  %v99 = vpack.c.b16 %v88, %v87
  %v100 = vpack.c.b16 %v90, %v89
  %v101 = vpack.c.b16 %v92, %v91
  %v102 = vpack.c.b16 %v94, %v93
  %111 = vmatprep.subr.bf16.mxu0 0
  %112 = vmatpush1.bf16.msra.mxu0 %v102
  %113 = vmatprep.subr.bf16.mxu0 0
  %114 = vmatpush1.bf16.msra.mxu0 %v101
  %115 = vmatprep.subr.bf16.mxu0 0
  %116 = vmatpush1.bf16.msra.mxu0 %v100
  %117 = vmatprep.subr.bf16.mxu0 0
  %118 = vmatpush1.bf16.msra.mxu0 %v99
  %119 = vmatprep.subr.bf16.mxu0 0
  %120 = vmatpush1.bf16.msra.mxu0 %v98
  %121 = vmatprep.subr.bf16.mxu0 0
  %122 = vmatpush1.bf16.msra.mxu0 %v97
  %123 = vmatprep.subr.bf16.mxu0 0
  %124 = vmatpush1.bf16.msra.mxu0 %v96
  %125 = vmatprep.subr.bf16.mxu0 0
  %126 = vmatpush1.bf16.msra.mxu0 %v95
  %127 = vmatprep.subr.bf16.mxu0 0
  %128 = vmatpush2.bf16.msra.mxu0 0
  %129 = vmatprep.subr.bf16.mxu0 0
  %130 = vmatpush2.bf16.msra.mxu0 0
  %131 = vmatprep.subr.bf16.mxu0 0
  %132 = vmatpush2.bf16.msra.mxu0 0
  %133 = vmatprep.subr.bf16.mxu0 0
  %134 = vmatpush2.bf16.msra.mxu0 0
  %135 = vmatprep.subr.bf16.mxu0 0
  %136 = vmatpush2.bf16.msra.mxu0 0
  %137 = vmatprep.subr.bf16.mxu0 0
  %138 = vmatpush2.bf16.msra.mxu0 0
  %139 = vmatprep.subr.bf16.mxu0 0
  %140 = vmatpush2.bf16.msra.mxu0 0
  %141 = vmatprep.subr.bf16.mxu0 0
  %142 = vmatpush2.bf16.msra.mxu0 0
  %143 = vmatprep.mubr.bf16.mxu0 0
  %144 = vmatmul.mubr.bf16.gmra.mxu0 %v61
  %v145 = vpop.f32.mrf.mxu0
  %v146 = vadd.f32 %v55, %v145
  %v147 = vpop.f32.mrf.mxu0
  %v148 = vpop.f32.mrf.mxu0
  %v149 = vadd.f32 %v55, %v148
  %v150 = vpop.f32.mrf.mxu0
  %151 = vdwg.mxu0
  %v152 = vmax.f32 %v146, 0.0
  %v153 = vmax.f32 %v149, 0.0
  %vm154 = vcmask 23552
  %v155 = vsel %vm154, %v146, -inf
  %156 = vmax.xlane.f32.xlu0 %v155
  %v157 = vpop.xlane.xlu0 %156
  %v158 = vsel %vm154, %v149, -inf
  %159 = vmax.xlane.f32.xlu0 %v158
  %v160 = vpop.xlane.xlu0 %159
  %v161 = vsub.f32 %v146, %v157
  %v162 = vsub.f32 %v149, %v160
  %v163 = vmul.f32 %v161, 1.442695
  %v164 = vpow.pop %v163
  %v165 = vmul.f32 %v162, 1.442695
  %v166 = vpow.pop %v165
  %v167 = vsel %vm154, %v164, 0.0
  %168 = vadd.xlane.f32.xlu0 %v167
  %v169 = vpop.xlane.xlu0 %168
  %v170 = vsel %vm154, %v166, 0.0
  %171 = vadd.xlane.f32.xlu0 %v170
  %v172 = vpop.xlane.xlu0 %171
  %v173 = vrcp.pop %v169
  %v174 = vmul.f32 %v164, %v173
  %v175 = vrcp.pop %v172
  %v176 = vmul.f32 %v166, %v175
  %v179 = vunpack.c.l.b16 %v32
  %v180 = vunpack.c.l.b16 %v33
  %v181 = vpack.c.b16 %v180, %v179
  %v183 = vld [vmem:[%s4] sm:$0xf]
  %v184 = vld [vmem:[%s4 + $0x4] sm:$0xf]
  %v185 = vld [vmem:[%s4 + $0x8] sm:$0xf]
  %v186 = vld [vmem:[%s4 + $0xc] sm:$0xf]
  %v187 = vld [vmem:[%s4 + $0x10] sm:$0xf]
  %v188 = vld [vmem:[%s4 + $0x14] sm:$0xf]
  %v189 = vld [vmem:[%s4 + $0x18] sm:$0xf]
  %v190 = vld [vmem:[%s4 + $0x1c] sm:$0xf]
  %v191 = vld [vmem:[%s4 + $0x20] sm:$0xf]
  %v192 = vld [vmem:[%s4 + $0x24] sm:$0xf]
  %v193 = vld [vmem:[%s4 + $0x28] sm:$0xf]
  %v194 = vld [vmem:[%s4 + $0x2c] sm:$0xf]
  %v195 = vld [vmem:[%s4 + $0x30] sm:$0xf]
  %v196 = vld [vmem:[%s4 + $0x34] sm:$0xf]
  %v197 = vld [vmem:[%s4 + $0x38] sm:$0xf]
  %v198 = vld [vmem:[%s4 + $0x3c] sm:$0xf]
  %v199 = vld [vmem:[%s4 + $0x40] sm:$0xf]
  %v200 = vld [vmem:[%s4 + $0x44] sm:$0xf]
  %v201 = vld [vmem:[%s4 + $0x48] sm:$0xf]
  %v202 = vld [vmem:[%s4 + $0x4c] sm:$0xf]
  %v203 = vld [vmem:[%s4 + $0x50] sm:$0xf]
  %v204 = vld [vmem:[%s4 + $0x54] sm:$0xf]
  %v205 = vld [vmem:[%s4 + $0x58] sm:$0xf]
  %v206 = vld [vmem:[%s4 + $0x5c] sm:$0xf]
  %v207 = vld [vmem:[%s4 + $0x60] sm:$0xf]
  %v208 = vld [vmem:[%s4 + $0x64] sm:$0xf]
  %v209 = vld [vmem:[%s4 + $0x68] sm:$0xf]
  %v210 = vld [vmem:[%s4 + $0x6c] sm:$0xf]
  %v211 = vld [vmem:[%s4 + $0x70] sm:$0xf]
  %v212 = vld [vmem:[%s4 + $0x74] sm:$0xf]
  %v213 = vld [vmem:[%s4 + $0x78] sm:$0xf]
  %v214 = vld [vmem:[%s4 + $0x7c] sm:$0xf]
  %v215 = vld [vmem:[%s5] sm:$0x1]
  %v217 = vlaneseq
  %v218 = vshrl.u32 %v217, 7
  %v219 = vsub.s32 0, %v218
  %v220 = vrot.slane %v215, %v219
  %v254 = vunpack.c.l.b16 %v183
  %v255 = vunpack.c.l.b16 %v184
  %v256 = vunpack.c.l.b16 %v185
  %v257 = vunpack.c.l.b16 %v186
  %v258 = vunpack.c.l.b16 %v187
  %v259 = vunpack.c.l.b16 %v188
  %v260 = vunpack.c.l.b16 %v189
  %v261 = vunpack.c.l.b16 %v190
  %v262 = vunpack.c.l.b16 %v191
  %v263 = vunpack.c.l.b16 %v192
  %v264 = vunpack.c.l.b16 %v193
  %v265 = vunpack.c.l.b16 %v194
  %v266 = vunpack.c.l.b16 %v195
  %v267 = vunpack.c.l.b16 %v196
  %v268 = vunpack.c.l.b16 %v197
  %v269 = vunpack.c.l.b16 %v198
  %v270 = vunpack.c.l.b16 %v199
  %v271 = vunpack.c.l.b16 %v200
  %v272 = vunpack.c.l.b16 %v201
  %v273 = vunpack.c.l.b16 %v202
  %v274 = vunpack.c.l.b16 %v203
  %v275 = vunpack.c.l.b16 %v204
  %v276 = vunpack.c.l.b16 %v205
  %v277 = vunpack.c.l.b16 %v206
  %v278 = vunpack.c.l.b16 %v207
  %v279 = vunpack.c.l.b16 %v208
  %v280 = vunpack.c.l.b16 %v209
  %v281 = vunpack.c.l.b16 %v210
  %v282 = vunpack.c.l.b16 %v211
  %v283 = vunpack.c.l.b16 %v212
  %v284 = vunpack.c.l.b16 %v213
  %v285 = vunpack.c.l.b16 %v214
  %v286 = vpack.c.b16 %v255, %v254
  %v287 = vpack.c.b16 %v257, %v256
  %v288 = vpack.c.b16 %v259, %v258
  %v289 = vpack.c.b16 %v261, %v260
  %v290 = vpack.c.b16 %v263, %v262
  %v291 = vpack.c.b16 %v265, %v264
  %v292 = vpack.c.b16 %v267, %v266
  %v293 = vpack.c.b16 %v269, %v268
  %v294 = vpack.c.b16 %v271, %v270
  %v295 = vpack.c.b16 %v273, %v272
  %v296 = vpack.c.b16 %v275, %v274
  %v297 = vpack.c.b16 %v277, %v276
  %v298 = vpack.c.b16 %v279, %v278
  %v299 = vpack.c.b16 %v281, %v280
  %v300 = vpack.c.b16 %v283, %v282
  %v301 = vpack.c.b16 %v285, %v284
  %318 = vmatprep.subr.bf16.mxu0 0
  %319 = vmatpush1.bf16.msra.mxu0 %v293
  %320 = vmatprep.subr.bf16.mxu0 0
  %321 = vmatpush1.bf16.msra.mxu0 %v292
  %322 = vmatprep.subr.bf16.mxu0 0
  %323 = vmatpush1.bf16.msra.mxu0 %v291
  %324 = vmatprep.subr.bf16.mxu0 0
  %325 = vmatpush1.bf16.msra.mxu0 %v290
  %326 = vmatprep.subr.bf16.mxu0 0
  %327 = vmatpush1.bf16.msra.mxu0 %v289
  %328 = vmatprep.subr.bf16.mxu0 0
  %329 = vmatpush1.bf16.msra.mxu0 %v288
  %330 = vmatprep.subr.bf16.mxu0 0
  %331 = vmatpush1.bf16.msra.mxu0 %v287
  %332 = vmatprep.subr.bf16.mxu0 0
  %333 = vmatpush1.bf16.msra.mxu0 %v286
  %334 = vmatprep.subr.bf16.mxu0 0
  %335 = vmatpush2.bf16.msra.mxu0 %v301
  %336 = vmatprep.subr.bf16.mxu0 0
  %337 = vmatpush2.bf16.msra.mxu0 %v300
  %338 = vmatprep.subr.bf16.mxu0 0
  %339 = vmatpush2.bf16.msra.mxu0 %v299
  %340 = vmatprep.subr.bf16.mxu0 0
  %341 = vmatpush2.bf16.msra.mxu0 %v298
  %342 = vmatprep.subr.bf16.mxu0 0
  %343 = vmatpush2.bf16.msra.mxu0 %v297
  %344 = vmatprep.subr.bf16.mxu0 0
  %345 = vmatpush2.bf16.msra.mxu0 %v296
  %346 = vmatprep.subr.bf16.mxu0 0
  %347 = vmatpush2.bf16.msra.mxu0 %v295
  %348 = vmatprep.subr.bf16.mxu0 0
  %349 = vmatpush2.bf16.msra.mxu0 %v294
  %350 = vmatprep.mubr.bf16.mxu0 %v181
  %351 = vmatmul.mubr.bf16.gmra.mxu0 %v61
  %v352 = vpop.f32.mrf.mxu0
  %v353 = vadd.f32 %v220, %v352
  %v354 = vpop.f32.mrf.mxu0
  %v355 = vpop.f32.mrf.mxu0
  %v356 = vadd.f32 %v220, %v355
  %v357 = vpop.f32.mrf.mxu0
  %358 = vdwg.mxu0
  %v359 = vmax.f32 %v353, 0.0
  %v360 = vmax.f32 %v356, 0.0
  %363 = vrot.lane.b32.xlu0 %v152, 17
  %v364 = vpop.permute.xlu0 %363
  %365 = vrot.lane.b32.xlu0 %v153, 17
  %v366 = vpop.permute.xlu0 %365
  %vm369 = vcmask 261120
  %v370 = vsel %vm369, %v359, %v364
  %v371 = vsel %vm369, %v360, %v366
  %vm372 = vcmask 523264
  %v373 = vsel %vm372, %v370, %v364
  %v374 = vsel %vm372, %v371, %v366
  %v375 = vpack.c.bf16 %v374, %v373
  %v376 = vld [vmem:[%s6] sm:$0xf]
  %v377 = vld [vmem:[%s6 + $0x4] sm:$0xf]
  %v378 = vld [vmem:[%s6 + $0x8] sm:$0xf]
  %v379 = vld [vmem:[%s6 + $0xc] sm:$0xf]
  %v380 = vld [vmem:[%s6 + $0x10] sm:$0xf]
  %v381 = vld [vmem:[%s6 + $0x14] sm:$0xf]
  %v382 = vld [vmem:[%s6 + $0x18] sm:$0xf]
  %v383 = vld [vmem:[%s6 + $0x1c] sm:$0xf]
  %v384 = vld [vmem:[%s6 + $0x20] sm:$0xf]
  %v385 = vld [vmem:[%s6 + $0x24] sm:$0xf]
  %v386 = vld [vmem:[%s6 + $0x28] sm:$0xf]
  %v387 = vld [vmem:[%s6 + $0x2c] sm:$0xf]
  %v388 = vld [vmem:[%s7] sm:$0x1]
  %v390 = vlaneseq
  %v391 = vshrl.u32 %v390, 7
  %v392 = vsub.s32 0, %v391
  %v393 = vrot.slane %v388, %v392
  %v407 = vunpack.c.l.b16 %v376
  %v408 = vunpack.c.l.b16 %v377
  %v409 = vunpack.c.l.b16 %v378
  %v410 = vunpack.c.l.b16 %v379
  %v411 = vunpack.c.l.b16 %v380
  %v412 = vunpack.c.l.b16 %v381
  %v413 = vunpack.c.l.b16 %v382
  %v414 = vunpack.c.l.b16 %v383
  %v415 = vunpack.c.l.b16 %v384
  %v416 = vunpack.c.l.b16 %v385
  %v417 = vunpack.c.l.b16 %v386
  %v418 = vunpack.c.l.b16 %v387
  %v419 = vpack.c.b16 %v408, %v407
  %v420 = vpack.c.b16 %v410, %v409
  %v421 = vpack.c.b16 %v412, %v411
  %v422 = vpack.c.b16 %v414, %v413
  %v423 = vpack.c.b16 %v416, %v415
  %v424 = vpack.c.b16 %v418, %v417
  %vm431 = vcmask 785408
  %v433 = vsel %vm431, %v375, 0
  %435 = vmatprep.subr.bf16.mxu0 0
  %436 = vmatpush1.bf16.msra.mxu0 0
  %437 = vmatprep.subr.bf16.mxu0 0
  %438 = vmatpush1.bf16.msra.mxu0 0
  %439 = vmatprep.subr.bf16.mxu0 0
  %440 = vmatpush1.bf16.msra.mxu0 %v424
  %441 = vmatprep.subr.bf16.mxu0 0
  %442 = vmatpush1.bf16.msra.mxu0 %v423
  %443 = vmatprep.subr.bf16.mxu0 0
  %444 = vmatpush1.bf16.msra.mxu0 %v422
  %445 = vmatprep.subr.bf16.mxu0 0
  %446 = vmatpush1.bf16.msra.mxu0 %v421
  %447 = vmatprep.subr.bf16.mxu0 0
  %448 = vmatpush1.bf16.msra.mxu0 %v420
  %449 = vmatprep.subr.bf16.mxu0 0
  %450 = vmatpush1.bf16.msra.mxu0 %v419
  %451 = vmatprep.subr.bf16.mxu0 0
  %452 = vmatpush2.bf16.msra.mxu0 0
  %453 = vmatprep.subr.bf16.mxu0 0
  %454 = vmatpush2.bf16.msra.mxu0 0
  %455 = vmatprep.subr.bf16.mxu0 0
  %456 = vmatpush2.bf16.msra.mxu0 0
  %457 = vmatprep.subr.bf16.mxu0 0
  %458 = vmatpush2.bf16.msra.mxu0 0
  %459 = vmatprep.subr.bf16.mxu0 0
  %460 = vmatpush2.bf16.msra.mxu0 0
  %461 = vmatprep.subr.bf16.mxu0 0
  %462 = vmatpush2.bf16.msra.mxu0 0
  %463 = vmatprep.subr.bf16.mxu0 0
  %464 = vmatpush2.bf16.msra.mxu0 0
  %465 = vmatprep.subr.bf16.mxu0 0
  %466 = vmatpush2.bf16.msra.mxu0 0
  %467 = vmatprep.mubr.bf16.mxu0 0
  %468 = vmatmul.mubr.bf16.gmra.mxu0 %v433
  %v469 = vpop.f32.mrf.mxu0
  %v470 = vadd.f32 %v393, %v469
  %v471 = vpop.f32.mrf.mxu0
  %v472 = vpop.f32.mrf.mxu0
  %v473 = vadd.f32 %v393, %v472
  %v474 = vpop.f32.mrf.mxu0
  %475 = vdwg.mxu0
  %v476 = vsub.f32 0.0, %v470
  %v477 = vsub.f32 0.0, %v473
  %v478 = vmul.f32 %v476, 1.442695
  %v479 = vpow.pop %v478
  %v480 = vmul.f32 %v477, 1.442695
  %v481 = vpow.pop %v480
  %v482 = vadd.f32 %v479, 1.0
  %v483 = vadd.f32 %v481, 1.0
  %v484 = vrcp.pop %v482
  %v485 = vmul.f32 1.0, %v484
  %v486 = vrcp.pop %v483
  %v487 = vmul.f32 1.0, %v486
  %490 = vrot.lane.b32.xlu0 %v470, 15
  %v491 = vpop.permute.xlu0 %490
  %492 = vrot.lane.b32.xlu0 %v473, 15
  %v493 = vpop.permute.xlu0 %492
  %498 = vrot.lane.b32.xlu0 %v485, 15
  %v499 = vpop.permute.xlu0 %498
  %500 = vrot.lane.b32.xlu0 %v487, 15
  %v501 = vpop.permute.xlu0 %500
  %v504 = vsel %vm154, %v174, %v146
  %v505 = vsel %vm154, %v176, %v149
  %vm506 = vcmask 121856
  %v507 = vsel %vm506, %v504, %v491
  %v508 = vsel %vm506, %v505, %v493
  %vm509 = vcmask 187392
  %v510 = vsel %vm509, %v507, %v499
  %v511 = vsel %vm509, %v508, %v501
  %vm512 = vcmask 195584
  %v513 = vsel %vm512, %v510, 0.0
  %v514 = vsel %vm512, %v511, 0.0
  %515 = vst [vmem:[%s8] sm:$0xff] %v513
  %516 = vst [vmem:[%s8 + $0x8] sm:$0xff] %v514
  // Predicated region
  $region34: #{faster_rcnn_forward.9} parent=0 // pred_check
    _
  $region35: #{faster_rcnn_forward.9} parent=0 // pred_check_branch
    %518 = sbr.rel (0) target = $region37
  $region36: #{faster_rcnn_forward.9} parent=0 // pred_region
    _
  $region37: #{faster_rcnn_forward.9} parent=0 // pred_fallthru
    _
  // Predicated region
  $region38: #{faster_rcnn_forward.9} parent=0 // pred_check
    _
  $region39: #{faster_rcnn_forward.9} parent=0 // pred_check_branch
    %520 = sbr.rel (0) target = $region41
  $region40: #{faster_rcnn_forward.9} parent=0 // pred_region
    _
  $region41: #{faster_rcnn_forward.9} parent=0 // pred_fallthru
    _

// kernel: faster_rcnn_forward.7
$region0: #{faster_rcnn_forward.7}
  #allocation0 [shape = 'u32[]', space=smem, size = 0x4, offset = 0x4, fixed_abs, tag = 'smem constant byte address 0x4 - core index']
  #allocation1 [shape = 'u32[144,128]{1,0:T(1,128)}', space=vmem, size = 0x12000, scoped, tag = 'internal scratch']
  #allocation2 [shape = 's32[1]{0}', space=sflag, size = 0x4, scoped, tag = 'scoped memory for faster_rcnn_forward.7']
  #allocation3 [shape = 'u8[512]{0}', space=smem, size = 0x200, scoped, tag = 'prefetched SMEM operand 0']
  #allocation4 [shape = 'u8[1024]{0}', space=smem, size = 0x400, scoped, tag = 'prefetched SMEM operand 1']
  #allocation5 [shape = 'u8[1024]{0}', space=smem, size = 0x400, scoped, tag = 'prefetched SMEM operand 2']
  #allocation6 [shape = 'u8[1024]{0}', space=smem, size = 0x400, scoped, tag = 'prefetched SMEM operand 3']
  #allocation7 [shape = 'u8[1024]{0}', space=smem, size = 0x400, scoped, tag = 'prefetched SMEM operand 4']
  %s0 = inlined_call_operand.vmem [shape: s32[32], index: 0, kind: input, shape index: {}]
  %s1 = inlined_call_operand.vmem [shape: s32[224], index: 1, kind: input, shape index: {}]
  %s2 = inlined_call_operand.vmem [shape: s32[224], index: 2, kind: input, shape index: {}]
  %s3 = inlined_call_operand.vmem [shape: s32[224], index: 3, kind: input, shape index: {}]
  %s4 = inlined_call_operand.vmem [shape: s32[224], index: 4, kind: input, shape index: {}]
  %s5 = inlined_call_operand.vmem [shape: bf16[2,4,4,128], index: 5, kind: input, shape index: {}]
  %s6 = inlined_call_operand.vmem [shape: bf16[32,49,128], index: 6, kind: output, shape index: {}]
  %s7 = sld [smem:[#allocation0]]
  $region37: #{faster_rcnn_forward.7} parent=0
    _
  %s9 = ssub.s32 1, %s7
  %s10 = scalar_select 0, %s9, %s7
  %s11 = sshll.u32 %s0, 4
  %s12 = int_to_ptr.vmem [resolvable:$true] %s11
  %14 = dma.vmem_to_smem %s12, 16, [#allocation3], [#allocation2]
  %s15 = sshll.u32 %s1, 4
  %s16 = int_to_ptr.vmem [resolvable:$true] %s15
  %18 = dma.vmem_to_smem %s16, 32, [#allocation4], [#allocation2]
  %s19 = sshll.u32 %s2, 4
  %s20 = int_to_ptr.vmem [resolvable:$true] %s19
  %22 = dma.vmem_to_smem %s20, 32, [#allocation5], [#allocation2]
  %s23 = sshll.u32 %s3, 4
  %s24 = int_to_ptr.vmem [resolvable:$true] %s23
  %26 = dma.vmem_to_smem %s24, 32, [#allocation6], [#allocation2]
  %s27 = sshll.u32 %s4, 4
  %s28 = int_to_ptr.vmem [resolvable:$true] %s27
  %30 = dma.vmem_to_smem %s28, 32, [#allocation7], [#allocation2]
  %31 = dma.done [#allocation2], 144
  %32 = sfence
  loop: start=0, step=1, limit=34
  $region2: #{faster_rcnn_forward.7} parent=0 // loop_pre_header
    _
  $region3: #{faster_rcnn_forward.7} parent=0 // loop_header
    %s34 = sphi 0, %s38
    %p35 = scmp.ge.s32.totalorder %s34, 34
    %s46 = sphi 0, %s48
    %s49 = sphi 0, %s46
    %s50 = sphi 0, %s49
    %s66 = sphi 0, %s50
    %s72 = sphi 0, %s74
    %s75 = sphi 0, %s72
    %s76 = sphi 0, %s75
    %s92 = sphi 0, %s76
  $region4: #{faster_rcnn_forward.7} parent=0 // loop_header_branch
    %37 = sbr.rel (%p35) target = $region8
  $region5: #{faster_rcnn_forward.7} parent=0 // loop_body
    %s39 = ssub.s32 %s34, 1
    %s40 = ssub.s32 %s34, 2
    %s41 = sadd.s32 %s34, 1
    %s42 = sld [smem:[#allocation3 + %s34]]
    %s43 = sld [smem:[#allocation3 + %s41]]
    %s44 = ssub.s32 %s42, %s43
    %p45 = scmp.eq.s32.totalorder %s44, 0
    %s47 = sadd.s32 %s46, 1
    %s48 = scalar_select %p45, %s46, %s47
    %p51 = pneg %p45
    %p52 = scmp.eq.s32.totalorder %s34, 31
    %p53 = por %p51, %p52
    %p54 = scmp.ne.s32.totalorder %s46, %s49
    %p55 = scmp.eq.s32.totalorder %s34, 0
    %p56 = por %p54, %p55
    %p57 = scmp.ne.s32.totalorder %s46, %s49
    %p58 = scmp.eq.s32.totalorder %s39, 31
    %p59 = por %p57, %p58
    %p60 = scmp.ne.s32.totalorder %s49, %s50
    %p61 = scmp.eq.s32.totalorder %s39, 0
    %p62 = por %p60, %p61
    %p63 = scmp.ne.s32.totalorder %s49, %s50
    %p64 = scmp.eq.s32.totalorder %s40, 31
    %p65 = por %p63, %p64
    %p67 = scmp.ne.s32.totalorder %s50, %s66
    %p68 = scmp.eq.s32.totalorder %s40, 0
    %p69 = por %p67, %p68
    %s70 = ssub.s32 %s34, %s41
    %p71 = scmp.eq.s32.totalorder %s70, 0
    %s73 = sadd.s32 %s72, 1
    %s74 = scalar_select %p71, %s72, %s73
    %p77 = pneg %p71
    %p78 = scmp.eq.s32.totalorder %s34, 31
    %p79 = por %p77, %p78
    %p80 = scmp.ne.s32.totalorder %s72, %s75
    %p81 = scmp.eq.s32.totalorder %s34, 0
    %p82 = por %p80, %p81
    %p83 = scmp.ne.s32.totalorder %s72, %s75
    %p84 = scmp.eq.s32.totalorder %s39, 31
    %p85 = por %p83, %p84
    %p86 = scmp.ne.s32.totalorder %s75, %s76
    %p87 = scmp.eq.s32.totalorder %s39, 0
    %p88 = por %p86, %p87
    %p89 = scmp.ne.s32.totalorder %s75, %s76
    %p90 = scmp.eq.s32.totalorder %s40, 31
    %p91 = por %p89, %p90
    %p93 = scmp.ne.s32.totalorder %s76, %s92
    %p94 = scmp.eq.s32.totalorder %s40, 0
    %p95 = por %p93, %p94
    %p96 = scmp.le.s32.totalorder 1, %s34
    %p97 = scmp.lt.s32.totalorder %s34, 33
    %p98 = pnand %p96, %p97
    %p99 = pneg %p98
    // Predicated region
    $region9: #{faster_rcnn_forward.7} parent=5 // pred_check
      _
    $region10: #{faster_rcnn_forward.7} parent=5 // pred_check_branch
      %101 = sbr.rel (%p98) target = $region12
    $region11: #{faster_rcnn_forward.7} parent=5 // pred_region
      %s102 = ssub.s32 %s34, 1
    $region12: #{faster_rcnn_forward.7} parent=5 // pred_fallthru
      _
    %p103 = scmp.lt.s32.totalorder %s34, 32
    // Predicated region
    $region13: #{faster_rcnn_forward.7} parent=5 // pred_check
      %p104 = pneg %p103
    $region14: #{faster_rcnn_forward.7} parent=5 // pred_check_branch
      %106 = sbr.rel (%p104) target = $region16
    $region15: #{faster_rcnn_forward.7} parent=5 // pred_region
      // Predicated region
      $region17: #{faster_rcnn_forward.7} parent=15 // pred_check
        %p107 = pneg %p56
      $region18: #{faster_rcnn_forward.7} parent=15 // pred_check_branch
        %109 = sbr.rel (%p107) target = $region20
      $region19: #{faster_rcnn_forward.7} parent=15 // pred_region
        %s110 = sld [smem:[#allocation3 + %s34]]
        %p111 = scmp.lt.s32.totalorder %s110, 1
        %s112 = scalar_select %p111, %s110, 1
        %s113 = smul.addr %s112, 4
        %s114 = smul.addr %s113, 2
        %s115 = scalar_lea.vmem %s5, %s114
        %s116 = sld [smem:[#allocation3 + %s34]]
      $region20: #{faster_rcnn_forward.7} parent=15 // pred_fallthru
        _
    $region16: #{faster_rcnn_forward.7} parent=5 // pred_fallthru
      _
    %p117 = scmp.le.s32.totalorder 1, %s34
    %p118 = scmp.lt.s32.totalorder %s34, 33
    %p119 = pnand %p117, %p118
    %p120 = pneg %p119
    // Predicated region
    $region21: #{faster_rcnn_forward.7} parent=5 // pred_check
      _
    $region22: #{faster_rcnn_forward.7} parent=5 // pred_check_branch
      %122 = sbr.rel (%p119) target = $region24
    $region23: #{faster_rcnn_forward.7} parent=5 // pred_region
      %s123 = ssub.s32 %s34, 1
      %s124 = sld [smem:[#allocation3 + %s39]]
      %p125 = scmp.lt.s32.totalorder %s124, 1
      %s126 = scalar_select %p125, %s124, 1
      %s127 = smul.addr %s126, 4
      %s128 = smul.addr %s127, 2
      %s129 = scalar_lea.vmem %s5, %s128
      %p130 = pneg %p62
      %p131 = pneg %p59
      %p132 = pneg %p88
      %p133 = pneg %p85
      %p134 = scmp.lt.s32.totalorder %s39, 31
      %s135 = scalar_select %p134, %s39, 31
      %s136 = smul.addr %s135, 7
      %s137 = smul.addr %s136, 4
      %s138 = scalar_lea.vmem %s6, %s137
      %s139 = sld [smem:[#allocation3 + %s39]]
      %p140 = scmp.lt.s32.totalorder %s139, 1
      %s141 = scalar_select %p140, %s139, 1
      %s142 = smul.addr %s141, 4
      %s143 = smul.addr %s142, 2
      %s144 = scalar_lea.vmem %s5, %s143
      %s145 = sld [smem:[#allocation3 + %s39]]
      %p146 = scmp.lt.s32.totalorder %s39, 31
      %s147 = scalar_select %p146, %s39, 31
      %s148 = smul.addr %s147, 7
      %s149 = smul.addr %s148, 4
      %s150 = scalar_lea.vmem %s6, %s149
      %v151 = vld [vmem:[%s144] sm:$0x3]
      %v152 = vld [vmem:[%s144 + $0x2] sm:$0x3]
      %v153 = vld [vmem:[%s144 + $0x4] sm:$0x3]
      %v154 = vld [vmem:[%s144 + $0x6] sm:$0x3]
      %v155 = vunpack.c.l.bf16 %v151
      %v156 = vunpack.c.l.bf16 %v152
      %v157 = vunpack.c.l.bf16 %v153
      %v158 = vunpack.c.l.bf16 %v154
      %v159 = vlaneseq
      %v160 = vshrl.u32 %v159, 7
      %s161 = smul.u32 %s39, 7
      %s162 = sld [smem:[#allocation6 + %s161]]
      %v163 = vstv %s162
      %vm164 = vcmp.ge.s32.totalorder %v160, %v163
      %s165 = sld [smem:[#allocation7 + %s161]]
      %v166 = vstv %s165
      %vm167 = vcmp.lt.s32.totalorder %v160, %v166
      %vm168 = vmand %vm164, %vm167
      %v169 = vsel %vm168, 1, 0
      %vm170 = vcmp.eq.s32.totalorder %v169, 1
      %v171 = vsel %vm170, %v155, -inf
      %v172 = vsel %vm170, %v156, -inf
      %v173 = vsel %vm170, %v157, -inf
      %v174 = vsel %vm170, %v158, -inf
      %vm175 = vcmask 1043456
      %v176 = vsel %vm175, %v171, -inf
      %v177 = vrot.slane %v176, 4
      %v178 = vmax.f32 %v176, %v177
      %v179 = vrot.slane %v178, 2
      %v180 = vmax.f32 %v178, %v179
      %v181 = vrot.slane %v180, 1
      %v182 = vmax.f32 %v180, %v181
      %v183 = vsel %vm175, %v172, -inf
      %v184 = vrot.slane %v183, 4
      %v185 = vmax.f32 %v183, %v184
      %v186 = vrot.slane %v185, 2
      %v187 = vmax.f32 %v185, %v186
      %v188 = vrot.slane %v187, 1
      %v189 = vmax.f32 %v187, %v188
      %v190 = vsel %vm175, %v173, -inf
      %v191 = vrot.slane %v190, 4
      %v192 = vmax.f32 %v190, %v191
      %v193 = vrot.slane %v192, 2
      %v194 = vmax.f32 %v192, %v193
      %v195 = vrot.slane %v194, 1
      %v196 = vmax.f32 %v194, %v195
      %v197 = vsel %vm175, %v174, -inf
      %v198 = vrot.slane %v197, 4
      %v199 = vmax.f32 %v197, %v198
      %v200 = vrot.slane %v199, 2
      %v201 = vmax.f32 %v199, %v200
      %v202 = vrot.slane %v201, 1
      %v203 = vmax.f32 %v201, %v202
      %s204 = sadd.s32 %s161, 1
      %s205 = sld [smem:[#allocation6 + %s204]]
      %v206 = vstv %s205
      %vm207 = vcmp.ge.s32.totalorder %v160, %v206
      %s208 = sld [smem:[#allocation7 + %s204]]
      %v209 = vstv %s208
      %vm210 = vcmp.lt.s32.totalorder %v160, %v209
      %vm211 = vmand %vm207, %vm210
      %v212 = vsel %vm211, 1, 0
      %vm213 = vcmp.eq.s32.totalorder %v212, 1
      %v214 = vsel %vm213, %v155, -inf
      %v215 = vsel %vm213, %v156, -inf
      %v216 = vsel %vm213, %v157, -inf
      %v217 = vsel %vm213, %v158, -inf
      %v218 = vsel %vm175, %v214, -inf
      %v219 = vrot.slane %v218, 4
      %v220 = vmax.f32 %v218, %v219
      %v221 = vrot.slane %v220, 2
      %v222 = vmax.f32 %v220, %v221
      %v223 = vrot.slane %v222, 1
      %v224 = vmax.f32 %v222, %v223
      %v225 = vsel %vm175, %v215, -inf
      %v226 = vrot.slane %v225, 4
      %v227 = vmax.f32 %v225, %v226
      %v228 = vrot.slane %v227, 2
      %v229 = vmax.f32 %v227, %v228
      %v230 = vrot.slane %v229, 1
      %v231 = vmax.f32 %v229, %v230
      %v232 = vsel %vm175, %v216, -inf
      %v233 = vrot.slane %v232, 4
      %v234 = vmax.f32 %v232, %v233
      %v235 = vrot.slane %v234, 2
      %v236 = vmax.f32 %v234, %v235
      %v237 = vrot.slane %v236, 1
      %v238 = vmax.f32 %v236, %v237
      %v239 = vsel %vm175, %v217, -inf
      %v240 = vrot.slane %v239, 4
      %v241 = vmax.f32 %v239, %v240
      %v242 = vrot.slane %v241, 2
      %v243 = vmax.f32 %v241, %v242
      %v244 = vrot.slane %v243, 1
      %v245 = vmax.f32 %v243, %v244
      %s246 = sadd.s32 %s161, 2
      %s247 = sld [smem:[#allocation6 + %s246]]
      %v248 = vstv %s247
      %vm249 = vcmp.ge.s32.totalorder %v160, %v248
      %s250 = sld [smem:[#allocation7 + %s246]]
      %v251 = vstv %s250
      %vm252 = vcmp.lt.s32.totalorder %v160, %v251
      %vm253 = vmand %vm249, %vm252
      %v254 = vsel %vm253, 1, 0
      %vm255 = vcmp.eq.s32.totalorder %v254, 1
      %v256 = vsel %vm255, %v155, -inf
      %v257 = vsel %vm255, %v156, -inf
      %v258 = vsel %vm255, %v157, -inf
      %v259 = vsel %vm255, %v158, -inf
      %v260 = vsel %vm175, %v256, -inf
      %v261 = vrot.slane %v260, 4
      %v262 = vmax.f32 %v260, %v261
      %v263 = vrot.slane %v262, 2
      %v264 = vmax.f32 %v262, %v263
      %v265 = vrot.slane %v264, 1
      %v266 = vmax.f32 %v264, %v265
      %v267 = vsel %vm175, %v257, -inf
      %v268 = vrot.slane %v267, 4
      %v269 = vmax.f32 %v267, %v268
      %v270 = vrot.slane %v269, 2
      %v271 = vmax.f32 %v269, %v270
      %v272 = vrot.slane %v271, 1
      %v273 = vmax.f32 %v271, %v272
      %v274 = vsel %vm175, %v258, -inf
      %v275 = vrot.slane %v274, 4
      %v276 = vmax.f32 %v274, %v275
      %v277 = vrot.slane %v276, 2
      %v278 = vmax.f32 %v276, %v277
      %v279 = vrot.slane %v278, 1
      %v280 = vmax.f32 %v278, %v279
      %v281 = vsel %vm175, %v259, -inf
      %v282 = vrot.slane %v281, 4
      %v283 = vmax.f32 %v281, %v282
      %v284 = vrot.slane %v283, 2
      %v285 = vmax.f32 %v283, %v284
      %v286 = vrot.slane %v285, 1
      %v287 = vmax.f32 %v285, %v286
      %s288 = sadd.s32 %s161, 3
      %s289 = sld [smem:[#allocation6 + %s288]]
      %v290 = vstv %s289
      %vm291 = vcmp.ge.s32.totalorder %v160, %v290
      %s292 = sld [smem:[#allocation7 + %s288]]
      %v293 = vstv %s292
      %vm294 = vcmp.lt.s32.totalorder %v160, %v293
      %vm295 = vmand %vm291, %vm294
      %v296 = vsel %vm295, 1, 0
      %vm297 = vcmp.eq.s32.totalorder %v296, 1
      %v298 = vsel %vm297, %v155, -inf
      %v299 = vsel %vm297, %v156, -inf
      %v300 = vsel %vm297, %v157, -inf
      %v301 = vsel %vm297, %v158, -inf
      %v302 = vsel %vm175, %v298, -inf
      %v303 = vrot.slane %v302, 4
      %v304 = vmax.f32 %v302, %v303
      %v305 = vrot.slane %v304, 2
      %v306 = vmax.f32 %v304, %v305
      %v307 = vrot.slane %v306, 1
      %v308 = vmax.f32 %v306, %v307
      %v309 = vsel %vm175, %v299, -inf
      %v310 = vrot.slane %v309, 4
      %v311 = vmax.f32 %v309, %v310
      %v312 = vrot.slane %v311, 2
      %v313 = vmax.f32 %v311, %v312
      %v314 = vrot.slane %v313, 1
      %v315 = vmax.f32 %v313, %v314
      %v316 = vsel %vm175, %v300, -inf
      %v317 = vrot.slane %v316, 4
      %v318 = vmax.f32 %v316, %v317
      %v319 = vrot.slane %v318, 2
      %v320 = vmax.f32 %v318, %v319
      %v321 = vrot.slane %v320, 1
      %v322 = vmax.f32 %v320, %v321
      %v323 = vsel %vm175, %v301, -inf
      %v324 = vrot.slane %v323, 4
      %v325 = vmax.f32 %v323, %v324
      %v326 = vrot.slane %v325, 2
      %v327 = vmax.f32 %v325, %v326
      %v328 = vrot.slane %v327, 1
      %v329 = vmax.f32 %v327, %v328
      %s330 = sadd.s32 %s161, 4
      %s331 = sld [smem:[#allocation6 + %s330]]
      %v332 = vstv %s331
      %vm333 = vcmp.ge.s32.totalorder %v160, %v332
      %s334 = sld [smem:[#allocation7 + %s330]]
      %v335 = vstv %s334
      %vm336 = vcmp.lt.s32.totalorder %v160, %v335
      %vm337 = vmand %vm333, %vm336
      %v338 = vsel %vm337, 1, 0
      %vm339 = vcmp.eq.s32.totalorder %v338, 1
      %v340 = vsel %vm339, %v155, -inf
      %v341 = vsel %vm339, %v156, -inf
      %v342 = vsel %vm339, %v157, -inf
      %v343 = vsel %vm339, %v158, -inf
      %v344 = vsel %vm175, %v340, -inf
      %v345 = vrot.slane %v344, 4
      %v346 = vmax.f32 %v344, %v345
      %v347 = vrot.slane %v346, 2
      %v348 = vmax.f32 %v346, %v347
      %v349 = vrot.slane %v348, 1
      %v350 = vmax.f32 %v348, %v349
      %v351 = vsel %vm175, %v341, -inf
      %v352 = vrot.slane %v351, 4
      %v353 = vmax.f32 %v351, %v352
      %v354 = vrot.slane %v353, 2
      %v355 = vmax.f32 %v353, %v354
      %v356 = vrot.slane %v355, 1
      %v357 = vmax.f32 %v355, %v356
      %v358 = vsel %vm175, %v342, -inf
      %v359 = vrot.slane %v358, 4
      %v360 = vmax.f32 %v358, %v359
      %v361 = vrot.slane %v360, 2
      %v362 = vmax.f32 %v360, %v361
      %v363 = vrot.slane %v362, 1
      %v364 = vmax.f32 %v362, %v363
      %v365 = vsel %vm175, %v343, -inf
      %v366 = vrot.slane %v365, 4
      %v367 = vmax.f32 %v365, %v366
      %v368 = vrot.slane %v367, 2
      %v369 = vmax.f32 %v367, %v368
      %v370 = vrot.slane %v369, 1
      %v371 = vmax.f32 %v369, %v370
      %s372 = sadd.s32 %s161, 5
      %s373 = sld [smem:[#allocation6 + %s372]]
      %v374 = vstv %s373
      %vm375 = vcmp.ge.s32.totalorder %v160, %v374
      %s376 = sld [smem:[#allocation7 + %s372]]
      %v377 = vstv %s376
      %vm378 = vcmp.lt.s32.totalorder %v160, %v377
      %vm379 = vmand %vm375, %vm378
      %v380 = vsel %vm379, 1, 0
      %vm381 = vcmp.eq.s32.totalorder %v380, 1
      %v382 = vsel %vm381, %v155, -inf
      %v383 = vsel %vm381, %v156, -inf
      %v384 = vsel %vm381, %v157, -inf
      %v385 = vsel %vm381, %v158, -inf
      %v386 = vsel %vm175, %v382, -inf
      %v387 = vrot.slane %v386, 4
      %v388 = vmax.f32 %v386, %v387
      %v389 = vrot.slane %v388, 2
      %v390 = vmax.f32 %v388, %v389
      %v391 = vrot.slane %v390, 1
      %v392 = vmax.f32 %v390, %v391
      %v393 = vsel %vm175, %v383, -inf
      %v394 = vrot.slane %v393, 4
      %v395 = vmax.f32 %v393, %v394
      %v396 = vrot.slane %v395, 2
      %v397 = vmax.f32 %v395, %v396
      %v398 = vrot.slane %v397, 1
      %v399 = vmax.f32 %v397, %v398
      %v400 = vsel %vm175, %v384, -inf
      %v401 = vrot.slane %v400, 4
      %v402 = vmax.f32 %v400, %v401
      %v403 = vrot.slane %v402, 2
      %v404 = vmax.f32 %v402, %v403
      %v405 = vrot.slane %v404, 1
      %v406 = vmax.f32 %v404, %v405
      %v407 = vsel %vm175, %v385, -inf
      %v408 = vrot.slane %v407, 4
      %v409 = vmax.f32 %v407, %v408
      %v410 = vrot.slane %v409, 2
      %v411 = vmax.f32 %v409, %v410
      %v412 = vrot.slane %v411, 1
      %v413 = vmax.f32 %v411, %v412
      %s414 = sadd.s32 %s161, 6
      %s415 = sld [smem:[#allocation6 + %s414]]
      %v416 = vstv %s415
      %vm417 = vcmp.ge.s32.totalorder %v160, %v416
      %s418 = sld [smem:[#allocation7 + %s414]]
      %v419 = vstv %s418
      %vm420 = vcmp.lt.s32.totalorder %v160, %v419
      %vm421 = vmand %vm417, %vm420
      %v422 = vsel %vm421, 1, 0
      %vm423 = vcmp.eq.s32.totalorder %v422, 1
      %v424 = vsel %vm423, %v155, -inf
      %v425 = vsel %vm423, %v156, -inf
      %v426 = vsel %vm423, %v157, -inf
      %v427 = vsel %vm423, %v158, -inf
      %v428 = vsel %vm175, %v424, -inf
      %v429 = vrot.slane %v428, 4
      %v430 = vmax.f32 %v428, %v429
      %v431 = vrot.slane %v430, 2
      %v432 = vmax.f32 %v430, %v431
      %v433 = vrot.slane %v432, 1
      %v434 = vmax.f32 %v432, %v433
      %v435 = vsel %vm175, %v425, -inf
      %v436 = vrot.slane %v435, 4
      %v437 = vmax.f32 %v435, %v436
      %v438 = vrot.slane %v437, 2
      %v439 = vmax.f32 %v437, %v438
      %v440 = vrot.slane %v439, 1
      %v441 = vmax.f32 %v439, %v440
      %v442 = vsel %vm175, %v426, -inf
      %v443 = vrot.slane %v442, 4
      %v444 = vmax.f32 %v442, %v443
      %v445 = vrot.slane %v444, 2
      %v446 = vmax.f32 %v444, %v445
      %v447 = vrot.slane %v446, 1
      %v448 = vmax.f32 %v446, %v447
      %v449 = vsel %vm175, %v427, -inf
      %v450 = vrot.slane %v449, 4
      %v451 = vmax.f32 %v449, %v450
      %v452 = vrot.slane %v451, 2
      %v453 = vmax.f32 %v451, %v452
      %v454 = vrot.slane %v453, 1
      %v455 = vmax.f32 %v453, %v454
      %s456 = sld [smem:[#allocation4 + %s161]]
      %v457 = vstv %s456
      %vm458 = vcmp.ge.s32.totalorder %v160, %v457
      %s459 = sld [smem:[#allocation5 + %s161]]
      %v460 = vstv %s459
      %vm461 = vcmp.lt.s32.totalorder %v160, %v460
      %vm462 = vmand %vm458, %vm461
      %v463 = vsel %vm462, 1, 0
      %vm464 = vcmp.eq.s32.totalorder %v463, 1
      %vm469 = vcmask 1041409
      %v470 = vsel %vm469, %v189, %v182
      %vm471 = vcmask 1042434
      %v472 = vsel %vm471, %v196, %v470
      %vm473 = vcmask 1043459
      %v474 = vsel %vm473, %v203, %v472
      %v476 = vsel %vm464, %v474, -inf
      %v477 = vsel %vm175, %v476, -inf
      %v478 = vrot.slane %v477, 4
      %v479 = vmax.f32 %v477, %v478
      %v480 = vrot.slane %v479, 2
      %v481 = vmax.f32 %v479, %v480
      %v482 = vrot.slane %v481, 1
      %v483 = vmax.f32 %v481, %v482
      %vm484 = vcmp.gt.f32.partialorder %v483, -inf
      %v485 = vsel %vm484, %v483, 0.0
      %v490 = vsel %vm469, %v231, %v224
      %v491 = vsel %vm471, %v238, %v490
      %v492 = vsel %vm473, %v245, %v491
      %v494 = vsel %vm464, %v492, -inf
      %v495 = vsel %vm175, %v494, -inf
      %v496 = vrot.slane %v495, 4
      %v497 = vmax.f32 %v495, %v496
      %v498 = vrot.slane %v497, 2
      %v499 = vmax.f32 %v497, %v498
      %v500 = vrot.slane %v499, 1
      %v501 = vmax.f32 %v499, %v500
      %vm502 = vcmp.gt.f32.partialorder %v501, -inf
      %v503 = vsel %vm502, %v501, 0.0
      %v508 = vsel %vm469, %v273, %v266
      %v509 = vsel %vm471, %v280, %v508
      %v510 = vsel %vm473, %v287, %v509
      %v512 = vsel %vm464, %v510, -inf
      %v513 = vsel %vm175, %v512, -inf
      %v514 = vrot.slane %v513, 4
      %v515 = vmax.f32 %v513, %v514
      %v516 = vrot.slane %v515, 2
      %v517 = vmax.f32 %v515, %v516
      %v518 = vrot.slane %v517, 1
      %v519 = vmax.f32 %v517, %v518
      %vm520 = vcmp.gt.f32.partialorder %v519, -inf
      %v521 = vsel %vm520, %v519, 0.0
      %v526 = vsel %vm469, %v315, %v308
      %v527 = vsel %vm471, %v322, %v526
      %v528 = vsel %vm473, %v329, %v527
      %v530 = vsel %vm464, %v528, -inf
      %v531 = vsel %vm175, %v530, -inf
      %v532 = vrot.slane %v531, 4
      %v533 = vmax.f32 %v531, %v532
      %v534 = vrot.slane %v533, 2
      %v535 = vmax.f32 %v533, %v534
      %v536 = vrot.slane %v535, 1
      %v537 = vmax.f32 %v535, %v536
      %vm538 = vcmp.gt.f32.partialorder %v537, -inf
      %v539 = vsel %vm538, %v537, 0.0
      %v544 = vsel %vm469, %v357, %v350
      %v545 = vsel %vm471, %v364, %v544
      %v546 = vsel %vm473, %v371, %v545
      %v548 = vsel %vm464, %v546, -inf
      %v549 = vsel %vm175, %v548, -inf
      %v550 = vrot.slane %v549, 4
      %v551 = vmax.f32 %v549, %v550
      %v552 = vrot.slane %v551, 2
      %v553 = vmax.f32 %v551, %v552
      %v554 = vrot.slane %v553, 1
      %v555 = vmax.f32 %v553, %v554
      %vm556 = vcmp.gt.f32.partialorder %v555, -inf
      %v557 = vsel %vm556, %v555, 0.0
      %v562 = vsel %vm469, %v399, %v392
      %v563 = vsel %vm471, %v406, %v562
      %v564 = vsel %vm473, %v413, %v563
      %v566 = vsel %vm464, %v564, -inf
      %v567 = vsel %vm175, %v566, -inf
      %v568 = vrot.slane %v567, 4
      %v569 = vmax.f32 %v567, %v568
      %v570 = vrot.slane %v569, 2
      %v571 = vmax.f32 %v569, %v570
      %v572 = vrot.slane %v571, 1
      %v573 = vmax.f32 %v571, %v572
      %vm574 = vcmp.gt.f32.partialorder %v573, -inf
      %v575 = vsel %vm574, %v573, 0.0
      %v580 = vsel %vm469, %v441, %v434
      %v581 = vsel %vm471, %v448, %v580
      %v582 = vsel %vm473, %v455, %v581
      %v584 = vsel %vm464, %v582, -inf
      %v585 = vsel %vm175, %v584, -inf
      %v586 = vrot.slane %v585, 4
      %v587 = vmax.f32 %v585, %v586
      %v588 = vrot.slane %v587, 2
      %v589 = vmax.f32 %v587, %v588
      %v590 = vrot.slane %v589, 1
      %v591 = vmax.f32 %v589, %v590
      %vm592 = vcmp.gt.f32.partialorder %v591, -inf
      %v593 = vsel %vm592, %v591, 0.0
      %s594 = sld [smem:[#allocation4 + %s204]]
      %v595 = vstv %s594
      %vm596 = vcmp.ge.s32.totalorder %v160, %v595
      %s597 = sld [smem:[#allocation5 + %s204]]
      %v598 = vstv %s597
      %vm599 = vcmp.lt.s32.totalorder %v160, %v598
      %vm600 = vmand %vm596, %vm599
      %v601 = vsel %vm600, 1, 0
      %vm602 = vcmp.eq.s32.totalorder %v601, 1
      %v603 = vsel %vm602, %v474, -inf
      %v604 = vsel %vm175, %v603, -inf
      %v605 = vrot.slane %v604, 4
      %v606 = vmax.f32 %v604, %v605
      %v607 = vrot.slane %v606, 2
      %v608 = vmax.f32 %v606, %v607
      %v609 = vrot.slane %v608, 1
      %v610 = vmax.f32 %v608, %v609
      %vm611 = vcmp.gt.f32.partialorder %v610, -inf
      %v612 = vsel %vm611, %v610, 0.0
      %v613 = vsel %vm602, %v492, -inf
      %v614 = vsel %vm175, %v613, -inf
      %v615 = vrot.slane %v614, 4
      %v616 = vmax.f32 %v614, %v615
      %v617 = vrot.slane %v616, 2
      %v618 = vmax.f32 %v616, %v617
      %v619 = vrot.slane %v618, 1
      %v620 = vmax.f32 %v618, %v619
      %vm621 = vcmp.gt.f32.partialorder %v620, -inf
      %v622 = vsel %vm621, %v620, 0.0
      %v623 = vsel %vm602, %v510, -inf
      %v624 = vsel %vm175, %v623, -inf
      %v625 = vrot.slane %v624, 4
      %v626 = vmax.f32 %v624, %v625
      %v627 = vrot.slane %v626, 2
      %v628 = vmax.f32 %v626, %v627
      %v629 = vrot.slane %v628, 1
      %v630 = vmax.f32 %v628, %v629
      %vm631 = vcmp.gt.f32.partialorder %v630, -inf
      %v632 = vsel %vm631, %v630, 0.0
      %v633 = vsel %vm602, %v528, -inf
      %v634 = vsel %vm175, %v633, -inf
      %v635 = vrot.slane %v634, 4
      %v636 = vmax.f32 %v634, %v635
      %v637 = vrot.slane %v636, 2
      %v638 = vmax.f32 %v636, %v637
      %v639 = vrot.slane %v638, 1
      %v640 = vmax.f32 %v638, %v639
      %vm641 = vcmp.gt.f32.partialorder %v640, -inf
      %v642 = vsel %vm641, %v640, 0.0
      %v643 = vsel %vm602, %v546, -inf
      %v644 = vsel %vm175, %v643, -inf
      %v645 = vrot.slane %v644, 4
      %v646 = vmax.f32 %v644, %v645
      %v647 = vrot.slane %v646, 2
      %v648 = vmax.f32 %v646, %v647
      %v649 = vrot.slane %v648, 1
      %v650 = vmax.f32 %v648, %v649
      %vm651 = vcmp.gt.f32.partialorder %v650, -inf
      %v652 = vsel %vm651, %v650, 0.0
      %v653 = vsel %vm602, %v564, -inf
      %v654 = vsel %vm175, %v653, -inf
      %v655 = vrot.slane %v654, 4
      %v656 = vmax.f32 %v654, %v655
      %v657 = vrot.slane %v656, 2
      %v658 = vmax.f32 %v656, %v657
      %v659 = vrot.slane %v658, 1
      %v660 = vmax.f32 %v658, %v659
      %vm661 = vcmp.gt.f32.partialorder %v660, -inf
      %v662 = vsel %vm661, %v660, 0.0
      %v663 = vsel %vm602, %v582, -inf
      %v664 = vsel %vm175, %v663, -inf
      %v665 = vrot.slane %v664, 4
      %v666 = vmax.f32 %v664, %v665
      %v667 = vrot.slane %v666, 2
      %v668 = vmax.f32 %v666, %v667
      %v669 = vrot.slane %v668, 1
      %v670 = vmax.f32 %v668, %v669
      %vm671 = vcmp.gt.f32.partialorder %v670, -inf
      %v672 = vsel %vm671, %v670, 0.0
      %s673 = sld [smem:[#allocation4 + %s246]]
      %v674 = vstv %s673
      %vm675 = vcmp.ge.s32.totalorder %v160, %v674
      %s676 = sld [smem:[#allocation5 + %s246]]
      %v677 = vstv %s676
      %vm678 = vcmp.lt.s32.totalorder %v160, %v677
      %vm679 = vmand %vm675, %vm678
      %v680 = vsel %vm679, 1, 0
      %vm681 = vcmp.eq.s32.totalorder %v680, 1
      %v682 = vsel %vm681, %v474, -inf
      %v683 = vsel %vm175, %v682, -inf
      %v684 = vrot.slane %v683, 4
      %v685 = vmax.f32 %v683, %v684
      %v686 = vrot.slane %v685, 2
      %v687 = vmax.f32 %v685, %v686
      %v688 = vrot.slane %v687, 1
      %v689 = vmax.f32 %v687, %v688
      %vm690 = vcmp.gt.f32.partialorder %v689, -inf
      %v691 = vsel %vm690, %v689, 0.0
      %v692 = vsel %vm681, %v492, -inf
      %v693 = vsel %vm175, %v692, -inf
      %v694 = vrot.slane %v693, 4
      %v695 = vmax.f32 %v693, %v694
      %v696 = vrot.slane %v695, 2
      %v697 = vmax.f32 %v695, %v696
      %v698 = vrot.slane %v697, 1
      %v699 = vmax.f32 %v697, %v698
      %vm700 = vcmp.gt.f32.partialorder %v699, -inf
      %v701 = vsel %vm700, %v699, 0.0
      %v702 = vsel %vm681, %v510, -inf
      %v703 = vsel %vm175, %v702, -inf
      %v704 = vrot.slane %v703, 4
      %v705 = vmax.f32 %v703, %v704
      %v706 = vrot.slane %v705, 2
      %v707 = vmax.f32 %v705, %v706
      %v708 = vrot.slane %v707, 1
      %v709 = vmax.f32 %v707, %v708
      %vm710 = vcmp.gt.f32.partialorder %v709, -inf
      %v711 = vsel %vm710, %v709, 0.0
      %v712 = vsel %vm681, %v528, -inf
      %v713 = vsel %vm175, %v712, -inf
      %v714 = vrot.slane %v713, 4
      %v715 = vmax.f32 %v713, %v714
      %v716 = vrot.slane %v715, 2
      %v717 = vmax.f32 %v715, %v716
      %v718 = vrot.slane %v717, 1
      %v719 = vmax.f32 %v717, %v718
      %vm720 = vcmp.gt.f32.partialorder %v719, -inf
      %v721 = vsel %vm720, %v719, 0.0
      %v722 = vsel %vm681, %v546, -inf
      %v723 = vsel %vm175, %v722, -inf
      %v724 = vrot.slane %v723, 4
      %v725 = vmax.f32 %v723, %v724
      %v726 = vrot.slane %v725, 2
      %v727 = vmax.f32 %v725, %v726
      %v728 = vrot.slane %v727, 1
      %v729 = vmax.f32 %v727, %v728
      %vm730 = vcmp.gt.f32.partialorder %v729, -inf
      %v731 = vsel %vm730, %v729, 0.0
      %v732 = vsel %vm681, %v564, -inf
      %v733 = vsel %vm175, %v732, -inf
      %v734 = vrot.slane %v733, 4
      %v735 = vmax.f32 %v733, %v734
      %v736 = vrot.slane %v735, 2
      %v737 = vmax.f32 %v735, %v736
      %v738 = vrot.slane %v737, 1
      %v739 = vmax.f32 %v737, %v738
      %vm740 = vcmp.gt.f32.partialorder %v739, -inf
      %v741 = vsel %vm740, %v739, 0.0
      %v742 = vsel %vm681, %v582, -inf
      %v743 = vsel %vm175, %v742, -inf
      %v744 = vrot.slane %v743, 4
      %v745 = vmax.f32 %v743, %v744
      %v746 = vrot.slane %v745, 2
      %v747 = vmax.f32 %v745, %v746
      %v748 = vrot.slane %v747, 1
      %v749 = vmax.f32 %v747, %v748
      %vm750 = vcmp.gt.f32.partialorder %v749, -inf
      %v751 = vsel %vm750, %v749, 0.0
      %s752 = sld [smem:[#allocation4 + %s288]]
      %v753 = vstv %s752
      %vm754 = vcmp.ge.s32.totalorder %v160, %v753
      %s755 = sld [smem:[#allocation5 + %s288]]
      %v756 = vstv %s755
      %vm757 = vcmp.lt.s32.totalorder %v160, %v756
      %vm758 = vmand %vm754, %vm757
      %v759 = vsel %vm758, 1, 0
      %vm760 = vcmp.eq.s32.totalorder %v759, 1
      %v761 = vsel %vm760, %v474, -inf
      %v762 = vsel %vm175, %v761, -inf
      %v763 = vrot.slane %v762, 4
      %v764 = vmax.f32 %v762, %v763
      %v765 = vrot.slane %v764, 2
      %v766 = vmax.f32 %v764, %v765
      %v767 = vrot.slane %v766, 1
      %v768 = vmax.f32 %v766, %v767
      %vm769 = vcmp.gt.f32.partialorder %v768, -inf
      %v770 = vsel %vm769, %v768, 0.0
      %v771 = vsel %vm760, %v492, -inf
      %v772 = vsel %vm175, %v771, -inf
      %v773 = vrot.slane %v772, 4
      %v774 = vmax.f32 %v772, %v773
      %v775 = vrot.slane %v774, 2
      %v776 = vmax.f32 %v774, %v775
      %v777 = vrot.slane %v776, 1
      %v778 = vmax.f32 %v776, %v777
      %vm779 = vcmp.gt.f32.partialorder %v778, -inf
      %v780 = vsel %vm779, %v778, 0.0
      %v781 = vsel %vm760, %v510, -inf
      %v782 = vsel %vm175, %v781, -inf
      %v783 = vrot.slane %v782, 4
      %v784 = vmax.f32 %v782, %v783
      %v785 = vrot.slane %v784, 2
      %v786 = vmax.f32 %v784, %v785
      %v787 = vrot.slane %v786, 1
      %v788 = vmax.f32 %v786, %v787
      %vm789 = vcmp.gt.f32.partialorder %v788, -inf
      %v790 = vsel %vm789, %v788, 0.0
      %v791 = vsel %vm760, %v528, -inf
      %v792 = vsel %vm175, %v791, -inf
      %v793 = vrot.slane %v792, 4
      %v794 = vmax.f32 %v792, %v793
      %v795 = vrot.slane %v794, 2
      %v796 = vmax.f32 %v794, %v795
      %v797 = vrot.slane %v796, 1
      %v798 = vmax.f32 %v796, %v797
      %vm799 = vcmp.gt.f32.partialorder %v798, -inf
      %v800 = vsel %vm799, %v798, 0.0
      %v801 = vsel %vm760, %v546, -inf
      %v802 = vsel %vm175, %v801, -inf
      %v803 = vrot.slane %v802, 4
      %v804 = vmax.f32 %v802, %v803
      %v805 = vrot.slane %v804, 2
      %v806 = vmax.f32 %v804, %v805
      %v807 = vrot.slane %v806, 1
      %v808 = vmax.f32 %v806, %v807
      %vm809 = vcmp.gt.f32.partialorder %v808, -inf
      %v810 = vsel %vm809, %v808, 0.0
      %v811 = vsel %vm760, %v564, -inf
      %v812 = vsel %vm175, %v811, -inf
      %v813 = vrot.slane %v812, 4
      %v814 = vmax.f32 %v812, %v813
      %v815 = vrot.slane %v814, 2
      %v816 = vmax.f32 %v814, %v815
      %v817 = vrot.slane %v816, 1
      %v818 = vmax.f32 %v816, %v817
      %vm819 = vcmp.gt.f32.partialorder %v818, -inf
      %v820 = vsel %vm819, %v818, 0.0
      %v821 = vsel %vm760, %v582, -inf
      %v822 = vsel %vm175, %v821, -inf
      %v823 = vrot.slane %v822, 4
      %v824 = vmax.f32 %v822, %v823
      %v825 = vrot.slane %v824, 2
      %v826 = vmax.f32 %v824, %v825
      %v827 = vrot.slane %v826, 1
      %v828 = vmax.f32 %v826, %v827
      %vm829 = vcmp.gt.f32.partialorder %v828, -inf
      %v830 = vsel %vm829, %v828, 0.0
      %s831 = sld [smem:[#allocation4 + %s330]]
      %v832 = vstv %s831
      %vm833 = vcmp.ge.s32.totalorder %v160, %v832
      %s834 = sld [smem:[#allocation5 + %s330]]
      %v835 = vstv %s834
      %vm836 = vcmp.lt.s32.totalorder %v160, %v835
      %vm837 = vmand %vm833, %vm836
      %v838 = vsel %vm837, 1, 0
      %vm839 = vcmp.eq.s32.totalorder %v838, 1
      %v840 = vsel %vm839, %v474, -inf
      %v841 = vsel %vm175, %v840, -inf
      %v842 = vrot.slane %v841, 4
      %v843 = vmax.f32 %v841, %v842
      %v844 = vrot.slane %v843, 2
      %v845 = vmax.f32 %v843, %v844
      %v846 = vrot.slane %v845, 1
      %v847 = vmax.f32 %v845, %v846
      %vm848 = vcmp.gt.f32.partialorder %v847, -inf
      %v849 = vsel %vm848, %v847, 0.0
      %v850 = vsel %vm839, %v492, -inf
      %v851 = vsel %vm175, %v850, -inf
      %v852 = vrot.slane %v851, 4
      %v853 = vmax.f32 %v851, %v852
      %v854 = vrot.slane %v853, 2
      %v855 = vmax.f32 %v853, %v854
      %v856 = vrot.slane %v855, 1
      %v857 = vmax.f32 %v855, %v856
      %vm858 = vcmp.gt.f32.partialorder %v857, -inf
      %v859 = vsel %vm858, %v857, 0.0
      %v860 = vsel %vm839, %v510, -inf
      %v861 = vsel %vm175, %v860, -inf
      %v862 = vrot.slane %v861, 4
      %v863 = vmax.f32 %v861, %v862
      %v864 = vrot.slane %v863, 2
      %v865 = vmax.f32 %v863, %v864
      %v866 = vrot.slane %v865, 1
      %v867 = vmax.f32 %v865, %v866
      %vm868 = vcmp.gt.f32.partialorder %v867, -inf
      %v869 = vsel %vm868, %v867, 0.0
      %v870 = vsel %vm839, %v528, -inf
      %v871 = vsel %vm175, %v870, -inf
      %v872 = vrot.slane %v871, 4
      %v873 = vmax.f32 %v871, %v872
      %v874 = vrot.slane %v873, 2
      %v875 = vmax.f32 %v873, %v874
      %v876 = vrot.slane %v875, 1
      %v877 = vmax.f32 %v875, %v876
      %vm878 = vcmp.gt.f32.partialorder %v877, -inf
      %v879 = vsel %vm878, %v877, 0.0
      %v880 = vsel %vm839, %v546, -inf
      %v881 = vsel %vm175, %v880, -inf
      %v882 = vrot.slane %v881, 4
      %v883 = vmax.f32 %v881, %v882
      %v884 = vrot.slane %v883, 2
      %v885 = vmax.f32 %v883, %v884
      %v886 = vrot.slane %v885, 1
      %v887 = vmax.f32 %v885, %v886
      %vm888 = vcmp.gt.f32.partialorder %v887, -inf
      %v889 = vsel %vm888, %v887, 0.0
      %v890 = vsel %vm839, %v564, -inf
      %v891 = vsel %vm175, %v890, -inf
      %v892 = vrot.slane %v891, 4
      %v893 = vmax.f32 %v891, %v892
      %v894 = vrot.slane %v893, 2
      %v895 = vmax.f32 %v893, %v894
      %v896 = vrot.slane %v895, 1
      %v897 = vmax.f32 %v895, %v896
      %vm898 = vcmp.gt.f32.partialorder %v897, -inf
      %v899 = vsel %vm898, %v897, 0.0
      %v900 = vsel %vm839, %v582, -inf
      %v901 = vsel %vm175, %v900, -inf
      %v902 = vrot.slane %v901, 4
      %v903 = vmax.f32 %v901, %v902
      %v904 = vrot.slane %v903, 2
      %v905 = vmax.f32 %v903, %v904
      %v906 = vrot.slane %v905, 1
      %v907 = vmax.f32 %v905, %v906
      %vm908 = vcmp.gt.f32.partialorder %v907, -inf
      %v909 = vsel %vm908, %v907, 0.0
      %s910 = sld [smem:[#allocation4 + %s372]]
      %v911 = vstv %s910
      %vm912 = vcmp.ge.s32.totalorder %v160, %v911
      %s913 = sld [smem:[#allocation5 + %s372]]
      %v914 = vstv %s913
      %vm915 = vcmp.lt.s32.totalorder %v160, %v914
      %vm916 = vmand %vm912, %vm915
      %v917 = vsel %vm916, 1, 0
      %vm918 = vcmp.eq.s32.totalorder %v917, 1
      %v919 = vsel %vm918, %v474, -inf
      %v920 = vsel %vm175, %v919, -inf
      %v921 = vrot.slane %v920, 4
      %v922 = vmax.f32 %v920, %v921
      %v923 = vrot.slane %v922, 2
      %v924 = vmax.f32 %v922, %v923
      %v925 = vrot.slane %v924, 1
      %v926 = vmax.f32 %v924, %v925
      %vm927 = vcmp.gt.f32.partialorder %v926, -inf
      %v928 = vsel %vm927, %v926, 0.0
      %v929 = vsel %vm918, %v492, -inf
      %v930 = vsel %vm175, %v929, -inf
      %v931 = vrot.slane %v930, 4
      %v932 = vmax.f32 %v930, %v931
      %v933 = vrot.slane %v932, 2
      %v934 = vmax.f32 %v932, %v933
      %v935 = vrot.slane %v934, 1
      %v936 = vmax.f32 %v934, %v935
      %vm937 = vcmp.gt.f32.partialorder %v936, -inf
      %v938 = vsel %vm937, %v936, 0.0
      %v939 = vsel %vm918, %v510, -inf
      %v940 = vsel %vm175, %v939, -inf
      %v941 = vrot.slane %v940, 4
      %v942 = vmax.f32 %v940, %v941
      %v943 = vrot.slane %v942, 2
      %v944 = vmax.f32 %v942, %v943
      %v945 = vrot.slane %v944, 1
      %v946 = vmax.f32 %v944, %v945
      %vm947 = vcmp.gt.f32.partialorder %v946, -inf
      %v948 = vsel %vm947, %v946, 0.0
      %v949 = vsel %vm918, %v528, -inf
      %v950 = vsel %vm175, %v949, -inf
      %v951 = vrot.slane %v950, 4
      %v952 = vmax.f32 %v950, %v951
      %v953 = vrot.slane %v952, 2
      %v954 = vmax.f32 %v952, %v953
      %v955 = vrot.slane %v954, 1
      %v956 = vmax.f32 %v954, %v955
      %vm957 = vcmp.gt.f32.partialorder %v956, -inf
      %v958 = vsel %vm957, %v956, 0.0
      %v959 = vsel %vm918, %v546, -inf
      %v960 = vsel %vm175, %v959, -inf
      %v961 = vrot.slane %v960, 4
      %v962 = vmax.f32 %v960, %v961
      %v963 = vrot.slane %v962, 2
      %v964 = vmax.f32 %v962, %v963
      %v965 = vrot.slane %v964, 1
      %v966 = vmax.f32 %v964, %v965
      %vm967 = vcmp.gt.f32.partialorder %v966, -inf
      %v968 = vsel %vm967, %v966, 0.0
      %v969 = vsel %vm918, %v564, -inf
      %v970 = vsel %vm175, %v969, -inf
      %v971 = vrot.slane %v970, 4
      %v972 = vmax.f32 %v970, %v971
      %v973 = vrot.slane %v972, 2
      %v974 = vmax.f32 %v972, %v973
      %v975 = vrot.slane %v974, 1
      %v976 = vmax.f32 %v974, %v975
      %vm977 = vcmp.gt.f32.partialorder %v976, -inf
      %v978 = vsel %vm977, %v976, 0.0
      %v979 = vsel %vm918, %v582, -inf
      %v980 = vsel %vm175, %v979, -inf
      %v981 = vrot.slane %v980, 4
      %v982 = vmax.f32 %v980, %v981
      %v983 = vrot.slane %v982, 2
      %v984 = vmax.f32 %v982, %v983
      %v985 = vrot.slane %v984, 1
      %v986 = vmax.f32 %v984, %v985
      %vm987 = vcmp.gt.f32.partialorder %v986, -inf
      %v988 = vsel %vm987, %v986, 0.0
      %s989 = sld [smem:[#allocation4 + %s414]]
      %v990 = vstv %s989
      %vm991 = vcmp.ge.s32.totalorder %v160, %v990
      %s992 = sld [smem:[#allocation5 + %s414]]
      %v993 = vstv %s992
      %vm994 = vcmp.lt.s32.totalorder %v160, %v993
      %vm995 = vmand %vm991, %vm994
      %v996 = vsel %vm995, 1, 0
      %vm997 = vcmp.eq.s32.totalorder %v996, 1
      %v998 = vsel %vm997, %v474, -inf
      %v999 = vsel %vm175, %v998, -inf
      %v1000 = vrot.slane %v999, 4
      %v1001 = vmax.f32 %v999, %v1000
      %v1002 = vrot.slane %v1001, 2
      %v1003 = vmax.f32 %v1001, %v1002
      %v1004 = vrot.slane %v1003, 1
      %v1005 = vmax.f32 %v1003, %v1004
      %vm1006 = vcmp.gt.f32.partialorder %v1005, -inf
      %v1007 = vsel %vm1006, %v1005, 0.0
      %v1008 = vsel %vm997, %v492, -inf
      %v1009 = vsel %vm175, %v1008, -inf
      %v1010 = vrot.slane %v1009, 4
      %v1011 = vmax.f32 %v1009, %v1010
      %v1012 = vrot.slane %v1011, 2
      %v1013 = vmax.f32 %v1011, %v1012
      %v1014 = vrot.slane %v1013, 1
      %v1015 = vmax.f32 %v1013, %v1014
      %vm1016 = vcmp.gt.f32.partialorder %v1015, -inf
      %v1017 = vsel %vm1016, %v1015, 0.0
      %v1018 = vsel %vm997, %v510, -inf
      %v1019 = vsel %vm175, %v1018, -inf
      %v1020 = vrot.slane %v1019, 4
      %v1021 = vmax.f32 %v1019, %v1020
      %v1022 = vrot.slane %v1021, 2
      %v1023 = vmax.f32 %v1021, %v1022
      %v1024 = vrot.slane %v1023, 1
      %v1025 = vmax.f32 %v1023, %v1024
      %vm1026 = vcmp.gt.f32.partialorder %v1025, -inf
      %v1027 = vsel %vm1026, %v1025, 0.0
      %v1028 = vsel %vm997, %v528, -inf
      %v1029 = vsel %vm175, %v1028, -inf
      %v1030 = vrot.slane %v1029, 4
      %v1031 = vmax.f32 %v1029, %v1030
      %v1032 = vrot.slane %v1031, 2
      %v1033 = vmax.f32 %v1031, %v1032
      %v1034 = vrot.slane %v1033, 1
      %v1035 = vmax.f32 %v1033, %v1034
      %vm1036 = vcmp.gt.f32.partialorder %v1035, -inf
      %v1037 = vsel %vm1036, %v1035, 0.0
      %v1038 = vsel %vm997, %v546, -inf
      %v1039 = vsel %vm175, %v1038, -inf
      %v1040 = vrot.slane %v1039, 4
      %v1041 = vmax.f32 %v1039, %v1040
      %v1042 = vrot.slane %v1041, 2
      %v1043 = vmax.f32 %v1041, %v1042
      %v1044 = vrot.slane %v1043, 1
      %v1045 = vmax.f32 %v1043, %v1044
      %vm1046 = vcmp.gt.f32.partialorder %v1045, -inf
      %v1047 = vsel %vm1046, %v1045, 0.0
      %v1048 = vsel %vm997, %v564, -inf
      %v1049 = vsel %vm175, %v1048, -inf
      %v1050 = vrot.slane %v1049, 4
      %v1051 = vmax.f32 %v1049, %v1050
      %v1052 = vrot.slane %v1051, 2
      %v1053 = vmax.f32 %v1051, %v1052
      %v1054 = vrot.slane %v1053, 1
      %v1055 = vmax.f32 %v1053, %v1054
      %vm1056 = vcmp.gt.f32.partialorder %v1055, -inf
      %v1057 = vsel %vm1056, %v1055, 0.0
      %v1058 = vsel %vm997, %v582, -inf
      %v1059 = vsel %vm175, %v1058, -inf
      %v1060 = vrot.slane %v1059, 4
      %v1061 = vmax.f32 %v1059, %v1060
      %v1062 = vrot.slane %v1061, 2
      %v1063 = vmax.f32 %v1061, %v1062
      %v1064 = vrot.slane %v1063, 1
      %v1065 = vmax.f32 %v1063, %v1064
      %vm1066 = vcmp.gt.f32.partialorder %v1065, -inf
      %v1067 = vsel %vm1066, %v1065, 0.0
      %vm1068 = vcmask 1040384
      %v1069 = vsel %vm1068, %v485, %v503
      %vm1070 = vcmask 1041408
      %v1071 = vsel %vm1070, %v1069, %v521
      %vm1072 = vcmask 1042432
      %v1073 = vsel %vm1072, %v1071, %v539
      %v1074 = vsel %vm175, %v1073, %v557
      %vm1075 = vcmask 1044480
      %v1076 = vsel %vm1075, %v1074, %v575
      %vm1077 = vcmask 1045504
      %v1078 = vsel %vm1077, %v1076, %v593
      %vm1079 = vcmask 1046528
      %v1080 = vsel %vm1079, %v1078, %v612
      %v1081 = vsel %vm1068, %v622, %v632
      %v1082 = vsel %vm1070, %v1081, %v642
      %v1083 = vsel %vm1072, %v1082, %v652
      %v1084 = vsel %vm175, %v1083, %v662
      %v1085 = vsel %vm1075, %v1084, %v672
      %v1086 = vsel %vm1077, %v1085, %v691
      %v1087 = vsel %vm1079, %v1086, %v701
      %v1088 = vsel %vm1068, %v711, %v721
      %v1089 = vsel %vm1070, %v1088, %v731
      %v1090 = vsel %vm1072, %v1089, %v741
      %v1091 = vsel %vm175, %v1090, %v751
      %v1092 = vsel %vm1075, %v1091, %v770
      %v1093 = vsel %vm1077, %v1092, %v780
      %v1094 = vsel %vm1079, %v1093, %v790
      %v1095 = vsel %vm1068, %v800, %v810
      %v1096 = vsel %vm1070, %v1095, %v820
      %v1097 = vsel %vm1072, %v1096, %v830
      %v1098 = vsel %vm175, %v1097, %v849
      %v1099 = vsel %vm1075, %v1098, %v859
      %v1100 = vsel %vm1077, %v1099, %v869
      %v1101 = vsel %vm1079, %v1100, %v879
      %v1102 = vsel %vm1068, %v889, %v899
      %v1103 = vsel %vm1070, %v1102, %v909
      %v1104 = vsel %vm1072, %v1103, %v928
      %v1105 = vsel %vm175, %v1104, %v938
      %v1106 = vsel %vm1075, %v1105, %v948
      %v1107 = vsel %vm1077, %v1106, %v958
      %v1108 = vsel %vm1079, %v1107, %v968
      %v1109 = vsel %vm1068, %v978, %v988
      %v1110 = vsel %vm1070, %v1109, %v1007
      %v1111 = vsel %vm1072, %v1110, %v1017
      %v1112 = vsel %vm175, %v1111, %v1027
      %v1113 = vsel %vm1075, %v1112, %v1037
      %v1114 = vsel %vm1077, %v1113, %v1047
      %v1115 = vsel %vm1079, %v1114, %v1057
      %v1116 = vpack.c.bf16 %v1087, %v1080
      %v1117 = vpack.c.bf16 %v1101, %v1094
      %v1118 = vpack.c.bf16 %v1115, %v1108
      %v1119 = vpack.c.bf16 %v1067, %v1067
      %v1124 = vunpack.c.l.b16 %v1116
      %v1125 = vunpack.c.h.b16 %v1116
      %v1126 = vunpack.c.l.b16 %v1117
      %v1127 = vunpack.c.h.b16 %v1117
      %v1128 = vunpack.c.l.b16 %v1118
      %v1129 = vunpack.c.h.b16 %v1118
      %v1130 = vunpack.c.l.b16 %v1119
      %v1131 = vpack.c.b16 %v1124, %v1124
      %v1132 = vpack.c.b16 %v1125, %v1125
      %v1133 = vpack.c.b16 %v1126, %v1126
      %v1134 = vpack.c.b16 %v1127, %v1127
      %v1135 = vpack.c.b16 %v1128, %v1128
      %v1136 = vpack.c.b16 %v1129, %v1129
      %v1137 = vpack.c.b16 %v1130, %v1130
      %1145 = vst [vmem:[%s150] sm:$0xf] %v1131
      %1146 = vst [vmem:[%s150 + $0x4] sm:$0xf] %v1132
      %1147 = vst [vmem:[%s150 + $0x8] sm:$0xf] %v1133
      %1148 = vst [vmem:[%s150 + $0xc] sm:$0xf] %v1134
      %1149 = vst [vmem:[%s150 + $0x10] sm:$0xf] %v1135
      %1150 = vst [vmem:[%s150 + $0x14] sm:$0xf] %v1136
      %vm1151 = vcmask 1040384
      %vm1152 = vsmask.f32 256
      %vm1153 = vmand %vm1151, %vm1152
      %v1154 = vld [vmem:[%s150 + $0x18] sm:$0x1]
      %v1155 = vsel %vm1153, %v1137, %v1154
      %1156 = vst [vmem:[%s150 + $0x18] sm:$0x1] %v1155
      %p1157 = scmp.lt.s32.totalorder %s39, 31
      %s1158 = scalar_select %p1157, %s39, 31
      %s1159 = smul.addr %s1158, 7
      %s1160 = smul.addr %s1159, 4
      %s1161 = scalar_lea.vmem %s6, %s1160
      // Predicated region
      $region25: #{faster_rcnn_forward.7} parent=23 // pred_check
        %p1162 = pneg %p85
      $region26: #{faster_rcnn_forward.7} parent=23 // pred_check_branch
        %1164 = sbr.rel (%p1162) target = $region28
      $region27: #{faster_rcnn_forward.7} parent=23 // pred_region
        _
      $region28: #{faster_rcnn_forward.7} parent=23 // pred_fallthru
        _
    $region24: #{faster_rcnn_forward.7} parent=5 // pred_fallthru
      _
    %p1165 = scmp.le.s32.totalorder 2, %s34
    // Predicated region
    $region29: #{faster_rcnn_forward.7} parent=5 // pred_check
      %p1166 = pneg %p1165
    $region30: #{faster_rcnn_forward.7} parent=5 // pred_check_branch
      %1168 = sbr.rel (%p1166) target = $region32
    $region31: #{faster_rcnn_forward.7} parent=5 // pred_region
      %s1169 = ssub.s32 %s34, 2
      // Predicated region
      $region33: #{faster_rcnn_forward.7} parent=31 // pred_check
        %p1170 = pneg %p91
      $region34: #{faster_rcnn_forward.7} parent=31 // pred_check_branch
        %1172 = sbr.rel (%p1170) target = $region36
      $region35: #{faster_rcnn_forward.7} parent=31 // pred_region
        %p1173 = scmp.lt.s32.totalorder %s40, 31
        %s1174 = scalar_select %p1173, %s40, 31
        %s1175 = smul.addr %s1174, 7
        %s1176 = smul.addr %s1175, 4
        %s1177 = scalar_lea.vmem %s6, %s1176
      $region36: #{faster_rcnn_forward.7} parent=31 // pred_fallthru
        _
    $region32: #{faster_rcnn_forward.7} parent=5 // pred_fallthru
      _
  $region6: #{faster_rcnn_forward.7} parent=0 // loop_footer
    %s38 = sadd.s32 1, %s34
  $region7: #{faster_rcnn_forward.7} parent=0 // loop_footer_branch
    %33 = sbr.rel target = $region3
  $region8: #{faster_rcnn_forward.7} parent=0 // loop_exit
    _

// kernel: faster_rcnn_forward.8
$region0: #{faster_rcnn_forward.8}
  #allocation0 [shape = 'u32[]', space=smem, size = 0x4, offset = 0x4, fixed_abs, tag = 'smem constant byte address 0x4 - core index']
  #allocation1 [shape = 'u32[144,128]{1,0:T(1,128)}', space=vmem, size = 0x12000, scoped, tag = 'internal scratch']
  %s0 = inlined_call_operand.vmem [shape: bf16[32,6272], index: 0, kind: input, shape index: {}]
  %s1 = inlined_call_operand.vmem [shape: bf16[6272,128], index: 1, kind: input, shape index: {}]
  %s2 = inlined_call_operand.vmem [shape: f32[1,128], index: 2, kind: input, shape index: {}]
  %s3 = inlined_call_operand.vmem [shape: bf16[32,128], index: 3, kind: output, shape index: {}]
  %s4 = sld [smem:[#allocation0]]
  $region45: #{faster_rcnn_forward.8} parent=0
    _
  %s6 = ssub.s32 1, %s4
  %s7 = scalar_select 0, %s6, %s4
  loop: start=0, step=1, limit=4
  $region2: #{faster_rcnn_forward.8} parent=0 // loop_pre_header
    _
  $region3: #{faster_rcnn_forward.8} parent=0 // loop_header
    %s9 = sphi 0, %s13
    %p10 = scmp.ge.s32.totalorder %s9, 4
    %s16 = sphi 0, %s28
    %s17 = sphi 0, %s24
    %s18 = sphi 0, %s16
    %s19 = sphi 0, %s17
    %s20 = sphi 0, %s18
    %s21 = sphi 0, %s19
    %s33 = sphi 0, %s35
    %s36 = sphi 0, %s33
    %s37 = sphi 0, %s36
    %s53 = sphi 0, %s37
    %s59 = sphi 0, %s61
    %s62 = sphi 0, %s59
    %s63 = sphi 0, %s62
    %s79 = sphi 0, %s63
    %s83 = sphi 0, %s83
    %s85 = sphi 0, %s83
    %s86 = sphi 0, %s85
    %s100 = sphi 0, %s86
    %s106 = sphi 0, %s108
    %s109 = sphi 0, %s106
    %s110 = sphi 0, %s109
    %s126 = sphi 0, %s110
  $region4: #{faster_rcnn_forward.8} parent=0 // loop_header_branch
    %12 = sbr.rel (%p10) target = $region8
  $region5: #{faster_rcnn_forward.8} parent=0 // loop_body
    %s14 = ssub.s32 %s9, 1
    %s15 = ssub.s32 %s9, 2
    %s22 = sadd.s32 1, %s17
    %p23 = scmp.ge.s32.totalorder %s22, 1
    %s24 = scalar_select %p23, 0, %s22
    %s25 = sadd.s32 1, %s16
    %s26 = scalar_select %p23, %s25, %s16
    %p27 = scmp.ge.s32.totalorder %s26, 2
    %s28 = scalar_select %p27, 0, %s26
    %s29 = ssub.s32 %s16, %s28
    %s30 = ssub.s32 %s17, %s24
    %s31 = sor.u32 %s29, %s30
    %p32 = scmp.eq.s32.totalorder %s31, 0
    %s34 = sadd.s32 %s33, 1
    %s35 = scalar_select %p32, %s33, %s34
    %p38 = pneg %p32
    %p39 = scmp.eq.s32.totalorder %s9, 1
    %p40 = por %p38, %p39
    %p41 = scmp.ne.s32.totalorder %s33, %s36
    %p42 = scmp.eq.s32.totalorder %s9, 0
    %p43 = por %p41, %p42
    %p44 = scmp.ne.s32.totalorder %s33, %s36
    %p45 = scmp.eq.s32.totalorder %s14, 1
    %p46 = por %p44, %p45
    %p47 = scmp.ne.s32.totalorder %s36, %s37
    %p48 = scmp.eq.s32.totalorder %s14, 0
    %p49 = por %p47, %p48
    %p50 = scmp.ne.s32.totalorder %s36, %s37
    %p51 = scmp.eq.s32.totalorder %s15, 1
    %p52 = por %p50, %p51
    %p54 = scmp.ne.s32.totalorder %s37, %s53
    %p55 = scmp.eq.s32.totalorder %s15, 0
    %p56 = por %p54, %p55
    %s57 = ssub.s32 %s17, %s24
    %p58 = scmp.eq.s32.totalorder %s57, 0
    %s60 = sadd.s32 %s59, 1
    %s61 = scalar_select %p58, %s59, %s60
    %p64 = pneg %p58
    %p65 = scmp.eq.s32.totalorder %s9, 1
    %p66 = por %p64, %p65
    %p67 = scmp.ne.s32.totalorder %s59, %s62
    %p68 = scmp.eq.s32.totalorder %s9, 0
    %p69 = por %p67, %p68
    %p70 = scmp.ne.s32.totalorder %s59, %s62
    %p71 = scmp.eq.s32.totalorder %s14, 1
    %p72 = por %p70, %p71
    %p73 = scmp.ne.s32.totalorder %s62, %s63
    %p74 = scmp.eq.s32.totalorder %s14, 0
    %p75 = por %p73, %p74
    %p76 = scmp.ne.s32.totalorder %s62, %s63
    %p77 = scmp.eq.s32.totalorder %s15, 1
    %p78 = por %p76, %p77
    %p80 = scmp.ne.s32.totalorder %s63, %s79
    %p81 = scmp.eq.s32.totalorder %s15, 0
    %p82 = por %p80, %p81
    %s84 = sadd.s32 %s83, 1
    %p87 = scmp.eq.s32.totalorder %s9, 1
    %p88 = scmp.ne.s32.totalorder %s83, %s85
    %p89 = scmp.eq.s32.totalorder %s9, 0
    %p90 = por %p88, %p89
    %p91 = scmp.ne.s32.totalorder %s83, %s85
    %p92 = scmp.eq.s32.totalorder %s14, 1
    %p93 = por %p91, %p92
    %p94 = scmp.ne.s32.totalorder %s85, %s86
    %p95 = scmp.eq.s32.totalorder %s14, 0
    %p96 = por %p94, %p95
    %p97 = scmp.ne.s32.totalorder %s85, %s86
    %p98 = scmp.eq.s32.totalorder %s15, 1
    %p99 = por %p97, %p98
    %p101 = scmp.ne.s32.totalorder %s86, %s100
    %p102 = scmp.eq.s32.totalorder %s15, 0
    %p103 = por %p101, %p102
    %s104 = ssub.s32 %s16, %s28
    %p105 = scmp.eq.s32.totalorder %s104, 0
    %s107 = sadd.s32 %s106, 1
    %s108 = scalar_select %p105, %s106, %s107
    %p111 = pneg %p105
    %p112 = scmp.eq.s32.totalorder %s9, 1
    %p113 = por %p111, %p112
    %p114 = scmp.ne.s32.totalorder %s106, %s109
    %p115 = scmp.eq.s32.totalorder %s9, 0
    %p116 = por %p114, %p115
    %p117 = scmp.ne.s32.totalorder %s106, %s109
    %p118 = scmp.eq.s32.totalorder %s14, 1
    %p119 = por %p117, %p118
    %p120 = scmp.ne.s32.totalorder %s109, %s110
    %p121 = scmp.eq.s32.totalorder %s14, 0
    %p122 = por %p120, %p121
    %p123 = scmp.ne.s32.totalorder %s109, %s110
    %p124 = scmp.eq.s32.totalorder %s15, 1
    %p125 = por %p123, %p124
    %p127 = scmp.ne.s32.totalorder %s110, %s126
    %p128 = scmp.eq.s32.totalorder %s15, 0
    %p129 = por %p127, %p128
    %p130 = scmp.le.s32.totalorder 1, %s9
    %p131 = scmp.lt.s32.totalorder %s9, 3
    %p132 = pnand %p130, %p131
    %p133 = pneg %p132
    // Predicated region
    $region9: #{faster_rcnn_forward.8} parent=5 // pred_check
      _
    $region10: #{faster_rcnn_forward.8} parent=5 // pred_check_branch
      %135 = sbr.rel (%p132) target = $region12
    $region11: #{faster_rcnn_forward.8} parent=5 // pred_region
      %s136 = ssub.s32 %s9, 1
      // Predicated region
      $region13: #{faster_rcnn_forward.8} parent=11 // pred_check
        %p137 = pneg %p75
      $region14: #{faster_rcnn_forward.8} parent=11 // pred_check_branch
        %139 = sbr.rel (%p137) target = $region16
      $region15: #{faster_rcnn_forward.8} parent=11 // pred_region
        %s140 = smul.u32 784, %s19
        %p141 = scmp.lt.s32.totalorder %s140, 783
        %s142 = scalar_select %p141, %s140, 783
        %s143 = smul.addr %s142, 4
        %s144 = scalar_lea.vmem %s1, %s143
        %s145 = smul.u32 784, %s19
      $region16: #{faster_rcnn_forward.8} parent=11 // pred_fallthru
        _
      // Predicated region
      $region17: #{faster_rcnn_forward.8} parent=11 // pred_check
        %p146 = pneg %p96
      $region18: #{faster_rcnn_forward.8} parent=11 // pred_check_branch
        %148 = sbr.rel (%p146) target = $region20
      $region19: #{faster_rcnn_forward.8} parent=11 // pred_region
        _
      $region20: #{faster_rcnn_forward.8} parent=11 // pred_fallthru
        _
    $region12: #{faster_rcnn_forward.8} parent=5 // pred_fallthru
      _
    %p149 = scmp.lt.s32.totalorder %s9, 2
    // Predicated region
    $region21: #{faster_rcnn_forward.8} parent=5 // pred_check
      %p150 = pneg %p149
    $region22: #{faster_rcnn_forward.8} parent=5 // pred_check_branch
      %152 = sbr.rel (%p150) target = $region24
    $region23: #{faster_rcnn_forward.8} parent=5 // pred_region
      // Predicated region
      $region25: #{faster_rcnn_forward.8} parent=23 // pred_check
        %p153 = pneg %p43
      $region26: #{faster_rcnn_forward.8} parent=23 // pred_check_branch
        %155 = sbr.rel (%p153) target = $region28
      $region27: #{faster_rcnn_forward.8} parent=23 // pred_region
        %s156 = smul.u32 2, %s16
        %s157 = smul.u32 49, %s17
        %p158 = scmp.lt.s32.totalorder %s156, 3
        %s159 = scalar_select %p158, %s156, 3
        %p160 = scmp.lt.s32.totalorder %s157, 48
        %s161 = scalar_select %p160, %s157, 48
        %s162 = smul.addr %s159, 49
        %s163 = sadd.s32 %s161, %s162
        %s164 = smul.addr %s163, 4
        %s165 = scalar_lea.vmem %s0, %s164
        %s166 = smul.u32 2, %s16
        %s167 = smul.u32 49, %s17
      $region28: #{faster_rcnn_forward.8} parent=23 // pred_fallthru
        _
    $region24: #{faster_rcnn_forward.8} parent=5 // pred_fallthru
      _
    %p168 = scmp.le.s32.totalorder 1, %s9
    %p169 = scmp.lt.s32.totalorder %s9, 3
    %p170 = pnand %p168, %p169
    %p171 = pneg %p170
    // Predicated region
    $region29: #{faster_rcnn_forward.8} parent=5 // pred_check
      _
    $region30: #{faster_rcnn_forward.8} parent=5 // pred_check_branch
      %173 = sbr.rel (%p170) target = $region32
    $region31: #{faster_rcnn_forward.8} parent=5 // pred_region
      %s174 = ssub.s32 %s9, 1
      %s175 = smul.u32 2, %s18
      %s176 = smul.u32 49, %s19
      %p177 = scmp.lt.s32.totalorder %s175, 3
      %s178 = scalar_select %p177, %s175, 3
      %p179 = scmp.lt.s32.totalorder %s176, 48
      %s180 = scalar_select %p179, %s176, 48
      %s181 = smul.addr %s178, 49
      %s182 = sadd.s32 %s180, %s181
      %s183 = smul.addr %s182, 4
      %s184 = scalar_lea.vmem %s0, %s183
      %p185 = pneg %p49
      %p186 = pneg %p46
      %s187 = smul.u32 784, %s19
      %p188 = scmp.lt.s32.totalorder %s187, 783
      %s189 = scalar_select %p188, %s187, 783
      %s190 = smul.addr %s189, 4
      %s191 = scalar_lea.vmem %s1, %s190
      %p192 = pneg %p75
      %p193 = pneg %p72
      %p194 = pneg %p96
      %p195 = pneg %p93
      %p196 = pneg %p122
      %p197 = pneg %p119
      %s198 = smul.u32 2, %s18
      %p199 = scmp.lt.s32.totalorder %s198, 3
      %s200 = scalar_select %p199, %s198, 3
      %s201 = smul.addr %s200, 4
      %s202 = scalar_lea.vmem %s3, %s201
      %s203 = smul.u32 2, %s18
      %s204 = smul.u32 49, %s19
      %p205 = scmp.lt.s32.totalorder %s203, 3
      %s206 = scalar_select %p205, %s203, 3
      %p207 = scmp.lt.s32.totalorder %s204, 48
      %s208 = scalar_select %p207, %s204, 48
      %s209 = smul.addr %s206, 49
      %s210 = sadd.s32 %s208, %s209
      %s211 = smul.addr %s210, 4
      %s212 = scalar_lea.vmem %s0, %s211
      %s213 = smul.u32 2, %s18
      %s214 = smul.u32 49, %s19
      %s215 = smul.u32 784, %s19
      %p216 = scmp.lt.s32.totalorder %s215, 783
      %s217 = scalar_select %p216, %s215, 783
      %s218 = smul.addr %s217, 4
      %s219 = scalar_lea.vmem %s1, %s218
      %s220 = smul.u32 784, %s19
      %s221 = smul.u32 2, %s18
      %p222 = scmp.lt.s32.totalorder %s221, 3
      %s223 = scalar_select %p222, %s221, 3
      %s224 = smul.addr %s223, 4
      %s225 = scalar_lea.vmem %s3, %s224
      %s226 = smul.u32 2, %s18
      %v228 = vld [vmem:[%s212] sm:$0xff]
      %v229 = vld [vmem:[%s212 + $0x8] sm:$0xff]
      %v230 = vld [vmem:[%s212 + $0x10] sm:$0xff]
      %v231 = vld [vmem:[%s212 + $0x18] sm:$0xff]
      %v232 = vld [vmem:[%s212 + $0x20] sm:$0xff]
      %v233 = vld [vmem:[%s212 + $0x28] sm:$0xff]
      %v234 = vld [vmem:[%s212 + $0x30] sm:$0xff]
      %v235 = vld [vmem:[%s212 + $0x38] sm:$0xff]
      %v236 = vld [vmem:[%s212 + $0x40] sm:$0xff]
      %v237 = vld [vmem:[%s212 + $0x48] sm:$0xff]
      %v238 = vld [vmem:[%s212 + $0x50] sm:$0xff]
      %v239 = vld [vmem:[%s212 + $0x58] sm:$0xff]
      %v240 = vld [vmem:[%s212 + $0x60] sm:$0xff]
      %v241 = vld [vmem:[%s212 + $0x68] sm:$0xff]
      %v242 = vld [vmem:[%s212 + $0x70] sm:$0xff]
      %v243 = vld [vmem:[%s212 + $0x78] sm:$0xff]
      %v244 = vld [vmem:[%s212 + $0x80] sm:$0xff]
      %v245 = vld [vmem:[%s212 + $0x88] sm:$0xff]
      %v246 = vld [vmem:[%s212 + $0x90] sm:$0xff]
      %v247 = vld [vmem:[%s212 + $0x98] sm:$0xff]
      %v248 = vld [vmem:[%s212 + $0xa0] sm:$0xff]
      %v249 = vld [vmem:[%s212 + $0xa8] sm:$0xff]
      %v250 = vld [vmem:[%s212 + $0xb0] sm:$0xff]
      %v251 = vld [vmem:[%s212 + $0xb8] sm:$0xff]
      %v252 = vld [vmem:[%s212 + $0xc0] sm:$0xf]
      %v253 = vld [vmem:[%s212 + $0xc4] sm:$0xff]
      %v254 = vld [vmem:[%s212 + $0xcc] sm:$0xff]
      %v255 = vld [vmem:[%s212 + $0xd4] sm:$0xff]
      %v256 = vld [vmem:[%s212 + $0xdc] sm:$0xff]
      %v257 = vld [vmem:[%s212 + $0xe4] sm:$0xff]
      %v258 = vld [vmem:[%s212 + $0xec] sm:$0xff]
      %v259 = vld [vmem:[%s212 + $0xf4] sm:$0xff]
      %v260 = vld [vmem:[%s212 + $0xfc] sm:$0xff]
      %v261 = vld [vmem:[%s212 + $0x104] sm:$0xff]
      %v262 = vld [vmem:[%s212 + $0x10c] sm:$0xff]
      %v263 = vld [vmem:[%s212 + $0x114] sm:$0xff]
      %v264 = vld [vmem:[%s212 + $0x11c] sm:$0xff]
      %v265 = vld [vmem:[%s212 + $0x124] sm:$0xff]
      %v266 = vld [vmem:[%s212 + $0x12c] sm:$0xff]
      %v267 = vld [vmem:[%s212 + $0x134] sm:$0xff]
      %v268 = vld [vmem:[%s212 + $0x13c] sm:$0xff]
      %v269 = vld [vmem:[%s212 + $0x144] sm:$0xff]
      %v270 = vld [vmem:[%s212 + $0x14c] sm:$0xff]
      %v271 = vld [vmem:[%s212 + $0x154] sm:$0xff]
      %v272 = vld [vmem:[%s212 + $0x15c] sm:$0xff]
      %v273 = vld [vmem:[%s212 + $0x164] sm:$0xff]
      %v274 = vld [vmem:[%s212 + $0x16c] sm:$0xff]
      %v275 = vld [vmem:[%s212 + $0x174] sm:$0xff]
      %v276 = vld [vmem:[%s212 + $0x17c] sm:$0xff]
      %v277 = vld [vmem:[%s212 + $0x184] sm:$0xf]
      %v278 = vld [vmem:[%s219] sm:$0xf]
      %v279 = vld [vmem:[%s219 + $0x4] sm:$0xf]
      %v280 = vld [vmem:[%s219 + $0x8] sm:$0xf]
      %v281 = vld [vmem:[%s219 + $0xc] sm:$0xf]
      %v282 = vld [vmem:[%s219 + $0x10] sm:$0xf]
      %v283 = vld [vmem:[%s219 + $0x14] sm:$0xf]
      %v284 = vld [vmem:[%s219 + $0x18] sm:$0xf]
      %v285 = vld [vmem:[%s219 + $0x1c] sm:$0xf]
      %v286 = vld [vmem:[%s219 + $0x20] sm:$0xf]
      %v287 = vld [vmem:[%s219 + $0x24] sm:$0xf]
      %v288 = vld [vmem:[%s219 + $0x28] sm:$0xf]
      %v289 = vld [vmem:[%s219 + $0x2c] sm:$0xf]
      %v290 = vld [vmem:[%s219 + $0x30] sm:$0xf]
      %v291 = vld [vmem:[%s219 + $0x34] sm:$0xf]
      %v292 = vld [vmem:[%s219 + $0x38] sm:$0xf]
      %v293 = vld [vmem:[%s219 + $0x3c] sm:$0xf]
      %v294 = vld [vmem:[%s219 + $0x40] sm:$0xf]
      %v295 = vld [vmem:[%s219 + $0x44] sm:$0xf]
      %v296 = vld [vmem:[%s219 + $0x48] sm:$0xf]
      %v297 = vld [vmem:[%s219 + $0x4c] sm:$0xf]
      %v298 = vld [vmem:[%s219 + $0x50] sm:$0xf]
      %v299 = vld [vmem:[%s219 + $0x54] sm:$0xf]
      %v300 = vld [vmem:[%s219 + $0x58] sm:$0xf]
      %v301 = vld [vmem:[%s219 + $0x5c] sm:$0xf]
      %v302 = vld [vmem:[%s219 + $0x60] sm:$0xf]
      %v303 = vld [vmem:[%s219 + $0x64] sm:$0xf]
      %v304 = vld [vmem:[%s219 + $0x68] sm:$0xf]
      %v305 = vld [vmem:[%s219 + $0x6c] sm:$0xf]
      %v306 = vld [vmem:[%s219 + $0x70] sm:$0xf]
      %v307 = vld [vmem:[%s219 + $0x74] sm:$0xf]
      %v308 = vld [vmem:[%s219 + $0x78] sm:$0xf]
      %v309 = vld [vmem:[%s219 + $0x7c] sm:$0xf]
      %v310 = vld [vmem:[%s219 + $0x80] sm:$0xf]
      %v311 = vld [vmem:[%s219 + $0x84] sm:$0xf]
      %v312 = vld [vmem:[%s219 + $0x88] sm:$0xf]
      %v313 = vld [vmem:[%s219 + $0x8c] sm:$0xf]
      %v314 = vld [vmem:[%s219 + $0x90] sm:$0xf]
      %v315 = vld [vmem:[%s219 + $0x94] sm:$0xf]
      %v316 = vld [vmem:[%s219 + $0x98] sm:$0xf]
      %v317 = vld [vmem:[%s219 + $0x9c] sm:$0xf]
      %v318 = vld [vmem:[%s219 + $0xa0] sm:$0xf]
      %v319 = vld [vmem:[%s219 + $0xa4] sm:$0xf]
      %v320 = vld [vmem:[%s219 + $0xa8] sm:$0xf]
      %v321 = vld [vmem:[%s219 + $0xac] sm:$0xf]
      %v322 = vld [vmem:[%s219 + $0xb0] sm:$0xf]
      %v323 = vld [vmem:[%s219 + $0xb4] sm:$0xf]
      %v324 = vld [vmem:[%s219 + $0xb8] sm:$0xf]
      %v325 = vld [vmem:[%s219 + $0xbc] sm:$0xf]
      %v326 = vld [vmem:[%s219 + $0xc0] sm:$0xf]
      %v327 = vld [vmem:[%s219 + $0xc4] sm:$0xf]
      %v328 = vld [vmem:[%s219 + $0xc8] sm:$0xf]
      %v329 = vld [vmem:[%s219 + $0xcc] sm:$0xf]
      %v330 = vld [vmem:[%s219 + $0xd0] sm:$0xf]
      %v331 = vld [vmem:[%s219 + $0xd4] sm:$0xf]
      %v332 = vld [vmem:[%s219 + $0xd8] sm:$0xf]
      %v333 = vld [vmem:[%s219 + $0xdc] sm:$0xf]
      %v334 = vld [vmem:[%s219 + $0xe0] sm:$0xf]
      %v335 = vld [vmem:[%s219 + $0xe4] sm:$0xf]
      %v336 = vld [vmem:[%s219 + $0xe8] sm:$0xf]
      %v337 = vld [vmem:[%s219 + $0xec] sm:$0xf]
      %v338 = vld [vmem:[%s219 + $0xf0] sm:$0xf]
      %v339 = vld [vmem:[%s219 + $0xf4] sm:$0xf]
      %v340 = vld [vmem:[%s219 + $0xf8] sm:$0xf]
      %v341 = vld [vmem:[%s219 + $0xfc] sm:$0xf]
      %v342 = vld [vmem:[%s219 + $0x100] sm:$0xf]
      %v343 = vld [vmem:[%s219 + $0x104] sm:$0xf]
      %v344 = vld [vmem:[%s219 + $0x108] sm:$0xf]
      %v345 = vld [vmem:[%s219 + $0x10c] sm:$0xf]
      %v346 = vld [vmem:[%s219 + $0x110] sm:$0xf]
      %v347 = vld [vmem:[%s219 + $0x114] sm:$0xf]
      %v348 = vld [vmem:[%s219 + $0x118] sm:$0xf]
      %v349 = vld [vmem:[%s219 + $0x11c] sm:$0xf]
      %v350 = vld [vmem:[%s219 + $0x120] sm:$0xf]
      %v351 = vld [vmem:[%s219 + $0x124] sm:$0xf]
      %v352 = vld [vmem:[%s219 + $0x128] sm:$0xf]
      %v353 = vld [vmem:[%s219 + $0x12c] sm:$0xf]
      %v354 = vld [vmem:[%s219 + $0x130] sm:$0xf]
      %v355 = vld [vmem:[%s219 + $0x134] sm:$0xf]
      %v356 = vld [vmem:[%s219 + $0x138] sm:$0xf]
      %v357 = vld [vmem:[%s219 + $0x13c] sm:$0xf]
      %v358 = vld [vmem:[%s219 + $0x140] sm:$0xf]
      %v359 = vld [vmem:[%s219 + $0x144] sm:$0xf]
      %v360 = vld [vmem:[%s219 + $0x148] sm:$0xf]
      %v361 = vld [vmem:[%s219 + $0x14c] sm:$0xf]
      %v362 = vld [vmem:[%s219 + $0x150] sm:$0xf]
      %v363 = vld [vmem:[%s219 + $0x154] sm:$0xf]
      %v364 = vld [vmem:[%s219 + $0x158] sm:$0xf]
      %v365 = vld [vmem:[%s219 + $0x15c] sm:$0xf]
      %v366 = vld [vmem:[%s219 + $0x160] sm:$0xf]
      %v367 = vld [vmem:[%s219 + $0x164] sm:$0xf]
      %v368 = vld [vmem:[%s219 + $0x168] sm:$0xf]
      %v369 = vld [vmem:[%s219 + $0x16c] sm:$0xf]
      %v370 = vld [vmem:[%s219 + $0x170] sm:$0xf]
      %v371 = vld [vmem:[%s219 + $0x174] sm:$0xf]
      %v372 = vld [vmem:[%s219 + $0x178] sm:$0xf]
      %v373 = vld [vmem:[%s219 + $0x17c] sm:$0xf]
      %v374 = vld [vmem:[%s219 + $0x180] sm:$0xf]
      %v375 = vld [vmem:[%s219 + $0x184] sm:$0xf]
      %v376 = vld [vmem:[%s219 + $0x188] sm:$0xf]
      %v377 = vld [vmem:[%s219 + $0x18c] sm:$0xf]
      %v378 = vld [vmem:[%s219 + $0x190] sm:$0xf]
      %v379 = vld [vmem:[%s219 + $0x194] sm:$0xf]
      %v380 = vld [vmem:[%s219 + $0x198] sm:$0xf]
      %v381 = vld [vmem:[%s219 + $0x19c] sm:$0xf]
      %v382 = vld [vmem:[%s219 + $0x1a0] sm:$0xf]
      %v383 = vld [vmem:[%s219 + $0x1a4] sm:$0xf]
      %v384 = vld [vmem:[%s219 + $0x1a8] sm:$0xf]
      %v385 = vld [vmem:[%s219 + $0x1ac] sm:$0xf]
      %v386 = vld [vmem:[%s219 + $0x1b0] sm:$0xf]
      %v387 = vld [vmem:[%s219 + $0x1b4] sm:$0xf]
      %v388 = vld [vmem:[%s219 + $0x1b8] sm:$0xf]
      %v389 = vld [vmem:[%s219 + $0x1bc] sm:$0xf]
      %v390 = vld [vmem:[%s219 + $0x1c0] sm:$0xf]
      %v391 = vld [vmem:[%s219 + $0x1c4] sm:$0xf]
      %v392 = vld [vmem:[%s219 + $0x1c8] sm:$0xf]
      %v393 = vld [vmem:[%s219 + $0x1cc] sm:$0xf]
      %v394 = vld [vmem:[%s219 + $0x1d0] sm:$0xf]
      %v395 = vld [vmem:[%s219 + $0x1d4] sm:$0xf]
      %v396 = vld [vmem:[%s219 + $0x1d8] sm:$0xf]
      %v397 = vld [vmem:[%s219 + $0x1dc] sm:$0xf]
      %v398 = vld [vmem:[%s219 + $0x1e0] sm:$0xf]
      %v399 = vld [vmem:[%s219 + $0x1e4] sm:$0xf]
      %v400 = vld [vmem:[%s219 + $0x1e8] sm:$0xf]
      %v401 = vld [vmem:[%s219 + $0x1ec] sm:$0xf]
      %v402 = vld [vmem:[%s219 + $0x1f0] sm:$0xf]
      %v403 = vld [vmem:[%s219 + $0x1f4] sm:$0xf]
      %v404 = vld [vmem:[%s219 + $0x1f8] sm:$0xf]
      %v405 = vld [vmem:[%s219 + $0x1fc] sm:$0xf]
      %v406 = vld [vmem:[%s219 + $0x200] sm:$0xf]
      %v407 = vld [vmem:[%s219 + $0x204] sm:$0xf]
      %v408 = vld [vmem:[%s219 + $0x208] sm:$0xf]
      %v409 = vld [vmem:[%s219 + $0x20c] sm:$0xf]
      %v410 = vld [vmem:[%s219 + $0x210] sm:$0xf]
      %v411 = vld [vmem:[%s219 + $0x214] sm:$0xf]
      %v412 = vld [vmem:[%s219 + $0x218] sm:$0xf]
      %v413 = vld [vmem:[%s219 + $0x21c] sm:$0xf]
      %v414 = vld [vmem:[%s219 + $0x220] sm:$0xf]
      %v415 = vld [vmem:[%s219 + $0x224] sm:$0xf]
      %v416 = vld [vmem:[%s219 + $0x228] sm:$0xf]
      %v417 = vld [vmem:[%s219 + $0x22c] sm:$0xf]
      %v418 = vld [vmem:[%s219 + $0x230] sm:$0xf]
      %v419 = vld [vmem:[%s219 + $0x234] sm:$0xf]
      %v420 = vld [vmem:[%s219 + $0x238] sm:$0xf]
      %v421 = vld [vmem:[%s219 + $0x23c] sm:$0xf]
      %v422 = vld [vmem:[%s219 + $0x240] sm:$0xf]
      %v423 = vld [vmem:[%s219 + $0x244] sm:$0xf]
      %v424 = vld [vmem:[%s219 + $0x248] sm:$0xf]
      %v425 = vld [vmem:[%s219 + $0x24c] sm:$0xf]
      %v426 = vld [vmem:[%s219 + $0x250] sm:$0xf]
      %v427 = vld [vmem:[%s219 + $0x254] sm:$0xf]
      %v428 = vld [vmem:[%s219 + $0x258] sm:$0xf]
      %v429 = vld [vmem:[%s219 + $0x25c] sm:$0xf]
      %v430 = vld [vmem:[%s219 + $0x260] sm:$0xf]
      %v431 = vld [vmem:[%s219 + $0x264] sm:$0xf]
      %v432 = vld [vmem:[%s219 + $0x268] sm:$0xf]
      %v433 = vld [vmem:[%s219 + $0x26c] sm:$0xf]
      %v434 = vld [vmem:[%s219 + $0x270] sm:$0xf]
      %v435 = vld [vmem:[%s219 + $0x274] sm:$0xf]
      %v436 = vld [vmem:[%s219 + $0x278] sm:$0xf]
      %v437 = vld [vmem:[%s219 + $0x27c] sm:$0xf]
      %v438 = vld [vmem:[%s219 + $0x280] sm:$0xf]
      %v439 = vld [vmem:[%s219 + $0x284] sm:$0xf]
      %v440 = vld [vmem:[%s219 + $0x288] sm:$0xf]
      %v441 = vld [vmem:[%s219 + $0x28c] sm:$0xf]
      %v442 = vld [vmem:[%s219 + $0x290] sm:$0xf]
      %v443 = vld [vmem:[%s219 + $0x294] sm:$0xf]
      %v444 = vld [vmem:[%s219 + $0x298] sm:$0xf]
      %v445 = vld [vmem:[%s219 + $0x29c] sm:$0xf]
      %v446 = vld [vmem:[%s219 + $0x2a0] sm:$0xf]
      %v447 = vld [vmem:[%s219 + $0x2a4] sm:$0xf]
      %v448 = vld [vmem:[%s219 + $0x2a8] sm:$0xf]
      %v449 = vld [vmem:[%s219 + $0x2ac] sm:$0xf]
      %v450 = vld [vmem:[%s219 + $0x2b0] sm:$0xf]
      %v451 = vld [vmem:[%s219 + $0x2b4] sm:$0xf]
      %v452 = vld [vmem:[%s219 + $0x2b8] sm:$0xf]
      %v453 = vld [vmem:[%s219 + $0x2bc] sm:$0xf]
      %v454 = vld [vmem:[%s219 + $0x2c0] sm:$0xf]
      %v455 = vld [vmem:[%s219 + $0x2c4] sm:$0xf]
      %v456 = vld [vmem:[%s219 + $0x2c8] sm:$0xf]
      %v457 = vld [vmem:[%s219 + $0x2cc] sm:$0xf]
      %v458 = vld [vmem:[%s219 + $0x2d0] sm:$0xf]
      %v459 = vld [vmem:[%s219 + $0x2d4] sm:$0xf]
      %v460 = vld [vmem:[%s219 + $0x2d8] sm:$0xf]
      %v461 = vld [vmem:[%s219 + $0x2dc] sm:$0xf]
      %v462 = vld [vmem:[%s219 + $0x2e0] sm:$0xf]
      %v463 = vld [vmem:[%s219 + $0x2e4] sm:$0xf]
      %v464 = vld [vmem:[%s219 + $0x2e8] sm:$0xf]
      %v465 = vld [vmem:[%s219 + $0x2ec] sm:$0xf]
      %v466 = vld [vmem:[%s219 + $0x2f0] sm:$0xf]
      %v467 = vld [vmem:[%s219 + $0x2f4] sm:$0xf]
      %v468 = vld [vmem:[%s219 + $0x2f8] sm:$0xf]
      %v469 = vld [vmem:[%s219 + $0x2fc] sm:$0xf]
      %v470 = vld [vmem:[%s219 + $0x300] sm:$0xf]
      %v471 = vld [vmem:[%s219 + $0x304] sm:$0xf]
      %v472 = vld [vmem:[%s219 + $0x308] sm:$0xf]
      %v473 = vld [vmem:[%s219 + $0x30c] sm:$0xf]
      %v474 = vld [vmem:[%s219 + $0x310] sm:$0xf]
      %v475 = vld [vmem:[%s219 + $0x314] sm:$0xf]
      %v476 = vld [vmem:[%s219 + $0x318] sm:$0xf]
      %v477 = vld [vmem:[%s219 + $0x31c] sm:$0xf]
      %v478 = vld [vmem:[%s219 + $0x320] sm:$0xf]
      %v479 = vld [vmem:[%s219 + $0x324] sm:$0xf]
      %v480 = vld [vmem:[%s219 + $0x328] sm:$0xf]
      %v481 = vld [vmem:[%s219 + $0x32c] sm:$0xf]
      %v482 = vld [vmem:[%s219 + $0x330] sm:$0xf]
      %v483 = vld [vmem:[%s219 + $0x334] sm:$0xf]
      %v484 = vld [vmem:[%s219 + $0x338] sm:$0xf]
      %v485 = vld [vmem:[%s219 + $0x33c] sm:$0xf]
      %v486 = vld [vmem:[%s219 + $0x340] sm:$0xf]
      %v487 = vld [vmem:[%s219 + $0x344] sm:$0xf]
      %v488 = vld [vmem:[%s219 + $0x348] sm:$0xf]
      %v489 = vld [vmem:[%s219 + $0x34c] sm:$0xf]
      %v490 = vld [vmem:[%s219 + $0x350] sm:$0xf]
      %v491 = vld [vmem:[%s219 + $0x354] sm:$0xf]
      %v492 = vld [vmem:[%s219 + $0x358] sm:$0xf]
      %v493 = vld [vmem:[%s219 + $0x35c] sm:$0xf]
      %v494 = vld [vmem:[%s219 + $0x360] sm:$0xf]
      %v495 = vld [vmem:[%s219 + $0x364] sm:$0xf]
      %v496 = vld [vmem:[%s219 + $0x368] sm:$0xf]
      %v497 = vld [vmem:[%s219 + $0x36c] sm:$0xf]
      %v498 = vld [vmem:[%s219 + $0x370] sm:$0xf]
      %v499 = vld [vmem:[%s219 + $0x374] sm:$0xf]
      %v500 = vld [vmem:[%s219 + $0x378] sm:$0xf]
      %v501 = vld [vmem:[%s219 + $0x37c] sm:$0xf]
      %v502 = vld [vmem:[%s219 + $0x380] sm:$0xf]
      %v503 = vld [vmem:[%s219 + $0x384] sm:$0xf]
      %v504 = vld [vmem:[%s219 + $0x388] sm:$0xf]
      %v505 = vld [vmem:[%s219 + $0x38c] sm:$0xf]
      %v506 = vld [vmem:[%s219 + $0x390] sm:$0xf]
      %v507 = vld [vmem:[%s219 + $0x394] sm:$0xf]
      %v508 = vld [vmem:[%s219 + $0x398] sm:$0xf]
      %v509 = vld [vmem:[%s219 + $0x39c] sm:$0xf]
      %v510 = vld [vmem:[%s219 + $0x3a0] sm:$0xf]
      %v511 = vld [vmem:[%s219 + $0x3a4] sm:$0xf]
      %v512 = vld [vmem:[%s219 + $0x3a8] sm:$0xf]
      %v513 = vld [vmem:[%s219 + $0x3ac] sm:$0xf]
      %v514 = vld [vmem:[%s219 + $0x3b0] sm:$0xf]
      %v515 = vld [vmem:[%s219 + $0x3b4] sm:$0xf]
      %v516 = vld [vmem:[%s219 + $0x3b8] sm:$0xf]
      %v517 = vld [vmem:[%s219 + $0x3bc] sm:$0xf]
      %v518 = vld [vmem:[%s219 + $0x3c0] sm:$0xf]
      %v519 = vld [vmem:[%s219 + $0x3c4] sm:$0xf]
      %v520 = vld [vmem:[%s219 + $0x3c8] sm:$0xf]
      %v521 = vld [vmem:[%s219 + $0x3cc] sm:$0xf]
      %v522 = vld [vmem:[%s219 + $0x3d0] sm:$0xf]
      %v523 = vld [vmem:[%s219 + $0x3d4] sm:$0xf]
      %v524 = vld [vmem:[%s219 + $0x3d8] sm:$0xf]
      %v525 = vld [vmem:[%s219 + $0x3dc] sm:$0xf]
      %v526 = vld [vmem:[%s219 + $0x3e0] sm:$0xf]
      %v527 = vld [vmem:[%s219 + $0x3e4] sm:$0xf]
      %v528 = vld [vmem:[%s219 + $0x3e8] sm:$0xf]
      %v529 = vld [vmem:[%s219 + $0x3ec] sm:$0xf]
      %v530 = vld [vmem:[%s219 + $0x3f0] sm:$0xf]
      %v531 = vld [vmem:[%s219 + $0x3f4] sm:$0xf]
      %v532 = vld [vmem:[%s219 + $0x3f8] sm:$0xf]
      %v533 = vld [vmem:[%s219 + $0x3fc] sm:$0xf]
      %v534 = vld [vmem:[%s219 + $0x400] sm:$0xf]
      %v535 = vld [vmem:[%s219 + $0x404] sm:$0xf]
      %v536 = vld [vmem:[%s219 + $0x408] sm:$0xf]
      %v537 = vld [vmem:[%s219 + $0x40c] sm:$0xf]
      %v538 = vld [vmem:[%s219 + $0x410] sm:$0xf]
      %v539 = vld [vmem:[%s219 + $0x414] sm:$0xf]
      %v540 = vld [vmem:[%s219 + $0x418] sm:$0xf]
      %v541 = vld [vmem:[%s219 + $0x41c] sm:$0xf]
      %v542 = vld [vmem:[%s219 + $0x420] sm:$0xf]
      %v543 = vld [vmem:[%s219 + $0x424] sm:$0xf]
      %v544 = vld [vmem:[%s219 + $0x428] sm:$0xf]
      %v545 = vld [vmem:[%s219 + $0x42c] sm:$0xf]
      %v546 = vld [vmem:[%s219 + $0x430] sm:$0xf]
      %v547 = vld [vmem:[%s219 + $0x434] sm:$0xf]
      %v548 = vld [vmem:[%s219 + $0x438] sm:$0xf]
      %v549 = vld [vmem:[%s219 + $0x43c] sm:$0xf]
      %v550 = vld [vmem:[%s219 + $0x440] sm:$0xf]
      %v551 = vld [vmem:[%s219 + $0x444] sm:$0xf]
      %v552 = vld [vmem:[%s219 + $0x448] sm:$0xf]
      %v553 = vld [vmem:[%s219 + $0x44c] sm:$0xf]
      %v554 = vld [vmem:[%s219 + $0x450] sm:$0xf]
      %v555 = vld [vmem:[%s219 + $0x454] sm:$0xf]
      %v556 = vld [vmem:[%s219 + $0x458] sm:$0xf]
      %v557 = vld [vmem:[%s219 + $0x45c] sm:$0xf]
      %v558 = vld [vmem:[%s219 + $0x460] sm:$0xf]
      %v559 = vld [vmem:[%s219 + $0x464] sm:$0xf]
      %v560 = vld [vmem:[%s219 + $0x468] sm:$0xf]
      %v561 = vld [vmem:[%s219 + $0x46c] sm:$0xf]
      %v562 = vld [vmem:[%s219 + $0x470] sm:$0xf]
      %v563 = vld [vmem:[%s219 + $0x474] sm:$0xf]
      %v564 = vld [vmem:[%s219 + $0x478] sm:$0xf]
      %v565 = vld [vmem:[%s219 + $0x47c] sm:$0xf]
      %v566 = vld [vmem:[%s219 + $0x480] sm:$0xf]
      %v567 = vld [vmem:[%s219 + $0x484] sm:$0xf]
      %v568 = vld [vmem:[%s219 + $0x488] sm:$0xf]
      %v569 = vld [vmem:[%s219 + $0x48c] sm:$0xf]
      %v570 = vld [vmem:[%s219 + $0x490] sm:$0xf]
      %v571 = vld [vmem:[%s219 + $0x494] sm:$0xf]
      %v572 = vld [vmem:[%s219 + $0x498] sm:$0xf]
      %v573 = vld [vmem:[%s219 + $0x49c] sm:$0xf]
      %v574 = vld [vmem:[%s219 + $0x4a0] sm:$0xf]
      %v575 = vld [vmem:[%s219 + $0x4a4] sm:$0xf]
      %v576 = vld [vmem:[%s219 + $0x4a8] sm:$0xf]
      %v577 = vld [vmem:[%s219 + $0x4ac] sm:$0xf]
      %v578 = vld [vmem:[%s219 + $0x4b0] sm:$0xf]
      %v579 = vld [vmem:[%s219 + $0x4b4] sm:$0xf]
      %v580 = vld [vmem:[%s219 + $0x4b8] sm:$0xf]
      %v581 = vld [vmem:[%s219 + $0x4bc] sm:$0xf]
      %v582 = vld [vmem:[%s219 + $0x4c0] sm:$0xf]
      %v583 = vld [vmem:[%s219 + $0x4c4] sm:$0xf]
      %v584 = vld [vmem:[%s219 + $0x4c8] sm:$0xf]
      %v585 = vld [vmem:[%s219 + $0x4cc] sm:$0xf]
      %v586 = vld [vmem:[%s219 + $0x4d0] sm:$0xf]
      %v587 = vld [vmem:[%s219 + $0x4d4] sm:$0xf]
      %v588 = vld [vmem:[%s219 + $0x4d8] sm:$0xf]
      %v589 = vld [vmem:[%s219 + $0x4dc] sm:$0xf]
      %v590 = vld [vmem:[%s219 + $0x4e0] sm:$0xf]
      %v591 = vld [vmem:[%s219 + $0x4e4] sm:$0xf]
      %v592 = vld [vmem:[%s219 + $0x4e8] sm:$0xf]
      %v593 = vld [vmem:[%s219 + $0x4ec] sm:$0xf]
      %v594 = vld [vmem:[%s219 + $0x4f0] sm:$0xf]
      %v595 = vld [vmem:[%s219 + $0x4f4] sm:$0xf]
      %v596 = vld [vmem:[%s219 + $0x4f8] sm:$0xf]
      %v597 = vld [vmem:[%s219 + $0x4fc] sm:$0xf]
      %v598 = vld [vmem:[%s219 + $0x500] sm:$0xf]
      %v599 = vld [vmem:[%s219 + $0x504] sm:$0xf]
      %v600 = vld [vmem:[%s219 + $0x508] sm:$0xf]
      %v601 = vld [vmem:[%s219 + $0x50c] sm:$0xf]
      %v602 = vld [vmem:[%s219 + $0x510] sm:$0xf]
      %v603 = vld [vmem:[%s219 + $0x514] sm:$0xf]
      %v604 = vld [vmem:[%s219 + $0x518] sm:$0xf]
      %v605 = vld [vmem:[%s219 + $0x51c] sm:$0xf]
      %v606 = vld [vmem:[%s219 + $0x520] sm:$0xf]
      %v607 = vld [vmem:[%s219 + $0x524] sm:$0xf]
      %v608 = vld [vmem:[%s219 + $0x528] sm:$0xf]
      %v609 = vld [vmem:[%s219 + $0x52c] sm:$0xf]
      %v610 = vld [vmem:[%s219 + $0x530] sm:$0xf]
      %v611 = vld [vmem:[%s219 + $0x534] sm:$0xf]
      %v612 = vld [vmem:[%s219 + $0x538] sm:$0xf]
      %v613 = vld [vmem:[%s219 + $0x53c] sm:$0xf]
      %v614 = vld [vmem:[%s219 + $0x540] sm:$0xf]
      %v615 = vld [vmem:[%s219 + $0x544] sm:$0xf]
      %v616 = vld [vmem:[%s219 + $0x548] sm:$0xf]
      %v617 = vld [vmem:[%s219 + $0x54c] sm:$0xf]
      %v618 = vld [vmem:[%s219 + $0x550] sm:$0xf]
      %v619 = vld [vmem:[%s219 + $0x554] sm:$0xf]
      %v620 = vld [vmem:[%s219 + $0x558] sm:$0xf]
      %v621 = vld [vmem:[%s219 + $0x55c] sm:$0xf]
      %v622 = vld [vmem:[%s219 + $0x560] sm:$0xf]
      %v623 = vld [vmem:[%s219 + $0x564] sm:$0xf]
      %v624 = vld [vmem:[%s219 + $0x568] sm:$0xf]
      %v625 = vld [vmem:[%s219 + $0x56c] sm:$0xf]
      %v626 = vld [vmem:[%s219 + $0x570] sm:$0xf]
      %v627 = vld [vmem:[%s219 + $0x574] sm:$0xf]
      %v628 = vld [vmem:[%s219 + $0x578] sm:$0xf]
      %v629 = vld [vmem:[%s219 + $0x57c] sm:$0xf]
      %v630 = vld [vmem:[%s219 + $0x580] sm:$0xf]
      %v631 = vld [vmem:[%s219 + $0x584] sm:$0xf]
      %v632 = vld [vmem:[%s219 + $0x588] sm:$0xf]
      %v633 = vld [vmem:[%s219 + $0x58c] sm:$0xf]
      %v634 = vld [vmem:[%s219 + $0x590] sm:$0xf]
      %v635 = vld [vmem:[%s219 + $0x594] sm:$0xf]
      %v636 = vld [vmem:[%s219 + $0x598] sm:$0xf]
      %v637 = vld [vmem:[%s219 + $0x59c] sm:$0xf]
      %v638 = vld [vmem:[%s219 + $0x5a0] sm:$0xf]
      %v639 = vld [vmem:[%s219 + $0x5a4] sm:$0xf]
      %v640 = vld [vmem:[%s219 + $0x5a8] sm:$0xf]
      %v641 = vld [vmem:[%s219 + $0x5ac] sm:$0xf]
      %v642 = vld [vmem:[%s219 + $0x5b0] sm:$0xf]
      %v643 = vld [vmem:[%s219 + $0x5b4] sm:$0xf]
      %v644 = vld [vmem:[%s219 + $0x5b8] sm:$0xf]
      %v645 = vld [vmem:[%s219 + $0x5bc] sm:$0xf]
      %v646 = vld [vmem:[%s219 + $0x5c0] sm:$0xf]
      %v647 = vld [vmem:[%s219 + $0x5c4] sm:$0xf]
      %v648 = vld [vmem:[%s219 + $0x5c8] sm:$0xf]
      %v649 = vld [vmem:[%s219 + $0x5cc] sm:$0xf]
      %v650 = vld [vmem:[%s219 + $0x5d0] sm:$0xf]
      %v651 = vld [vmem:[%s219 + $0x5d4] sm:$0xf]
      %v652 = vld [vmem:[%s219 + $0x5d8] sm:$0xf]
      %v653 = vld [vmem:[%s219 + $0x5dc] sm:$0xf]
      %v654 = vld [vmem:[%s219 + $0x5e0] sm:$0xf]
      %v655 = vld [vmem:[%s219 + $0x5e4] sm:$0xf]
      %v656 = vld [vmem:[%s219 + $0x5e8] sm:$0xf]
      %v657 = vld [vmem:[%s219 + $0x5ec] sm:$0xf]
      %v658 = vld [vmem:[%s219 + $0x5f0] sm:$0xf]
      %v659 = vld [vmem:[%s219 + $0x5f4] sm:$0xf]
      %v660 = vld [vmem:[%s219 + $0x5f8] sm:$0xf]
      %v661 = vld [vmem:[%s219 + $0x5fc] sm:$0xf]
      %v662 = vld [vmem:[%s219 + $0x600] sm:$0xf]
      %v663 = vld [vmem:[%s219 + $0x604] sm:$0xf]
      %v664 = vld [vmem:[%s219 + $0x608] sm:$0xf]
      %v665 = vld [vmem:[%s219 + $0x60c] sm:$0xf]
      %v666 = vld [vmem:[%s219 + $0x610] sm:$0xf]
      %v667 = vld [vmem:[%s219 + $0x614] sm:$0xf]
      %v668 = vld [vmem:[%s219 + $0x618] sm:$0xf]
      %v669 = vld [vmem:[%s219 + $0x61c] sm:$0xf]
      %v670 = vld [vmem:[%s219 + $0x620] sm:$0xf]
      %v671 = vld [vmem:[%s219 + $0x624] sm:$0xf]
      %v672 = vld [vmem:[%s219 + $0x628] sm:$0xf]
      %v673 = vld [vmem:[%s219 + $0x62c] sm:$0xf]
      %v674 = vld [vmem:[%s219 + $0x630] sm:$0xf]
      %v675 = vld [vmem:[%s219 + $0x634] sm:$0xf]
      %v676 = vld [vmem:[%s219 + $0x638] sm:$0xf]
      %v677 = vld [vmem:[%s219 + $0x63c] sm:$0xf]
      %v678 = vld [vmem:[%s219 + $0x640] sm:$0xf]
      %v679 = vld [vmem:[%s219 + $0x644] sm:$0xf]
      %v680 = vld [vmem:[%s219 + $0x648] sm:$0xf]
      %v681 = vld [vmem:[%s219 + $0x64c] sm:$0xf]
      %v682 = vld [vmem:[%s219 + $0x650] sm:$0xf]
      %v683 = vld [vmem:[%s219 + $0x654] sm:$0xf]
      %v684 = vld [vmem:[%s219 + $0x658] sm:$0xf]
      %v685 = vld [vmem:[%s219 + $0x65c] sm:$0xf]
      %v686 = vld [vmem:[%s219 + $0x660] sm:$0xf]
      %v687 = vld [vmem:[%s219 + $0x664] sm:$0xf]
      %v688 = vld [vmem:[%s219 + $0x668] sm:$0xf]
      %v689 = vld [vmem:[%s219 + $0x66c] sm:$0xf]
      %v690 = vld [vmem:[%s219 + $0x670] sm:$0xf]
      %v691 = vld [vmem:[%s219 + $0x674] sm:$0xf]
      %v692 = vld [vmem:[%s219 + $0x678] sm:$0xf]
      %v693 = vld [vmem:[%s219 + $0x67c] sm:$0xf]
      %v694 = vld [vmem:[%s219 + $0x680] sm:$0xf]
      %v695 = vld [vmem:[%s219 + $0x684] sm:$0xf]
      %v696 = vld [vmem:[%s219 + $0x688] sm:$0xf]
      %v697 = vld [vmem:[%s219 + $0x68c] sm:$0xf]
      %v698 = vld [vmem:[%s219 + $0x690] sm:$0xf]
      %v699 = vld [vmem:[%s219 + $0x694] sm:$0xf]
      %v700 = vld [vmem:[%s219 + $0x698] sm:$0xf]
      %v701 = vld [vmem:[%s219 + $0x69c] sm:$0xf]
      %v702 = vld [vmem:[%s219 + $0x6a0] sm:$0xf]
      %v703 = vld [vmem:[%s219 + $0x6a4] sm:$0xf]
      %v704 = vld [vmem:[%s219 + $0x6a8] sm:$0xf]
      %v705 = vld [vmem:[%s219 + $0x6ac] sm:$0xf]
      %v706 = vld [vmem:[%s219 + $0x6b0] sm:$0xf]
      %v707 = vld [vmem:[%s219 + $0x6b4] sm:$0xf]
      %v708 = vld [vmem:[%s219 + $0x6b8] sm:$0xf]
      %v709 = vld [vmem:[%s219 + $0x6bc] sm:$0xf]
      %v710 = vld [vmem:[%s219 + $0x6c0] sm:$0xf]
      %v711 = vld [vmem:[%s219 + $0x6c4] sm:$0xf]
      %v712 = vld [vmem:[%s219 + $0x6c8] sm:$0xf]
      %v713 = vld [vmem:[%s219 + $0x6cc] sm:$0xf]
      %v714 = vld [vmem:[%s219 + $0x6d0] sm:$0xf]
      %v715 = vld [vmem:[%s219 + $0x6d4] sm:$0xf]
      %v716 = vld [vmem:[%s219 + $0x6d8] sm:$0xf]
      %v717 = vld [vmem:[%s219 + $0x6dc] sm:$0xf]
      %v718 = vld [vmem:[%s219 + $0x6e0] sm:$0xf]
      %v719 = vld [vmem:[%s219 + $0x6e4] sm:$0xf]
      %v720 = vld [vmem:[%s219 + $0x6e8] sm:$0xf]
      %v721 = vld [vmem:[%s219 + $0x6ec] sm:$0xf]
      %v722 = vld [vmem:[%s219 + $0x6f0] sm:$0xf]
      %v723 = vld [vmem:[%s219 + $0x6f4] sm:$0xf]
      %v724 = vld [vmem:[%s219 + $0x6f8] sm:$0xf]
      %v725 = vld [vmem:[%s219 + $0x6fc] sm:$0xf]
      %v726 = vld [vmem:[%s219 + $0x700] sm:$0xf]
      %v727 = vld [vmem:[%s219 + $0x704] sm:$0xf]
      %v728 = vld [vmem:[%s219 + $0x708] sm:$0xf]
      %v729 = vld [vmem:[%s219 + $0x70c] sm:$0xf]
      %v730 = vld [vmem:[%s219 + $0x710] sm:$0xf]
      %v731 = vld [vmem:[%s219 + $0x714] sm:$0xf]
      %v732 = vld [vmem:[%s219 + $0x718] sm:$0xf]
      %v733 = vld [vmem:[%s219 + $0x71c] sm:$0xf]
      %v734 = vld [vmem:[%s219 + $0x720] sm:$0xf]
      %v735 = vld [vmem:[%s219 + $0x724] sm:$0xf]
      %v736 = vld [vmem:[%s219 + $0x728] sm:$0xf]
      %v737 = vld [vmem:[%s219 + $0x72c] sm:$0xf]
      %v738 = vld [vmem:[%s219 + $0x730] sm:$0xf]
      %v739 = vld [vmem:[%s219 + $0x734] sm:$0xf]
      %v740 = vld [vmem:[%s219 + $0x738] sm:$0xf]
      %v741 = vld [vmem:[%s219 + $0x73c] sm:$0xf]
      %v742 = vld [vmem:[%s219 + $0x740] sm:$0xf]
      %v743 = vld [vmem:[%s219 + $0x744] sm:$0xf]
      %v744 = vld [vmem:[%s219 + $0x748] sm:$0xf]
      %v745 = vld [vmem:[%s219 + $0x74c] sm:$0xf]
      %v746 = vld [vmem:[%s219 + $0x750] sm:$0xf]
      %v747 = vld [vmem:[%s219 + $0x754] sm:$0xf]
      %v748 = vld [vmem:[%s219 + $0x758] sm:$0xf]
      %v749 = vld [vmem:[%s219 + $0x75c] sm:$0xf]
      %v750 = vld [vmem:[%s219 + $0x760] sm:$0xf]
      %v751 = vld [vmem:[%s219 + $0x764] sm:$0xf]
      %v752 = vld [vmem:[%s219 + $0x768] sm:$0xf]
      %v753 = vld [vmem:[%s219 + $0x76c] sm:$0xf]
      %v754 = vld [vmem:[%s219 + $0x770] sm:$0xf]
      %v755 = vld [vmem:[%s219 + $0x774] sm:$0xf]
      %v756 = vld [vmem:[%s219 + $0x778] sm:$0xf]
      %v757 = vld [vmem:[%s219 + $0x77c] sm:$0xf]
      %v758 = vld [vmem:[%s219 + $0x780] sm:$0xf]
      %v759 = vld [vmem:[%s219 + $0x784] sm:$0xf]
      %v760 = vld [vmem:[%s219 + $0x788] sm:$0xf]
      %v761 = vld [vmem:[%s219 + $0x78c] sm:$0xf]
      %v762 = vld [vmem:[%s219 + $0x790] sm:$0xf]
      %v763 = vld [vmem:[%s219 + $0x794] sm:$0xf]
      %v764 = vld [vmem:[%s219 + $0x798] sm:$0xf]
      %v765 = vld [vmem:[%s219 + $0x79c] sm:$0xf]
      %v766 = vld [vmem:[%s219 + $0x7a0] sm:$0xf]
      %v767 = vld [vmem:[%s219 + $0x7a4] sm:$0xf]
      %v768 = vld [vmem:[%s219 + $0x7a8] sm:$0xf]
      %v769 = vld [vmem:[%s219 + $0x7ac] sm:$0xf]
      %v770 = vld [vmem:[%s219 + $0x7b0] sm:$0xf]
      %v771 = vld [vmem:[%s219 + $0x7b4] sm:$0xf]
      %v772 = vld [vmem:[%s219 + $0x7b8] sm:$0xf]
      %v773 = vld [vmem:[%s219 + $0x7bc] sm:$0xf]
      %v774 = vld [vmem:[%s219 + $0x7c0] sm:$0xf]
      %v775 = vld [vmem:[%s219 + $0x7c4] sm:$0xf]
      %v776 = vld [vmem:[%s219 + $0x7c8] sm:$0xf]
      %v777 = vld [vmem:[%s219 + $0x7cc] sm:$0xf]
      %v778 = vld [vmem:[%s219 + $0x7d0] sm:$0xf]
      %v779 = vld [vmem:[%s219 + $0x7d4] sm:$0xf]
      %v780 = vld [vmem:[%s219 + $0x7d8] sm:$0xf]
      %v781 = vld [vmem:[%s219 + $0x7dc] sm:$0xf]
      %v782 = vld [vmem:[%s219 + $0x7e0] sm:$0xf]
      %v783 = vld [vmem:[%s219 + $0x7e4] sm:$0xf]
      %v784 = vld [vmem:[%s219 + $0x7e8] sm:$0xf]
      %v785 = vld [vmem:[%s219 + $0x7ec] sm:$0xf]
      %v786 = vld [vmem:[%s219 + $0x7f0] sm:$0xf]
      %v787 = vld [vmem:[%s219 + $0x7f4] sm:$0xf]
      %v788 = vld [vmem:[%s219 + $0x7f8] sm:$0xf]
      %v789 = vld [vmem:[%s219 + $0x7fc] sm:$0xf]
      %v790 = vld [vmem:[%s219 + $0x800] sm:$0xf]
      %v791 = vld [vmem:[%s219 + $0x804] sm:$0xf]
      %v792 = vld [vmem:[%s219 + $0x808] sm:$0xf]
      %v793 = vld [vmem:[%s219 + $0x80c] sm:$0xf]
      %v794 = vld [vmem:[%s219 + $0x810] sm:$0xf]
      %v795 = vld [vmem:[%s219 + $0x814] sm:$0xf]
      %v796 = vld [vmem:[%s219 + $0x818] sm:$0xf]
      %v797 = vld [vmem:[%s219 + $0x81c] sm:$0xf]
      %v798 = vld [vmem:[%s219 + $0x820] sm:$0xf]
      %v799 = vld [vmem:[%s219 + $0x824] sm:$0xf]
      %v800 = vld [vmem:[%s219 + $0x828] sm:$0xf]
      %v801 = vld [vmem:[%s219 + $0x82c] sm:$0xf]
      %v802 = vld [vmem:[%s219 + $0x830] sm:$0xf]
      %v803 = vld [vmem:[%s219 + $0x834] sm:$0xf]
      %v804 = vld [vmem:[%s219 + $0x838] sm:$0xf]
      %v805 = vld [vmem:[%s219 + $0x83c] sm:$0xf]
      %v806 = vld [vmem:[%s219 + $0x840] sm:$0xf]
      %v807 = vld [vmem:[%s219 + $0x844] sm:$0xf]
      %v808 = vld [vmem:[%s219 + $0x848] sm:$0xf]
      %v809 = vld [vmem:[%s219 + $0x84c] sm:$0xf]
      %v810 = vld [vmem:[%s219 + $0x850] sm:$0xf]
      %v811 = vld [vmem:[%s219 + $0x854] sm:$0xf]
      %v812 = vld [vmem:[%s219 + $0x858] sm:$0xf]
      %v813 = vld [vmem:[%s219 + $0x85c] sm:$0xf]
      %v814 = vld [vmem:[%s219 + $0x860] sm:$0xf]
      %v815 = vld [vmem:[%s219 + $0x864] sm:$0xf]
      %v816 = vld [vmem:[%s219 + $0x868] sm:$0xf]
      %v817 = vld [vmem:[%s219 + $0x86c] sm:$0xf]
      %v818 = vld [vmem:[%s219 + $0x870] sm:$0xf]
      %v819 = vld [vmem:[%s219 + $0x874] sm:$0xf]
      %v820 = vld [vmem:[%s219 + $0x878] sm:$0xf]
      %v821 = vld [vmem:[%s219 + $0x87c] sm:$0xf]
      %v822 = vld [vmem:[%s219 + $0x880] sm:$0xf]
      %v823 = vld [vmem:[%s219 + $0x884] sm:$0xf]
      %v824 = vld [vmem:[%s219 + $0x888] sm:$0xf]
      %v825 = vld [vmem:[%s219 + $0x88c] sm:$0xf]
      %v826 = vld [vmem:[%s219 + $0x890] sm:$0xf]
      %v827 = vld [vmem:[%s219 + $0x894] sm:$0xf]
      %v828 = vld [vmem:[%s219 + $0x898] sm:$0xf]
      %v829 = vld [vmem:[%s219 + $0x89c] sm:$0xf]
      %v830 = vld [vmem:[%s219 + $0x8a0] sm:$0xf]
      %v831 = vld [vmem:[%s219 + $0x8a4] sm:$0xf]
      %v832 = vld [vmem:[%s219 + $0x8a8] sm:$0xf]
      %v833 = vld [vmem:[%s219 + $0x8ac] sm:$0xf]
      %v834 = vld [vmem:[%s219 + $0x8b0] sm:$0xf]
      %v835 = vld [vmem:[%s219 + $0x8b4] sm:$0xf]
      %v836 = vld [vmem:[%s219 + $0x8b8] sm:$0xf]
      %v837 = vld [vmem:[%s219 + $0x8bc] sm:$0xf]
      %v838 = vld [vmem:[%s219 + $0x8c0] sm:$0xf]
      %v839 = vld [vmem:[%s219 + $0x8c4] sm:$0xf]
      %v840 = vld [vmem:[%s219 + $0x8c8] sm:$0xf]
      %v841 = vld [vmem:[%s219 + $0x8cc] sm:$0xf]
      %v842 = vld [vmem:[%s219 + $0x8d0] sm:$0xf]
      %v843 = vld [vmem:[%s219 + $0x8d4] sm:$0xf]
      %v844 = vld [vmem:[%s219 + $0x8d8] sm:$0xf]
      %v845 = vld [vmem:[%s219 + $0x8dc] sm:$0xf]
      %v846 = vld [vmem:[%s219 + $0x8e0] sm:$0xf]
      %v847 = vld [vmem:[%s219 + $0x8e4] sm:$0xf]
      %v848 = vld [vmem:[%s219 + $0x8e8] sm:$0xf]
      %v849 = vld [vmem:[%s219 + $0x8ec] sm:$0xf]
      %v850 = vld [vmem:[%s219 + $0x8f0] sm:$0xf]
      %v851 = vld [vmem:[%s219 + $0x8f4] sm:$0xf]
      %v852 = vld [vmem:[%s219 + $0x8f8] sm:$0xf]
      %v853 = vld [vmem:[%s219 + $0x8fc] sm:$0xf]
      %v854 = vld [vmem:[%s219 + $0x900] sm:$0xf]
      %v855 = vld [vmem:[%s219 + $0x904] sm:$0xf]
      %v856 = vld [vmem:[%s219 + $0x908] sm:$0xf]
      %v857 = vld [vmem:[%s219 + $0x90c] sm:$0xf]
      %v858 = vld [vmem:[%s219 + $0x910] sm:$0xf]
      %v859 = vld [vmem:[%s219 + $0x914] sm:$0xf]
      %v860 = vld [vmem:[%s219 + $0x918] sm:$0xf]
      %v861 = vld [vmem:[%s219 + $0x91c] sm:$0xf]
      %v862 = vld [vmem:[%s219 + $0x920] sm:$0xf]
      %v863 = vld [vmem:[%s219 + $0x924] sm:$0xf]
      %v864 = vld [vmem:[%s219 + $0x928] sm:$0xf]
      %v865 = vld [vmem:[%s219 + $0x92c] sm:$0xf]
      %v866 = vld [vmem:[%s219 + $0x930] sm:$0xf]
      %v867 = vld [vmem:[%s219 + $0x934] sm:$0xf]
      %v868 = vld [vmem:[%s219 + $0x938] sm:$0xf]
      %v869 = vld [vmem:[%s219 + $0x93c] sm:$0xf]
      %v870 = vld [vmem:[%s219 + $0x940] sm:$0xf]
      %v871 = vld [vmem:[%s219 + $0x944] sm:$0xf]
      %v872 = vld [vmem:[%s219 + $0x948] sm:$0xf]
      %v873 = vld [vmem:[%s219 + $0x94c] sm:$0xf]
      %v874 = vld [vmem:[%s219 + $0x950] sm:$0xf]
      %v875 = vld [vmem:[%s219 + $0x954] sm:$0xf]
      %v876 = vld [vmem:[%s219 + $0x958] sm:$0xf]
      %v877 = vld [vmem:[%s219 + $0x95c] sm:$0xf]
      %v878 = vld [vmem:[%s219 + $0x960] sm:$0xf]
      %v879 = vld [vmem:[%s219 + $0x964] sm:$0xf]
      %v880 = vld [vmem:[%s219 + $0x968] sm:$0xf]
      %v881 = vld [vmem:[%s219 + $0x96c] sm:$0xf]
      %v882 = vld [vmem:[%s219 + $0x970] sm:$0xf]
      %v883 = vld [vmem:[%s219 + $0x974] sm:$0xf]
      %v884 = vld [vmem:[%s219 + $0x978] sm:$0xf]
      %v885 = vld [vmem:[%s219 + $0x97c] sm:$0xf]
      %v886 = vld [vmem:[%s219 + $0x980] sm:$0xf]
      %v887 = vld [vmem:[%s219 + $0x984] sm:$0xf]
      %v888 = vld [vmem:[%s219 + $0x988] sm:$0xf]
      %v889 = vld [vmem:[%s219 + $0x98c] sm:$0xf]
      %v890 = vld [vmem:[%s219 + $0x990] sm:$0xf]
      %v891 = vld [vmem:[%s219 + $0x994] sm:$0xf]
      %v892 = vld [vmem:[%s219 + $0x998] sm:$0xf]
      %v893 = vld [vmem:[%s219 + $0x99c] sm:$0xf]
      %v894 = vld [vmem:[%s219 + $0x9a0] sm:$0xf]
      %v895 = vld [vmem:[%s219 + $0x9a4] sm:$0xf]
      %v896 = vld [vmem:[%s219 + $0x9a8] sm:$0xf]
      %v897 = vld [vmem:[%s219 + $0x9ac] sm:$0xf]
      %v898 = vld [vmem:[%s219 + $0x9b0] sm:$0xf]
      %v899 = vld [vmem:[%s219 + $0x9b4] sm:$0xf]
      %v900 = vld [vmem:[%s219 + $0x9b8] sm:$0xf]
      %v901 = vld [vmem:[%s219 + $0x9bc] sm:$0xf]
      %v902 = vld [vmem:[%s219 + $0x9c0] sm:$0xf]
      %v903 = vld [vmem:[%s219 + $0x9c4] sm:$0xf]
      %v904 = vld [vmem:[%s219 + $0x9c8] sm:$0xf]
      %v905 = vld [vmem:[%s219 + $0x9cc] sm:$0xf]
      %v906 = vld [vmem:[%s219 + $0x9d0] sm:$0xf]
      %v907 = vld [vmem:[%s219 + $0x9d4] sm:$0xf]
      %v908 = vld [vmem:[%s219 + $0x9d8] sm:$0xf]
      %v909 = vld [vmem:[%s219 + $0x9dc] sm:$0xf]
      %v910 = vld [vmem:[%s219 + $0x9e0] sm:$0xf]
      %v911 = vld [vmem:[%s219 + $0x9e4] sm:$0xf]
      %v912 = vld [vmem:[%s219 + $0x9e8] sm:$0xf]
      %v913 = vld [vmem:[%s219 + $0x9ec] sm:$0xf]
      %v914 = vld [vmem:[%s219 + $0x9f0] sm:$0xf]
      %v915 = vld [vmem:[%s219 + $0x9f4] sm:$0xf]
      %v916 = vld [vmem:[%s219 + $0x9f8] sm:$0xf]
      %v917 = vld [vmem:[%s219 + $0x9fc] sm:$0xf]
      %v918 = vld [vmem:[%s219 + $0xa00] sm:$0xf]
      %v919 = vld [vmem:[%s219 + $0xa04] sm:$0xf]
      %v920 = vld [vmem:[%s219 + $0xa08] sm:$0xf]
      %v921 = vld [vmem:[%s219 + $0xa0c] sm:$0xf]
      %v922 = vld [vmem:[%s219 + $0xa10] sm:$0xf]
      %v923 = vld [vmem:[%s219 + $0xa14] sm:$0xf]
      %v924 = vld [vmem:[%s219 + $0xa18] sm:$0xf]
      %v925 = vld [vmem:[%s219 + $0xa1c] sm:$0xf]
      %v926 = vld [vmem:[%s219 + $0xa20] sm:$0xf]
      %v927 = vld [vmem:[%s219 + $0xa24] sm:$0xf]
      %v928 = vld [vmem:[%s219 + $0xa28] sm:$0xf]
      %v929 = vld [vmem:[%s219 + $0xa2c] sm:$0xf]
      %v930 = vld [vmem:[%s219 + $0xa30] sm:$0xf]
      %v931 = vld [vmem:[%s219 + $0xa34] sm:$0xf]
      %v932 = vld [vmem:[%s219 + $0xa38] sm:$0xf]
      %v933 = vld [vmem:[%s219 + $0xa3c] sm:$0xf]
      %v934 = vld [vmem:[%s219 + $0xa40] sm:$0xf]
      %v935 = vld [vmem:[%s219 + $0xa44] sm:$0xf]
      %v936 = vld [vmem:[%s219 + $0xa48] sm:$0xf]
      %v937 = vld [vmem:[%s219 + $0xa4c] sm:$0xf]
      %v938 = vld [vmem:[%s219 + $0xa50] sm:$0xf]
      %v939 = vld [vmem:[%s219 + $0xa54] sm:$0xf]
      %v940 = vld [vmem:[%s219 + $0xa58] sm:$0xf]
      %v941 = vld [vmem:[%s219 + $0xa5c] sm:$0xf]
      %v942 = vld [vmem:[%s219 + $0xa60] sm:$0xf]
      %v943 = vld [vmem:[%s219 + $0xa64] sm:$0xf]
      %v944 = vld [vmem:[%s219 + $0xa68] sm:$0xf]
      %v945 = vld [vmem:[%s219 + $0xa6c] sm:$0xf]
      %v946 = vld [vmem:[%s219 + $0xa70] sm:$0xf]
      %v947 = vld [vmem:[%s219 + $0xa74] sm:$0xf]
      %v948 = vld [vmem:[%s219 + $0xa78] sm:$0xf]
      %v949 = vld [vmem:[%s219 + $0xa7c] sm:$0xf]
      %v950 = vld [vmem:[%s219 + $0xa80] sm:$0xf]
      %v951 = vld [vmem:[%s219 + $0xa84] sm:$0xf]
      %v952 = vld [vmem:[%s219 + $0xa88] sm:$0xf]
      %v953 = vld [vmem:[%s219 + $0xa8c] sm:$0xf]
      %v954 = vld [vmem:[%s219 + $0xa90] sm:$0xf]
      %v955 = vld [vmem:[%s219 + $0xa94] sm:$0xf]
      %v956 = vld [vmem:[%s219 + $0xa98] sm:$0xf]
      %v957 = vld [vmem:[%s219 + $0xa9c] sm:$0xf]
      %v958 = vld [vmem:[%s219 + $0xaa0] sm:$0xf]
      %v959 = vld [vmem:[%s219 + $0xaa4] sm:$0xf]
      %v960 = vld [vmem:[%s219 + $0xaa8] sm:$0xf]
      %v961 = vld [vmem:[%s219 + $0xaac] sm:$0xf]
      %v962 = vld [vmem:[%s219 + $0xab0] sm:$0xf]
      %v963 = vld [vmem:[%s219 + $0xab4] sm:$0xf]
      %v964 = vld [vmem:[%s219 + $0xab8] sm:$0xf]
      %v965 = vld [vmem:[%s219 + $0xabc] sm:$0xf]
      %v966 = vld [vmem:[%s219 + $0xac0] sm:$0xf]
      %v967 = vld [vmem:[%s219 + $0xac4] sm:$0xf]
      %v968 = vld [vmem:[%s219 + $0xac8] sm:$0xf]
      %v969 = vld [vmem:[%s219 + $0xacc] sm:$0xf]
      %v970 = vld [vmem:[%s219 + $0xad0] sm:$0xf]
      %v971 = vld [vmem:[%s219 + $0xad4] sm:$0xf]
      %v972 = vld [vmem:[%s219 + $0xad8] sm:$0xf]
      %v973 = vld [vmem:[%s219 + $0xadc] sm:$0xf]
      %v974 = vld [vmem:[%s219 + $0xae0] sm:$0xf]
      %v975 = vld [vmem:[%s219 + $0xae4] sm:$0xf]
      %v976 = vld [vmem:[%s219 + $0xae8] sm:$0xf]
      %v977 = vld [vmem:[%s219 + $0xaec] sm:$0xf]
      %v978 = vld [vmem:[%s219 + $0xaf0] sm:$0xf]
      %v979 = vld [vmem:[%s219 + $0xaf4] sm:$0xf]
      %v980 = vld [vmem:[%s219 + $0xaf8] sm:$0xf]
      %v981 = vld [vmem:[%s219 + $0xafc] sm:$0xf]
      %v982 = vld [vmem:[%s219 + $0xb00] sm:$0xf]
      %v983 = vld [vmem:[%s219 + $0xb04] sm:$0xf]
      %v984 = vld [vmem:[%s219 + $0xb08] sm:$0xf]
      %v985 = vld [vmem:[%s219 + $0xb0c] sm:$0xf]
      %v986 = vld [vmem:[%s219 + $0xb10] sm:$0xf]
      %v987 = vld [vmem:[%s219 + $0xb14] sm:$0xf]
      %v988 = vld [vmem:[%s219 + $0xb18] sm:$0xf]
      %v989 = vld [vmem:[%s219 + $0xb1c] sm:$0xf]
      %v990 = vld [vmem:[%s219 + $0xb20] sm:$0xf]
      %v991 = vld [vmem:[%s219 + $0xb24] sm:$0xf]
      %v992 = vld [vmem:[%s219 + $0xb28] sm:$0xf]
      %v993 = vld [vmem:[%s219 + $0xb2c] sm:$0xf]
      %v994 = vld [vmem:[%s219 + $0xb30] sm:$0xf]
      %v995 = vld [vmem:[%s219 + $0xb34] sm:$0xf]
      %v996 = vld [vmem:[%s219 + $0xb38] sm:$0xf]
      %v997 = vld [vmem:[%s219 + $0xb3c] sm:$0xf]
      %v998 = vld [vmem:[%s219 + $0xb40] sm:$0xf]
      %v999 = vld [vmem:[%s219 + $0xb44] sm:$0xf]
      %v1000 = vld [vmem:[%s219 + $0xb48] sm:$0xf]
      %v1001 = vld [vmem:[%s219 + $0xb4c] sm:$0xf]
      %v1002 = vld [vmem:[%s219 + $0xb50] sm:$0xf]
      %v1003 = vld [vmem:[%s219 + $0xb54] sm:$0xf]
      %v1004 = vld [vmem:[%s219 + $0xb58] sm:$0xf]
      %v1005 = vld [vmem:[%s219 + $0xb5c] sm:$0xf]
      %v1006 = vld [vmem:[%s219 + $0xb60] sm:$0xf]
      %v1007 = vld [vmem:[%s219 + $0xb64] sm:$0xf]
      %v1008 = vld [vmem:[%s219 + $0xb68] sm:$0xf]
      %v1009 = vld [vmem:[%s219 + $0xb6c] sm:$0xf]
      %v1010 = vld [vmem:[%s219 + $0xb70] sm:$0xf]
      %v1011 = vld [vmem:[%s219 + $0xb74] sm:$0xf]
      %v1012 = vld [vmem:[%s219 + $0xb78] sm:$0xf]
      %v1013 = vld [vmem:[%s219 + $0xb7c] sm:$0xf]
      %v1014 = vld [vmem:[%s219 + $0xb80] sm:$0xf]
      %v1015 = vld [vmem:[%s219 + $0xb84] sm:$0xf]
      %v1016 = vld [vmem:[%s219 + $0xb88] sm:$0xf]
      %v1017 = vld [vmem:[%s219 + $0xb8c] sm:$0xf]
      %v1018 = vld [vmem:[%s219 + $0xb90] sm:$0xf]
      %v1019 = vld [vmem:[%s219 + $0xb94] sm:$0xf]
      %v1020 = vld [vmem:[%s219 + $0xb98] sm:$0xf]
      %v1021 = vld [vmem:[%s219 + $0xb9c] sm:$0xf]
      %v1022 = vld [vmem:[%s219 + $0xba0] sm:$0xf]
      %v1023 = vld [vmem:[%s219 + $0xba4] sm:$0xf]
      %v1024 = vld [vmem:[%s219 + $0xba8] sm:$0xf]
      %v1025 = vld [vmem:[%s219 + $0xbac] sm:$0xf]
      %v1026 = vld [vmem:[%s219 + $0xbb0] sm:$0xf]
      %v1027 = vld [vmem:[%s219 + $0xbb4] sm:$0xf]
      %v1028 = vld [vmem:[%s219 + $0xbb8] sm:$0xf]
      %v1029 = vld [vmem:[%s219 + $0xbbc] sm:$0xf]
      %v1030 = vld [vmem:[%s219 + $0xbc0] sm:$0xf]
      %v1031 = vld [vmem:[%s219 + $0xbc4] sm:$0xf]
      %v1032 = vld [vmem:[%s219 + $0xbc8] sm:$0xf]
      %v1033 = vld [vmem:[%s219 + $0xbcc] sm:$0xf]
      %v1034 = vld [vmem:[%s219 + $0xbd0] sm:$0xf]
      %v1035 = vld [vmem:[%s219 + $0xbd4] sm:$0xf]
      %v1036 = vld [vmem:[%s219 + $0xbd8] sm:$0xf]
      %v1037 = vld [vmem:[%s219 + $0xbdc] sm:$0xf]
      %v1038 = vld [vmem:[%s219 + $0xbe0] sm:$0xf]
      %v1039 = vld [vmem:[%s219 + $0xbe4] sm:$0xf]
      %v1040 = vld [vmem:[%s219 + $0xbe8] sm:$0xf]
      %v1041 = vld [vmem:[%s219 + $0xbec] sm:$0xf]
      %v1042 = vld [vmem:[%s219 + $0xbf0] sm:$0xf]
      %v1043 = vld [vmem:[%s219 + $0xbf4] sm:$0xf]
      %v1044 = vld [vmem:[%s219 + $0xbf8] sm:$0xf]
      %v1045 = vld [vmem:[%s219 + $0xbfc] sm:$0xf]
      %v1046 = vld [vmem:[%s219 + $0xc00] sm:$0xf]
      %v1047 = vld [vmem:[%s219 + $0xc04] sm:$0xf]
      %v1048 = vld [vmem:[%s219 + $0xc08] sm:$0xf]
      %v1049 = vld [vmem:[%s219 + $0xc0c] sm:$0xf]
      %v1050 = vld [vmem:[%s219 + $0xc10] sm:$0xf]
      %v1051 = vld [vmem:[%s219 + $0xc14] sm:$0xf]
      %v1052 = vld [vmem:[%s219 + $0xc18] sm:$0xf]
      %v1053 = vld [vmem:[%s219 + $0xc1c] sm:$0xf]
      %v1054 = vld [vmem:[%s219 + $0xc20] sm:$0xf]
      %v1055 = vld [vmem:[%s219 + $0xc24] sm:$0xf]
      %v1056 = vld [vmem:[%s219 + $0xc28] sm:$0xf]
      %v1057 = vld [vmem:[%s219 + $0xc2c] sm:$0xf]
      %v1058 = vld [vmem:[%s219 + $0xc30] sm:$0xf]
      %v1059 = vld [vmem:[%s219 + $0xc34] sm:$0xf]
      %v1060 = vld [vmem:[%s219 + $0xc38] sm:$0xf]
      %v1061 = vld [vmem:[%s219 + $0xc3c] sm:$0xf]
      %v1062 = vld [vmem:[%s2] sm:$0x1]
      %v1064 = vlaneseq
      %v1065 = vshrl.u32 %v1064, 7
      %v1066 = vsub.s32 0, %v1065
      %v1067 = vrot.slane %v1062, %v1066
      %v1119 = vunpack.c.l.b16 %v228
      %v1120 = vunpack.c.h.b16 %v228
      %v1121 = vunpack.c.l.b16 %v229
      %v1122 = vunpack.c.h.b16 %v229
      %v1123 = vunpack.c.l.b16 %v230
      %v1124 = vunpack.c.h.b16 %v230
      %v1125 = vunpack.c.l.b16 %v231
      %v1126 = vunpack.c.h.b16 %v231
      %v1127 = vunpack.c.l.b16 %v232
      %v1128 = vunpack.c.h.b16 %v232
      %v1129 = vunpack.c.l.b16 %v233
      %v1130 = vunpack.c.h.b16 %v233
      %v1131 = vunpack.c.l.b16 %v234
      %v1132 = vunpack.c.h.b16 %v234
      %v1133 = vunpack.c.l.b16 %v235
      %v1134 = vunpack.c.h.b16 %v235
      %v1135 = vunpack.c.l.b16 %v236
      %v1136 = vunpack.c.h.b16 %v236
      %v1137 = vunpack.c.l.b16 %v237
      %v1138 = vunpack.c.h.b16 %v237
      %v1139 = vunpack.c.l.b16 %v238
      %v1140 = vunpack.c.h.b16 %v238
      %v1141 = vunpack.c.l.b16 %v239
      %v1142 = vunpack.c.h.b16 %v239
      %v1143 = vunpack.c.l.b16 %v240
      %v1144 = vunpack.c.h.b16 %v240
      %v1145 = vunpack.c.l.b16 %v241
      %v1146 = vunpack.c.h.b16 %v241
      %v1147 = vunpack.c.l.b16 %v242
      %v1148 = vunpack.c.h.b16 %v242
      %v1149 = vunpack.c.l.b16 %v243
      %v1150 = vunpack.c.h.b16 %v243
      %v1151 = vunpack.c.l.b16 %v244
      %v1152 = vunpack.c.h.b16 %v244
      %v1153 = vunpack.c.l.b16 %v245
      %v1154 = vunpack.c.h.b16 %v245
      %v1155 = vunpack.c.l.b16 %v246
      %v1156 = vunpack.c.h.b16 %v246
      %v1157 = vunpack.c.l.b16 %v247
      %v1158 = vunpack.c.h.b16 %v247
      %v1159 = vunpack.c.l.b16 %v248
      %v1160 = vunpack.c.h.b16 %v248
      %v1161 = vunpack.c.l.b16 %v249
      %v1162 = vunpack.c.h.b16 %v249
      %v1163 = vunpack.c.l.b16 %v250
      %v1164 = vunpack.c.h.b16 %v250
      %v1165 = vunpack.c.l.b16 %v251
      %v1166 = vunpack.c.h.b16 %v251
      %v1167 = vunpack.c.l.b16 %v252
      %v1168 = vunpack.c.l.b16 %v253
      %v1169 = vunpack.c.h.b16 %v253
      %v1170 = vunpack.c.l.b16 %v254
      %v1171 = vunpack.c.h.b16 %v254
      %v1172 = vunpack.c.l.b16 %v255
      %v1173 = vunpack.c.h.b16 %v255
      %v1174 = vunpack.c.l.b16 %v256
      %v1175 = vunpack.c.h.b16 %v256
      %v1176 = vunpack.c.l.b16 %v257
      %v1177 = vunpack.c.h.b16 %v257
      %v1178 = vunpack.c.l.b16 %v258
      %v1179 = vunpack.c.h.b16 %v258
      %v1180 = vunpack.c.l.b16 %v259
      %v1181 = vunpack.c.h.b16 %v259
      %v1182 = vunpack.c.l.b16 %v260
      %v1183 = vunpack.c.h.b16 %v260
      %v1184 = vunpack.c.l.b16 %v261
      %v1185 = vunpack.c.h.b16 %v261
      %v1186 = vunpack.c.l.b16 %v262
      %v1187 = vunpack.c.h.b16 %v262
      %v1188 = vunpack.c.l.b16 %v263
      %v1189 = vunpack.c.h.b16 %v263
      %v1190 = vunpack.c.l.b16 %v264
      %v1191 = vunpack.c.h.b16 %v264
      %v1192 = vunpack.c.l.b16 %v265
      %v1193 = vunpack.c.h.b16 %v265
      %v1194 = vunpack.c.l.b16 %v266
      %v1195 = vunpack.c.h.b16 %v266
      %v1196 = vunpack.c.l.b16 %v267
      %v1197 = vunpack.c.h.b16 %v267
      %v1198 = vunpack.c.l.b16 %v268
      %v1199 = vunpack.c.h.b16 %v268
      %v1200 = vunpack.c.l.b16 %v269
      %v1201 = vunpack.c.h.b16 %v269
      %v1202 = vunpack.c.l.b16 %v270
      %v1203 = vunpack.c.h.b16 %v270
      %v1204 = vunpack.c.l.b16 %v271
      %v1205 = vunpack.c.h.b16 %v271
      %v1206 = vunpack.c.l.b16 %v272
      %v1207 = vunpack.c.h.b16 %v272
      %v1208 = vunpack.c.l.b16 %v273
      %v1209 = vunpack.c.h.b16 %v273
      %v1210 = vunpack.c.l.b16 %v274
      %v1211 = vunpack.c.h.b16 %v274
      %v1212 = vunpack.c.l.b16 %v275
      %v1213 = vunpack.c.h.b16 %v275
      %v1214 = vunpack.c.l.b16 %v276
      %v1215 = vunpack.c.h.b16 %v276
      %v1216 = vunpack.c.l.b16 %v277
      %v1217 = vpack.c.b16 %v1168, %v1119
      %v1218 = vpack.c.b16 %v1169, %v1120
      %v1219 = vpack.c.b16 %v1170, %v1121
      %v1220 = vpack.c.b16 %v1171, %v1122
      %v1221 = vpack.c.b16 %v1172, %v1123
      %v1222 = vpack.c.b16 %v1173, %v1124
      %v1223 = vpack.c.b16 %v1174, %v1125
      %v1224 = vpack.c.b16 %v1175, %v1126
      %v1225 = vpack.c.b16 %v1176, %v1127
      %v1226 = vpack.c.b16 %v1177, %v1128
      %v1227 = vpack.c.b16 %v1178, %v1129
      %v1228 = vpack.c.b16 %v1179, %v1130
      %v1229 = vpack.c.b16 %v1180, %v1131
      %v1230 = vpack.c.b16 %v1181, %v1132
      %v1231 = vpack.c.b16 %v1182, %v1133
      %v1232 = vpack.c.b16 %v1183, %v1134
      %v1233 = vpack.c.b16 %v1184, %v1135
      %v1234 = vpack.c.b16 %v1185, %v1136
      %v1235 = vpack.c.b16 %v1186, %v1137
      %v1236 = vpack.c.b16 %v1187, %v1138
      %v1237 = vpack.c.b16 %v1188, %v1139
      %v1238 = vpack.c.b16 %v1189, %v1140
      %v1239 = vpack.c.b16 %v1190, %v1141
      %v1240 = vpack.c.b16 %v1191, %v1142
      %v1241 = vpack.c.b16 %v1192, %v1143
      %v1242 = vpack.c.b16 %v1193, %v1144
      %v1243 = vpack.c.b16 %v1194, %v1145
      %v1244 = vpack.c.b16 %v1195, %v1146
      %v1245 = vpack.c.b16 %v1196, %v1147
      %v1246 = vpack.c.b16 %v1197, %v1148
      %v1247 = vpack.c.b16 %v1198, %v1149
      %v1248 = vpack.c.b16 %v1199, %v1150
      %v1249 = vpack.c.b16 %v1200, %v1151
      %v1250 = vpack.c.b16 %v1201, %v1152
      %v1251 = vpack.c.b16 %v1202, %v1153
      %v1252 = vpack.c.b16 %v1203, %v1154
      %v1253 = vpack.c.b16 %v1204, %v1155
      %v1254 = vpack.c.b16 %v1205, %v1156
      %v1255 = vpack.c.b16 %v1206, %v1157
      %v1256 = vpack.c.b16 %v1207, %v1158
      %v1257 = vpack.c.b16 %v1208, %v1159
      %v1258 = vpack.c.b16 %v1209, %v1160
      %v1259 = vpack.c.b16 %v1210, %v1161
      %v1260 = vpack.c.b16 %v1211, %v1162
      %v1261 = vpack.c.b16 %v1212, %v1163
      %v1262 = vpack.c.b16 %v1213, %v1164
      %v1263 = vpack.c.b16 %v1214, %v1165
      %v1264 = vpack.c.b16 %v1215, %v1166
      %v1265 = vpack.c.b16 %v1216, %v1167
      %v2099 = vunpack.c.l.b16 %v278
      %v2100 = vunpack.c.l.b16 %v279
      %v2101 = vunpack.c.l.b16 %v280
      %v2102 = vunpack.c.l.b16 %v281
      %v2103 = vunpack.c.l.b16 %v282
      %v2104 = vunpack.c.l.b16 %v283
      %v2105 = vunpack.c.l.b16 %v284
      %v2106 = vunpack.c.l.b16 %v285
      %v2107 = vunpack.c.l.b16 %v286
      %v2108 = vunpack.c.l.b16 %v287
      %v2109 = vunpack.c.l.b16 %v288
      %v2110 = vunpack.c.l.b16 %v289
      %v2111 = vunpack.c.l.b16 %v290
      %v2112 = vunpack.c.l.b16 %v291
      %v2113 = vunpack.c.l.b16 %v292
      %v2114 = vunpack.c.l.b16 %v293
      %v2115 = vunpack.c.l.b16 %v294
      %v2116 = vunpack.c.l.b16 %v295
      %v2117 = vunpack.c.l.b16 %v296
      %v2118 = vunpack.c.l.b16 %v297
      %v2119 = vunpack.c.l.b16 %v298
      %v2120 = vunpack.c.l.b16 %v299
      %v2121 = vunpack.c.l.b16 %v300
      %v2122 = vunpack.c.l.b16 %v301
      %v2123 = vunpack.c.l.b16 %v302
      %v2124 = vunpack.c.l.b16 %v303
      %v2125 = vunpack.c.l.b16 %v304
      %v2126 = vunpack.c.l.b16 %v305
      %v2127 = vunpack.c.l.b16 %v306
      %v2128 = vunpack.c.l.b16 %v307
      %v2129 = vunpack.c.l.b16 %v308
      %v2130 = vunpack.c.l.b16 %v309
      %v2131 = vunpack.c.l.b16 %v310
      %v2132 = vunpack.c.l.b16 %v311
      %v2133 = vunpack.c.l.b16 %v312
      %v2134 = vunpack.c.l.b16 %v313
      %v2135 = vunpack.c.l.b16 %v314
      %v2136 = vunpack.c.l.b16 %v315
      %v2137 = vunpack.c.l.b16 %v316
      %v2138 = vunpack.c.l.b16 %v317
      %v2139 = vunpack.c.l.b16 %v318
      %v2140 = vunpack.c.l.b16 %v319
      %v2141 = vunpack.c.l.b16 %v320
      %v2142 = vunpack.c.l.b16 %v321
      %v2143 = vunpack.c.l.b16 %v322
      %v2144 = vunpack.c.l.b16 %v323
      %v2145 = vunpack.c.l.b16 %v324
      %v2146 = vunpack.c.l.b16 %v325
      %v2147 = vunpack.c.l.b16 %v326
      %v2148 = vunpack.c.l.b16 %v327
      %v2149 = vunpack.c.l.b16 %v328
      %v2150 = vunpack.c.l.b16 %v329
      %v2151 = vunpack.c.l.b16 %v330
      %v2152 = vunpack.c.l.b16 %v331
      %v2153 = vunpack.c.l.b16 %v332
      %v2154 = vunpack.c.l.b16 %v333
      %v2155 = vunpack.c.l.b16 %v334
      %v2156 = vunpack.c.l.b16 %v335
      %v2157 = vunpack.c.l.b16 %v336
      %v2158 = vunpack.c.l.b16 %v337
      %v2159 = vunpack.c.l.b16 %v338
      %v2160 = vunpack.c.l.b16 %v339
      %v2161 = vunpack.c.l.b16 %v340
      %v2162 = vunpack.c.l.b16 %v341
      %v2163 = vunpack.c.l.b16 %v342
      %v2164 = vunpack.c.l.b16 %v343
      %v2165 = vunpack.c.l.b16 %v344
      %v2166 = vunpack.c.l.b16 %v345
      %v2167 = vunpack.c.l.b16 %v346
      %v2168 = vunpack.c.l.b16 %v347
      %v2169 = vunpack.c.l.b16 %v348
      %v2170 = vunpack.c.l.b16 %v349
      %v2171 = vunpack.c.l.b16 %v350
      %v2172 = vunpack.c.l.b16 %v351
      %v2173 = vunpack.c.l.b16 %v352
      %v2174 = vunpack.c.l.b16 %v353
      %v2175 = vunpack.c.l.b16 %v354
      %v2176 = vunpack.c.l.b16 %v355
      %v2177 = vunpack.c.l.b16 %v356
      %v2178 = vunpack.c.l.b16 %v357
      %v2179 = vunpack.c.l.b16 %v358
      %v2180 = vunpack.c.l.b16 %v359
      %v2181 = vunpack.c.l.b16 %v360
      %v2182 = vunpack.c.l.b16 %v361
      %v2183 = vunpack.c.l.b16 %v362
      %v2184 = vunpack.c.l.b16 %v363
      %v2185 = vunpack.c.l.b16 %v364
      %v2186 = vunpack.c.l.b16 %v365
      %v2187 = vunpack.c.l.b16 %v366
      %v2188 = vunpack.c.l.b16 %v367
      %v2189 = vunpack.c.l.b16 %v368
      %v2190 = vunpack.c.l.b16 %v369
      %v2191 = vunpack.c.l.b16 %v370
      %v2192 = vunpack.c.l.b16 %v371
      %v2193 = vunpack.c.l.b16 %v372
      %v2194 = vunpack.c.l.b16 %v373
      %v2195 = vunpack.c.l.b16 %v374
      %v2196 = vunpack.c.l.b16 %v375
      %v2197 = vunpack.c.l.b16 %v376
      %v2198 = vunpack.c.l.b16 %v377
      %v2199 = vunpack.c.l.b16 %v378
      %v2200 = vunpack.c.l.b16 %v379
      %v2201 = vunpack.c.l.b16 %v380
      %v2202 = vunpack.c.l.b16 %v381
      %v2203 = vunpack.c.l.b16 %v382
      %v2204 = vunpack.c.l.b16 %v383
      %v2205 = vunpack.c.l.b16 %v384
      %v2206 = vunpack.c.l.b16 %v385
      %v2207 = vunpack.c.l.b16 %v386
      %v2208 = vunpack.c.l.b16 %v387
      %v2209 = vunpack.c.l.b16 %v388
      %v2210 = vunpack.c.l.b16 %v389
      %v2211 = vunpack.c.l.b16 %v390
      %v2212 = vunpack.c.l.b16 %v391
      %v2213 = vunpack.c.l.b16 %v392
      %v2214 = vunpack.c.l.b16 %v393
      %v2215 = vunpack.c.l.b16 %v394
      %v2216 = vunpack.c.l.b16 %v395
      %v2217 = vunpack.c.l.b16 %v396
      %v2218 = vunpack.c.l.b16 %v397
      %v2219 = vunpack.c.l.b16 %v398
      %v2220 = vunpack.c.l.b16 %v399
      %v2221 = vunpack.c.l.b16 %v400
      %v2222 = vunpack.c.l.b16 %v401
      %v2223 = vunpack.c.l.b16 %v402
      %v2224 = vunpack.c.l.b16 %v403
      %v2225 = vunpack.c.l.b16 %v404
      %v2226 = vunpack.c.l.b16 %v405
      %v2227 = vunpack.c.l.b16 %v406
      %v2228 = vunpack.c.l.b16 %v407
      %v2229 = vunpack.c.l.b16 %v408
      %v2230 = vunpack.c.l.b16 %v409
      %v2231 = vunpack.c.l.b16 %v410
      %v2232 = vunpack.c.l.b16 %v411
      %v2233 = vunpack.c.l.b16 %v412
      %v2234 = vunpack.c.l.b16 %v413
      %v2235 = vunpack.c.l.b16 %v414
      %v2236 = vunpack.c.l.b16 %v415
      %v2237 = vunpack.c.l.b16 %v416
      %v2238 = vunpack.c.l.b16 %v417
      %v2239 = vunpack.c.l.b16 %v418
      %v2240 = vunpack.c.l.b16 %v419
      %v2241 = vunpack.c.l.b16 %v420
      %v2242 = vunpack.c.l.b16 %v421
      %v2243 = vunpack.c.l.b16 %v422
      %v2244 = vunpack.c.l.b16 %v423
      %v2245 = vunpack.c.l.b16 %v424
      %v2246 = vunpack.c.l.b16 %v425
      %v2247 = vunpack.c.l.b16 %v426
      %v2248 = vunpack.c.l.b16 %v427
      %v2249 = vunpack.c.l.b16 %v428
      %v2250 = vunpack.c.l.b16 %v429
      %v2251 = vunpack.c.l.b16 %v430
      %v2252 = vunpack.c.l.b16 %v431
      %v2253 = vunpack.c.l.b16 %v432
      %v2254 = vunpack.c.l.b16 %v433
      %v2255 = vunpack.c.l.b16 %v434
      %v2256 = vunpack.c.l.b16 %v435
      %v2257 = vunpack.c.l.b16 %v436
      %v2258 = vunpack.c.l.b16 %v437
      %v2259 = vunpack.c.l.b16 %v438
      %v2260 = vunpack.c.l.b16 %v439
      %v2261 = vunpack.c.l.b16 %v440
      %v2262 = vunpack.c.l.b16 %v441
      %v2263 = vunpack.c.l.b16 %v442
      %v2264 = vunpack.c.l.b16 %v443
      %v2265 = vunpack.c.l.b16 %v444
      %v2266 = vunpack.c.l.b16 %v445
      %v2267 = vunpack.c.l.b16 %v446
      %v2268 = vunpack.c.l.b16 %v447
      %v2269 = vunpack.c.l.b16 %v448
      %v2270 = vunpack.c.l.b16 %v449
      %v2271 = vunpack.c.l.b16 %v450
      %v2272 = vunpack.c.l.b16 %v451
      %v2273 = vunpack.c.l.b16 %v452
      %v2274 = vunpack.c.l.b16 %v453
      %v2275 = vunpack.c.l.b16 %v454
      %v2276 = vunpack.c.l.b16 %v455
      %v2277 = vunpack.c.l.b16 %v456
      %v2278 = vunpack.c.l.b16 %v457
      %v2279 = vunpack.c.l.b16 %v458
      %v2280 = vunpack.c.l.b16 %v459
      %v2281 = vunpack.c.l.b16 %v460
      %v2282 = vunpack.c.l.b16 %v461
      %v2283 = vunpack.c.l.b16 %v462
      %v2284 = vunpack.c.l.b16 %v463
      %v2285 = vunpack.c.l.b16 %v464
      %v2286 = vunpack.c.l.b16 %v465
      %v2287 = vunpack.c.l.b16 %v466
      %v2288 = vunpack.c.l.b16 %v467
      %v2289 = vunpack.c.l.b16 %v468
      %v2290 = vunpack.c.l.b16 %v469
      %v2291 = vunpack.c.l.b16 %v470
      %v2292 = vunpack.c.l.b16 %v471
      %v2293 = vunpack.c.l.b16 %v472
      %v2294 = vunpack.c.l.b16 %v473
      %v2295 = vunpack.c.l.b16 %v474
      %v2296 = vunpack.c.l.b16 %v475
      %v2297 = vunpack.c.l.b16 %v476
      %v2298 = vunpack.c.l.b16 %v477
      %v2299 = vunpack.c.l.b16 %v478
      %v2300 = vunpack.c.l.b16 %v479
      %v2301 = vunpack.c.l.b16 %v480
      %v2302 = vunpack.c.l.b16 %v481
      %v2303 = vunpack.c.l.b16 %v482
      %v2304 = vunpack.c.l.b16 %v483
      %v2305 = vunpack.c.l.b16 %v484
      %v2306 = vunpack.c.l.b16 %v485
      %v2307 = vunpack.c.l.b16 %v486
      %v2308 = vunpack.c.l.b16 %v487
      %v2309 = vunpack.c.l.b16 %v488
      %v2310 = vunpack.c.l.b16 %v489
      %v2311 = vunpack.c.l.b16 %v490
      %v2312 = vunpack.c.l.b16 %v491
      %v2313 = vunpack.c.l.b16 %v492
      %v2314 = vunpack.c.l.b16 %v493
      %v2315 = vunpack.c.l.b16 %v494
      %v2316 = vunpack.c.l.b16 %v495
      %v2317 = vunpack.c.l.b16 %v496
      %v2318 = vunpack.c.l.b16 %v497
      %v2319 = vunpack.c.l.b16 %v498
      %v2320 = vunpack.c.l.b16 %v499
      %v2321 = vunpack.c.l.b16 %v500
      %v2322 = vunpack.c.l.b16 %v501
      %v2323 = vunpack.c.l.b16 %v502
      %v2324 = vunpack.c.l.b16 %v503
      %v2325 = vunpack.c.l.b16 %v504
      %v2326 = vunpack.c.l.b16 %v505
      %v2327 = vunpack.c.l.b16 %v506
      %v2328 = vunpack.c.l.b16 %v507
      %v2329 = vunpack.c.l.b16 %v508
      %v2330 = vunpack.c.l.b16 %v509
      %v2331 = vunpack.c.l.b16 %v510
      %v2332 = vunpack.c.l.b16 %v511
      %v2333 = vunpack.c.l.b16 %v512
      %v2334 = vunpack.c.l.b16 %v513
      %v2335 = vunpack.c.l.b16 %v514
      %v2336 = vunpack.c.l.b16 %v515
      %v2337 = vunpack.c.l.b16 %v516
      %v2338 = vunpack.c.l.b16 %v517
      %v2339 = vunpack.c.l.b16 %v518
      %v2340 = vunpack.c.l.b16 %v519
      %v2341 = vunpack.c.l.b16 %v520
      %v2342 = vunpack.c.l.b16 %v521
      %v2343 = vunpack.c.l.b16 %v522
      %v2344 = vunpack.c.l.b16 %v523
      %v2345 = vunpack.c.l.b16 %v524
      %v2346 = vunpack.c.l.b16 %v525
      %v2347 = vunpack.c.l.b16 %v526
      %v2348 = vunpack.c.l.b16 %v527
      %v2349 = vunpack.c.l.b16 %v528
      %v2350 = vunpack.c.l.b16 %v529
      %v2351 = vunpack.c.l.b16 %v530
      %v2352 = vunpack.c.l.b16 %v531
      %v2353 = vunpack.c.l.b16 %v532
      %v2354 = vunpack.c.l.b16 %v533
      %v2355 = vunpack.c.l.b16 %v534
      %v2356 = vunpack.c.l.b16 %v535
      %v2357 = vunpack.c.l.b16 %v536
      %v2358 = vunpack.c.l.b16 %v537
      %v2359 = vunpack.c.l.b16 %v538
      %v2360 = vunpack.c.l.b16 %v539
      %v2361 = vunpack.c.l.b16 %v540
      %v2362 = vunpack.c.l.b16 %v541
      %v2363 = vunpack.c.l.b16 %v542
      %v2364 = vunpack.c.l.b16 %v543
      %v2365 = vunpack.c.l.b16 %v544
      %v2366 = vunpack.c.l.b16 %v545
      %v2367 = vunpack.c.l.b16 %v546
      %v2368 = vunpack.c.l.b16 %v547
      %v2369 = vunpack.c.l.b16 %v548
      %v2370 = vunpack.c.l.b16 %v549
      %v2371 = vunpack.c.l.b16 %v550
      %v2372 = vunpack.c.l.b16 %v551
      %v2373 = vunpack.c.l.b16 %v552
      %v2374 = vunpack.c.l.b16 %v553
      %v2375 = vunpack.c.l.b16 %v554
      %v2376 = vunpack.c.l.b16 %v555
      %v2377 = vunpack.c.l.b16 %v556
      %v2378 = vunpack.c.l.b16 %v557
      %v2379 = vunpack.c.l.b16 %v558
      %v2380 = vunpack.c.l.b16 %v559
      %v2381 = vunpack.c.l.b16 %v560
      %v2382 = vunpack.c.l.b16 %v561
      %v2383 = vunpack.c.l.b16 %v562
      %v2384 = vunpack.c.l.b16 %v563
      %v2385 = vunpack.c.l.b16 %v564
      %v2386 = vunpack.c.l.b16 %v565
      %v2387 = vunpack.c.l.b16 %v566
      %v2388 = vunpack.c.l.b16 %v567
      %v2389 = vunpack.c.l.b16 %v568
      %v2390 = vunpack.c.l.b16 %v569
      %v2391 = vunpack.c.l.b16 %v570
      %v2392 = vunpack.c.l.b16 %v571
      %v2393 = vunpack.c.l.b16 %v572
      %v2394 = vunpack.c.l.b16 %v573
      %v2395 = vunpack.c.l.b16 %v574
      %v2396 = vunpack.c.l.b16 %v575
      %v2397 = vunpack.c.l.b16 %v576
      %v2398 = vunpack.c.l.b16 %v577
      %v2399 = vunpack.c.l.b16 %v578
      %v2400 = vunpack.c.l.b16 %v579
      %v2401 = vunpack.c.l.b16 %v580
      %v2402 = vunpack.c.l.b16 %v581
      %v2403 = vunpack.c.l.b16 %v582
      %v2404 = vunpack.c.l.b16 %v583
      %v2405 = vunpack.c.l.b16 %v584
      %v2406 = vunpack.c.l.b16 %v585
      %v2407 = vunpack.c.l.b16 %v586
      %v2408 = vunpack.c.l.b16 %v587
      %v2409 = vunpack.c.l.b16 %v588
      %v2410 = vunpack.c.l.b16 %v589
      %v2411 = vunpack.c.l.b16 %v590
      %v2412 = vunpack.c.l.b16 %v591
      %v2413 = vunpack.c.l.b16 %v592
      %v2414 = vunpack.c.l.b16 %v593
      %v2415 = vunpack.c.l.b16 %v594
      %v2416 = vunpack.c.l.b16 %v595
      %v2417 = vunpack.c.l.b16 %v596
      %v2418 = vunpack.c.l.b16 %v597
      %v2419 = vunpack.c.l.b16 %v598
      %v2420 = vunpack.c.l.b16 %v599
      %v2421 = vunpack.c.l.b16 %v600
      %v2422 = vunpack.c.l.b16 %v601
      %v2423 = vunpack.c.l.b16 %v602
      %v2424 = vunpack.c.l.b16 %v603
      %v2425 = vunpack.c.l.b16 %v604
      %v2426 = vunpack.c.l.b16 %v605
      %v2427 = vunpack.c.l.b16 %v606
      %v2428 = vunpack.c.l.b16 %v607
      %v2429 = vunpack.c.l.b16 %v608
      %v2430 = vunpack.c.l.b16 %v609
      %v2431 = vunpack.c.l.b16 %v610
      %v2432 = vunpack.c.l.b16 %v611
      %v2433 = vunpack.c.l.b16 %v612
      %v2434 = vunpack.c.l.b16 %v613
      %v2435 = vunpack.c.l.b16 %v614
      %v2436 = vunpack.c.l.b16 %v615
      %v2437 = vunpack.c.l.b16 %v616
      %v2438 = vunpack.c.l.b16 %v617
      %v2439 = vunpack.c.l.b16 %v618
      %v2440 = vunpack.c.l.b16 %v619
      %v2441 = vunpack.c.l.b16 %v620
      %v2442 = vunpack.c.l.b16 %v621
      %v2443 = vunpack.c.l.b16 %v622
      %v2444 = vunpack.c.l.b16 %v623
      %v2445 = vunpack.c.l.b16 %v624
      %v2446 = vunpack.c.l.b16 %v625
      %v2447 = vunpack.c.l.b16 %v626
      %v2448 = vunpack.c.l.b16 %v627
      %v2449 = vunpack.c.l.b16 %v628
      %v2450 = vunpack.c.l.b16 %v629
      %v2451 = vunpack.c.l.b16 %v630
      %v2452 = vunpack.c.l.b16 %v631
      %v2453 = vunpack.c.l.b16 %v632
      %v2454 = vunpack.c.l.b16 %v633
      %v2455 = vunpack.c.l.b16 %v634
      %v2456 = vunpack.c.l.b16 %v635
      %v2457 = vunpack.c.l.b16 %v636
      %v2458 = vunpack.c.l.b16 %v637
      %v2459 = vunpack.c.l.b16 %v638
      %v2460 = vunpack.c.l.b16 %v639
      %v2461 = vunpack.c.l.b16 %v640
      %v2462 = vunpack.c.l.b16 %v641
      %v2463 = vunpack.c.l.b16 %v642
      %v2464 = vunpack.c.l.b16 %v643
      %v2465 = vunpack.c.l.b16 %v644
      %v2466 = vunpack.c.l.b16 %v645
      %v2467 = vunpack.c.l.b16 %v646
      %v2468 = vunpack.c.l.b16 %v647
      %v2469 = vunpack.c.l.b16 %v648
      %v2470 = vunpack.c.l.b16 %v649
      %v2471 = vunpack.c.l.b16 %v650
      %v2472 = vunpack.c.l.b16 %v651
      %v2473 = vunpack.c.l.b16 %v652
      %v2474 = vunpack.c.l.b16 %v653
      %v2475 = vunpack.c.l.b16 %v654
      %v2476 = vunpack.c.l.b16 %v655
      %v2477 = vunpack.c.l.b16 %v656
      %v2478 = vunpack.c.l.b16 %v657
      %v2479 = vunpack.c.l.b16 %v658
      %v2480 = vunpack.c.l.b16 %v659
      %v2481 = vunpack.c.l.b16 %v660
      %v2482 = vunpack.c.l.b16 %v661
      %v2483 = vunpack.c.l.b16 %v662
      %v2484 = vunpack.c.l.b16 %v663
      %v2485 = vunpack.c.l.b16 %v664
      %v2486 = vunpack.c.l.b16 %v665
      %v2487 = vunpack.c.l.b16 %v666
      %v2488 = vunpack.c.l.b16 %v667
      %v2489 = vunpack.c.l.b16 %v668
      %v2490 = vunpack.c.l.b16 %v669
      %v2491 = vunpack.c.l.b16 %v670
      %v2492 = vunpack.c.l.b16 %v671
      %v2493 = vunpack.c.l.b16 %v672
      %v2494 = vunpack.c.l.b16 %v673
      %v2495 = vunpack.c.l.b16 %v674
      %v2496 = vunpack.c.l.b16 %v675
      %v2497 = vunpack.c.l.b16 %v676
      %v2498 = vunpack.c.l.b16 %v677
      %v2499 = vunpack.c.l.b16 %v678
      %v2500 = vunpack.c.l.b16 %v679
      %v2501 = vunpack.c.l.b16 %v680
      %v2502 = vunpack.c.l.b16 %v681
      %v2503 = vunpack.c.l.b16 %v682
      %v2504 = vunpack.c.l.b16 %v683
      %v2505 = vunpack.c.l.b16 %v684
      %v2506 = vunpack.c.l.b16 %v685
      %v2507 = vunpack.c.l.b16 %v686
      %v2508 = vunpack.c.l.b16 %v687
      %v2509 = vunpack.c.l.b16 %v688
      %v2510 = vunpack.c.l.b16 %v689
      %v2511 = vunpack.c.l.b16 %v690
      %v2512 = vunpack.c.l.b16 %v691
      %v2513 = vunpack.c.l.b16 %v692
      %v2514 = vunpack.c.l.b16 %v693
      %v2515 = vunpack.c.l.b16 %v694
      %v2516 = vunpack.c.l.b16 %v695
      %v2517 = vunpack.c.l.b16 %v696
      %v2518 = vunpack.c.l.b16 %v697
      %v2519 = vunpack.c.l.b16 %v698
      %v2520 = vunpack.c.l.b16 %v699
      %v2521 = vunpack.c.l.b16 %v700
      %v2522 = vunpack.c.l.b16 %v701
      %v2523 = vunpack.c.l.b16 %v702
      %v2524 = vunpack.c.l.b16 %v703
      %v2525 = vunpack.c.l.b16 %v704
      %v2526 = vunpack.c.l.b16 %v705
      %v2527 = vunpack.c.l.b16 %v706
      %v2528 = vunpack.c.l.b16 %v707
      %v2529 = vunpack.c.l.b16 %v708
      %v2530 = vunpack.c.l.b16 %v709
      %v2531 = vunpack.c.l.b16 %v710
      %v2532 = vunpack.c.l.b16 %v711
      %v2533 = vunpack.c.l.b16 %v712
      %v2534 = vunpack.c.l.b16 %v713
      %v2535 = vunpack.c.l.b16 %v714
      %v2536 = vunpack.c.l.b16 %v715
      %v2537 = vunpack.c.l.b16 %v716
      %v2538 = vunpack.c.l.b16 %v717
      %v2539 = vunpack.c.l.b16 %v718
      %v2540 = vunpack.c.l.b16 %v719
      %v2541 = vunpack.c.l.b16 %v720
      %v2542 = vunpack.c.l.b16 %v721
      %v2543 = vunpack.c.l.b16 %v722
      %v2544 = vunpack.c.l.b16 %v723
      %v2545 = vunpack.c.l.b16 %v724
      %v2546 = vunpack.c.l.b16 %v725
      %v2547 = vunpack.c.l.b16 %v726
      %v2548 = vunpack.c.l.b16 %v727
      %v2549 = vunpack.c.l.b16 %v728
      %v2550 = vunpack.c.l.b16 %v729
      %v2551 = vunpack.c.l.b16 %v730
      %v2552 = vunpack.c.l.b16 %v731
      %v2553 = vunpack.c.l.b16 %v732
      %v2554 = vunpack.c.l.b16 %v733
      %v2555 = vunpack.c.l.b16 %v734
      %v2556 = vunpack.c.l.b16 %v735
      %v2557 = vunpack.c.l.b16 %v736
      %v2558 = vunpack.c.l.b16 %v737
      %v2559 = vunpack.c.l.b16 %v738
      %v2560 = vunpack.c.l.b16 %v739
      %v2561 = vunpack.c.l.b16 %v740
      %v2562 = vunpack.c.l.b16 %v741
      %v2563 = vunpack.c.l.b16 %v742
      %v2564 = vunpack.c.l.b16 %v743
      %v2565 = vunpack.c.l.b16 %v744
      %v2566 = vunpack.c.l.b16 %v745
      %v2567 = vunpack.c.l.b16 %v746
      %v2568 = vunpack.c.l.b16 %v747
      %v2569 = vunpack.c.l.b16 %v748
      %v2570 = vunpack.c.l.b16 %v749
      %v2571 = vunpack.c.l.b16 %v750
      %v2572 = vunpack.c.l.b16 %v751
      %v2573 = vunpack.c.l.b16 %v752
      %v2574 = vunpack.c.l.b16 %v753
      %v2575 = vunpack.c.l.b16 %v754
      %v2576 = vunpack.c.l.b16 %v755
      %v2577 = vunpack.c.l.b16 %v756
      %v2578 = vunpack.c.l.b16 %v757
      %v2579 = vunpack.c.l.b16 %v758
      %v2580 = vunpack.c.l.b16 %v759
      %v2581 = vunpack.c.l.b16 %v760
      %v2582 = vunpack.c.l.b16 %v761
      %v2583 = vunpack.c.l.b16 %v762
      %v2584 = vunpack.c.l.b16 %v763
      %v2585 = vunpack.c.l.b16 %v764
      %v2586 = vunpack.c.l.b16 %v765
      %v2587 = vunpack.c.l.b16 %v766
      %v2588 = vunpack.c.l.b16 %v767
      %v2589 = vunpack.c.l.b16 %v768
      %v2590 = vunpack.c.l.b16 %v769
      %v2591 = vunpack.c.l.b16 %v770
      %v2592 = vunpack.c.l.b16 %v771
      %v2593 = vunpack.c.l.b16 %v772
      %v2594 = vunpack.c.l.b16 %v773
      %v2595 = vunpack.c.l.b16 %v774
      %v2596 = vunpack.c.l.b16 %v775
      %v2597 = vunpack.c.l.b16 %v776
      %v2598 = vunpack.c.l.b16 %v777
      %v2599 = vunpack.c.l.b16 %v778
      %v2600 = vunpack.c.l.b16 %v779
      %v2601 = vunpack.c.l.b16 %v780
      %v2602 = vunpack.c.l.b16 %v781
      %v2603 = vunpack.c.l.b16 %v782
      %v2604 = vunpack.c.l.b16 %v783
      %v2605 = vunpack.c.l.b16 %v784
      %v2606 = vunpack.c.l.b16 %v785
      %v2607 = vunpack.c.l.b16 %v786
      %v2608 = vunpack.c.l.b16 %v787
      %v2609 = vunpack.c.l.b16 %v788
      %v2610 = vunpack.c.l.b16 %v789
      %v2611 = vunpack.c.l.b16 %v790
      %v2612 = vunpack.c.l.b16 %v791
      %v2613 = vunpack.c.l.b16 %v792
      %v2614 = vunpack.c.l.b16 %v793
      %v2615 = vunpack.c.l.b16 %v794
      %v2616 = vunpack.c.l.b16 %v795
      %v2617 = vunpack.c.l.b16 %v796
      %v2618 = vunpack.c.l.b16 %v797
      %v2619 = vunpack.c.l.b16 %v798
      %v2620 = vunpack.c.l.b16 %v799
      %v2621 = vunpack.c.l.b16 %v800
      %v2622 = vunpack.c.l.b16 %v801
      %v2623 = vunpack.c.l.b16 %v802
      %v2624 = vunpack.c.l.b16 %v803
      %v2625 = vunpack.c.l.b16 %v804
      %v2626 = vunpack.c.l.b16 %v805
      %v2627 = vunpack.c.l.b16 %v806
      %v2628 = vunpack.c.l.b16 %v807
      %v2629 = vunpack.c.l.b16 %v808
      %v2630 = vunpack.c.l.b16 %v809
      %v2631 = vunpack.c.l.b16 %v810
      %v2632 = vunpack.c.l.b16 %v811
      %v2633 = vunpack.c.l.b16 %v812
      %v2634 = vunpack.c.l.b16 %v813
      %v2635 = vunpack.c.l.b16 %v814
      %v2636 = vunpack.c.l.b16 %v815
      %v2637 = vunpack.c.l.b16 %v816
      %v2638 = vunpack.c.l.b16 %v817
      %v2639 = vunpack.c.l.b16 %v818
      %v2640 = vunpack.c.l.b16 %v819
      %v2641 = vunpack.c.l.b16 %v820
      %v2642 = vunpack.c.l.b16 %v821
      %v2643 = vunpack.c.l.b16 %v822
      %v2644 = vunpack.c.l.b16 %v823
      %v2645 = vunpack.c.l.b16 %v824
      %v2646 = vunpack.c.l.b16 %v825
      %v2647 = vunpack.c.l.b16 %v826
      %v2648 = vunpack.c.l.b16 %v827
      %v2649 = vunpack.c.l.b16 %v828
      %v2650 = vunpack.c.l.b16 %v829
      %v2651 = vunpack.c.l.b16 %v830
      %v2652 = vunpack.c.l.b16 %v831
      %v2653 = vunpack.c.l.b16 %v832
      %v2654 = vunpack.c.l.b16 %v833
      %v2655 = vunpack.c.l.b16 %v834
      %v2656 = vunpack.c.l.b16 %v835
      %v2657 = vunpack.c.l.b16 %v836
      %v2658 = vunpack.c.l.b16 %v837
      %v2659 = vunpack.c.l.b16 %v838
      %v2660 = vunpack.c.l.b16 %v839
      %v2661 = vunpack.c.l.b16 %v840
      %v2662 = vunpack.c.l.b16 %v841
      %v2663 = vunpack.c.l.b16 %v842
      %v2664 = vunpack.c.l.b16 %v843
      %v2665 = vunpack.c.l.b16 %v844
      %v2666 = vunpack.c.l.b16 %v845
      %v2667 = vunpack.c.l.b16 %v846
      %v2668 = vunpack.c.l.b16 %v847
      %v2669 = vunpack.c.l.b16 %v848
      %v2670 = vunpack.c.l.b16 %v849
      %v2671 = vunpack.c.l.b16 %v850
      %v2672 = vunpack.c.l.b16 %v851
      %v2673 = vunpack.c.l.b16 %v852
      %v2674 = vunpack.c.l.b16 %v853
      %v2675 = vunpack.c.l.b16 %v854
      %v2676 = vunpack.c.l.b16 %v855
      %v2677 = vunpack.c.l.b16 %v856
      %v2678 = vunpack.c.l.b16 %v857
      %v2679 = vunpack.c.l.b16 %v858
      %v2680 = vunpack.c.l.b16 %v859
      %v2681 = vunpack.c.l.b16 %v860
      %v2682 = vunpack.c.l.b16 %v861
      %v2683 = vunpack.c.l.b16 %v862
      %v2684 = vunpack.c.l.b16 %v863
      %v2685 = vunpack.c.l.b16 %v864
      %v2686 = vunpack.c.l.b16 %v865
      %v2687 = vunpack.c.l.b16 %v866
      %v2688 = vunpack.c.l.b16 %v867
      %v2689 = vunpack.c.l.b16 %v868
      %v2690 = vunpack.c.l.b16 %v869
      %v2691 = vunpack.c.l.b16 %v870
      %v2692 = vunpack.c.l.b16 %v871
      %v2693 = vunpack.c.l.b16 %v872
      %v2694 = vunpack.c.l.b16 %v873
      %v2695 = vunpack.c.l.b16 %v874
      %v2696 = vunpack.c.l.b16 %v875
      %v2697 = vunpack.c.l.b16 %v876
      %v2698 = vunpack.c.l.b16 %v877
      %v2699 = vunpack.c.l.b16 %v878
      %v2700 = vunpack.c.l.b16 %v879
      %v2701 = vunpack.c.l.b16 %v880
      %v2702 = vunpack.c.l.b16 %v881
      %v2703 = vunpack.c.l.b16 %v882
      %v2704 = vunpack.c.l.b16 %v883
      %v2705 = vunpack.c.l.b16 %v884
      %v2706 = vunpack.c.l.b16 %v885
      %v2707 = vunpack.c.l.b16 %v886
      %v2708 = vunpack.c.l.b16 %v887
      %v2709 = vunpack.c.l.b16 %v888
      %v2710 = vunpack.c.l.b16 %v889
      %v2711 = vunpack.c.l.b16 %v890
      %v2712 = vunpack.c.l.b16 %v891
      %v2713 = vunpack.c.l.b16 %v892
      %v2714 = vunpack.c.l.b16 %v893
      %v2715 = vunpack.c.l.b16 %v894
      %v2716 = vunpack.c.l.b16 %v895
      %v2717 = vunpack.c.l.b16 %v896
      %v2718 = vunpack.c.l.b16 %v897
      %v2719 = vunpack.c.l.b16 %v898
      %v2720 = vunpack.c.l.b16 %v899
      %v2721 = vunpack.c.l.b16 %v900
      %v2722 = vunpack.c.l.b16 %v901
      %v2723 = vunpack.c.l.b16 %v902
      %v2724 = vunpack.c.l.b16 %v903
      %v2725 = vunpack.c.l.b16 %v904
      %v2726 = vunpack.c.l.b16 %v905
      %v2727 = vunpack.c.l.b16 %v906
      %v2728 = vunpack.c.l.b16 %v907
      %v2729 = vunpack.c.l.b16 %v908
      %v2730 = vunpack.c.l.b16 %v909
      %v2731 = vunpack.c.l.b16 %v910
      %v2732 = vunpack.c.l.b16 %v911
      %v2733 = vunpack.c.l.b16 %v912
      %v2734 = vunpack.c.l.b16 %v913
      %v2735 = vunpack.c.l.b16 %v914
      %v2736 = vunpack.c.l.b16 %v915
      %v2737 = vunpack.c.l.b16 %v916
      %v2738 = vunpack.c.l.b16 %v917
      %v2739 = vunpack.c.l.b16 %v918
      %v2740 = vunpack.c.l.b16 %v919
      %v2741 = vunpack.c.l.b16 %v920
      %v2742 = vunpack.c.l.b16 %v921
      %v2743 = vunpack.c.l.b16 %v922
      %v2744 = vunpack.c.l.b16 %v923
      %v2745 = vunpack.c.l.b16 %v924
      %v2746 = vunpack.c.l.b16 %v925
      %v2747 = vunpack.c.l.b16 %v926
      %v2748 = vunpack.c.l.b16 %v927
      %v2749 = vunpack.c.l.b16 %v928
      %v2750 = vunpack.c.l.b16 %v929
      %v2751 = vunpack.c.l.b16 %v930
      %v2752 = vunpack.c.l.b16 %v931
      %v2753 = vunpack.c.l.b16 %v932
      %v2754 = vunpack.c.l.b16 %v933
      %v2755 = vunpack.c.l.b16 %v934
      %v2756 = vunpack.c.l.b16 %v935
      %v2757 = vunpack.c.l.b16 %v936
      %v2758 = vunpack.c.l.b16 %v937
      %v2759 = vunpack.c.l.b16 %v938
      %v2760 = vunpack.c.l.b16 %v939
      %v2761 = vunpack.c.l.b16 %v940
      %v2762 = vunpack.c.l.b16 %v941
      %v2763 = vunpack.c.l.b16 %v942
      %v2764 = vunpack.c.l.b16 %v943
      %v2765 = vunpack.c.l.b16 %v944
      %v2766 = vunpack.c.l.b16 %v945
      %v2767 = vunpack.c.l.b16 %v946
      %v2768 = vunpack.c.l.b16 %v947
      %v2769 = vunpack.c.l.b16 %v948
      %v2770 = vunpack.c.l.b16 %v949
      %v2771 = vunpack.c.l.b16 %v950
      %v2772 = vunpack.c.l.b16 %v951
      %v2773 = vunpack.c.l.b16 %v952
      %v2774 = vunpack.c.l.b16 %v953
      %v2775 = vunpack.c.l.b16 %v954
      %v2776 = vunpack.c.l.b16 %v955
      %v2777 = vunpack.c.l.b16 %v956
      %v2778 = vunpack.c.l.b16 %v957
      %v2779 = vunpack.c.l.b16 %v958
      %v2780 = vunpack.c.l.b16 %v959
      %v2781 = vunpack.c.l.b16 %v960
      %v2782 = vunpack.c.l.b16 %v961
      %v2783 = vunpack.c.l.b16 %v962
      %v2784 = vunpack.c.l.b16 %v963
      %v2785 = vunpack.c.l.b16 %v964
      %v2786 = vunpack.c.l.b16 %v965
      %v2787 = vunpack.c.l.b16 %v966
      %v2788 = vunpack.c.l.b16 %v967
      %v2789 = vunpack.c.l.b16 %v968
      %v2790 = vunpack.c.l.b16 %v969
      %v2791 = vunpack.c.l.b16 %v970
      %v2792 = vunpack.c.l.b16 %v971
      %v2793 = vunpack.c.l.b16 %v972
      %v2794 = vunpack.c.l.b16 %v973
      %v2795 = vunpack.c.l.b16 %v974
      %v2796 = vunpack.c.l.b16 %v975
      %v2797 = vunpack.c.l.b16 %v976
      %v2798 = vunpack.c.l.b16 %v977
      %v2799 = vunpack.c.l.b16 %v978
      %v2800 = vunpack.c.l.b16 %v979
      %v2801 = vunpack.c.l.b16 %v980
      %v2802 = vunpack.c.l.b16 %v981
      %v2803 = vunpack.c.l.b16 %v982
      %v2804 = vunpack.c.l.b16 %v983
      %v2805 = vunpack.c.l.b16 %v984
      %v2806 = vunpack.c.l.b16 %v985
      %v2807 = vunpack.c.l.b16 %v986
      %v2808 = vunpack.c.l.b16 %v987
      %v2809 = vunpack.c.l.b16 %v988
      %v2810 = vunpack.c.l.b16 %v989
      %v2811 = vunpack.c.l.b16 %v990
      %v2812 = vunpack.c.l.b16 %v991
      %v2813 = vunpack.c.l.b16 %v992
      %v2814 = vunpack.c.l.b16 %v993
      %v2815 = vunpack.c.l.b16 %v994
      %v2816 = vunpack.c.l.b16 %v995
      %v2817 = vunpack.c.l.b16 %v996
      %v2818 = vunpack.c.l.b16 %v997
      %v2819 = vunpack.c.l.b16 %v998
      %v2820 = vunpack.c.l.b16 %v999
      %v2821 = vunpack.c.l.b16 %v1000
      %v2822 = vunpack.c.l.b16 %v1001
      %v2823 = vunpack.c.l.b16 %v1002
      %v2824 = vunpack.c.l.b16 %v1003
      %v2825 = vunpack.c.l.b16 %v1004
      %v2826 = vunpack.c.l.b16 %v1005
      %v2827 = vunpack.c.l.b16 %v1006
      %v2828 = vunpack.c.l.b16 %v1007
      %v2829 = vunpack.c.l.b16 %v1008
      %v2830 = vunpack.c.l.b16 %v1009
      %v2831 = vunpack.c.l.b16 %v1010
      %v2832 = vunpack.c.l.b16 %v1011
      %v2833 = vunpack.c.l.b16 %v1012
      %v2834 = vunpack.c.l.b16 %v1013
      %v2835 = vunpack.c.l.b16 %v1014
      %v2836 = vunpack.c.l.b16 %v1015
      %v2837 = vunpack.c.l.b16 %v1016
      %v2838 = vunpack.c.l.b16 %v1017
      %v2839 = vunpack.c.l.b16 %v1018
      %v2840 = vunpack.c.l.b16 %v1019
      %v2841 = vunpack.c.l.b16 %v1020
      %v2842 = vunpack.c.l.b16 %v1021
      %v2843 = vunpack.c.l.b16 %v1022
      %v2844 = vunpack.c.l.b16 %v1023
      %v2845 = vunpack.c.l.b16 %v1024
      %v2846 = vunpack.c.l.b16 %v1025
      %v2847 = vunpack.c.l.b16 %v1026
      %v2848 = vunpack.c.l.b16 %v1027
      %v2849 = vunpack.c.l.b16 %v1028
      %v2850 = vunpack.c.l.b16 %v1029
      %v2851 = vunpack.c.l.b16 %v1030
      %v2852 = vunpack.c.l.b16 %v1031
      %v2853 = vunpack.c.l.b16 %v1032
      %v2854 = vunpack.c.l.b16 %v1033
      %v2855 = vunpack.c.l.b16 %v1034
      %v2856 = vunpack.c.l.b16 %v1035
      %v2857 = vunpack.c.l.b16 %v1036
      %v2858 = vunpack.c.l.b16 %v1037
      %v2859 = vunpack.c.l.b16 %v1038
      %v2860 = vunpack.c.l.b16 %v1039
      %v2861 = vunpack.c.l.b16 %v1040
      %v2862 = vunpack.c.l.b16 %v1041
      %v2863 = vunpack.c.l.b16 %v1042
      %v2864 = vunpack.c.l.b16 %v1043
      %v2865 = vunpack.c.l.b16 %v1044
      %v2866 = vunpack.c.l.b16 %v1045
      %v2867 = vunpack.c.l.b16 %v1046
      %v2868 = vunpack.c.l.b16 %v1047
      %v2869 = vunpack.c.l.b16 %v1048
      %v2870 = vunpack.c.l.b16 %v1049
      %v2871 = vunpack.c.l.b16 %v1050
      %v2872 = vunpack.c.l.b16 %v1051
      %v2873 = vunpack.c.l.b16 %v1052
      %v2874 = vunpack.c.l.b16 %v1053
      %v2875 = vunpack.c.l.b16 %v1054
      %v2876 = vunpack.c.l.b16 %v1055
      %v2877 = vunpack.c.l.b16 %v1056
      %v2878 = vunpack.c.l.b16 %v1057
      %v2879 = vunpack.c.l.b16 %v1058
      %v2880 = vunpack.c.l.b16 %v1059
      %v2881 = vunpack.c.l.b16 %v1060
      %v2882 = vunpack.c.l.b16 %v1061
      %v2883 = vpack.c.b16 %v2100, %v2099
      %v2884 = vpack.c.b16 %v2102, %v2101
      %v2885 = vpack.c.b16 %v2104, %v2103
      %v2886 = vpack.c.b16 %v2106, %v2105
      %v2887 = vpack.c.b16 %v2108, %v2107
      %v2888 = vpack.c.b16 %v2110, %v2109
      %v2889 = vpack.c.b16 %v2112, %v2111
      %v2890 = vpack.c.b16 %v2114, %v2113
      %v2891 = vpack.c.b16 %v2116, %v2115
      %v2892 = vpack.c.b16 %v2118, %v2117
      %v2893 = vpack.c.b16 %v2120, %v2119
      %v2894 = vpack.c.b16 %v2122, %v2121
      %v2895 = vpack.c.b16 %v2124, %v2123
      %v2896 = vpack.c.b16 %v2126, %v2125
      %v2897 = vpack.c.b16 %v2128, %v2127
      %v2898 = vpack.c.b16 %v2130, %v2129
      %v2899 = vpack.c.b16 %v2132, %v2131
      %v2900 = vpack.c.b16 %v2134, %v2133
      %v2901 = vpack.c.b16 %v2136, %v2135
      %v2902 = vpack.c.b16 %v2138, %v2137
      %v2903 = vpack.c.b16 %v2140, %v2139
      %v2904 = vpack.c.b16 %v2142, %v2141
      %v2905 = vpack.c.b16 %v2144, %v2143
      %v2906 = vpack.c.b16 %v2146, %v2145
      %v2907 = vpack.c.b16 %v2148, %v2147
      %v2908 = vpack.c.b16 %v2150, %v2149
      %v2909 = vpack.c.b16 %v2152, %v2151
      %v2910 = vpack.c.b16 %v2154, %v2153
      %v2911 = vpack.c.b16 %v2156, %v2155
      %v2912 = vpack.c.b16 %v2158, %v2157
      %v2913 = vpack.c.b16 %v2160, %v2159
      %v2914 = vpack.c.b16 %v2162, %v2161
      %v2915 = vpack.c.b16 %v2164, %v2163
      %v2916 = vpack.c.b16 %v2166, %v2165
      %v2917 = vpack.c.b16 %v2168, %v2167
      %v2918 = vpack.c.b16 %v2170, %v2169
      %v2919 = vpack.c.b16 %v2172, %v2171
      %v2920 = vpack.c.b16 %v2174, %v2173
      %v2921 = vpack.c.b16 %v2176, %v2175
      %v2922 = vpack.c.b16 %v2178, %v2177
      %v2923 = vpack.c.b16 %v2180, %v2179
      %v2924 = vpack.c.b16 %v2182, %v2181
      %v2925 = vpack.c.b16 %v2184, %v2183
      %v2926 = vpack.c.b16 %v2186, %v2185
      %v2927 = vpack.c.b16 %v2188, %v2187
      %v2928 = vpack.c.b16 %v2190, %v2189
      %v2929 = vpack.c.b16 %v2192, %v2191
      %v2930 = vpack.c.b16 %v2194, %v2193
      %v2931 = vpack.c.b16 %v2196, %v2195
      %v2932 = vpack.c.b16 %v2198, %v2197
      %v2933 = vpack.c.b16 %v2200, %v2199
      %v2934 = vpack.c.b16 %v2202, %v2201
      %v2935 = vpack.c.b16 %v2204, %v2203
      %v2936 = vpack.c.b16 %v2206, %v2205
      %v2937 = vpack.c.b16 %v2208, %v2207
      %v2938 = vpack.c.b16 %v2210, %v2209
      %v2939 = vpack.c.b16 %v2212, %v2211
      %v2940 = vpack.c.b16 %v2214, %v2213
      %v2941 = vpack.c.b16 %v2216, %v2215
      %v2942 = vpack.c.b16 %v2218, %v2217
      %v2943 = vpack.c.b16 %v2220, %v2219
      %v2944 = vpack.c.b16 %v2222, %v2221
      %v2945 = vpack.c.b16 %v2224, %v2223
      %v2946 = vpack.c.b16 %v2226, %v2225
      %v2947 = vpack.c.b16 %v2228, %v2227
      %v2948 = vpack.c.b16 %v2230, %v2229
      %v2949 = vpack.c.b16 %v2232, %v2231
      %v2950 = vpack.c.b16 %v2234, %v2233
      %v2951 = vpack.c.b16 %v2236, %v2235
      %v2952 = vpack.c.b16 %v2238, %v2237
      %v2953 = vpack.c.b16 %v2240, %v2239
      %v2954 = vpack.c.b16 %v2242, %v2241
      %v2955 = vpack.c.b16 %v2244, %v2243
      %v2956 = vpack.c.b16 %v2246, %v2245
      %v2957 = vpack.c.b16 %v2248, %v2247
      %v2958 = vpack.c.b16 %v2250, %v2249
      %v2959 = vpack.c.b16 %v2252, %v2251
      %v2960 = vpack.c.b16 %v2254, %v2253
      %v2961 = vpack.c.b16 %v2256, %v2255
      %v2962 = vpack.c.b16 %v2258, %v2257
      %v2963 = vpack.c.b16 %v2260, %v2259
      %v2964 = vpack.c.b16 %v2262, %v2261
      %v2965 = vpack.c.b16 %v2264, %v2263
      %v2966 = vpack.c.b16 %v2266, %v2265
      %v2967 = vpack.c.b16 %v2268, %v2267
      %v2968 = vpack.c.b16 %v2270, %v2269
      %v2969 = vpack.c.b16 %v2272, %v2271
      %v2970 = vpack.c.b16 %v2274, %v2273
      %v2971 = vpack.c.b16 %v2276, %v2275
      %v2972 = vpack.c.b16 %v2278, %v2277
      %v2973 = vpack.c.b16 %v2280, %v2279
      %v2974 = vpack.c.b16 %v2282, %v2281
      %v2975 = vpack.c.b16 %v2284, %v2283
      %v2976 = vpack.c.b16 %v2286, %v2285
      %v2977 = vpack.c.b16 %v2288, %v2287
      %v2978 = vpack.c.b16 %v2290, %v2289
      %v2979 = vpack.c.b16 %v2292, %v2291
      %v2980 = vpack.c.b16 %v2294, %v2293
      %v2981 = vpack.c.b16 %v2296, %v2295
      %v2982 = vpack.c.b16 %v2298, %v2297
      %v2983 = vpack.c.b16 %v2300, %v2299
      %v2984 = vpack.c.b16 %v2302, %v2301
      %v2985 = vpack.c.b16 %v2304, %v2303
      %v2986 = vpack.c.b16 %v2306, %v2305
      %v2987 = vpack.c.b16 %v2308, %v2307
      %v2988 = vpack.c.b16 %v2310, %v2309
      %v2989 = vpack.c.b16 %v2312, %v2311
      %v2990 = vpack.c.b16 %v2314, %v2313
      %v2991 = vpack.c.b16 %v2316, %v2315
      %v2992 = vpack.c.b16 %v2318, %v2317
      %v2993 = vpack.c.b16 %v2320, %v2319
      %v2994 = vpack.c.b16 %v2322, %v2321
      %v2995 = vpack.c.b16 %v2324, %v2323
      %v2996 = vpack.c.b16 %v2326, %v2325
      %v2997 = vpack.c.b16 %v2328, %v2327
      %v2998 = vpack.c.b16 %v2330, %v2329
      %v2999 = vpack.c.b16 %v2332, %v2331
      %v3000 = vpack.c.b16 %v2334, %v2333
      %v3001 = vpack.c.b16 %v2336, %v2335
      %v3002 = vpack.c.b16 %v2338, %v2337
      %v3003 = vpack.c.b16 %v2340, %v2339
      %v3004 = vpack.c.b16 %v2342, %v2341
      %v3005 = vpack.c.b16 %v2344, %v2343
      %v3006 = vpack.c.b16 %v2346, %v2345
      %v3007 = vpack.c.b16 %v2348, %v2347
      %v3008 = vpack.c.b16 %v2350, %v2349
      %v3009 = vpack.c.b16 %v2352, %v2351
      %v3010 = vpack.c.b16 %v2354, %v2353
      %v3011 = vpack.c.b16 %v2356, %v2355
      %v3012 = vpack.c.b16 %v2358, %v2357
      %v3013 = vpack.c.b16 %v2360, %v2359
      %v3014 = vpack.c.b16 %v2362, %v2361
      %v3015 = vpack.c.b16 %v2364, %v2363
      %v3016 = vpack.c.b16 %v2366, %v2365
      %v3017 = vpack.c.b16 %v2368, %v2367
      %v3018 = vpack.c.b16 %v2370, %v2369
      %v3019 = vpack.c.b16 %v2372, %v2371
      %v3020 = vpack.c.b16 %v2374, %v2373
      %v3021 = vpack.c.b16 %v2376, %v2375
      %v3022 = vpack.c.b16 %v2378, %v2377
      %v3023 = vpack.c.b16 %v2380, %v2379
      %v3024 = vpack.c.b16 %v2382, %v2381
      %v3025 = vpack.c.b16 %v2384, %v2383
      %v3026 = vpack.c.b16 %v2386, %v2385
      %v3027 = vpack.c.b16 %v2388, %v2387
      %v3028 = vpack.c.b16 %v2390, %v2389
      %v3029 = vpack.c.b16 %v2392, %v2391
      %v3030 = vpack.c.b16 %v2394, %v2393
      %v3031 = vpack.c.b16 %v2396, %v2395
      %v3032 = vpack.c.b16 %v2398, %v2397
      %v3033 = vpack.c.b16 %v2400, %v2399
      %v3034 = vpack.c.b16 %v2402, %v2401
      %v3035 = vpack.c.b16 %v2404, %v2403
      %v3036 = vpack.c.b16 %v2406, %v2405
      %v3037 = vpack.c.b16 %v2408, %v2407
      %v3038 = vpack.c.b16 %v2410, %v2409
      %v3039 = vpack.c.b16 %v2412, %v2411
      %v3040 = vpack.c.b16 %v2414, %v2413
      %v3041 = vpack.c.b16 %v2416, %v2415
      %v3042 = vpack.c.b16 %v2418, %v2417
      %v3043 = vpack.c.b16 %v2420, %v2419
      %v3044 = vpack.c.b16 %v2422, %v2421
      %v3045 = vpack.c.b16 %v2424, %v2423
      %v3046 = vpack.c.b16 %v2426, %v2425
      %v3047 = vpack.c.b16 %v2428, %v2427
      %v3048 = vpack.c.b16 %v2430, %v2429
      %v3049 = vpack.c.b16 %v2432, %v2431
      %v3050 = vpack.c.b16 %v2434, %v2433
      %v3051 = vpack.c.b16 %v2436, %v2435
      %v3052 = vpack.c.b16 %v2438, %v2437
      %v3053 = vpack.c.b16 %v2440, %v2439
      %v3054 = vpack.c.b16 %v2442, %v2441
      %v3055 = vpack.c.b16 %v2444, %v2443
      %v3056 = vpack.c.b16 %v2446, %v2445
      %v3057 = vpack.c.b16 %v2448, %v2447
      %v3058 = vpack.c.b16 %v2450, %v2449
      %v3059 = vpack.c.b16 %v2452, %v2451
      %v3060 = vpack.c.b16 %v2454, %v2453
      %v3061 = vpack.c.b16 %v2456, %v2455
      %v3062 = vpack.c.b16 %v2458, %v2457
      %v3063 = vpack.c.b16 %v2460, %v2459
      %v3064 = vpack.c.b16 %v2462, %v2461
      %v3065 = vpack.c.b16 %v2464, %v2463
      %v3066 = vpack.c.b16 %v2466, %v2465
      %v3067 = vpack.c.b16 %v2468, %v2467
      %v3068 = vpack.c.b16 %v2470, %v2469
      %v3069 = vpack.c.b16 %v2472, %v2471
      %v3070 = vpack.c.b16 %v2474, %v2473
      %v3071 = vpack.c.b16 %v2476, %v2475
      %v3072 = vpack.c.b16 %v2478, %v2477
      %v3073 = vpack.c.b16 %v2480, %v2479
      %v3074 = vpack.c.b16 %v2482, %v2481
      %v3075 = vpack.c.b16 %v2484, %v2483
      %v3076 = vpack.c.b16 %v2486, %v2485
      %v3077 = vpack.c.b16 %v2488, %v2487
      %v3078 = vpack.c.b16 %v2490, %v2489
      %v3079 = vpack.c.b16 %v2492, %v2491
      %v3080 = vpack.c.b16 %v2494, %v2493
      %v3081 = vpack.c.b16 %v2496, %v2495
      %v3082 = vpack.c.b16 %v2498, %v2497
      %v3083 = vpack.c.b16 %v2500, %v2499
      %v3084 = vpack.c.b16 %v2502, %v2501
      %v3085 = vpack.c.b16 %v2504, %v2503
      %v3086 = vpack.c.b16 %v2506, %v2505
      %v3087 = vpack.c.b16 %v2508, %v2507
      %v3088 = vpack.c.b16 %v2510, %v2509
      %v3089 = vpack.c.b16 %v2512, %v2511
      %v3090 = vpack.c.b16 %v2514, %v2513
      %v3091 = vpack.c.b16 %v2516, %v2515
      %v3092 = vpack.c.b16 %v2518, %v2517
      %v3093 = vpack.c.b16 %v2520, %v2519
      %v3094 = vpack.c.b16 %v2522, %v2521
      %v3095 = vpack.c.b16 %v2524, %v2523
      %v3096 = vpack.c.b16 %v2526, %v2525
      %v3097 = vpack.c.b16 %v2528, %v2527
      %v3098 = vpack.c.b16 %v2530, %v2529
      %v3099 = vpack.c.b16 %v2532, %v2531
      %v3100 = vpack.c.b16 %v2534, %v2533
      %v3101 = vpack.c.b16 %v2536, %v2535
      %v3102 = vpack.c.b16 %v2538, %v2537
      %v3103 = vpack.c.b16 %v2540, %v2539
      %v3104 = vpack.c.b16 %v2542, %v2541
      %v3105 = vpack.c.b16 %v2544, %v2543
      %v3106 = vpack.c.b16 %v2546, %v2545
      %v3107 = vpack.c.b16 %v2548, %v2547
      %v3108 = vpack.c.b16 %v2550, %v2549
      %v3109 = vpack.c.b16 %v2552, %v2551
      %v3110 = vpack.c.b16 %v2554, %v2553
      %v3111 = vpack.c.b16 %v2556, %v2555
      %v3112 = vpack.c.b16 %v2558, %v2557
      %v3113 = vpack.c.b16 %v2560, %v2559
      %v3114 = vpack.c.b16 %v2562, %v2561
      %v3115 = vpack.c.b16 %v2564, %v2563
      %v3116 = vpack.c.b16 %v2566, %v2565
      %v3117 = vpack.c.b16 %v2568, %v2567
      %v3118 = vpack.c.b16 %v2570, %v2569
      %v3119 = vpack.c.b16 %v2572, %v2571
      %v3120 = vpack.c.b16 %v2574, %v2573
      %v3121 = vpack.c.b16 %v2576, %v2575
      %v3122 = vpack.c.b16 %v2578, %v2577
      %v3123 = vpack.c.b16 %v2580, %v2579
      %v3124 = vpack.c.b16 %v2582, %v2581
      %v3125 = vpack.c.b16 %v2584, %v2583
      %v3126 = vpack.c.b16 %v2586, %v2585
      %v3127 = vpack.c.b16 %v2588, %v2587
      %v3128 = vpack.c.b16 %v2590, %v2589
      %v3129 = vpack.c.b16 %v2592, %v2591
      %v3130 = vpack.c.b16 %v2594, %v2593
      %v3131 = vpack.c.b16 %v2596, %v2595
      %v3132 = vpack.c.b16 %v2598, %v2597
      %v3133 = vpack.c.b16 %v2600, %v2599
      %v3134 = vpack.c.b16 %v2602, %v2601
      %v3135 = vpack.c.b16 %v2604, %v2603
      %v3136 = vpack.c.b16 %v2606, %v2605
      %v3137 = vpack.c.b16 %v2608, %v2607
      %v3138 = vpack.c.b16 %v2610, %v2609
      %v3139 = vpack.c.b16 %v2612, %v2611
      %v3140 = vpack.c.b16 %v2614, %v2613
      %v3141 = vpack.c.b16 %v2616, %v2615
      %v3142 = vpack.c.b16 %v2618, %v2617
      %v3143 = vpack.c.b16 %v2620, %v2619
      %v3144 = vpack.c.b16 %v2622, %v2621
      %v3145 = vpack.c.b16 %v2624, %v2623
      %v3146 = vpack.c.b16 %v2626, %v2625
      %v3147 = vpack.c.b16 %v2628, %v2627
      %v3148 = vpack.c.b16 %v2630, %v2629
      %v3149 = vpack.c.b16 %v2632, %v2631
      %v3150 = vpack.c.b16 %v2634, %v2633
      %v3151 = vpack.c.b16 %v2636, %v2635
      %v3152 = vpack.c.b16 %v2638, %v2637
      %v3153 = vpack.c.b16 %v2640, %v2639
      %v3154 = vpack.c.b16 %v2642, %v2641
      %v3155 = vpack.c.b16 %v2644, %v2643
      %v3156 = vpack.c.b16 %v2646, %v2645
      %v3157 = vpack.c.b16 %v2648, %v2647
      %v3158 = vpack.c.b16 %v2650, %v2649
      %v3159 = vpack.c.b16 %v2652, %v2651
      %v3160 = vpack.c.b16 %v2654, %v2653
      %v3161 = vpack.c.b16 %v2656, %v2655
      %v3162 = vpack.c.b16 %v2658, %v2657
      %v3163 = vpack.c.b16 %v2660, %v2659
      %v3164 = vpack.c.b16 %v2662, %v2661
      %v3165 = vpack.c.b16 %v2664, %v2663
      %v3166 = vpack.c.b16 %v2666, %v2665
      %v3167 = vpack.c.b16 %v2668, %v2667
      %v3168 = vpack.c.b16 %v2670, %v2669
      %v3169 = vpack.c.b16 %v2672, %v2671
      %v3170 = vpack.c.b16 %v2674, %v2673
      %v3171 = vpack.c.b16 %v2676, %v2675
      %v3172 = vpack.c.b16 %v2678, %v2677
      %v3173 = vpack.c.b16 %v2680, %v2679
      %v3174 = vpack.c.b16 %v2682, %v2681
      %v3175 = vpack.c.b16 %v2684, %v2683
      %v3176 = vpack.c.b16 %v2686, %v2685
      %v3177 = vpack.c.b16 %v2688, %v2687
      %v3178 = vpack.c.b16 %v2690, %v2689
      %v3179 = vpack.c.b16 %v2692, %v2691
      %v3180 = vpack.c.b16 %v2694, %v2693
      %v3181 = vpack.c.b16 %v2696, %v2695
      %v3182 = vpack.c.b16 %v2698, %v2697
      %v3183 = vpack.c.b16 %v2700, %v2699
      %v3184 = vpack.c.b16 %v2702, %v2701
      %v3185 = vpack.c.b16 %v2704, %v2703
      %v3186 = vpack.c.b16 %v2706, %v2705
      %v3187 = vpack.c.b16 %v2708, %v2707
      %v3188 = vpack.c.b16 %v2710, %v2709
      %v3189 = vpack.c.b16 %v2712, %v2711
      %v3190 = vpack.c.b16 %v2714, %v2713
      %v3191 = vpack.c.b16 %v2716, %v2715
      %v3192 = vpack.c.b16 %v2718, %v2717
      %v3193 = vpack.c.b16 %v2720, %v2719
      %v3194 = vpack.c.b16 %v2722, %v2721
      %v3195 = vpack.c.b16 %v2724, %v2723
      %v3196 = vpack.c.b16 %v2726, %v2725
      %v3197 = vpack.c.b16 %v2728, %v2727
      %v3198 = vpack.c.b16 %v2730, %v2729
      %v3199 = vpack.c.b16 %v2732, %v2731
      %v3200 = vpack.c.b16 %v2734, %v2733
      %v3201 = vpack.c.b16 %v2736, %v2735
      %v3202 = vpack.c.b16 %v2738, %v2737
      %v3203 = vpack.c.b16 %v2740, %v2739
      %v3204 = vpack.c.b16 %v2742, %v2741
      %v3205 = vpack.c.b16 %v2744, %v2743
      %v3206 = vpack.c.b16 %v2746, %v2745
      %v3207 = vpack.c.b16 %v2748, %v2747
      %v3208 = vpack.c.b16 %v2750, %v2749
      %v3209 = vpack.c.b16 %v2752, %v2751
      %v3210 = vpack.c.b16 %v2754, %v2753
      %v3211 = vpack.c.b16 %v2756, %v2755
      %v3212 = vpack.c.b16 %v2758, %v2757
      %v3213 = vpack.c.b16 %v2760, %v2759
      %v3214 = vpack.c.b16 %v2762, %v2761
      %v3215 = vpack.c.b16 %v2764, %v2763
      %v3216 = vpack.c.b16 %v2766, %v2765
      %v3217 = vpack.c.b16 %v2768, %v2767
      %v3218 = vpack.c.b16 %v2770, %v2769
      %v3219 = vpack.c.b16 %v2772, %v2771
      %v3220 = vpack.c.b16 %v2774, %v2773
      %v3221 = vpack.c.b16 %v2776, %v2775
      %v3222 = vpack.c.b16 %v2778, %v2777
      %v3223 = vpack.c.b16 %v2780, %v2779
      %v3224 = vpack.c.b16 %v2782, %v2781
      %v3225 = vpack.c.b16 %v2784, %v2783
      %v3226 = vpack.c.b16 %v2786, %v2785
      %v3227 = vpack.c.b16 %v2788, %v2787
      %v3228 = vpack.c.b16 %v2790, %v2789
      %v3229 = vpack.c.b16 %v2792, %v2791
      %v3230 = vpack.c.b16 %v2794, %v2793
      %v3231 = vpack.c.b16 %v2796, %v2795
      %v3232 = vpack.c.b16 %v2798, %v2797
      %v3233 = vpack.c.b16 %v2800, %v2799
      %v3234 = vpack.c.b16 %v2802, %v2801
      %v3235 = vpack.c.b16 %v2804, %v2803
      %v3236 = vpack.c.b16 %v2806, %v2805
      %v3237 = vpack.c.b16 %v2808, %v2807
      %v3238 = vpack.c.b16 %v2810, %v2809
      %v3239 = vpack.c.b16 %v2812, %v2811
      %v3240 = vpack.c.b16 %v2814, %v2813
      %v3241 = vpack.c.b16 %v2816, %v2815
      %v3242 = vpack.c.b16 %v2818, %v2817
      %v3243 = vpack.c.b16 %v2820, %v2819
      %v3244 = vpack.c.b16 %v2822, %v2821
      %v3245 = vpack.c.b16 %v2824, %v2823
      %v3246 = vpack.c.b16 %v2826, %v2825
      %v3247 = vpack.c.b16 %v2828, %v2827
      %v3248 = vpack.c.b16 %v2830, %v2829
      %v3249 = vpack.c.b16 %v2832, %v2831
      %v3250 = vpack.c.b16 %v2834, %v2833
      %v3251 = vpack.c.b16 %v2836, %v2835
      %v3252 = vpack.c.b16 %v2838, %v2837
      %v3253 = vpack.c.b16 %v2840, %v2839
      %v3254 = vpack.c.b16 %v2842, %v2841
      %v3255 = vpack.c.b16 %v2844, %v2843
      %v3256 = vpack.c.b16 %v2846, %v2845
      %v3257 = vpack.c.b16 %v2848, %v2847
      %v3258 = vpack.c.b16 %v2850, %v2849
      %v3259 = vpack.c.b16 %v2852, %v2851
      %v3260 = vpack.c.b16 %v2854, %v2853
      %v3261 = vpack.c.b16 %v2856, %v2855
      %v3262 = vpack.c.b16 %v2858, %v2857
      %v3263 = vpack.c.b16 %v2860, %v2859
      %v3264 = vpack.c.b16 %v2862, %v2861
      %v3265 = vpack.c.b16 %v2864, %v2863
      %v3266 = vpack.c.b16 %v2866, %v2865
      %v3267 = vpack.c.b16 %v2868, %v2867
      %v3268 = vpack.c.b16 %v2870, %v2869
      %v3269 = vpack.c.b16 %v2872, %v2871
      %v3270 = vpack.c.b16 %v2874, %v2873
      %v3271 = vpack.c.b16 %v2876, %v2875
      %v3272 = vpack.c.b16 %v2878, %v2877
      %v3273 = vpack.c.b16 %v2880, %v2879
      %v3274 = vpack.c.b16 %v2882, %v2881
      %3667 = vmatprep.subr.bf16.mxu0 0
      %3668 = vmatpush1.bf16.msra.mxu0 %v2890
      %3669 = vmatprep.subr.bf16.mxu0 0
      %3670 = vmatpush1.bf16.msra.mxu0 %v2889
      %3671 = vmatprep.subr.bf16.mxu0 0
      %3672 = vmatpush1.bf16.msra.mxu0 %v2888
      %3673 = vmatprep.subr.bf16.mxu0 0
      %3674 = vmatpush1.bf16.msra.mxu0 %v2887
      %3675 = vmatprep.subr.bf16.mxu0 0
      %3676 = vmatpush1.bf16.msra.mxu0 %v2886
      %3677 = vmatprep.subr.bf16.mxu0 0
      %3678 = vmatpush1.bf16.msra.mxu0 %v2885
      %3679 = vmatprep.subr.bf16.mxu0 0
      %3680 = vmatpush1.bf16.msra.mxu0 %v2884
      %3681 = vmatprep.subr.bf16.mxu0 0
      %3682 = vmatpush1.bf16.msra.mxu0 %v2883
      %3683 = vmatprep.subr.bf16.mxu0 0
      %3684 = vmatpush2.bf16.msra.mxu0 %v2898
      %3685 = vmatprep.subr.bf16.mxu0 0
      %3686 = vmatpush2.bf16.msra.mxu0 %v2897
      %3687 = vmatprep.subr.bf16.mxu0 0
      %3688 = vmatpush2.bf16.msra.mxu0 %v2896
      %3689 = vmatprep.subr.bf16.mxu0 0
      %3690 = vmatpush2.bf16.msra.mxu0 %v2895
      %3691 = vmatprep.subr.bf16.mxu0 0
      %3692 = vmatpush2.bf16.msra.mxu0 %v2894
      %3693 = vmatprep.subr.bf16.mxu0 0
      %3694 = vmatpush2.bf16.msra.mxu0 %v2893
      %3695 = vmatprep.subr.bf16.mxu0 0
      %3696 = vmatpush2.bf16.msra.mxu0 %v2892
      %3697 = vmatprep.subr.bf16.mxu0 0
      %3698 = vmatpush2.bf16.msra.mxu0 %v2891
      %3699 = vmatprep.mubr.bf16.mxu0 %v1218
      %3700 = vmatmul.mubr.bf16.gmra.mxu0 %v1217
      %v3701 = vpop.f32.mrf.mxu0
      %v3702 = vadd.f32 %v1067, %v3701
      %v3703 = vpop.f32.mrf.mxu0
      %v3704 = vpop.f32.mrf.mxu0
      %v3705 = vadd.f32 %v1067, %v3704
      %v3706 = vpop.f32.mrf.mxu0
      %3707 = vdwg.mxu0
      %3708 = vmatprep.subr.bf16.mxu0 0
      %3709 = vmatpush1.bf16.msra.mxu0 %v2906
      %3710 = vmatprep.subr.bf16.mxu0 0
      %3711 = vmatpush1.bf16.msra.mxu0 %v2905
      %3712 = vmatprep.subr.bf16.mxu0 0
      %3713 = vmatpush1.bf16.msra.mxu0 %v2904
      %3714 = vmatprep.subr.bf16.mxu0 0
      %3715 = vmatpush1.bf16.msra.mxu0 %v2903
      %3716 = vmatprep.subr.bf16.mxu0 0
      %3717 = vmatpush1.bf16.msra.mxu0 %v2902
      %3718 = vmatprep.subr.bf16.mxu0 0
      %3719 = vmatpush1.bf16.msra.mxu0 %v2901
      %3720 = vmatprep.subr.bf16.mxu0 0
      %3721 = vmatpush1.bf16.msra.mxu0 %v2900
      %3722 = vmatprep.subr.bf16.mxu0 0
      %3723 = vmatpush1.bf16.msra.mxu0 %v2899
      %3724 = vmatprep.subr.bf16.mxu0 0
      %3725 = vmatpush2.bf16.msra.mxu0 %v2914
      %3726 = vmatprep.subr.bf16.mxu0 0
      %3727 = vmatpush2.bf16.msra.mxu0 %v2913
      %3728 = vmatprep.subr.bf16.mxu0 0
      %3729 = vmatpush2.bf16.msra.mxu0 %v2912
      %3730 = vmatprep.subr.bf16.mxu0 0
      %3731 = vmatpush2.bf16.msra.mxu0 %v2911
      %3732 = vmatprep.subr.bf16.mxu0 0
      %3733 = vmatpush2.bf16.msra.mxu0 %v2910
      %3734 = vmatprep.subr.bf16.mxu0 0
      %3735 = vmatpush2.bf16.msra.mxu0 %v2909
      %3736 = vmatprep.subr.bf16.mxu0 0
      %3737 = vmatpush2.bf16.msra.mxu0 %v2908
      %3738 = vmatprep.subr.bf16.mxu0 0
      %3739 = vmatpush2.bf16.msra.mxu0 %v2907
      %3740 = vmatprep.mubr.bf16.mxu0 %v1220
      %3741 = vmatmul.mubr.bf16.gmra.mxu0 %v1219
      %v3742 = vpop.f32.mrf.mxu0
      %v3743 = vadd.f32 %v3702, %v3742
      %v3744 = vpop.f32.mrf.mxu0
      %v3745 = vpop.f32.mrf.mxu0
      %v3746 = vadd.f32 %v3705, %v3745
      %v3747 = vpop.f32.mrf.mxu0
      %3748 = vdwg.mxu0
      %3749 = vmatprep.subr.bf16.mxu0 0
      %3750 = vmatpush1.bf16.msra.mxu0 %v2922
      %3751 = vmatprep.subr.bf16.mxu0 0
      %3752 = vmatpush1.bf16.msra.mxu0 %v2921
      %3753 = vmatprep.subr.bf16.mxu0 0
      %3754 = vmatpush1.bf16.msra.mxu0 %v2920
      %3755 = vmatprep.subr.bf16.mxu0 0
      %3756 = vmatpush1.bf16.msra.mxu0 %v2919
      %3757 = vmatprep.subr.bf16.mxu0 0
      %3758 = vmatpush1.bf16.msra.mxu0 %v2918
      %3759 = vmatprep.subr.bf16.mxu0 0
      %3760 = vmatpush1.bf16.msra.mxu0 %v2917
      %3761 = vmatprep.subr.bf16.mxu0 0
      %3762 = vmatpush1.bf16.msra.mxu0 %v2916
      %3763 = vmatprep.subr.bf16.mxu0 0
      %3764 = vmatpush1.bf16.msra.mxu0 %v2915
      %3765 = vmatprep.subr.bf16.mxu0 0
      %3766 = vmatpush2.bf16.msra.mxu0 %v2930
      %3767 = vmatprep.subr.bf16.mxu0 0
      %3768 = vmatpush2.bf16.msra.mxu0 %v2929
      %3769 = vmatprep.subr.bf16.mxu0 0
      %3770 = vmatpush2.bf16.msra.mxu0 %v2928
      %3771 = vmatprep.subr.bf16.mxu0 0
      %3772 = vmatpush2.bf16.msra.mxu0 %v2927
      %3773 = vmatprep.subr.bf16.mxu0 0
      %3774 = vmatpush2.bf16.msra.mxu0 %v2926
      %3775 = vmatprep.subr.bf16.mxu0 0
      %3776 = vmatpush2.bf16.msra.mxu0 %v2925
      %3777 = vmatprep.subr.bf16.mxu0 0
      %3778 = vmatpush2.bf16.msra.mxu0 %v2924
      %3779 = vmatprep.subr.bf16.mxu0 0
      %3780 = vmatpush2.bf16.msra.mxu0 %v2923
      %3781 = vmatprep.mubr.bf16.mxu0 %v1222
      %3782 = vmatmul.mubr.bf16.gmra.mxu0 %v1221
      %v3783 = vpop.f32.mrf.mxu0
      %v3784 = vadd.f32 %v3743, %v3783
      %v3785 = vpop.f32.mrf.mxu0
      %v3786 = vpop.f32.mrf.mxu0
      %v3787 = vadd.f32 %v3746, %v3786
      %v3788 = vpop.f32.mrf.mxu0
      %3789 = vdwg.mxu0
      %3790 = vmatprep.subr.bf16.mxu0 0
      %3791 = vmatpush1.bf16.msra.mxu0 %v2938
      %3792 = vmatprep.subr.bf16.mxu0 0
      %3793 = vmatpush1.bf16.msra.mxu0 %v2937
      %3794 = vmatprep.subr.bf16.mxu0 0
      %3795 = vmatpush1.bf16.msra.mxu0 %v2936
      %3796 = vmatprep.subr.bf16.mxu0 0
      %3797 = vmatpush1.bf16.msra.mxu0 %v2935
      %3798 = vmatprep.subr.bf16.mxu0 0
      %3799 = vmatpush1.bf16.msra.mxu0 %v2934
      %3800 = vmatprep.subr.bf16.mxu0 0
      %3801 = vmatpush1.bf16.msra.mxu0 %v2933
      %3802 = vmatprep.subr.bf16.mxu0 0
      %3803 = vmatpush1.bf16.msra.mxu0 %v2932
      %3804 = vmatprep.subr.bf16.mxu0 0
      %3805 = vmatpush1.bf16.msra.mxu0 %v2931
      %3806 = vmatprep.subr.bf16.mxu0 0
      %3807 = vmatpush2.bf16.msra.mxu0 %v2946
      %3808 = vmatprep.subr.bf16.mxu0 0
      %3809 = vmatpush2.bf16.msra.mxu0 %v2945
      %3810 = vmatprep.subr.bf16.mxu0 0
      %3811 = vmatpush2.bf16.msra.mxu0 %v2944
      %3812 = vmatprep.subr.bf16.mxu0 0
      %3813 = vmatpush2.bf16.msra.mxu0 %v2943
      %3814 = vmatprep.subr.bf16.mxu0 0
      %3815 = vmatpush2.bf16.msra.mxu0 %v2942
      %3816 = vmatprep.subr.bf16.mxu0 0
      %3817 = vmatpush2.bf16.msra.mxu0 %v2941
      %3818 = vmatprep.subr.bf16.mxu0 0
      %3819 = vmatpush2.bf16.msra.mxu0 %v2940
      %3820 = vmatprep.subr.bf16.mxu0 0
      %3821 = vmatpush2.bf16.msra.mxu0 %v2939
      %3822 = vmatprep.mubr.bf16.mxu0 %v1224
      %3823 = vmatmul.mubr.bf16.gmra.mxu0 %v1223
      %v3824 = vpop.f32.mrf.mxu0
      %v3825 = vadd.f32 %v3784, %v3824
      %v3826 = vpop.f32.mrf.mxu0
      %v3827 = vpop.f32.mrf.mxu0
      %v3828 = vadd.f32 %v3787, %v3827
      %v3829 = vpop.f32.mrf.mxu0
      %3830 = vdwg.mxu0
      %3831 = vmatprep.subr.bf16.mxu0 0
      %3832 = vmatpush1.bf16.msra.mxu0 %v2954
      %3833 = vmatprep.subr.bf16.mxu0 0
      %3834 = vmatpush1.bf16.msra.mxu0 %v2953
      %3835 = vmatprep.subr.bf16.mxu0 0
      %3836 = vmatpush1.bf16.msra.mxu0 %v2952
      %3837 = vmatprep.subr.bf16.mxu0 0
      %3838 = vmatpush1.bf16.msra.mxu0 %v2951
      %3839 = vmatprep.subr.bf16.mxu0 0
      %3840 = vmatpush1.bf16.msra.mxu0 %v2950
      %3841 = vmatprep.subr.bf16.mxu0 0
      %3842 = vmatpush1.bf16.msra.mxu0 %v2949
      %3843 = vmatprep.subr.bf16.mxu0 0
      %3844 = vmatpush1.bf16.msra.mxu0 %v2948
      %3845 = vmatprep.subr.bf16.mxu0 0
      %3846 = vmatpush1.bf16.msra.mxu0 %v2947
      %3847 = vmatprep.subr.bf16.mxu0 0
      %3848 = vmatpush2.bf16.msra.mxu0 %v2962
      %3849 = vmatprep.subr.bf16.mxu0 0
      %3850 = vmatpush2.bf16.msra.mxu0 %v2961
      %3851 = vmatprep.subr.bf16.mxu0 0
      %3852 = vmatpush2.bf16.msra.mxu0 %v2960
      %3853 = vmatprep.subr.bf16.mxu0 0
      %3854 = vmatpush2.bf16.msra.mxu0 %v2959
      %3855 = vmatprep.subr.bf16.mxu0 0
      %3856 = vmatpush2.bf16.msra.mxu0 %v2958
      %3857 = vmatprep.subr.bf16.mxu0 0
      %3858 = vmatpush2.bf16.msra.mxu0 %v2957
      %3859 = vmatprep.subr.bf16.mxu0 0
      %3860 = vmatpush2.bf16.msra.mxu0 %v2956
      %3861 = vmatprep.subr.bf16.mxu0 0
      %3862 = vmatpush2.bf16.msra.mxu0 %v2955
      %3863 = vmatprep.mubr.bf16.mxu0 %v1226
      %3864 = vmatmul.mubr.bf16.gmra.mxu0 %v1225
      %v3865 = vpop.f32.mrf.mxu0
      %v3866 = vadd.f32 %v3825, %v3865
      %v3867 = vpop.f32.mrf.mxu0
      %v3868 = vpop.f32.mrf.mxu0
      %v3869 = vadd.f32 %v3828, %v3868
      %v3870 = vpop.f32.mrf.mxu0
      %3871 = vdwg.mxu0
      %3872 = vmatprep.subr.bf16.mxu0 0
      %3873 = vmatpush1.bf16.msra.mxu0 %v2970
      %3874 = vmatprep.subr.bf16.mxu0 0
      %3875 = vmatpush1.bf16.msra.mxu0 %v2969
      %3876 = vmatprep.subr.bf16.mxu0 0
      %3877 = vmatpush1.bf16.msra.mxu0 %v2968
      %3878 = vmatprep.subr.bf16.mxu0 0
      %3879 = vmatpush1.bf16.msra.mxu0 %v2967
      %3880 = vmatprep.subr.bf16.mxu0 0
      %3881 = vmatpush1.bf16.msra.mxu0 %v2966
      %3882 = vmatprep.subr.bf16.mxu0 0
      %3883 = vmatpush1.bf16.msra.mxu0 %v2965
      %3884 = vmatprep.subr.bf16.mxu0 0
      %3885 = vmatpush1.bf16.msra.mxu0 %v2964
      %3886 = vmatprep.subr.bf16.mxu0 0
      %3887 = vmatpush1.bf16.msra.mxu0 %v2963
      %3888 = vmatprep.subr.bf16.mxu0 0
      %3889 = vmatpush2.bf16.msra.mxu0 %v2978
      %3890 = vmatprep.subr.bf16.mxu0 0
      %3891 = vmatpush2.bf16.msra.mxu0 %v2977
      %3892 = vmatprep.subr.bf16.mxu0 0
      %3893 = vmatpush2.bf16.msra.mxu0 %v2976
      %3894 = vmatprep.subr.bf16.mxu0 0
      %3895 = vmatpush2.bf16.msra.mxu0 %v2975
      %3896 = vmatprep.subr.bf16.mxu0 0
      %3897 = vmatpush2.bf16.msra.mxu0 %v2974
      %3898 = vmatprep.subr.bf16.mxu0 0
      %3899 = vmatpush2.bf16.msra.mxu0 %v2973
      %3900 = vmatprep.subr.bf16.mxu0 0
      %3901 = vmatpush2.bf16.msra.mxu0 %v2972
      %3902 = vmatprep.subr.bf16.mxu0 0
      %3903 = vmatpush2.bf16.msra.mxu0 %v2971
      %3904 = vmatprep.mubr.bf16.mxu0 %v1228
      %3905 = vmatmul.mubr.bf16.gmra.mxu0 %v1227
      %v3906 = vpop.f32.mrf.mxu0
      %v3907 = vadd.f32 %v3866, %v3906
      %v3908 = vpop.f32.mrf.mxu0
      %v3909 = vpop.f32.mrf.mxu0
      %v3910 = vadd.f32 %v3869, %v3909
      %v3911 = vpop.f32.mrf.mxu0
      %3912 = vdwg.mxu0
      %3913 = vmatprep.subr.bf16.mxu0 0
      %3914 = vmatpush1.bf16.msra.mxu0 %v2986
      %3915 = vmatprep.subr.bf16.mxu0 0
      %3916 = vmatpush1.bf16.msra.mxu0 %v2985
      %3917 = vmatprep.subr.bf16.mxu0 0
      %3918 = vmatpush1.bf16.msra.mxu0 %v2984
      %3919 = vmatprep.subr.bf16.mxu0 0
      %3920 = vmatpush1.bf16.msra.mxu0 %v2983
      %3921 = vmatprep.subr.bf16.mxu0 0
      %3922 = vmatpush1.bf16.msra.mxu0 %v2982
      %3923 = vmatprep.subr.bf16.mxu0 0
      %3924 = vmatpush1.bf16.msra.mxu0 %v2981
      %3925 = vmatprep.subr.bf16.mxu0 0
      %3926 = vmatpush1.bf16.msra.mxu0 %v2980
      %3927 = vmatprep.subr.bf16.mxu0 0
      %3928 = vmatpush1.bf16.msra.mxu0 %v2979
      %3929 = vmatprep.subr.bf16.mxu0 0
      %3930 = vmatpush2.bf16.msra.mxu0 %v2994
      %3931 = vmatprep.subr.bf16.mxu0 0
      %3932 = vmatpush2.bf16.msra.mxu0 %v2993
      %3933 = vmatprep.subr.bf16.mxu0 0
      %3934 = vmatpush2.bf16.msra.mxu0 %v2992
      %3935 = vmatprep.subr.bf16.mxu0 0
      %3936 = vmatpush2.bf16.msra.mxu0 %v2991
      %3937 = vmatprep.subr.bf16.mxu0 0
      %3938 = vmatpush2.bf16.msra.mxu0 %v2990
      %3939 = vmatprep.subr.bf16.mxu0 0
      %3940 = vmatpush2.bf16.msra.mxu0 %v2989
      %3941 = vmatprep.subr.bf16.mxu0 0
      %3942 = vmatpush2.bf16.msra.mxu0 %v2988
      %3943 = vmatprep.subr.bf16.mxu0 0
      %3944 = vmatpush2.bf16.msra.mxu0 %v2987
      %3945 = vmatprep.mubr.bf16.mxu0 %v1230
      %3946 = vmatmul.mubr.bf16.gmra.mxu0 %v1229
      %v3947 = vpop.f32.mrf.mxu0
      %v3948 = vadd.f32 %v3907, %v3947
      %v3949 = vpop.f32.mrf.mxu0
      %v3950 = vpop.f32.mrf.mxu0
      %v3951 = vadd.f32 %v3910, %v3950
      %v3952 = vpop.f32.mrf.mxu0
      %3953 = vdwg.mxu0
      %3954 = vmatprep.subr.bf16.mxu0 0
      %3955 = vmatpush1.bf16.msra.mxu0 %v3002
      %3956 = vmatprep.subr.bf16.mxu0 0
      %3957 = vmatpush1.bf16.msra.mxu0 %v3001
      %3958 = vmatprep.subr.bf16.mxu0 0
      %3959 = vmatpush1.bf16.msra.mxu0 %v3000
      %3960 = vmatprep.subr.bf16.mxu0 0
      %3961 = vmatpush1.bf16.msra.mxu0 %v2999
      %3962 = vmatprep.subr.bf16.mxu0 0
      %3963 = vmatpush1.bf16.msra.mxu0 %v2998
      %3964 = vmatprep.subr.bf16.mxu0 0
      %3965 = vmatpush1.bf16.msra.mxu0 %v2997
      %3966 = vmatprep.subr.bf16.mxu0 0
      %3967 = vmatpush1.bf16.msra.mxu0 %v2996
      %3968 = vmatprep.subr.bf16.mxu0 0
      %3969 = vmatpush1.bf16.msra.mxu0 %v2995
      %3970 = vmatprep.subr.bf16.mxu0 0
      %3971 = vmatpush2.bf16.msra.mxu0 %v3010
      %3972 = vmatprep.subr.bf16.mxu0 0
      %3973 = vmatpush2.bf16.msra.mxu0 %v3009
      %3974 = vmatprep.subr.bf16.mxu0 0
      %3975 = vmatpush2.bf16.msra.mxu0 %v3008
      %3976 = vmatprep.subr.bf16.mxu0 0
      %3977 = vmatpush2.bf16.msra.mxu0 %v3007
      %3978 = vmatprep.subr.bf16.mxu0 0
      %3979 = vmatpush2.bf16.msra.mxu0 %v3006
      %3980 = vmatprep.subr.bf16.mxu0 0
      %3981 = vmatpush2.bf16.msra.mxu0 %v3005
      %3982 = vmatprep.subr.bf16.mxu0 0
      %3983 = vmatpush2.bf16.msra.mxu0 %v3004
      %3984 = vmatprep.subr.bf16.mxu0 0
      %3985 = vmatpush2.bf16.msra.mxu0 %v3003
      %3986 = vmatprep.mubr.bf16.mxu0 %v1232
      %3987 = vmatmul.mubr.bf16.gmra.mxu0 %v1231
      %v3988 = vpop.f32.mrf.mxu0
      %v3989 = vadd.f32 %v3948, %v3988
      %v3990 = vpop.f32.mrf.mxu0
      %v3991 = vpop.f32.mrf.mxu0
      %v3992 = vadd.f32 %v3951, %v3991
      %v3993 = vpop.f32.mrf.mxu0
      %3994 = vdwg.mxu0
      %3995 = vmatprep.subr.bf16.mxu0 0
      %3996 = vmatpush1.bf16.msra.mxu0 %v3018
      %3997 = vmatprep.subr.bf16.mxu0 0
      %3998 = vmatpush1.bf16.msra.mxu0 %v3017
      %3999 = vmatprep.subr.bf16.mxu0 0
      %4000 = vmatpush1.bf16.msra.mxu0 %v3016
      %4001 = vmatprep.subr.bf16.mxu0 0
      %4002 = vmatpush1.bf16.msra.mxu0 %v3015
      %4003 = vmatprep.subr.bf16.mxu0 0
      %4004 = vmatpush1.bf16.msra.mxu0 %v3014
      %4005 = vmatprep.subr.bf16.mxu0 0
      %4006 = vmatpush1.bf16.msra.mxu0 %v3013
      %4007 = vmatprep.subr.bf16.mxu0 0
      %4008 = vmatpush1.bf16.msra.mxu0 %v3012
      %4009 = vmatprep.subr.bf16.mxu0 0
      %4010 = vmatpush1.bf16.msra.mxu0 %v3011
      %4011 = vmatprep.subr.bf16.mxu0 0
      %4012 = vmatpush2.bf16.msra.mxu0 %v3026
      %4013 = vmatprep.subr.bf16.mxu0 0
      %4014 = vmatpush2.bf16.msra.mxu0 %v3025
      %4015 = vmatprep.subr.bf16.mxu0 0
      %4016 = vmatpush2.bf16.msra.mxu0 %v3024
      %4017 = vmatprep.subr.bf16.mxu0 0
      %4018 = vmatpush2.bf16.msra.mxu0 %v3023
      %4019 = vmatprep.subr.bf16.mxu0 0
      %4020 = vmatpush2.bf16.msra.mxu0 %v3022
      %4021 = vmatprep.subr.bf16.mxu0 0
      %4022 = vmatpush2.bf16.msra.mxu0 %v3021
      %4023 = vmatprep.subr.bf16.mxu0 0
      %4024 = vmatpush2.bf16.msra.mxu0 %v3020
      %4025 = vmatprep.subr.bf16.mxu0 0
      %4026 = vmatpush2.bf16.msra.mxu0 %v3019
      %4027 = vmatprep.mubr.bf16.mxu0 %v1234
      %4028 = vmatmul.mubr.bf16.gmra.mxu0 %v1233
      %v4029 = vpop.f32.mrf.mxu0
      %v4030 = vadd.f32 %v3989, %v4029
      %v4031 = vpop.f32.mrf.mxu0
      %v4032 = vpop.f32.mrf.mxu0
      %v4033 = vadd.f32 %v3992, %v4032
      %v4034 = vpop.f32.mrf.mxu0
      %4035 = vdwg.mxu0
      %4036 = vmatprep.subr.bf16.mxu0 0
      %4037 = vmatpush1.bf16.msra.mxu0 %v3034
      %4038 = vmatprep.subr.bf16.mxu0 0
      %4039 = vmatpush1.bf16.msra.mxu0 %v3033
      %4040 = vmatprep.subr.bf16.mxu0 0
      %4041 = vmatpush1.bf16.msra.mxu0 %v3032
      %4042 = vmatprep.subr.bf16.mxu0 0
      %4043 = vmatpush1.bf16.msra.mxu0 %v3031
      %4044 = vmatprep.subr.bf16.mxu0 0
      %4045 = vmatpush1.bf16.msra.mxu0 %v3030
      %4046 = vmatprep.subr.bf16.mxu0 0
      %4047 = vmatpush1.bf16.msra.mxu0 %v3029
      %4048 = vmatprep.subr.bf16.mxu0 0
      %4049 = vmatpush1.bf16.msra.mxu0 %v3028
      %4050 = vmatprep.subr.bf16.mxu0 0
      %4051 = vmatpush1.bf16.msra.mxu0 %v3027
      %4052 = vmatprep.subr.bf16.mxu0 0
      %4053 = vmatpush2.bf16.msra.mxu0 %v3042
      %4054 = vmatprep.subr.bf16.mxu0 0
      %4055 = vmatpush2.bf16.msra.mxu0 %v3041
      %4056 = vmatprep.subr.bf16.mxu0 0
      %4057 = vmatpush2.bf16.msra.mxu0 %v3040
      %4058 = vmatprep.subr.bf16.mxu0 0
      %4059 = vmatpush2.bf16.msra.mxu0 %v3039
      %4060 = vmatprep.subr.bf16.mxu0 0
      %4061 = vmatpush2.bf16.msra.mxu0 %v3038
      %4062 = vmatprep.subr.bf16.mxu0 0
      %4063 = vmatpush2.bf16.msra.mxu0 %v3037
      %4064 = vmatprep.subr.bf16.mxu0 0
      %4065 = vmatpush2.bf16.msra.mxu0 %v3036
      %4066 = vmatprep.subr.bf16.mxu0 0
      %4067 = vmatpush2.bf16.msra.mxu0 %v3035
      %4068 = vmatprep.mubr.bf16.mxu0 %v1236
      %4069 = vmatmul.mubr.bf16.gmra.mxu0 %v1235
      %v4070 = vpop.f32.mrf.mxu0
      %v4071 = vadd.f32 %v4030, %v4070
      %v4072 = vpop.f32.mrf.mxu0
      %v4073 = vpop.f32.mrf.mxu0
      %v4074 = vadd.f32 %v4033, %v4073
      %v4075 = vpop.f32.mrf.mxu0
      %4076 = vdwg.mxu0
      %4077 = vmatprep.subr.bf16.mxu0 0
      %4078 = vmatpush1.bf16.msra.mxu0 %v3050
      %4079 = vmatprep.subr.bf16.mxu0 0
      %4080 = vmatpush1.bf16.msra.mxu0 %v3049
      %4081 = vmatprep.subr.bf16.mxu0 0
      %4082 = vmatpush1.bf16.msra.mxu0 %v3048
      %4083 = vmatprep.subr.bf16.mxu0 0
      %4084 = vmatpush1.bf16.msra.mxu0 %v3047
      %4085 = vmatprep.subr.bf16.mxu0 0
      %4086 = vmatpush1.bf16.msra.mxu0 %v3046
      %4087 = vmatprep.subr.bf16.mxu0 0
      %4088 = vmatpush1.bf16.msra.mxu0 %v3045
      %4089 = vmatprep.subr.bf16.mxu0 0
      %4090 = vmatpush1.bf16.msra.mxu0 %v3044
      %4091 = vmatprep.subr.bf16.mxu0 0
      %4092 = vmatpush1.bf16.msra.mxu0 %v3043
      %4093 = vmatprep.subr.bf16.mxu0 0
      %4094 = vmatpush2.bf16.msra.mxu0 %v3058
      %4095 = vmatprep.subr.bf16.mxu0 0
      %4096 = vmatpush2.bf16.msra.mxu0 %v3057
      %4097 = vmatprep.subr.bf16.mxu0 0
      %4098 = vmatpush2.bf16.msra.mxu0 %v3056
      %4099 = vmatprep.subr.bf16.mxu0 0
      %4100 = vmatpush2.bf16.msra.mxu0 %v3055
      %4101 = vmatprep.subr.bf16.mxu0 0
      %4102 = vmatpush2.bf16.msra.mxu0 %v3054
      %4103 = vmatprep.subr.bf16.mxu0 0
      %4104 = vmatpush2.bf16.msra.mxu0 %v3053
      %4105 = vmatprep.subr.bf16.mxu0 0
      %4106 = vmatpush2.bf16.msra.mxu0 %v3052
      %4107 = vmatprep.subr.bf16.mxu0 0
      %4108 = vmatpush2.bf16.msra.mxu0 %v3051
      %4109 = vmatprep.mubr.bf16.mxu0 %v1238
      %4110 = vmatmul.mubr.bf16.gmra.mxu0 %v1237
      %v4111 = vpop.f32.mrf.mxu0
      %v4112 = vadd.f32 %v4071, %v4111
      %v4113 = vpop.f32.mrf.mxu0
      %v4114 = vpop.f32.mrf.mxu0
      %v4115 = vadd.f32 %v4074, %v4114
      %v4116 = vpop.f32.mrf.mxu0
      %4117 = vdwg.mxu0
      %4118 = vmatprep.subr.bf16.mxu0 0
      %4119 = vmatpush1.bf16.msra.mxu0 %v3066
      %4120 = vmatprep.subr.bf16.mxu0 0
      %4121 = vmatpush1.bf16.msra.mxu0 %v3065
      %4122 = vmatprep.subr.bf16.mxu0 0
      %4123 = vmatpush1.bf16.msra.mxu0 %v3064
      %4124 = vmatprep.subr.bf16.mxu0 0
      %4125 = vmatpush1.bf16.msra.mxu0 %v3063
      %4126 = vmatprep.subr.bf16.mxu0 0
      %4127 = vmatpush1.bf16.msra.mxu0 %v3062
      %4128 = vmatprep.subr.bf16.mxu0 0
      %4129 = vmatpush1.bf16.msra.mxu0 %v3061
      %4130 = vmatprep.subr.bf16.mxu0 0
      %4131 = vmatpush1.bf16.msra.mxu0 %v3060
      %4132 = vmatprep.subr.bf16.mxu0 0
      %4133 = vmatpush1.bf16.msra.mxu0 %v3059
      %4134 = vmatprep.subr.bf16.mxu0 0
      %4135 = vmatpush2.bf16.msra.mxu0 %v3074
      %4136 = vmatprep.subr.bf16.mxu0 0
      %4137 = vmatpush2.bf16.msra.mxu0 %v3073
      %4138 = vmatprep.subr.bf16.mxu0 0
      %4139 = vmatpush2.bf16.msra.mxu0 %v3072
      %4140 = vmatprep.subr.bf16.mxu0 0
      %4141 = vmatpush2.bf16.msra.mxu0 %v3071
      %4142 = vmatprep.subr.bf16.mxu0 0
      %4143 = vmatpush2.bf16.msra.mxu0 %v3070
      %4144 = vmatprep.subr.bf16.mxu0 0
      %4145 = vmatpush2.bf16.msra.mxu0 %v3069
      %4146 = vmatprep.subr.bf16.mxu0 0
      %4147 = vmatpush2.bf16.msra.mxu0 %v3068
      %4148 = vmatprep.subr.bf16.mxu0 0
      %4149 = vmatpush2.bf16.msra.mxu0 %v3067
      %4150 = vmatprep.mubr.bf16.mxu0 %v1240
      %4151 = vmatmul.mubr.bf16.gmra.mxu0 %v1239
      %v4152 = vpop.f32.mrf.mxu0
      %v4153 = vadd.f32 %v4112, %v4152
      %v4154 = vpop.f32.mrf.mxu0
      %v4155 = vpop.f32.mrf.mxu0
      %v4156 = vadd.f32 %v4115, %v4155
      %v4157 = vpop.f32.mrf.mxu0
      %4158 = vdwg.mxu0
      %4159 = vmatprep.subr.bf16.mxu0 0
      %4160 = vmatpush1.bf16.msra.mxu0 %v3082
      %4161 = vmatprep.subr.bf16.mxu0 0
      %4162 = vmatpush1.bf16.msra.mxu0 %v3081
      %4163 = vmatprep.subr.bf16.mxu0 0
      %4164 = vmatpush1.bf16.msra.mxu0 %v3080
      %4165 = vmatprep.subr.bf16.mxu0 0
      %4166 = vmatpush1.bf16.msra.mxu0 %v3079
      %4167 = vmatprep.subr.bf16.mxu0 0
      %4168 = vmatpush1.bf16.msra.mxu0 %v3078
      %4169 = vmatprep.subr.bf16.mxu0 0
      %4170 = vmatpush1.bf16.msra.mxu0 %v3077
      %4171 = vmatprep.subr.bf16.mxu0 0
      %4172 = vmatpush1.bf16.msra.mxu0 %v3076
      %4173 = vmatprep.subr.bf16.mxu0 0
      %4174 = vmatpush1.bf16.msra.mxu0 %v3075
      %4175 = vmatprep.subr.bf16.mxu0 0
      %4176 = vmatpush2.bf16.msra.mxu0 %v3090
      %4177 = vmatprep.subr.bf16.mxu0 0
      %4178 = vmatpush2.bf16.msra.mxu0 %v3089
      %4179 = vmatprep.subr.bf16.mxu0 0
      %4180 = vmatpush2.bf16.msra.mxu0 %v3088
      %4181 = vmatprep.subr.bf16.mxu0 0
      %4182 = vmatpush2.bf16.msra.mxu0 %v3087
      %4183 = vmatprep.subr.bf16.mxu0 0
      %4184 = vmatpush2.bf16.msra.mxu0 %v3086
      %4185 = vmatprep.subr.bf16.mxu0 0
      %4186 = vmatpush2.bf16.msra.mxu0 %v3085
      %4187 = vmatprep.subr.bf16.mxu0 0
      %4188 = vmatpush2.bf16.msra.mxu0 %v3084
      %4189 = vmatprep.subr.bf16.mxu0 0
      %4190 = vmatpush2.bf16.msra.mxu0 %v3083
      %4191 = vmatprep.mubr.bf16.mxu0 %v1242
      %4192 = vmatmul.mubr.bf16.gmra.mxu0 %v1241
      %v4193 = vpop.f32.mrf.mxu0
      %v4194 = vadd.f32 %v4153, %v4193
      %v4195 = vpop.f32.mrf.mxu0
      %v4196 = vpop.f32.mrf.mxu0
      %v4197 = vadd.f32 %v4156, %v4196
      %v4198 = vpop.f32.mrf.mxu0
      %4199 = vdwg.mxu0
      %4200 = vmatprep.subr.bf16.mxu0 0
      %4201 = vmatpush1.bf16.msra.mxu0 %v3098
      %4202 = vmatprep.subr.bf16.mxu0 0
      %4203 = vmatpush1.bf16.msra.mxu0 %v3097
      %4204 = vmatprep.subr.bf16.mxu0 0
      %4205 = vmatpush1.bf16.msra.mxu0 %v3096
      %4206 = vmatprep.subr.bf16.mxu0 0
      %4207 = vmatpush1.bf16.msra.mxu0 %v3095
      %4208 = vmatprep.subr.bf16.mxu0 0
      %4209 = vmatpush1.bf16.msra.mxu0 %v3094
      %4210 = vmatprep.subr.bf16.mxu0 0
      %4211 = vmatpush1.bf16.msra.mxu0 %v3093
      %4212 = vmatprep.subr.bf16.mxu0 0
      %4213 = vmatpush1.bf16.msra.mxu0 %v3092
      %4214 = vmatprep.subr.bf16.mxu0 0
      %4215 = vmatpush1.bf16.msra.mxu0 %v3091
      %4216 = vmatprep.subr.bf16.mxu0 0
      %4217 = vmatpush2.bf16.msra.mxu0 %v3106
      %4218 = vmatprep.subr.bf16.mxu0 0
      %4219 = vmatpush2.bf16.msra.mxu0 %v3105
      %4220 = vmatprep.subr.bf16.mxu0 0
      %4221 = vmatpush2.bf16.msra.mxu0 %v3104
      %4222 = vmatprep.subr.bf16.mxu0 0
      %4223 = vmatpush2.bf16.msra.mxu0 %v3103
      %4224 = vmatprep.subr.bf16.mxu0 0
      %4225 = vmatpush2.bf16.msra.mxu0 %v3102
      %4226 = vmatprep.subr.bf16.mxu0 0
      %4227 = vmatpush2.bf16.msra.mxu0 %v3101
      %4228 = vmatprep.subr.bf16.mxu0 0
      %4229 = vmatpush2.bf16.msra.mxu0 %v3100
      %4230 = vmatprep.subr.bf16.mxu0 0
      %4231 = vmatpush2.bf16.msra.mxu0 %v3099
      %4232 = vmatprep.mubr.bf16.mxu0 %v1244
      %4233 = vmatmul.mubr.bf16.gmra.mxu0 %v1243
      %v4234 = vpop.f32.mrf.mxu0
      %v4235 = vadd.f32 %v4194, %v4234
      %v4236 = vpop.f32.mrf.mxu0
      %v4237 = vpop.f32.mrf.mxu0
      %v4238 = vadd.f32 %v4197, %v4237
      %v4239 = vpop.f32.mrf.mxu0
      %4240 = vdwg.mxu0
      %4241 = vmatprep.subr.bf16.mxu0 0
      %4242 = vmatpush1.bf16.msra.mxu0 %v3114
      %4243 = vmatprep.subr.bf16.mxu0 0
      %4244 = vmatpush1.bf16.msra.mxu0 %v3113
      %4245 = vmatprep.subr.bf16.mxu0 0
      %4246 = vmatpush1.bf16.msra.mxu0 %v3112
      %4247 = vmatprep.subr.bf16.mxu0 0
      %4248 = vmatpush1.bf16.msra.mxu0 %v3111
      %4249 = vmatprep.subr.bf16.mxu0 0
      %4250 = vmatpush1.bf16.msra.mxu0 %v3110
      %4251 = vmatprep.subr.bf16.mxu0 0
      %4252 = vmatpush1.bf16.msra.mxu0 %v3109
      %4253 = vmatprep.subr.bf16.mxu0 0
      %4254 = vmatpush1.bf16.msra.mxu0 %v3108
      %4255 = vmatprep.subr.bf16.mxu0 0
      %4256 = vmatpush1.bf16.msra.mxu0 %v3107
      %4257 = vmatprep.subr.bf16.mxu0 0
      %4258 = vmatpush2.bf16.msra.mxu0 %v3122
      %4259 = vmatprep.subr.bf16.mxu0 0
      %4260 = vmatpush2.bf16.msra.mxu0 %v3121
      %4261 = vmatprep.subr.bf16.mxu0 0
      %4262 = vmatpush2.bf16.msra.mxu0 %v3120
      %4263 = vmatprep.subr.bf16.mxu0 0
      %4264 = vmatpush2.bf16.msra.mxu0 %v3119
      %4265 = vmatprep.subr.bf16.mxu0 0
      %4266 = vmatpush2.bf16.msra.mxu0 %v3118
      %4267 = vmatprep.subr.bf16.mxu0 0
      %4268 = vmatpush2.bf16.msra.mxu0 %v3117
      %4269 = vmatprep.subr.bf16.mxu0 0
      %4270 = vmatpush2.bf16.msra.mxu0 %v3116
      %4271 = vmatprep.subr.bf16.mxu0 0
      %4272 = vmatpush2.bf16.msra.mxu0 %v3115
      %4273 = vmatprep.mubr.bf16.mxu0 %v1246
      %4274 = vmatmul.mubr.bf16.gmra.mxu0 %v1245
      %v4275 = vpop.f32.mrf.mxu0
      %v4276 = vadd.f32 %v4235, %v4275
      %v4277 = vpop.f32.mrf.mxu0
      %v4278 = vpop.f32.mrf.mxu0
      %v4279 = vadd.f32 %v4238, %v4278
      %v4280 = vpop.f32.mrf.mxu0
      %4281 = vdwg.mxu0
      %4282 = vmatprep.subr.bf16.mxu0 0
      %4283 = vmatpush1.bf16.msra.mxu0 %v3130
      %4284 = vmatprep.subr.bf16.mxu0 0
      %4285 = vmatpush1.bf16.msra.mxu0 %v3129
      %4286 = vmatprep.subr.bf16.mxu0 0
      %4287 = vmatpush1.bf16.msra.mxu0 %v3128
      %4288 = vmatprep.subr.bf16.mxu0 0
      %4289 = vmatpush1.bf16.msra.mxu0 %v3127
      %4290 = vmatprep.subr.bf16.mxu0 0
      %4291 = vmatpush1.bf16.msra.mxu0 %v3126
      %4292 = vmatprep.subr.bf16.mxu0 0
      %4293 = vmatpush1.bf16.msra.mxu0 %v3125
      %4294 = vmatprep.subr.bf16.mxu0 0
      %4295 = vmatpush1.bf16.msra.mxu0 %v3124
      %4296 = vmatprep.subr.bf16.mxu0 0
      %4297 = vmatpush1.bf16.msra.mxu0 %v3123
      %4298 = vmatprep.subr.bf16.mxu0 0
      %4299 = vmatpush2.bf16.msra.mxu0 %v3138
      %4300 = vmatprep.subr.bf16.mxu0 0
      %4301 = vmatpush2.bf16.msra.mxu0 %v3137
      %4302 = vmatprep.subr.bf16.mxu0 0
      %4303 = vmatpush2.bf16.msra.mxu0 %v3136
      %4304 = vmatprep.subr.bf16.mxu0 0
      %4305 = vmatpush2.bf16.msra.mxu0 %v3135
      %4306 = vmatprep.subr.bf16.mxu0 0
      %4307 = vmatpush2.bf16.msra.mxu0 %v3134
      %4308 = vmatprep.subr.bf16.mxu0 0
      %4309 = vmatpush2.bf16.msra.mxu0 %v3133
      %4310 = vmatprep.subr.bf16.mxu0 0
      %4311 = vmatpush2.bf16.msra.mxu0 %v3132
      %4312 = vmatprep.subr.bf16.mxu0 0
      %4313 = vmatpush2.bf16.msra.mxu0 %v3131
      %4314 = vmatprep.mubr.bf16.mxu0 %v1248
      %4315 = vmatmul.mubr.bf16.gmra.mxu0 %v1247
      %v4316 = vpop.f32.mrf.mxu0
      %v4317 = vadd.f32 %v4276, %v4316
      %v4318 = vpop.f32.mrf.mxu0
      %v4319 = vpop.f32.mrf.mxu0
      %v4320 = vadd.f32 %v4279, %v4319
      %v4321 = vpop.f32.mrf.mxu0
      %4322 = vdwg.mxu0
      %4323 = vmatprep.subr.bf16.mxu0 0
      %4324 = vmatpush1.bf16.msra.mxu0 %v3146
      %4325 = vmatprep.subr.bf16.mxu0 0
      %4326 = vmatpush1.bf16.msra.mxu0 %v3145
      %4327 = vmatprep.subr.bf16.mxu0 0
      %4328 = vmatpush1.bf16.msra.mxu0 %v3144
      %4329 = vmatprep.subr.bf16.mxu0 0
      %4330 = vmatpush1.bf16.msra.mxu0 %v3143
      %4331 = vmatprep.subr.bf16.mxu0 0
      %4332 = vmatpush1.bf16.msra.mxu0 %v3142
      %4333 = vmatprep.subr.bf16.mxu0 0
      %4334 = vmatpush1.bf16.msra.mxu0 %v3141
      %4335 = vmatprep.subr.bf16.mxu0 0
      %4336 = vmatpush1.bf16.msra.mxu0 %v3140
      %4337 = vmatprep.subr.bf16.mxu0 0
      %4338 = vmatpush1.bf16.msra.mxu0 %v3139
      %4339 = vmatprep.subr.bf16.mxu0 0
      %4340 = vmatpush2.bf16.msra.mxu0 %v3154
      %4341 = vmatprep.subr.bf16.mxu0 0
      %4342 = vmatpush2.bf16.msra.mxu0 %v3153
      %4343 = vmatprep.subr.bf16.mxu0 0
      %4344 = vmatpush2.bf16.msra.mxu0 %v3152
      %4345 = vmatprep.subr.bf16.mxu0 0
      %4346 = vmatpush2.bf16.msra.mxu0 %v3151
      %4347 = vmatprep.subr.bf16.mxu0 0
      %4348 = vmatpush2.bf16.msra.mxu0 %v3150
      %4349 = vmatprep.subr.bf16.mxu0 0
      %4350 = vmatpush2.bf16.msra.mxu0 %v3149
      %4351 = vmatprep.subr.bf16.mxu0 0
      %4352 = vmatpush2.bf16.msra.mxu0 %v3148
      %4353 = vmatprep.subr.bf16.mxu0 0
      %4354 = vmatpush2.bf16.msra.mxu0 %v3147
      %4355 = vmatprep.mubr.bf16.mxu0 %v1250
      %4356 = vmatmul.mubr.bf16.gmra.mxu0 %v1249
      %v4357 = vpop.f32.mrf.mxu0
      %v4358 = vadd.f32 %v4317, %v4357
      %v4359 = vpop.f32.mrf.mxu0
      %v4360 = vpop.f32.mrf.mxu0
      %v4361 = vadd.f32 %v4320, %v4360
      %v4362 = vpop.f32.mrf.mxu0
      %4363 = vdwg.mxu0
      %4364 = vmatprep.subr.bf16.mxu0 0
      %4365 = vmatpush1.bf16.msra.mxu0 %v3162
      %4366 = vmatprep.subr.bf16.mxu0 0
      %4367 = vmatpush1.bf16.msra.mxu0 %v3161
      %4368 = vmatprep.subr.bf16.mxu0 0
      %4369 = vmatpush1.bf16.msra.mxu0 %v3160
      %4370 = vmatprep.subr.bf16.mxu0 0
      %4371 = vmatpush1.bf16.msra.mxu0 %v3159
      %4372 = vmatprep.subr.bf16.mxu0 0
      %4373 = vmatpush1.bf16.msra.mxu0 %v3158
      %4374 = vmatprep.subr.bf16.mxu0 0
      %4375 = vmatpush1.bf16.msra.mxu0 %v3157
      %4376 = vmatprep.subr.bf16.mxu0 0
      %4377 = vmatpush1.bf16.msra.mxu0 %v3156
      %4378 = vmatprep.subr.bf16.mxu0 0
      %4379 = vmatpush1.bf16.msra.mxu0 %v3155
      %4380 = vmatprep.subr.bf16.mxu0 0
      %4381 = vmatpush2.bf16.msra.mxu0 %v3170
      %4382 = vmatprep.subr.bf16.mxu0 0
      %4383 = vmatpush2.bf16.msra.mxu0 %v3169
      %4384 = vmatprep.subr.bf16.mxu0 0
      %4385 = vmatpush2.bf16.msra.mxu0 %v3168
      %4386 = vmatprep.subr.bf16.mxu0 0
      %4387 = vmatpush2.bf16.msra.mxu0 %v3167
      %4388 = vmatprep.subr.bf16.mxu0 0
      %4389 = vmatpush2.bf16.msra.mxu0 %v3166
      %4390 = vmatprep.subr.bf16.mxu0 0
      %4391 = vmatpush2.bf16.msra.mxu0 %v3165
      %4392 = vmatprep.subr.bf16.mxu0 0
      %4393 = vmatpush2.bf16.msra.mxu0 %v3164
      %4394 = vmatprep.subr.bf16.mxu0 0
      %4395 = vmatpush2.bf16.msra.mxu0 %v3163
      %4396 = vmatprep.mubr.bf16.mxu0 %v1252
      %4397 = vmatmul.mubr.bf16.gmra.mxu0 %v1251
      %v4398 = vpop.f32.mrf.mxu0
      %v4399 = vadd.f32 %v4358, %v4398
      %v4400 = vpop.f32.mrf.mxu0
      %v4401 = vpop.f32.mrf.mxu0
      %v4402 = vadd.f32 %v4361, %v4401
      %v4403 = vpop.f32.mrf.mxu0
      %4404 = vdwg.mxu0
      %4405 = vmatprep.subr.bf16.mxu0 0
      %4406 = vmatpush1.bf16.msra.mxu0 %v3178
      %4407 = vmatprep.subr.bf16.mxu0 0
      %4408 = vmatpush1.bf16.msra.mxu0 %v3177
      %4409 = vmatprep.subr.bf16.mxu0 0
      %4410 = vmatpush1.bf16.msra.mxu0 %v3176
      %4411 = vmatprep.subr.bf16.mxu0 0
      %4412 = vmatpush1.bf16.msra.mxu0 %v3175
      %4413 = vmatprep.subr.bf16.mxu0 0
      %4414 = vmatpush1.bf16.msra.mxu0 %v3174
      %4415 = vmatprep.subr.bf16.mxu0 0
      %4416 = vmatpush1.bf16.msra.mxu0 %v3173
      %4417 = vmatprep.subr.bf16.mxu0 0
      %4418 = vmatpush1.bf16.msra.mxu0 %v3172
      %4419 = vmatprep.subr.bf16.mxu0 0
      %4420 = vmatpush1.bf16.msra.mxu0 %v3171
      %4421 = vmatprep.subr.bf16.mxu0 0
      %4422 = vmatpush2.bf16.msra.mxu0 %v3186
      %4423 = vmatprep.subr.bf16.mxu0 0
      %4424 = vmatpush2.bf16.msra.mxu0 %v3185
      %4425 = vmatprep.subr.bf16.mxu0 0
      %4426 = vmatpush2.bf16.msra.mxu0 %v3184
      %4427 = vmatprep.subr.bf16.mxu0 0
      %4428 = vmatpush2.bf16.msra.mxu0 %v3183
      %4429 = vmatprep.subr.bf16.mxu0 0
      %4430 = vmatpush2.bf16.msra.mxu0 %v3182
      %4431 = vmatprep.subr.bf16.mxu0 0
      %4432 = vmatpush2.bf16.msra.mxu0 %v3181
      %4433 = vmatprep.subr.bf16.mxu0 0
      %4434 = vmatpush2.bf16.msra.mxu0 %v3180
      %4435 = vmatprep.subr.bf16.mxu0 0
      %4436 = vmatpush2.bf16.msra.mxu0 %v3179
      %4437 = vmatprep.mubr.bf16.mxu0 %v1254
      %4438 = vmatmul.mubr.bf16.gmra.mxu0 %v1253
      %v4439 = vpop.f32.mrf.mxu0
      %v4440 = vadd.f32 %v4399, %v4439
      %v4441 = vpop.f32.mrf.mxu0
      %v4442 = vpop.f32.mrf.mxu0
      %v4443 = vadd.f32 %v4402, %v4442
      %v4444 = vpop.f32.mrf.mxu0
      %4445 = vdwg.mxu0
      %4446 = vmatprep.subr.bf16.mxu0 0
      %4447 = vmatpush1.bf16.msra.mxu0 %v3194
      %4448 = vmatprep.subr.bf16.mxu0 0
      %4449 = vmatpush1.bf16.msra.mxu0 %v3193
      %4450 = vmatprep.subr.bf16.mxu0 0
      %4451 = vmatpush1.bf16.msra.mxu0 %v3192
      %4452 = vmatprep.subr.bf16.mxu0 0
      %4453 = vmatpush1.bf16.msra.mxu0 %v3191
      %4454 = vmatprep.subr.bf16.mxu0 0
      %4455 = vmatpush1.bf16.msra.mxu0 %v3190
      %4456 = vmatprep.subr.bf16.mxu0 0
      %4457 = vmatpush1.bf16.msra.mxu0 %v3189
      %4458 = vmatprep.subr.bf16.mxu0 0
      %4459 = vmatpush1.bf16.msra.mxu0 %v3188
      %4460 = vmatprep.subr.bf16.mxu0 0
      %4461 = vmatpush1.bf16.msra.mxu0 %v3187
      %4462 = vmatprep.subr.bf16.mxu0 0
      %4463 = vmatpush2.bf16.msra.mxu0 %v3202
      %4464 = vmatprep.subr.bf16.mxu0 0
      %4465 = vmatpush2.bf16.msra.mxu0 %v3201
      %4466 = vmatprep.subr.bf16.mxu0 0
      %4467 = vmatpush2.bf16.msra.mxu0 %v3200
      %4468 = vmatprep.subr.bf16.mxu0 0
      %4469 = vmatpush2.bf16.msra.mxu0 %v3199
      %4470 = vmatprep.subr.bf16.mxu0 0
      %4471 = vmatpush2.bf16.msra.mxu0 %v3198
      %4472 = vmatprep.subr.bf16.mxu0 0
      %4473 = vmatpush2.bf16.msra.mxu0 %v3197
      %4474 = vmatprep.subr.bf16.mxu0 0
      %4475 = vmatpush2.bf16.msra.mxu0 %v3196
      %4476 = vmatprep.subr.bf16.mxu0 0
      %4477 = vmatpush2.bf16.msra.mxu0 %v3195
      %4478 = vmatprep.mubr.bf16.mxu0 %v1256
      %4479 = vmatmul.mubr.bf16.gmra.mxu0 %v1255
      %v4480 = vpop.f32.mrf.mxu0
      %v4481 = vadd.f32 %v4440, %v4480
      %v4482 = vpop.f32.mrf.mxu0
      %v4483 = vpop.f32.mrf.mxu0
      %v4484 = vadd.f32 %v4443, %v4483
      %v4485 = vpop.f32.mrf.mxu0
      %4486 = vdwg.mxu0
      %4487 = vmatprep.subr.bf16.mxu0 0
      %4488 = vmatpush1.bf16.msra.mxu0 %v3210
      %4489 = vmatprep.subr.bf16.mxu0 0
      %4490 = vmatpush1.bf16.msra.mxu0 %v3209
      %4491 = vmatprep.subr.bf16.mxu0 0
      %4492 = vmatpush1.bf16.msra.mxu0 %v3208
      %4493 = vmatprep.subr.bf16.mxu0 0
      %4494 = vmatpush1.bf16.msra.mxu0 %v3207
      %4495 = vmatprep.subr.bf16.mxu0 0
      %4496 = vmatpush1.bf16.msra.mxu0 %v3206
      %4497 = vmatprep.subr.bf16.mxu0 0
      %4498 = vmatpush1.bf16.msra.mxu0 %v3205
      %4499 = vmatprep.subr.bf16.mxu0 0
      %4500 = vmatpush1.bf16.msra.mxu0 %v3204
      %4501 = vmatprep.subr.bf16.mxu0 0
      %4502 = vmatpush1.bf16.msra.mxu0 %v3203
      %4503 = vmatprep.subr.bf16.mxu0 0
      %4504 = vmatpush2.bf16.msra.mxu0 %v3218
      %4505 = vmatprep.subr.bf16.mxu0 0
      %4506 = vmatpush2.bf16.msra.mxu0 %v3217
      %4507 = vmatprep.subr.bf16.mxu0 0
      %4508 = vmatpush2.bf16.msra.mxu0 %v3216
      %4509 = vmatprep.subr.bf16.mxu0 0
      %4510 = vmatpush2.bf16.msra.mxu0 %v3215
      %4511 = vmatprep.subr.bf16.mxu0 0
      %4512 = vmatpush2.bf16.msra.mxu0 %v3214
      %4513 = vmatprep.subr.bf16.mxu0 0
      %4514 = vmatpush2.bf16.msra.mxu0 %v3213
      %4515 = vmatprep.subr.bf16.mxu0 0
      %4516 = vmatpush2.bf16.msra.mxu0 %v3212
      %4517 = vmatprep.subr.bf16.mxu0 0
      %4518 = vmatpush2.bf16.msra.mxu0 %v3211
      %4519 = vmatprep.mubr.bf16.mxu0 %v1258
      %4520 = vmatmul.mubr.bf16.gmra.mxu0 %v1257
      %v4521 = vpop.f32.mrf.mxu0
      %v4522 = vadd.f32 %v4481, %v4521
      %v4523 = vpop.f32.mrf.mxu0
      %v4524 = vpop.f32.mrf.mxu0
      %v4525 = vadd.f32 %v4484, %v4524
      %v4526 = vpop.f32.mrf.mxu0
      %4527 = vdwg.mxu0
      %4528 = vmatprep.subr.bf16.mxu0 0
      %4529 = vmatpush1.bf16.msra.mxu0 %v3226
      %4530 = vmatprep.subr.bf16.mxu0 0
      %4531 = vmatpush1.bf16.msra.mxu0 %v3225
      %4532 = vmatprep.subr.bf16.mxu0 0
      %4533 = vmatpush1.bf16.msra.mxu0 %v3224
      %4534 = vmatprep.subr.bf16.mxu0 0
      %4535 = vmatpush1.bf16.msra.mxu0 %v3223
      %4536 = vmatprep.subr.bf16.mxu0 0
      %4537 = vmatpush1.bf16.msra.mxu0 %v3222
      %4538 = vmatprep.subr.bf16.mxu0 0
      %4539 = vmatpush1.bf16.msra.mxu0 %v3221
      %4540 = vmatprep.subr.bf16.mxu0 0
      %4541 = vmatpush1.bf16.msra.mxu0 %v3220
      %4542 = vmatprep.subr.bf16.mxu0 0
      %4543 = vmatpush1.bf16.msra.mxu0 %v3219
      %4544 = vmatprep.subr.bf16.mxu0 0
      %4545 = vmatpush2.bf16.msra.mxu0 %v3234
      %4546 = vmatprep.subr.bf16.mxu0 0
      %4547 = vmatpush2.bf16.msra.mxu0 %v3233
      %4548 = vmatprep.subr.bf16.mxu0 0
      %4549 = vmatpush2.bf16.msra.mxu0 %v3232
      %4550 = vmatprep.subr.bf16.mxu0 0
      %4551 = vmatpush2.bf16.msra.mxu0 %v3231
      %4552 = vmatprep.subr.bf16.mxu0 0
      %4553 = vmatpush2.bf16.msra.mxu0 %v3230
      %4554 = vmatprep.subr.bf16.mxu0 0
      %4555 = vmatpush2.bf16.msra.mxu0 %v3229
      %4556 = vmatprep.subr.bf16.mxu0 0
      %4557 = vmatpush2.bf16.msra.mxu0 %v3228
      %4558 = vmatprep.subr.bf16.mxu0 0
      %4559 = vmatpush2.bf16.msra.mxu0 %v3227
      %4560 = vmatprep.mubr.bf16.mxu0 %v1260
      %4561 = vmatmul.mubr.bf16.gmra.mxu0 %v1259
      %v4562 = vpop.f32.mrf.mxu0
      %v4563 = vadd.f32 %v4522, %v4562
      %v4564 = vpop.f32.mrf.mxu0
      %v4565 = vpop.f32.mrf.mxu0
      %v4566 = vadd.f32 %v4525, %v4565
      %v4567 = vpop.f32.mrf.mxu0
      %4568 = vdwg.mxu0
      %4569 = vmatprep.subr.bf16.mxu0 0
      %4570 = vmatpush1.bf16.msra.mxu0 %v3242
      %4571 = vmatprep.subr.bf16.mxu0 0
      %4572 = vmatpush1.bf16.msra.mxu0 %v3241
      %4573 = vmatprep.subr.bf16.mxu0 0
      %4574 = vmatpush1.bf16.msra.mxu0 %v3240
      %4575 = vmatprep.subr.bf16.mxu0 0
      %4576 = vmatpush1.bf16.msra.mxu0 %v3239
      %4577 = vmatprep.subr.bf16.mxu0 0
      %4578 = vmatpush1.bf16.msra.mxu0 %v3238
      %4579 = vmatprep.subr.bf16.mxu0 0
      %4580 = vmatpush1.bf16.msra.mxu0 %v3237
      %4581 = vmatprep.subr.bf16.mxu0 0
      %4582 = vmatpush1.bf16.msra.mxu0 %v3236
      %4583 = vmatprep.subr.bf16.mxu0 0
      %4584 = vmatpush1.bf16.msra.mxu0 %v3235
      %4585 = vmatprep.subr.bf16.mxu0 0
      %4586 = vmatpush2.bf16.msra.mxu0 %v3250
      %4587 = vmatprep.subr.bf16.mxu0 0
      %4588 = vmatpush2.bf16.msra.mxu0 %v3249
      %4589 = vmatprep.subr.bf16.mxu0 0
      %4590 = vmatpush2.bf16.msra.mxu0 %v3248
      %4591 = vmatprep.subr.bf16.mxu0 0
      %4592 = vmatpush2.bf16.msra.mxu0 %v3247
      %4593 = vmatprep.subr.bf16.mxu0 0
      %4594 = vmatpush2.bf16.msra.mxu0 %v3246
      %4595 = vmatprep.subr.bf16.mxu0 0
      %4596 = vmatpush2.bf16.msra.mxu0 %v3245
      %4597 = vmatprep.subr.bf16.mxu0 0
      %4598 = vmatpush2.bf16.msra.mxu0 %v3244
      %4599 = vmatprep.subr.bf16.mxu0 0
      %4600 = vmatpush2.bf16.msra.mxu0 %v3243
      %4601 = vmatprep.mubr.bf16.mxu0 %v1262
      %4602 = vmatmul.mubr.bf16.gmra.mxu0 %v1261
      %v4603 = vpop.f32.mrf.mxu0
      %v4604 = vadd.f32 %v4563, %v4603
      %v4605 = vpop.f32.mrf.mxu0
      %v4606 = vpop.f32.mrf.mxu0
      %v4607 = vadd.f32 %v4566, %v4606
      %v4608 = vpop.f32.mrf.mxu0
      %4609 = vdwg.mxu0
      %4610 = vmatprep.subr.bf16.mxu0 0
      %4611 = vmatpush1.bf16.msra.mxu0 %v3258
      %4612 = vmatprep.subr.bf16.mxu0 0
      %4613 = vmatpush1.bf16.msra.mxu0 %v3257
      %4614 = vmatprep.subr.bf16.mxu0 0
      %4615 = vmatpush1.bf16.msra.mxu0 %v3256
      %4616 = vmatprep.subr.bf16.mxu0 0
      %4617 = vmatpush1.bf16.msra.mxu0 %v3255
      %4618 = vmatprep.subr.bf16.mxu0 0
      %4619 = vmatpush1.bf16.msra.mxu0 %v3254
      %4620 = vmatprep.subr.bf16.mxu0 0
      %4621 = vmatpush1.bf16.msra.mxu0 %v3253
      %4622 = vmatprep.subr.bf16.mxu0 0
      %4623 = vmatpush1.bf16.msra.mxu0 %v3252
      %4624 = vmatprep.subr.bf16.mxu0 0
      %4625 = vmatpush1.bf16.msra.mxu0 %v3251
      %4626 = vmatprep.subr.bf16.mxu0 0
      %4627 = vmatpush2.bf16.msra.mxu0 %v3266
      %4628 = vmatprep.subr.bf16.mxu0 0
      %4629 = vmatpush2.bf16.msra.mxu0 %v3265
      %4630 = vmatprep.subr.bf16.mxu0 0
      %4631 = vmatpush2.bf16.msra.mxu0 %v3264
      %4632 = vmatprep.subr.bf16.mxu0 0
      %4633 = vmatpush2.bf16.msra.mxu0 %v3263
      %4634 = vmatprep.subr.bf16.mxu0 0
      %4635 = vmatpush2.bf16.msra.mxu0 %v3262
      %4636 = vmatprep.subr.bf16.mxu0 0
      %4637 = vmatpush2.bf16.msra.mxu0 %v3261
      %4638 = vmatprep.subr.bf16.mxu0 0
      %4639 = vmatpush2.bf16.msra.mxu0 %v3260
      %4640 = vmatprep.subr.bf16.mxu0 0
      %4641 = vmatpush2.bf16.msra.mxu0 %v3259
      %4642 = vmatprep.mubr.bf16.mxu0 %v1264
      %4643 = vmatmul.mubr.bf16.gmra.mxu0 %v1263
      %v4644 = vpop.f32.mrf.mxu0
      %v4645 = vadd.f32 %v4604, %v4644
      %v4646 = vpop.f32.mrf.mxu0
      %v4647 = vpop.f32.mrf.mxu0
      %v4648 = vadd.f32 %v4607, %v4647
      %v4649 = vpop.f32.mrf.mxu0
      %4650 = vdwg.mxu0
      %4651 = vmatprep.subr.bf16.mxu0 0
      %4652 = vmatpush1.bf16.msra.mxu0 %v3274
      %4653 = vmatprep.subr.bf16.mxu0 0
      %4654 = vmatpush1.bf16.msra.mxu0 %v3273
      %4655 = vmatprep.subr.bf16.mxu0 0
      %4656 = vmatpush1.bf16.msra.mxu0 %v3272
      %4657 = vmatprep.subr.bf16.mxu0 0
      %4658 = vmatpush1.bf16.msra.mxu0 %v3271
      %4659 = vmatprep.subr.bf16.mxu0 0
      %4660 = vmatpush1.bf16.msra.mxu0 %v3270
      %4661 = vmatprep.subr.bf16.mxu0 0
      %4662 = vmatpush1.bf16.msra.mxu0 %v3269
      %4663 = vmatprep.subr.bf16.mxu0 0
      %4664 = vmatpush1.bf16.msra.mxu0 %v3268
      %4665 = vmatprep.subr.bf16.mxu0 0
      %4666 = vmatpush1.bf16.msra.mxu0 %v3267
      %4667 = vmatprep.subr.bf16.mxu0 0
      %4668 = vmatpush2.bf16.msra.mxu0 0
      %4669 = vmatprep.subr.bf16.mxu0 0
      %4670 = vmatpush2.bf16.msra.mxu0 0
      %4671 = vmatprep.subr.bf16.mxu0 0
      %4672 = vmatpush2.bf16.msra.mxu0 0
      %4673 = vmatprep.subr.bf16.mxu0 0
      %4674 = vmatpush2.bf16.msra.mxu0 0
      %4675 = vmatprep.subr.bf16.mxu0 0
      %4676 = vmatpush2.bf16.msra.mxu0 0
      %4677 = vmatprep.subr.bf16.mxu0 0
      %4678 = vmatpush2.bf16.msra.mxu0 0
      %4679 = vmatprep.subr.bf16.mxu0 0
      %4680 = vmatpush2.bf16.msra.mxu0 0
      %4681 = vmatprep.subr.bf16.mxu0 0
      %4682 = vmatpush2.bf16.msra.mxu0 0
      %4683 = vmatprep.mubr.bf16.mxu0 0
      %4684 = vmatmul.mubr.bf16.gmra.mxu0 %v1265
      %v4685 = vpop.f32.mrf.mxu0
      %v4686 = vadd.f32 %v4645, %v4685
      %v4687 = vpop.f32.mrf.mxu0
      %v4688 = vpop.f32.mrf.mxu0
      %v4689 = vadd.f32 %v4648, %v4688
      %v4690 = vpop.f32.mrf.mxu0
      %4691 = vdwg.mxu0
      %v4692 = vmax.f32 %v4686, 0.0
      %v4693 = vmax.f32 %v4689, 0.0
      %v4694 = vpack.c.bf16 %v4693, %v4692
      %v4696 = vunpack.c.l.b16 %v4694
      %v4697 = vunpack.c.h.b16 %v4694
      %v4698 = vpack.c.b16 %v4696, %v4696
      %v4699 = vpack.c.b16 %v4697, %v4697
      %4702 = vst [vmem:[%s225] sm:$0xf] %v4698
      %4703 = vst [vmem:[%s225 + $0x4] sm:$0xf] %v4699
      %s4704 = smul.u32 2, %s18
      %p4705 = scmp.lt.s32.totalorder %s4704, 3
      %s4706 = scalar_select %p4705, %s4704, 3
      %s4707 = smul.addr %s4706, 4
      %s4708 = scalar_lea.vmem %s3, %s4707
      // Predicated region
      $region33: #{faster_rcnn_forward.8} parent=31 // pred_check
        %p4709 = pneg %p119
      $region34: #{faster_rcnn_forward.8} parent=31 // pred_check_branch
        %4711 = sbr.rel (%p4709) target = $region36
      $region35: #{faster_rcnn_forward.8} parent=31 // pred_region
        %s4712 = smul.u32 2, %s18
      $region36: #{faster_rcnn_forward.8} parent=31 // pred_fallthru
        _
    $region32: #{faster_rcnn_forward.8} parent=5 // pred_fallthru
      _
    %p4713 = scmp.le.s32.totalorder 2, %s9
    // Predicated region
    $region37: #{faster_rcnn_forward.8} parent=5 // pred_check
      %p4714 = pneg %p4713
    $region38: #{faster_rcnn_forward.8} parent=5 // pred_check_branch
      %4716 = sbr.rel (%p4714) target = $region40
    $region39: #{faster_rcnn_forward.8} parent=5 // pred_region
      %s4717 = ssub.s32 %s9, 2
      // Predicated region
      $region41: #{faster_rcnn_forward.8} parent=39 // pred_check
        %p4718 = pneg %p125
      $region42: #{faster_rcnn_forward.8} parent=39 // pred_check_branch
        %4720 = sbr.rel (%p4718) target = $region44
      $region43: #{faster_rcnn_forward.8} parent=39 // pred_region
        %s4721 = smul.u32 2, %s20
        %p4722 = scmp.lt.s32.totalorder %s4721, 3
        %s4723 = scalar_select %p4722, %s4721, 3
        %s4724 = smul.addr %s4723, 4
        %s4725 = scalar_lea.vmem %s3, %s4724
      $region44: #{faster_rcnn_forward.8} parent=39 // pred_fallthru
        _
    $region40: #{faster_rcnn_forward.8} parent=5 // pred_fallthru
      _
  $region6: #{faster_rcnn_forward.8} parent=0 // loop_footer
    %s13 = sadd.s32 1, %s9
  $region7: #{faster_rcnn_forward.8} parent=0 // loop_footer_branch
    %8 = sbr.rel target = $region3
  $region8: #{faster_rcnn_forward.8} parent=0 // loop_exit
    _

</llo_original>
